<compile_context>
chip_gen: v7x
topology: tpu7x:2x2x1
jax: 0.10.0
libtpu: 0.0.40
codegen_flags: <defaults>
</compile_context>

<pallas_src>
import functools

import jax
import jax.numpy as jnp
from jax import lax
from jax.experimental import pallas as pl
from jax.experimental.pallas import tpu as pltpu


# ---------------------------------------------------------------------------
# Pallas kernel: fused  out = act(X @ W + b)  for one (tm, K) x (K, N) tile.
# ---------------------------------------------------------------------------
def _gemm_bias_act_kernel(x_ref, w_ref, b_ref, o_ref, *, activation):
    acc = jnp.dot(x_ref[...], w_ref[...], preferred_element_type=jnp.float32)
    acc = acc + b_ref[...]
    if activation:  # ELU(alpha=1): x if x > 0 else exp(x) - 1
        acc = jnp.where(acc > 0, acc, jnp.exp(acc) - 1.0)
    o_ref[...] = acc.astype(o_ref.dtype)


def _choose_tile_m(m, k, itemsize, budget_bytes=4 * 1024 * 1024):
    """Byte-budget, dtype-aware tile along M (multiple of 8 or full dim)."""
    if m <= 8 or m % 8 != 0:
        return m  # full-dim block satisfies the (8,128) rule
    rows = max(8, budget_bytes // max(1, k * itemsize))
    rows = (rows // 8) * 8
    return min(m, rows)


def gemm_bias_act(x, w, b, activation):
    """x: (M, K), w: (K, N), b: (N,)  ->  act(x @ w + b)  (float32)."""
    m, k = x.shape
    n = w.shape[1]
    tm = _choose_tile_m(m, k, x.dtype.itemsize)
    grid_m = pl.cdiv(m, tm)
    b2 = b.reshape(1, n)

    return pl.pallas_call(
        functools.partial(_gemm_bias_act_kernel, activation=activation),
        out_shape=jax.ShapeDtypeStruct((m, n), x.dtype),
        grid_spec=pltpu.PrefetchScalarGridSpec(
            num_scalar_prefetch=0,
            grid=(grid_m,),
            in_specs=[
                pl.BlockSpec((tm, k), lambda i: (i, 0)),   # X tile
                pl.BlockSpec((k, n), lambda i: (0, 0)),    # W resident
                pl.BlockSpec((1, n), lambda i: (0, 0)),    # bias resident
            ],
            out_specs=pl.BlockSpec((tm, n), lambda i: (i, 0)),
        ),
        compiler_params=pltpu.CompilerParams(
            dimension_semantics=("parallel",),
            vmem_limit_bytes=32 * 1024 * 1024,  # safe on v5e/v6e/v7x for these tiles
        ),
    )(x, w, b2)


# ---------------------------------------------------------------------------
# Conv layers expressed through the fused GEMM kernel (im2col is XLA glue).
# ---------------------------------------------------------------------------
def _im2col(x, k, stride, pad):
    n, c, h, w = x.shape
    xp = jnp.pad(x, ((0, 0), (0, 0), (pad, pad), (pad, pad))) if pad else x
    oh = (h + 2 * pad - k) // stride + 1
    ow = (w + 2 * pad - k) // stride + 1
    cols = []
    for di in range(k):
        for dj in range(k):
            cols.append(xp[:, :, di:di + stride * oh:stride, dj:dj + stride * ow:stride])
    cols = jnp.stack(cols, axis=2)                      # (N, C, k*k, OH, OW)
    cols = cols.transpose(0, 3, 4, 1, 2).reshape(n * oh * ow, c * k * k)
    return cols, oh, ow


def conv2d(x, w, b, stride, pad, activation):
    """PyTorch Conv2d (NCHW input, OIHW weight) via im2col + fused Pallas GEMM."""
    cout, cin, kh, kw = w.shape
    n = x.shape[0]
    cols, oh, ow = _im2col(x, kh, stride, pad)
    w2 = w.reshape(cout, cin * kh * kw).T               # (Cin*k*k, Cout)
    y = gemm_bias_act(cols, w2, b, activation)          # (N*OH*OW, Cout)
    return y.reshape(n, oh, ow, cout).transpose(0, 3, 1, 2)


def conv_transpose2d(x, w, b, stride, pad, activation):
    """PyTorch ConvTranspose2d (weight (Cin, Cout, kH, kW)) as an equivalent
    stride-1 conv on the zero-dilated input with the flipped/transposed kernel."""
    n, cin, h, wd = x.shape
    _, cout, kh, kw = w.shape
    xd = jnp.zeros((n, cin, (h - 1) * stride + 1, (wd - 1) * stride + 1), x.dtype)
    xd = xd.at[:, :, ::stride, ::stride].set(x)
    w_conv = jnp.flip(jnp.transpose(w, (1, 0, 2, 3)), axis=(2, 3))  # (Cout, Cin, k, k)
    return conv2d(xd, w_conv, b, stride=1, pad=kh - 1 - pad, activation=activation)


def view(x, shape):
    # Per perf feedback: torch .view on contiguous tensors is metadata-only,
    # and so is jnp.reshape — no Pallas copy kernel, zero HBM traffic.
    return jnp.reshape(x, shape)


# ---------------------------------------------------------------------------
# DAE: parameters + forward pass
# ---------------------------------------------------------------------------
def init_dae_params(key, in_size, encoder_sizes, decoder_sizes, bottleneck):
    enc_sizes = [in_size] + list(encoder_sizes)
    dec_sizes = list(decoder_sizes) + [in_size]
    k = 4
    params = {"enc_conv": [], "dec_conv": []}
    keys = iter(jax.random.split(key, 2 * (len(enc_sizes) + len(dec_sizes)) + 8))

    for ci, co in zip(enc_sizes, enc_sizes[1:]):
        fan_in = ci * k * k
        w = jax.random.normal(next(keys), (co, ci, k, k), jnp.float32) / jnp.sqrt(fan_in)
        bb = jax.random.normal(next(keys), (co,), jnp.float32) * 0.01
        params["enc_conv"].append((w, bb))

    fan_in = 5 * 5 * enc_sizes[-1]
    params["enc_lin"] = (
        jax.random.normal(next(keys), (fan_in, bottleneck), jnp.float32) / jnp.sqrt(fan_in),
        jax.random.normal(next(keys), (bottleneck,), jnp.float32) * 0.01,
    )
    fan_out = 5 * 5 * dec_sizes[0]
    params["dec_lin"] = (
        jax.random.normal(next(keys), (bottleneck, fan_out), jnp.float32) / jnp.sqrt(bottleneck),
        jax.random.normal(next(keys), (fan_out,), jnp.float32) * 0.01,
    )

    for ci, co in zip(dec_sizes, dec_sizes[1:]):
        fan_in = ci * k * k
        w = jax.random.normal(next(keys), (ci, co, k, k), jnp.float32) / jnp.sqrt(fan_in)
        bb = jax.random.normal(next(keys), (co,), jnp.float32) * 0.01
        params["dec_conv"].append((w, bb))
    return params


def dae_forward(params, x, encoder_activation, decoder_activation):
    # ---- encoder: down_conv_block* -> Flatten -> Linear ----
    h = x
    for (w, b), act in zip(params["enc_conv"], encoder_activation):
        h = conv2d(h, w, b, stride=2, pad=1, activation=act)
    h = view(h, (h.shape[0], -1))                       # nn.Flatten (metadata-only)
    wl, bl = params["enc_lin"]
    h = gemm_bias_act(h, wl, bl, activation=False)

    # ---- decoder: Linear -> View(-1,64,5,5) -> up_conv_block* ----
    wl, bl = params["dec_lin"]
    d = gemm_bias_act(h, wl, bl, activation=False)
    d = view(d, (-1, 64, 5, 5))                         # View module (metadata-only)
    for (w, b), act in zip(params["dec_conv"], decoder_activation):
        d = conv_transpose2d(d, w, b, stride=2, pad=1, activation=act)
    return d


# ---------------------------------------------------------------------------
# Pure-JAX reference (lax convs) for a sanity check of the Pallas path.
# ---------------------------------------------------------------------------
def _elu(x):
    return jnp.where(x > 0, x, jnp.exp(x) - 1.0)


def _ref_conv2d(x, w, b, s, p, act):
    y = lax.conv_general_dilated(x, w, (s, s), [(p, p), (p, p)],
                                 dimension_numbers=("NCHW", "OIHW", "NCHW"))
    y = y + b[None, :, None, None]
    return _elu(y) if act else y


def _ref_conv_transpose2d(x, w, b, s, p, act):
    kh, kw = w.shape[2], w.shape[3]
    wk = jnp.flip(jnp.transpose(w, (1, 0, 2, 3)), axis=(2, 3))
    y = lax.conv_general_dilated(x, wk, (1, 1),
                                 [(kh - 1 - p, kh - 1 - p), (kw - 1 - p, kw - 1 - p)],
                                 lhs_dilation=(s, s),
                                 dimension_numbers=("NCHW", "OIHW", "NCHW"))
    y = y + b[None, :, None, None]
    return _elu(y) if act else y


def ref_dae_forward(params, x, enc_act, dec_act):
    h = x
    for (w, b), a in zip(params["enc_conv"], enc_act):
        h = _ref_conv2d(h, w, b, 2, 1, a)
    h = h.reshape(h.shape[0], -1)
    wl, bl = params["enc_lin"]
    h = h @ wl + bl
    wl, bl = params["dec_lin"]
    d = h @ wl + bl
    d = d.reshape(-1, 64, 5, 5)
    for (w, b), a in zip(params["dec_conv"], dec_act):
        d = _ref_conv_transpose2d(d, w, b, 2, 1, a)
    return d


if __name__ == "__main__":
    key = jax.random.PRNGKey(0)
    kx, kp = jax.random.split(key)

    # Shapes implied by the module: 5x5 bottleneck after 3 stride-2 convs -> 40x40 input.
    batch, in_size, spatial = 2, 3, 40
    encoder_sizes = [16, 32, 64]
    decoder_sizes = [64, 32, 16]          # decoder_sizes[0] must be 64 (View(-1,64,5,5))
    encoder_activation = (True, True, True)
    decoder_activation = (True, True, False)
    bottleneck = 32

    x = jax.random.normal(kx, (batch, in_size, spatial, spatial), jnp.float32)
    params = init_dae_params(kp, in_size, encoder_sizes, decoder_sizes, bottleneck)

    fwd = jax.jit(functools.partial(dae_forward,
                                    encoder_activation=encoder_activation,
                                    decoder_activation=decoder_activation))
    y = jax.block_until_ready(fwd(params, x))

    assert y.shape == (batch, in_size, spatial, spatial), y.shape
    assert y.dtype == jnp.float32
    assert bool(jnp.all(jnp.isfinite(y)))

    ref = jax.block_until_ready(
        ref_dae_forward(params, x, encoder_activation, decoder_activation))
    assert bool(jnp.allclose(y, ref, rtol=5e-2, atol=5e-2)), \
        float(jnp.max(jnp.abs(y - ref)))

    print("KERNEL_OK")
</pallas_src>

<mosaic_0001>
module attributes {stable_mosaic.version = 11 : i64} {
  func.func @_gemm_bias_act_kernel(%arg0: i32, %arg1: memref<800x48xf32, #tpu.memory_space<vmem>>, %arg2: memref<48x16xf32, #tpu.memory_space<vmem>>, %arg3: memref<1x16xf32, #tpu.memory_space<vmem>>, %arg4: memref<800x16xf32, #tpu.memory_space<vmem>>) attributes {dimension_semantics = [#tpu.dimension_semantics<parallel>], iteration_bounds = array<i64: 1>, scalar_prefetch = 0 : i64, scratch_operands = 0 : i64, tpu.core_type = #tpu.core_type<tc>, window_params = [{transform_indices = @transform_0, window_bounds = array<i64: 800, 48>}, {pipeline_mode = #tpu.pipeline_mode<synchronous>, transform_indices = @transform_1, window_bounds = array<i64: 48, 16>}, {pipeline_mode = #tpu.pipeline_mode<synchronous>, transform_indices = @transform_2, window_bounds = array<i64: 1, 16>}, {transform_indices = @transform_3, window_bounds = array<i64: 800, 16>}]} {
    %c0 = arith.constant 0 : index
    %c0_0 = arith.constant 0 : index
    %0 = vector.load %arg1[%c0, %c0_0] : memref<800x48xf32, #tpu.memory_space<vmem>>, vector<800x48xf32>
    %c0_1 = arith.constant 0 : index
    %c0_2 = arith.constant 0 : index
    %1 = vector.load %arg2[%c0_1, %c0_2] : memref<48x16xf32, #tpu.memory_space<vmem>>, vector<48x16xf32>
    %cst = arith.constant dense<0.000000e+00> : vector<800x16xf32>
    %2 = tpu.matmul %0, %1, %cst {dimension_numbers = #tpu.dot_dimension_numbers<[1], [0], [0], [1], [0, 0, 1, 1], [], []>} : vector<800x48xf32>, vector<48x16xf32>, vector<800x16xf32> -> vector<800x16xf32>
    %c0_3 = arith.constant 0 : index
    %c0_4 = arith.constant 0 : index
    %3 = vector.load %arg3[%c0_3, %c0_4] : memref<1x16xf32, #tpu.memory_space<vmem>>, vector<1x16xf32>
    %4 = vector.broadcast %3 : vector<1x16xf32> to vector<800x16xf32>
    %5 = arith.addf %2, %4 : vector<800x16xf32>
    %cst_5 = arith.constant 0.000000e+00 : f32
    %6 = vector.broadcast %cst_5 : f32 to vector<800x16xf32>
    %7 = arith.cmpf ogt, %5, %6 : vector<800x16xf32>
    %8 = math.exp %5 : vector<800x16xf32>
    %cst_6 = arith.constant 1.000000e+00 : f32
    %9 = vector.broadcast %cst_6 : f32 to vector<800x16xf32>
    %10 = arith.subf %8, %9 : vector<800x16xf32>
    %11 = arith.select %7, %5, %10 : vector<800x16xi1>, vector<800x16xf32>
    %c0_7 = arith.constant 0 : index
    %c0_8 = arith.constant 0 : index
    %12 = vector.load %arg4[%c0_7, %c0_8] : memref<800x16xf32, #tpu.memory_space<vmem>>, vector<800x16xf32>
    tpu.vector_store %arg4[%c0_7, %c0_8], %11 {strides = array<i32>} : memref<800x16xf32, #tpu.memory_space<vmem>>, vector<800x16xf32>,
    return
  }
  func.func @transform_0(%arg0: i32) -> (i32, i32) {
    %c0_i32 = arith.constant 0 : i32
    %c0_i32_0 = arith.constant 0 : i32
    return %arg0, %c0_i32 : i32, i32
  }
  func.func @transform_1(%arg0: i32) -> (i32, i32) {
    %c0_i32 = arith.constant 0 : i32
    %c0_i32_0 = arith.constant 0 : i32
    %c0_i32_1 = arith.constant 0 : i32
    return %c0_i32, %c0_i32_0 : i32, i32
  }
  func.func @transform_2(%arg0: i32) -> (i32, i32) {
    %c0_i32 = arith.constant 0 : i32
    %c0_i32_0 = arith.constant 0 : i32
    %c0_i32_1 = arith.constant 0 : i32
    return %c0_i32, %c0_i32_0 : i32, i32
  }
  func.func @transform_3(%arg0: i32) -> (i32, i32) {
    %c0_i32 = arith.constant 0 : i32
    %c0_i32_0 = arith.constant 0 : i32
    return %arg0, %c0_i32 : i32, i32
  }
}

module attributes {stable_mosaic.version = 11 : i64} {
  func.func @_gemm_bias_act_kernel(%arg0: i32, %arg1: memref<200x256xf32, #tpu.memory_space<vmem>>, %arg2: memref<256x32xf32, #tpu.memory_space<vmem>>, %arg3: memref<1x32xf32, #tpu.memory_space<vmem>>, %arg4: memref<200x32xf32, #tpu.memory_space<vmem>>) attributes {dimension_semantics = [#tpu.dimension_semantics<parallel>], iteration_bounds = array<i64: 1>, scalar_prefetch = 0 : i64, scratch_operands = 0 : i64, tpu.core_type = #tpu.core_type<tc>, window_params = [{transform_indices = @transform_0, window_bounds = array<i64: 200, 256>}, {pipeline_mode = #tpu.pipeline_mode<synchronous>, transform_indices = @transform_1, window_bounds = array<i64: 256, 32>}, {pipeline_mode = #tpu.pipeline_mode<synchronous>, transform_indices = @transform_2, window_bounds = array<i64: 1, 32>}, {transform_indices = @transform_3, window_bounds = array<i64: 200, 32>}]} {
    %c0 = arith.constant 0 : index
    %c0_0 = arith.constant 0 : index
    %0 = vector.load %arg1[%c0, %c0_0] : memref<200x256xf32, #tpu.memory_space<vmem>>, vector<200x256xf32>
    %c0_1 = arith.constant 0 : index
    %c0_2 = arith.constant 0 : index
    %1 = vector.load %arg2[%c0_1, %c0_2] : memref<256x32xf32, #tpu.memory_space<vmem>>, vector<256x32xf32>
    %cst = arith.constant dense<0.000000e+00> : vector<200x32xf32>
    %2 = tpu.matmul %0, %1, %cst {dimension_numbers = #tpu.dot_dimension_numbers<[1], [0], [0], [1], [0, 0, 1, 1], [], []>} : vector<200x256xf32>, vector<256x32xf32>, vector<200x32xf32> -> vector<200x32xf32>
    %c0_3 = arith.constant 0 : index
    %c0_4 = arith.constant 0 : index
    %3 = vector.load %arg3[%c0_3, %c0_4] : memref<1x32xf32, #tpu.memory_space<vmem>>, vector<1x32xf32>
    %4 = vector.broadcast %3 : vector<1x32xf32> to vector<200x32xf32>
    %5 = arith.addf %2, %4 : vector<200x32xf32>
    %cst_5 = arith.constant 0.000000e+00 : f32
    %6 = vector.broadcast %cst_5 : f32 to vector<200x32xf32>
    %7 = arith.cmpf ogt, %5, %6 : vector<200x32xf32>
    %8 = math.exp %5 : vector<200x32xf32>
    %cst_6 = arith.constant 1.000000e+00 : f32
    %9 = vector.broadcast %cst_6 : f32 to vector<200x32xf32>
    %10 = arith.subf %8, %9 : vector<200x32xf32>
    %11 = arith.select %7, %5, %10 : vector<200x32xi1>, vector<200x32xf32>
    %c0_7 = arith.constant 0 : index
    %c0_8 = arith.constant 0 : index
    %12 = vector.load %arg4[%c0_7, %c0_8] : memref<200x32xf32, #tpu.memory_space<vmem>>, vector<200x32xf32>
    tpu.vector_store %arg4[%c0_7, %c0_8], %11 {strides = array<i32>} : memref<200x32xf32, #tpu.memory_space<vmem>>, vector<200x32xf32>,
    return
  }
  func.func @transform_0(%arg0: i32) -> (i32, i32) {
    %c0_i32 = arith.constant 0 : i32
    %c0_i32_0 = arith.constant 0 : i32
    return %arg0, %c0_i32 : i32, i32
  }
  func.func @transform_1(%arg0: i32) -> (i32, i32) {
    %c0_i32 = arith.constant 0 : i32
    %c0_i32_0 = arith.constant 0 : i32
    %c0_i32_1 = arith.constant 0 : i32
    return %c0_i32, %c0_i32_0 : i32, i32
  }
  func.func @transform_2(%arg0: i32) -> (i32, i32) {
    %c0_i32 = arith.constant 0 : i32
    %c0_i32_0 = arith.constant 0 : i32
    %c0_i32_1 = arith.constant 0 : i32
    return %c0_i32, %c0_i32_0 : i32, i32
  }
  func.func @transform_3(%arg0: i32) -> (i32, i32) {
    %c0_i32 = arith.constant 0 : i32
    %c0_i32_0 = arith.constant 0 : i32
    return %arg0, %c0_i32 : i32, i32
  }
}

module attributes {stable_mosaic.version = 11 : i64} {
  func.func @_gemm_bias_act_kernel(%arg0: i32, %arg1: memref<50x512xf32, #tpu.memory_space<vmem>>, %arg2: memref<512x64xf32, #tpu.memory_space<vmem>>, %arg3: memref<1x64xf32, #tpu.memory_space<vmem>>, %arg4: memref<50x64xf32, #tpu.memory_space<vmem>>) attributes {dimension_semantics = [#tpu.dimension_semantics<parallel>], iteration_bounds = array<i64: 1>, scalar_prefetch = 0 : i64, scratch_operands = 0 : i64, tpu.core_type = #tpu.core_type<tc>, window_params = [{transform_indices = @transform_0, window_bounds = array<i64: 50, 512>}, {pipeline_mode = #tpu.pipeline_mode<synchronous>, transform_indices = @transform_1, window_bounds = array<i64: 512, 64>}, {pipeline_mode = #tpu.pipeline_mode<synchronous>, transform_indices = @transform_2, window_bounds = array<i64: 1, 64>}, {transform_indices = @transform_3, window_bounds = array<i64: 50, 64>}]} {
    %c0 = arith.constant 0 : index
    %c0_0 = arith.constant 0 : index
    %0 = vector.load %arg1[%c0, %c0_0] : memref<50x512xf32, #tpu.memory_space<vmem>>, vector<50x512xf32>
    %c0_1 = arith.constant 0 : index
    %c0_2 = arith.constant 0 : index
    %1 = vector.load %arg2[%c0_1, %c0_2] : memref<512x64xf32, #tpu.memory_space<vmem>>, vector<512x64xf32>
    %cst = arith.constant dense<0.000000e+00> : vector<50x64xf32>
    %2 = tpu.matmul %0, %1, %cst {dimension_numbers = #tpu.dot_dimension_numbers<[1], [0], [0], [1], [0, 0, 1, 1], [], []>} : vector<50x512xf32>, vector<512x64xf32>, vector<50x64xf32> -> vector<50x64xf32>
    %c0_3 = arith.constant 0 : index
    %c0_4 = arith.constant 0 : index
    %3 = vector.load %arg3[%c0_3, %c0_4] : memref<1x64xf32, #tpu.memory_space<vmem>>, vector<1x64xf32>
    %4 = vector.broadcast %3 : vector<1x64xf32> to vector<50x64xf32>
    %5 = arith.addf %2, %4 : vector<50x64xf32>
    %cst_5 = arith.constant 0.000000e+00 : f32
    %6 = vector.broadcast %cst_5 : f32 to vector<50x64xf32>
    %7 = arith.cmpf ogt, %5, %6 : vector<50x64xf32>
    %8 = math.exp %5 : vector<50x64xf32>
    %cst_6 = arith.constant 1.000000e+00 : f32
    %9 = vector.broadcast %cst_6 : f32 to vector<50x64xf32>
    %10 = arith.subf %8, %9 : vector<50x64xf32>
    %11 = arith.select %7, %5, %10 : vector<50x64xi1>, vector<50x64xf32>
    %c0_7 = arith.constant 0 : index
    %c0_8 = arith.constant 0 : index
    %12 = vector.load %arg4[%c0_7, %c0_8] : memref<50x64xf32, #tpu.memory_space<vmem>>, vector<50x64xf32>
    tpu.vector_store %arg4[%c0_7, %c0_8], %11 {strides = array<i32>} : memref<50x64xf32, #tpu.memory_space<vmem>>, vector<50x64xf32>,
    return
  }
  func.func @transform_0(%arg0: i32) -> (i32, i32) {
    %c0_i32 = arith.constant 0 : i32
    %c0_i32_0 = arith.constant 0 : i32
    return %arg0, %c0_i32 : i32, i32
  }
  func.func @transform_1(%arg0: i32) -> (i32, i32) {
    %c0_i32 = arith.constant 0 : i32
    %c0_i32_0 = arith.constant 0 : i32
    %c0_i32_1 = arith.constant 0 : i32
    return %c0_i32, %c0_i32_0 : i32, i32
  }
  func.func @transform_2(%arg0: i32) -> (i32, i32) {
    %c0_i32 = arith.constant 0 : i32
    %c0_i32_0 = arith.constant 0 : i32
    %c0_i32_1 = arith.constant 0 : i32
    return %c0_i32, %c0_i32_0 : i32, i32
  }
  func.func @transform_3(%arg0: i32) -> (i32, i32) {
    %c0_i32 = arith.constant 0 : i32
    %c0_i32_0 = arith.constant 0 : i32
    return %arg0, %c0_i32 : i32, i32
  }
}

module attributes {stable_mosaic.version = 11 : i64} {
  func.func @_gemm_bias_act_kernel(%arg0: i32, %arg1: memref<2x1600xf32, #tpu.memory_space<vmem>>, %arg2: memref<1600x32xf32, #tpu.memory_space<vmem>>, %arg3: memref<1x32xf32, #tpu.memory_space<vmem>>, %arg4: memref<2x32xf32, #tpu.memory_space<vmem>>) attributes {dimension_semantics = [#tpu.dimension_semantics<parallel>], iteration_bounds = array<i64: 1>, scalar_prefetch = 0 : i64, scratch_operands = 0 : i64, tpu.core_type = #tpu.core_type<tc>, window_params = [{transform_indices = @transform_0, window_bounds = array<i64: 2, 1600>}, {pipeline_mode = #tpu.pipeline_mode<synchronous>, transform_indices = @transform_1, window_bounds = array<i64: 1600, 32>}, {pipeline_mode = #tpu.pipeline_mode<synchronous>, transform_indices = @transform_2, window_bounds = array<i64: 1, 32>}, {transform_indices = @transform_3, window_bounds = array<i64: 2, 32>}]} {
    %c0 = arith.constant 0 : index
    %c0_0 = arith.constant 0 : index
    %0 = vector.load %arg1[%c0, %c0_0] : memref<2x1600xf32, #tpu.memory_space<vmem>>, vector<2x1600xf32>
    %c0_1 = arith.constant 0 : index
    %c0_2 = arith.constant 0 : index
    %1 = vector.load %arg2[%c0_1, %c0_2] : memref<1600x32xf32, #tpu.memory_space<vmem>>, vector<1600x32xf32>
    %cst = arith.constant dense<0.000000e+00> : vector<2x32xf32>
    %2 = tpu.matmul %0, %1, %cst {dimension_numbers = #tpu.dot_dimension_numbers<[1], [0], [0], [1], [0, 0, 1, 1], [], []>} : vector<2x1600xf32>, vector<1600x32xf32>, vector<2x32xf32> -> vector<2x32xf32>
    %c0_3 = arith.constant 0 : index
    %c0_4 = arith.constant 0 : index
    %3 = vector.load %arg3[%c0_3, %c0_4] : memref<1x32xf32, #tpu.memory_space<vmem>>, vector<1x32xf32>
    %4 = vector.broadcast %3 : vector<1x32xf32> to vector<2x32xf32>
    %5 = arith.addf %2, %4 : vector<2x32xf32>
    %c0_5 = arith.constant 0 : index
    %c0_6 = arith.constant 0 : index
    %6 = vector.load %arg4[%c0_5, %c0_6] : memref<2x32xf32, #tpu.memory_space<vmem>>, vector<2x32xf32>
    tpu.vector_store %arg4[%c0_5, %c0_6], %5 {strides = array<i32>} : memref<2x32xf32, #tpu.memory_space<vmem>>, vector<2x32xf32>,
    return
  }
  func.func @transform_0(%arg0: i32) -> (i32, i32) {
    %c0_i32 = arith.constant 0 : i32
    %c0_i32_0 = arith.constant 0 : i32
    return %arg0, %c0_i32 : i32, i32
  }
  func.func @transform_1(%arg0: i32) -> (i32, i32) {
    %c0_i32 = arith.constant 0 : i32
    %c0_i32_0 = arith.constant 0 : i32
    %c0_i32_1 = arith.constant 0 : i32
    return %c0_i32, %c0_i32_0 : i32, i32
  }
  func.func @transform_2(%arg0: i32) -> (i32, i32) {
    %c0_i32 = arith.constant 0 : i32
    %c0_i32_0 = arith.constant 0 : i32
    %c0_i32_1 = arith.constant 0 : i32
    return %c0_i32, %c0_i32_0 : i32, i32
  }
  func.func @transform_3(%arg0: i32) -> (i32, i32) {
    %c0_i32 = arith.constant 0 : i32
    %c0_i32_0 = arith.constant 0 : i32
    return %arg0, %c0_i32 : i32, i32
  }
}

module attributes {stable_mosaic.version = 11 : i64} {
  func.func @_gemm_bias_act_kernel(%arg0: i32, %arg1: memref<2x32xf32, #tpu.memory_space<vmem>>, %arg2: memref<32x1600xf32, #tpu.memory_space<vmem>>, %arg3: memref<1x1600xf32, #tpu.memory_space<vmem>>, %arg4: memref<2x1600xf32, #tpu.memory_space<vmem>>) attributes {dimension_semantics = [#tpu.dimension_semantics<parallel>], iteration_bounds = array<i64: 1>, scalar_prefetch = 0 : i64, scratch_operands = 0 : i64, tpu.core_type = #tpu.core_type<tc>, window_params = [{transform_indices = @transform_0, window_bounds = array<i64: 2, 32>}, {pipeline_mode = #tpu.pipeline_mode<synchronous>, transform_indices = @transform_1, window_bounds = array<i64: 32, 1600>}, {pipeline_mode = #tpu.pipeline_mode<synchronous>, transform_indices = @transform_2, window_bounds = array<i64: 1, 1600>}, {transform_indices = @transform_3, window_bounds = array<i64: 2, 1600>}]} {
    %c0 = arith.constant 0 : index
    %c0_0 = arith.constant 0 : index
    %0 = vector.load %arg1[%c0, %c0_0] : memref<2x32xf32, #tpu.memory_space<vmem>>, vector<2x32xf32>
    %c0_1 = arith.constant 0 : index
    %c0_2 = arith.constant 0 : index
    %1 = vector.load %arg2[%c0_1, %c0_2] : memref<32x1600xf32, #tpu.memory_space<vmem>>, vector<32x1600xf32>
    %cst = arith.constant dense<0.000000e+00> : vector<2x1600xf32>
    %2 = tpu.matmul %0, %1, %cst {dimension_numbers = #tpu.dot_dimension_numbers<[1], [0], [0], [1], [0, 0, 1, 1], [], []>} : vector<2x32xf32>, vector<32x1600xf32>, vector<2x1600xf32> -> vector<2x1600xf32>
    %c0_3 = arith.constant 0 : index
    %c0_4 = arith.constant 0 : index
    %3 = vector.load %arg3[%c0_3, %c0_4] : memref<1x1600xf32, #tpu.memory_space<vmem>>, vector<1x1600xf32>
    %4 = vector.broadcast %3 : vector<1x1600xf32> to vector<2x1600xf32>
    %5 = arith.addf %2, %4 : vector<2x1600xf32>
    %c0_5 = arith.constant 0 : index
    %c0_6 = arith.constant 0 : index
    %6 = vector.load %arg4[%c0_5, %c0_6] : memref<2x1600xf32, #tpu.memory_space<vmem>>, vector<2x1600xf32>
    tpu.vector_store %arg4[%c0_5, %c0_6], %5 {strides = array<i32>} : memref<2x1600xf32, #tpu.memory_space<vmem>>, vector<2x1600xf32>,
    return
  }
  func.func @transform_0(%arg0: i32) -> (i32, i32) {
    %c0_i32 = arith.constant 0 : i32
    %c0_i32_0 = arith.constant 0 : i32
    return %arg0, %c0_i32 : i32, i32
  }
  func.func @transform_1(%arg0: i32) -> (i32, i32) {
    %c0_i32 = arith.constant 0 : i32
    %c0_i32_0 = arith.constant 0 : i32
    %c0_i32_1 = arith.constant 0 : i32
    return %c0_i32, %c0_i32_0 : i32, i32
  }
  func.func @transform_2(%arg0: i32) -> (i32, i32) {
    %c0_i32 = arith.constant 0 : i32
    %c0_i32_0 = arith.constant 0 : i32
    %c0_i32_1 = arith.constant 0 : i32
    return %c0_i32, %c0_i32_0 : i32, i32
  }
  func.func @transform_3(%arg0: i32) -> (i32, i32) {
    %c0_i32 = arith.constant 0 : i32
    %c0_i32_0 = arith.constant 0 : i32
    return %arg0, %c0_i32 : i32, i32
  }
}

module attributes {stable_mosaic.version = 11 : i64} {
  func.func @_gemm_bias_act_kernel(%arg0: i32, %arg1: memref<200x1024xf32, #tpu.memory_space<vmem>>, %arg2: memref<1024x32xf32, #tpu.memory_space<vmem>>, %arg3: memref<1x32xf32, #tpu.memory_space<vmem>>, %arg4: memref<200x32xf32, #tpu.memory_space<vmem>>) attributes {dimension_semantics = [#tpu.dimension_semantics<parallel>], iteration_bounds = array<i64: 1>, scalar_prefetch = 0 : i64, scratch_operands = 0 : i64, tpu.core_type = #tpu.core_type<tc>, window_params = [{transform_indices = @transform_0, window_bounds = array<i64: 200, 1024>}, {pipeline_mode = #tpu.pipeline_mode<synchronous>, transform_indices = @transform_1, window_bounds = array<i64: 1024, 32>}, {pipeline_mode = #tpu.pipeline_mode<synchronous>, transform_indices = @transform_2, window_bounds = array<i64: 1, 32>}, {transform_indices = @transform_3, window_bounds = array<i64: 200, 32>}]} {
    %c0 = arith.constant 0 : index
    %c0_0 = arith.constant 0 : index
    %0 = vector.load %arg1[%c0, %c0_0] : memref<200x1024xf32, #tpu.memory_space<vmem>>, vector<200x1024xf32>
    %c0_1 = arith.constant 0 : index
    %c0_2 = arith.constant 0 : index
    %1 = vector.load %arg2[%c0_1, %c0_2] : memref<1024x32xf32, #tpu.memory_space<vmem>>, vector<1024x32xf32>
    %cst = arith.constant dense<0.000000e+00> : vector<200x32xf32>
    %2 = tpu.matmul %0, %1, %cst {dimension_numbers = #tpu.dot_dimension_numbers<[1], [0], [0], [1], [0, 0, 1, 1], [], []>} : vector<200x1024xf32>, vector<1024x32xf32>, vector<200x32xf32> -> vector<200x32xf32>
    %c0_3 = arith.constant 0 : index
    %c0_4 = arith.constant 0 : index
    %3 = vector.load %arg3[%c0_3, %c0_4] : memref<1x32xf32, #tpu.memory_space<vmem>>, vector<1x32xf32>
    %4 = vector.broadcast %3 : vector<1x32xf32> to vector<200x32xf32>
    %5 = arith.addf %2, %4 : vector<200x32xf32>
    %cst_5 = arith.constant 0.000000e+00 : f32
    %6 = vector.broadcast %cst_5 : f32 to vector<200x32xf32>
    %7 = arith.cmpf ogt, %5, %6 : vector<200x32xf32>
    %8 = math.exp %5 : vector<200x32xf32>
    %cst_6 = arith.constant 1.000000e+00 : f32
    %9 = vector.broadcast %cst_6 : f32 to vector<200x32xf32>
    %10 = arith.subf %8, %9 : vector<200x32xf32>
    %11 = arith.select %7, %5, %10 : vector<200x32xi1>, vector<200x32xf32>
    %c0_7 = arith.constant 0 : index
    %c0_8 = arith.constant 0 : index
    %12 = vector.load %arg4[%c0_7, %c0_8] : memref<200x32xf32, #tpu.memory_space<vmem>>, vector<200x32xf32>
    tpu.vector_store %arg4[%c0_7, %c0_8], %11 {strides = array<i32>} : memref<200x32xf32, #tpu.memory_space<vmem>>, vector<200x32xf32>,
    return
  }
  func.func @transform_0(%arg0: i32) -> (i32, i32) {
    %c0_i32 = arith.constant 0 : i32
    %c0_i32_0 = arith.constant 0 : i32
    return %arg0, %c0_i32 : i32, i32
  }
  func.func @transform_1(%arg0: i32) -> (i32, i32) {
    %c0_i32 = arith.constant 0 : i32
    %c0_i32_0 = arith.constant 0 : i32
    %c0_i32_1 = arith.constant 0 : i32
    return %c0_i32, %c0_i32_0 : i32, i32
  }
  func.func @transform_2(%arg0: i32) -> (i32, i32) {
    %c0_i32 = arith.constant 0 : i32
    %c0_i32_0 = arith.constant 0 : i32
    %c0_i32_1 = arith.constant 0 : i32
    return %c0_i32, %c0_i32_0 : i32, i32
  }
  func.func @transform_3(%arg0: i32) -> (i32, i32) {
    %c0_i32 = arith.constant 0 : i32
    %c0_i32_0 = arith.constant 0 : i32
    return %arg0, %c0_i32 : i32, i32
  }
}

module attributes {stable_mosaic.version = 11 : i64} {
  func.func @_gemm_bias_act_kernel(%arg0: i32, %arg1: memref<800x512xf32, #tpu.memory_space<vmem>>, %arg2: memref<512x16xf32, #tpu.memory_space<vmem>>, %arg3: memref<1x16xf32, #tpu.memory_space<vmem>>, %arg4: memref<800x16xf32, #tpu.memory_space<vmem>>) attributes {dimension_semantics = [#tpu.dimension_semantics<parallel>], iteration_bounds = array<i64: 1>, scalar_prefetch = 0 : i64, scratch_operands = 0 : i64, tpu.core_type = #tpu.core_type<tc>, window_params = [{transform_indices = @transform_0, window_bounds = array<i64: 800, 512>}, {pipeline_mode = #tpu.pipeline_mode<synchronous>, transform_indices = @transform_1, window_bounds = array<i64: 512, 16>}, {pipeline_mode = #tpu.pipeline_mode<synchronous>, transform_indices = @transform_2, window_bounds = array<i64: 1, 16>}, {transform_indices = @transform_3, window_bounds = array<i64: 800, 16>}]} {
    %c0 = arith.constant 0 : index
    %c0_0 = arith.constant 0 : index
    %0 = vector.load %arg1[%c0, %c0_0] : memref<800x512xf32, #tpu.memory_space<vmem>>, vector<800x512xf32>
    %c0_1 = arith.constant 0 : index
    %c0_2 = arith.constant 0 : index
    %1 = vector.load %arg2[%c0_1, %c0_2] : memref<512x16xf32, #tpu.memory_space<vmem>>, vector<512x16xf32>
    %cst = arith.constant dense<0.000000e+00> : vector<800x16xf32>
    %2 = tpu.matmul %0, %1, %cst {dimension_numbers = #tpu.dot_dimension_numbers<[1], [0], [0], [1], [0, 0, 1, 1], [], []>} : vector<800x512xf32>, vector<512x16xf32>, vector<800x16xf32> -> vector<800x16xf32>
    %c0_3 = arith.constant 0 : index
    %c0_4 = arith.constant 0 : index
    %3 = vector.load %arg3[%c0_3, %c0_4] : memref<1x16xf32, #tpu.memory_space<vmem>>, vector<1x16xf32>
    %4 = vector.broadcast %3 : vector<1x16xf32> to vector<800x16xf32>
    %5 = arith.addf %2, %4 : vector<800x16xf32>
    %cst_5 = arith.constant 0.000000e+00 : f32
    %6 = vector.broadcast %cst_5 : f32 to vector<800x16xf32>
    %7 = arith.cmpf ogt, %5, %6 : vector<800x16xf32>
    %8 = math.exp %5 : vector<800x16xf32>
    %cst_6 = arith.constant 1.000000e+00 : f32
    %9 = vector.broadcast %cst_6 : f32 to vector<800x16xf32>
    %10 = arith.subf %8, %9 : vector<800x16xf32>
    %11 = arith.select %7, %5, %10 : vector<800x16xi1>, vector<800x16xf32>
    %c0_7 = arith.constant 0 : index
    %c0_8 = arith.constant 0 : index
    %12 = vector.load %arg4[%c0_7, %c0_8] : memref<800x16xf32, #tpu.memory_space<vmem>>, vector<800x16xf32>
    tpu.vector_store %arg4[%c0_7, %c0_8], %11 {strides = array<i32>} : memref<800x16xf32, #tpu.memory_space<vmem>>, vector<800x16xf32>,
    return
  }
  func.func @transform_0(%arg0: i32) -> (i32, i32) {
    %c0_i32 = arith.constant 0 : i32
    %c0_i32_0 = arith.constant 0 : i32
    return %arg0, %c0_i32 : i32, i32
  }
  func.func @transform_1(%arg0: i32) -> (i32, i32) {
    %c0_i32 = arith.constant 0 : i32
    %c0_i32_0 = arith.constant 0 : i32
    %c0_i32_1 = arith.constant 0 : i32
    return %c0_i32, %c0_i32_0 : i32, i32
  }
  func.func @transform_2(%arg0: i32) -> (i32, i32) {
    %c0_i32 = arith.constant 0 : i32
    %c0_i32_0 = arith.constant 0 : i32
    %c0_i32_1 = arith.constant 0 : i32
    return %c0_i32, %c0_i32_0 : i32, i32
  }
  func.func @transform_3(%arg0: i32) -> (i32, i32) {
    %c0_i32 = arith.constant 0 : i32
    %c0_i32_0 = arith.constant 0 : i32
    return %arg0, %c0_i32 : i32, i32
  }
}

module attributes {stable_mosaic.version = 11 : i64} {
  func.func @_gemm_bias_act_kernel(%arg0: i32, %arg1: memref<3200x256xf32, #tpu.memory_space<vmem>>, %arg2: memref<256x3xf32, #tpu.memory_space<vmem>>, %arg3: memref<1x3xf32, #tpu.memory_space<vmem>>, %arg4: memref<3200x3xf32, #tpu.memory_space<vmem>>) attributes {dimension_semantics = [#tpu.dimension_semantics<parallel>], iteration_bounds = array<i64: 1>, scalar_prefetch = 0 : i64, scratch_operands = 0 : i64, tpu.core_type = #tpu.core_type<tc>, window_params = [{transform_indices = @transform_0, window_bounds = array<i64: 3200, 256>}, {pipeline_mode = #tpu.pipeline_mode<synchronous>, transform_indices = @transform_1, window_bounds = array<i64: 256, 3>}, {pipeline_mode = #tpu.pipeline_mode<synchronous>, transform_indices = @transform_2, window_bounds = array<i64: 1, 3>}, {transform_indices = @transform_3, window_bounds = array<i64: 3200, 3>}]} {
    %c0 = arith.constant 0 : index
    %c0_0 = arith.constant 0 : index
    %0 = vector.load %arg1[%c0, %c0_0] : memref<3200x256xf32, #tpu.memory_space<vmem>>, vector<3200x256xf32>
    %c0_1 = arith.constant 0 : index
    %c0_2 = arith.constant 0 : index
    %1 = vector.load %arg2[%c0_1, %c0_2] : memref<256x3xf32, #tpu.memory_space<vmem>>, vector<256x3xf32>
    %cst = arith.constant dense<0.000000e+00> : vector<3200x3xf32>
    %2 = tpu.matmul %0, %1, %cst {dimension_numbers = #tpu.dot_dimension_numbers<[1], [0], [0], [1], [0, 0, 1, 1], [], []>} : vector<3200x256xf32>, vector<256x3xf32>, vector<3200x3xf32> -> vector<3200x3xf32>
    %c0_3 = arith.constant 0 : index
    %c0_4 = arith.constant 0 : index
    %3 = vector.load %arg3[%c0_3, %c0_4] : memref<1x3xf32, #tpu.memory_space<vmem>>, vector<1x3xf32>
    %4 = vector.broadcast %3 : vector<1x3xf32> to vector<3200x3xf32>
    %5 = arith.addf %2, %4 : vector<3200x3xf32>
    %c0_5 = arith.constant 0 : index
    %c0_6 = arith.constant 0 : index
    %6 = vector.load %arg4[%c0_5, %c0_6] : memref<3200x3xf32, #tpu.memory_space<vmem>>, vector<3200x3xf32>
    tpu.vector_store %arg4[%c0_5, %c0_6], %5 {strides = array<i32>} : memref<3200x3xf32, #tpu.memory_space<vmem>>, vector<3200x3xf32>,
    return
  }
  func.func @transform_0(%arg0: i32) -> (i32, i32) {
    %c0_i32 = arith.constant 0 : i32
    %c0_i32_0 = arith.constant 0 : i32
    return %arg0, %c0_i32 : i32, i32
  }
  func.func @transform_1(%arg0: i32) -> (i32, i32) {
    %c0_i32 = arith.constant 0 : i32
    %c0_i32_0 = arith.constant 0 : i32
    %c0_i32_1 = arith.constant 0 : i32
    return %c0_i32, %c0_i32_0 : i32, i32
  }
  func.func @transform_2(%arg0: i32) -> (i32, i32) {
    %c0_i32 = arith.constant 0 : i32
    %c0_i32_0 = arith.constant 0 : i32
    %c0_i32_1 = arith.constant 0 : i32
    return %c0_i32, %c0_i32_0 : i32, i32
  }
  func.func @transform_3(%arg0: i32) -> (i32, i32) {
    %c0_i32 = arith.constant 0 : i32
    %c0_i32_0 = arith.constant 0 : i32
    return %arg0, %c0_i32 : i32, i32
  }
}

</mosaic_0001>

<llo_original>
// kernel: dae_forward.8
$region0: #{dae_forward.8}
  #allocation0 [shape = 'u32[]', space=smem, size = 0x4, offset = 0x4, fixed_abs, tag = 'smem constant byte address 0x4 - core index']
  #allocation1 [shape = 'u32[144,128]{1,0:T(1,128)}', space=vmem, size = 0x12000, scoped, tag = 'internal scratch']
  %s0 = inlined_call_operand.vmem [shape: f32[800,48], index: 0, kind: input, shape index: {}]
  %s1 = inlined_call_operand.vmem [shape: f32[48,16], index: 1, kind: input, shape index: {}]
  %s2 = inlined_call_operand.vmem [shape: f32[1,16], index: 2, kind: input, shape index: {}]
  %s3 = inlined_call_operand.vmem [shape: f32[800,16], index: 3, kind: output, shape index: {}]
  %s4 = sld [smem:[#allocation0]]
  $region22: #{dae_forward.8} parent=0
    _
  %s6 = ssub.s32 1, %s4
  %s7 = scalar_select 0, %s6, %s4
  // Predicated region
  $region2: #{dae_forward.8} parent=0 // pred_check
    _
  $region3: #{dae_forward.8} parent=0 // pred_check_branch
    %9 = sbr.rel (0) target = $region5
  $region4: #{dae_forward.8} parent=0 // pred_region
    _
  $region5: #{dae_forward.8} parent=0 // pred_fallthru
    _
  // Predicated region
  $region6: #{dae_forward.8} parent=0 // pred_check
    _
  $region7: #{dae_forward.8} parent=0 // pred_check_branch
    %11 = sbr.rel (0) target = $region9
  $region8: #{dae_forward.8} parent=0 // pred_region
    _
  $region9: #{dae_forward.8} parent=0 // pred_fallthru
    _
  // Predicated region
  $region10: #{dae_forward.8} parent=0 // pred_check
    _
  $region11: #{dae_forward.8} parent=0 // pred_check_branch
    %13 = sbr.rel (0) target = $region13
  $region12: #{dae_forward.8} parent=0 // pred_region
    _
  $region13: #{dae_forward.8} parent=0 // pred_fallthru
    _
  %v14 = vld [vmem:[%s0] sm:$0xff]
  %v15 = vld [vmem:[%s0 + $0x8] sm:$0xff]
  %v16 = vld [vmem:[%s0 + $0x10] sm:$0xff]
  %v17 = vld [vmem:[%s0 + $0x18] sm:$0xff]
  %v18 = vld [vmem:[%s0 + $0x20] sm:$0xff]
  %v19 = vld [vmem:[%s0 + $0x28] sm:$0xff]
  %v20 = vld [vmem:[%s0 + $0x30] sm:$0xff]
  %v21 = vld [vmem:[%s0 + $0x38] sm:$0xff]
  %v22 = vld [vmem:[%s0 + $0x40] sm:$0xff]
  %v23 = vld [vmem:[%s0 + $0x48] sm:$0xff]
  %v24 = vld [vmem:[%s0 + $0x50] sm:$0xff]
  %v25 = vld [vmem:[%s0 + $0x58] sm:$0xff]
  %v26 = vld [vmem:[%s0 + $0x60] sm:$0xff]
  %v27 = vld [vmem:[%s0 + $0x68] sm:$0xff]
  %v28 = vld [vmem:[%s0 + $0x70] sm:$0xff]
  %v29 = vld [vmem:[%s0 + $0x78] sm:$0xff]
  %v30 = vld [vmem:[%s0 + $0x80] sm:$0xff]
  %v31 = vld [vmem:[%s0 + $0x88] sm:$0xff]
  %v32 = vld [vmem:[%s0 + $0x90] sm:$0xff]
  %v33 = vld [vmem:[%s0 + $0x98] sm:$0xff]
  %v34 = vld [vmem:[%s0 + $0xa0] sm:$0xff]
  %v35 = vld [vmem:[%s0 + $0xa8] sm:$0xff]
  %v36 = vld [vmem:[%s0 + $0xb0] sm:$0xff]
  %v37 = vld [vmem:[%s0 + $0xb8] sm:$0xff]
  %v38 = vld [vmem:[%s0 + $0xc0] sm:$0xff]
  %v39 = vld [vmem:[%s0 + $0xc8] sm:$0xff]
  %v40 = vld [vmem:[%s0 + $0xd0] sm:$0xff]
  %v41 = vld [vmem:[%s0 + $0xd8] sm:$0xff]
  %v42 = vld [vmem:[%s0 + $0xe0] sm:$0xff]
  %v43 = vld [vmem:[%s0 + $0xe8] sm:$0xff]
  %v44 = vld [vmem:[%s0 + $0xf0] sm:$0xff]
  %v45 = vld [vmem:[%s0 + $0xf8] sm:$0xff]
  %v46 = vld [vmem:[%s0 + $0x100] sm:$0xff]
  %v47 = vld [vmem:[%s0 + $0x108] sm:$0xff]
  %v48 = vld [vmem:[%s0 + $0x110] sm:$0xff]
  %v49 = vld [vmem:[%s0 + $0x118] sm:$0xff]
  %v50 = vld [vmem:[%s0 + $0x120] sm:$0xff]
  %v51 = vld [vmem:[%s0 + $0x128] sm:$0xff]
  %v52 = vld [vmem:[%s0 + $0x130] sm:$0xff]
  %v53 = vld [vmem:[%s0 + $0x138] sm:$0xff]
  %v54 = vld [vmem:[%s0 + $0x140] sm:$0xff]
  %v55 = vld [vmem:[%s0 + $0x148] sm:$0xff]
  %v56 = vld [vmem:[%s0 + $0x150] sm:$0xff]
  %v57 = vld [vmem:[%s0 + $0x158] sm:$0xff]
  %v58 = vld [vmem:[%s0 + $0x160] sm:$0xff]
  %v59 = vld [vmem:[%s0 + $0x168] sm:$0xff]
  %v60 = vld [vmem:[%s0 + $0x170] sm:$0xff]
  %v61 = vld [vmem:[%s0 + $0x178] sm:$0xff]
  %v62 = vld [vmem:[%s0 + $0x180] sm:$0xff]
  %v63 = vld [vmem:[%s0 + $0x188] sm:$0xff]
  %v64 = vld [vmem:[%s0 + $0x190] sm:$0xff]
  %v65 = vld [vmem:[%s0 + $0x198] sm:$0xff]
  %v66 = vld [vmem:[%s0 + $0x1a0] sm:$0xff]
  %v67 = vld [vmem:[%s0 + $0x1a8] sm:$0xff]
  %v68 = vld [vmem:[%s0 + $0x1b0] sm:$0xff]
  %v69 = vld [vmem:[%s0 + $0x1b8] sm:$0xff]
  %v70 = vld [vmem:[%s0 + $0x1c0] sm:$0xff]
  %v71 = vld [vmem:[%s0 + $0x1c8] sm:$0xff]
  %v72 = vld [vmem:[%s0 + $0x1d0] sm:$0xff]
  %v73 = vld [vmem:[%s0 + $0x1d8] sm:$0xff]
  %v74 = vld [vmem:[%s0 + $0x1e0] sm:$0xff]
  %v75 = vld [vmem:[%s0 + $0x1e8] sm:$0xff]
  %v76 = vld [vmem:[%s0 + $0x1f0] sm:$0xff]
  %v77 = vld [vmem:[%s0 + $0x1f8] sm:$0xff]
  %v78 = vld [vmem:[%s0 + $0x200] sm:$0xff]
  %v79 = vld [vmem:[%s0 + $0x208] sm:$0xff]
  %v80 = vld [vmem:[%s0 + $0x210] sm:$0xff]
  %v81 = vld [vmem:[%s0 + $0x218] sm:$0xff]
  %v82 = vld [vmem:[%s0 + $0x220] sm:$0xff]
  %v83 = vld [vmem:[%s0 + $0x228] sm:$0xff]
  %v84 = vld [vmem:[%s0 + $0x230] sm:$0xff]
  %v85 = vld [vmem:[%s0 + $0x238] sm:$0xff]
  %v86 = vld [vmem:[%s0 + $0x240] sm:$0xff]
  %v87 = vld [vmem:[%s0 + $0x248] sm:$0xff]
  %v88 = vld [vmem:[%s0 + $0x250] sm:$0xff]
  %v89 = vld [vmem:[%s0 + $0x258] sm:$0xff]
  %v90 = vld [vmem:[%s0 + $0x260] sm:$0xff]
  %v91 = vld [vmem:[%s0 + $0x268] sm:$0xff]
  %v92 = vld [vmem:[%s0 + $0x270] sm:$0xff]
  %v93 = vld [vmem:[%s0 + $0x278] sm:$0xff]
  %v94 = vld [vmem:[%s0 + $0x280] sm:$0xff]
  %v95 = vld [vmem:[%s0 + $0x288] sm:$0xff]
  %v96 = vld [vmem:[%s0 + $0x290] sm:$0xff]
  %v97 = vld [vmem:[%s0 + $0x298] sm:$0xff]
  %v98 = vld [vmem:[%s0 + $0x2a0] sm:$0xff]
  %v99 = vld [vmem:[%s0 + $0x2a8] sm:$0xff]
  %v100 = vld [vmem:[%s0 + $0x2b0] sm:$0xff]
  %v101 = vld [vmem:[%s0 + $0x2b8] sm:$0xff]
  %v102 = vld [vmem:[%s0 + $0x2c0] sm:$0xff]
  %v103 = vld [vmem:[%s0 + $0x2c8] sm:$0xff]
  %v104 = vld [vmem:[%s0 + $0x2d0] sm:$0xff]
  %v105 = vld [vmem:[%s0 + $0x2d8] sm:$0xff]
  %v106 = vld [vmem:[%s0 + $0x2e0] sm:$0xff]
  %v107 = vld [vmem:[%s0 + $0x2e8] sm:$0xff]
  %v108 = vld [vmem:[%s0 + $0x2f0] sm:$0xff]
  %v109 = vld [vmem:[%s0 + $0x2f8] sm:$0xff]
  %v110 = vld [vmem:[%s0 + $0x300] sm:$0xff]
  %v111 = vld [vmem:[%s0 + $0x308] sm:$0xff]
  %v112 = vld [vmem:[%s0 + $0x310] sm:$0xff]
  %v113 = vld [vmem:[%s0 + $0x318] sm:$0xff]
  %v114 = vld [vmem:[%s1] sm:$0xff]
  %v115 = vld [vmem:[%s1 + $0x8] sm:$0xff]
  %v116 = vld [vmem:[%s1 + $0x10] sm:$0xff]
  %v117 = vld [vmem:[%s1 + $0x18] sm:$0xff]
  %v118 = vld [vmem:[%s1 + $0x20] sm:$0xff]
  %v119 = vld [vmem:[%s1 + $0x28] sm:$0xff]
  %v120 = vld [vmem:[%s2] sm:$0x1]
  %v122 = vlaneseq
  %v123 = vshrl.u32 %v122, 7
  %v124 = vsub.s32 0, %v123
  %v125 = vrot.slane %v120, %v124
  %vm127 = vcmask 392192
  %v129 = vsel %vm127, %v14, 0
  %v132 = vsel %vm127, %v15, 0
  %v135 = vsel %vm127, %v16, 0
  %v138 = vsel %vm127, %v17, 0
  %v141 = vsel %vm127, %v18, 0
  %v144 = vsel %vm127, %v19, 0
  %v147 = vsel %vm127, %v20, 0
  %v150 = vsel %vm127, %v21, 0
  %v153 = vsel %vm127, %v22, 0
  %v156 = vsel %vm127, %v23, 0
  %v159 = vsel %vm127, %v24, 0
  %v162 = vsel %vm127, %v25, 0
  %v165 = vsel %vm127, %v26, 0
  %v168 = vsel %vm127, %v27, 0
  %v171 = vsel %vm127, %v28, 0
  %v174 = vsel %vm127, %v29, 0
  %v177 = vsel %vm127, %v30, 0
  %v180 = vsel %vm127, %v31, 0
  %v183 = vsel %vm127, %v32, 0
  %v186 = vsel %vm127, %v33, 0
  %v189 = vsel %vm127, %v34, 0
  %v192 = vsel %vm127, %v35, 0
  %v195 = vsel %vm127, %v36, 0
  %v198 = vsel %vm127, %v37, 0
  %v201 = vsel %vm127, %v38, 0
  %v204 = vsel %vm127, %v39, 0
  %v207 = vsel %vm127, %v40, 0
  %v210 = vsel %vm127, %v41, 0
  %v213 = vsel %vm127, %v42, 0
  %v216 = vsel %vm127, %v43, 0
  %v219 = vsel %vm127, %v44, 0
  %v222 = vsel %vm127, %v45, 0
  %v225 = vsel %vm127, %v46, 0
  %v228 = vsel %vm127, %v47, 0
  %v231 = vsel %vm127, %v48, 0
  %v234 = vsel %vm127, %v49, 0
  %v237 = vsel %vm127, %v50, 0
  %v240 = vsel %vm127, %v51, 0
  %v243 = vsel %vm127, %v52, 0
  %v246 = vsel %vm127, %v53, 0
  %v249 = vsel %vm127, %v54, 0
  %v252 = vsel %vm127, %v55, 0
  %v255 = vsel %vm127, %v56, 0
  %v258 = vsel %vm127, %v57, 0
  %v261 = vsel %vm127, %v58, 0
  %v264 = vsel %vm127, %v59, 0
  %v267 = vsel %vm127, %v60, 0
  %v270 = vsel %vm127, %v61, 0
  %v273 = vsel %vm127, %v62, 0
  %v276 = vsel %vm127, %v63, 0
  %v279 = vsel %vm127, %v64, 0
  %v282 = vsel %vm127, %v65, 0
  %v285 = vsel %vm127, %v66, 0
  %v288 = vsel %vm127, %v67, 0
  %v291 = vsel %vm127, %v68, 0
  %v294 = vsel %vm127, %v69, 0
  %v297 = vsel %vm127, %v70, 0
  %v300 = vsel %vm127, %v71, 0
  %v303 = vsel %vm127, %v72, 0
  %v306 = vsel %vm127, %v73, 0
  %v309 = vsel %vm127, %v74, 0
  %v312 = vsel %vm127, %v75, 0
  %v315 = vsel %vm127, %v76, 0
  %v318 = vsel %vm127, %v77, 0
  %v321 = vsel %vm127, %v78, 0
  %v324 = vsel %vm127, %v79, 0
  %v327 = vsel %vm127, %v80, 0
  %v330 = vsel %vm127, %v81, 0
  %v333 = vsel %vm127, %v82, 0
  %v336 = vsel %vm127, %v83, 0
  %v339 = vsel %vm127, %v84, 0
  %v342 = vsel %vm127, %v85, 0
  %v345 = vsel %vm127, %v86, 0
  %v348 = vsel %vm127, %v87, 0
  %v351 = vsel %vm127, %v88, 0
  %v354 = vsel %vm127, %v89, 0
  %v357 = vsel %vm127, %v90, 0
  %v360 = vsel %vm127, %v91, 0
  %v363 = vsel %vm127, %v92, 0
  %v366 = vsel %vm127, %v93, 0
  %v369 = vsel %vm127, %v94, 0
  %v372 = vsel %vm127, %v95, 0
  %v375 = vsel %vm127, %v96, 0
  %v378 = vsel %vm127, %v97, 0
  %v381 = vsel %vm127, %v98, 0
  %v384 = vsel %vm127, %v99, 0
  %v387 = vsel %vm127, %v100, 0
  %v390 = vsel %vm127, %v101, 0
  %v393 = vsel %vm127, %v102, 0
  %v396 = vsel %vm127, %v103, 0
  %v399 = vsel %vm127, %v104, 0
  %v402 = vsel %vm127, %v105, 0
  %v405 = vsel %vm127, %v106, 0
  %v408 = vsel %vm127, %v107, 0
  %v411 = vsel %vm127, %v108, 0
  %v414 = vsel %vm127, %v109, 0
  %v417 = vsel %vm127, %v110, 0
  %v420 = vsel %vm127, %v111, 0
  %v423 = vsel %vm127, %v112, 0
  %v426 = vsel %vm127, %v113, 0
  %428 = vmatprep.subr.mxu0 0.0
  %429 = vmatpush1.msra.mxu0 %v114
  %430 = vmatprep.subr.mxu0 0.0
  %431 = vmatpush1.msra.mxu0 %v115
  %432 = vmatprep.subr.mxu0 0.0
  %433 = vmatpush1.msra.mxu0 %v116
  %434 = vmatprep.subr.mxu0 0.0
  %435 = vmatpush1.msra.mxu0 %v117
  %436 = vmatprep.subr.mxu0 0.0
  %437 = vmatpush1.msra.mxu0 %v118
  %438 = vmatprep.subr.mxu0 0.0
  %439 = vmatpush1.msra.mxu0 %v119
  %440 = vmatprep.subr.mxu0 0.0
  %441 = vmatpush1.msra.mxu0 0.0
  %442 = vmatprep.subr.mxu0 0.0
  %443 = vmatpush1.msra.mxu0 0.0
  %444 = vmatprep.subr.mxu0 0.0
  %445 = vmatpush1.msra.mxu0 0.0
  %446 = vmatprep.subr.mxu0 0.0
  %447 = vmatpush1.msra.mxu0 0.0
  %448 = vmatprep.subr.mxu0 0.0
  %449 = vmatpush1.msra.mxu0 0.0
  %450 = vmatprep.subr.mxu0 0.0
  %451 = vmatpush1.msra.mxu0 0.0
  %452 = vmatprep.subr.mxu0 0.0
  %453 = vmatpush1.msra.mxu0 0.0
  %454 = vmatprep.subr.mxu0 0.0
  %455 = vmatpush1.msra.mxu0 0.0
  %456 = vmatprep.subr.mxu0 0.0
  %457 = vmatpush1.msra.mxu0 0.0
  %458 = vmatprep.subr.mxu0 0.0
  %459 = vmatpush1.msra.mxu0 0.0
  %460 = vmatprep.subr.mxu0 0.0
  %461 = vmatpush1.msra.mxu0 0.0
  %462 = vmatprep.subr.mxu0 0.0
  %463 = vmatpush1.msra.mxu0 0.0
  %464 = vmatprep.subr.mxu0 0.0
  %465 = vmatpush1.msra.mxu0 0.0
  %466 = vmatprep.subr.mxu0 0.0
  %467 = vmatpush1.msra.mxu0 0.0
  %468 = vmatprep.subr.mxu0 0.0
  %469 = vmatpush1.msra.mxu0 0.0
  %470 = vmatprep.subr.mxu0 0.0
  %471 = vmatpush1.msra.mxu0 0.0
  %472 = vmatprep.subr.mxu0 0.0
  %473 = vmatpush1.msra.mxu0 0.0
  %474 = vmatprep.subr.mxu0 0.0
  %475 = vmatpush1.msra.mxu0 0.0
  %476 = vmatprep.subr.mxu0 0.0
  %477 = vmatpush1.msra.mxu0 0.0
  %478 = vmatprep.subr.mxu0 0.0
  %479 = vmatpush1.msra.mxu0 0.0
  %480 = vmatprep.subr.mxu0 0.0
  %481 = vmatpush1.msra.mxu0 0.0
  %482 = vmatprep.subr.mxu0 0.0
  %483 = vmatpush1.msra.mxu0 0.0
  %484 = vmatprep.subr.mxu0 0.0
  %485 = vmatpush1.msra.mxu0 0.0
  %486 = vmatprep.subr.mxu0 0.0
  %487 = vmatpush1.msra.mxu0 0.0
  %488 = vmatprep.subr.mxu0 0.0
  %489 = vmatpush1.msra.mxu0 0.0
  %490 = vmatprep.subr.mxu0 0.0
  %491 = vmatpush1.msra.mxu0 0.0
  %492 = vmatprep.mubr.f32.mxu0 0.0
  %493 = vmatmul.mubr.f32.gmra.mrb[0].mxu0 %v129
  %v494 = vpop.f32.mrb[0].mxu0
  %v495 = vadd.f32 %v125, %v494
  %v496 = vpop.f32.mrb[0].mxu0
  %497 = vmatprep.mubr.f32.mxu0 0.0
  %498 = vmatmul.mubr.f32.gmra.mrb[0].mxu0 %v132
  %v499 = vpop.f32.mrb[0].mxu0
  %v500 = vadd.f32 %v125, %v499
  %v501 = vpop.f32.mrb[0].mxu0
  %502 = vmatprep.mubr.f32.mxu0 0.0
  %503 = vmatmul.mubr.f32.gmra.mrb[0].mxu0 %v135
  %v504 = vpop.f32.mrb[0].mxu0
  %v505 = vadd.f32 %v125, %v504
  %v506 = vpop.f32.mrb[0].mxu0
  %507 = vmatprep.mubr.f32.mxu0 0.0
  %508 = vmatmul.mubr.f32.gmra.mrb[0].mxu0 %v138
  %v509 = vpop.f32.mrb[0].mxu0
  %v510 = vadd.f32 %v125, %v509
  %v511 = vpop.f32.mrb[0].mxu0
  %512 = vmatprep.mubr.f32.mxu0 0.0
  %513 = vmatmul.mubr.f32.gmra.mrb[0].mxu0 %v141
  %v514 = vpop.f32.mrb[0].mxu0
  %v515 = vadd.f32 %v125, %v514
  %v516 = vpop.f32.mrb[0].mxu0
  %517 = vmatprep.mubr.f32.mxu0 0.0
  %518 = vmatmul.mubr.f32.gmra.mrb[0].mxu0 %v144
  %v519 = vpop.f32.mrb[0].mxu0
  %v520 = vadd.f32 %v125, %v519
  %v521 = vpop.f32.mrb[0].mxu0
  %522 = vmatprep.mubr.f32.mxu0 0.0
  %523 = vmatmul.mubr.f32.gmra.mrb[0].mxu0 %v147
  %v524 = vpop.f32.mrb[0].mxu0
  %v525 = vadd.f32 %v125, %v524
  %v526 = vpop.f32.mrb[0].mxu0
  %527 = vmatprep.mubr.f32.mxu0 0.0
  %528 = vmatmul.mubr.f32.gmra.mrb[0].mxu0 %v150
  %v529 = vpop.f32.mrb[0].mxu0
  %v530 = vadd.f32 %v125, %v529
  %v531 = vpop.f32.mrb[0].mxu0
  %532 = vmatprep.mubr.f32.mxu0 0.0
  %533 = vmatmul.mubr.f32.gmra.mrb[0].mxu0 %v153
  %v534 = vpop.f32.mrb[0].mxu0
  %v535 = vadd.f32 %v125, %v534
  %v536 = vpop.f32.mrb[0].mxu0
  %537 = vmatprep.mubr.f32.mxu0 0.0
  %538 = vmatmul.mubr.f32.gmra.mrb[0].mxu0 %v156
  %v539 = vpop.f32.mrb[0].mxu0
  %v540 = vadd.f32 %v125, %v539
  %v541 = vpop.f32.mrb[0].mxu0
  %542 = vmatprep.mubr.f32.mxu0 0.0
  %543 = vmatmul.mubr.f32.gmra.mrb[0].mxu0 %v159
  %v544 = vpop.f32.mrb[0].mxu0
  %v545 = vadd.f32 %v125, %v544
  %v546 = vpop.f32.mrb[0].mxu0
  %547 = vmatprep.mubr.f32.mxu0 0.0
  %548 = vmatmul.mubr.f32.gmra.mrb[0].mxu0 %v162
  %v549 = vpop.f32.mrb[0].mxu0
  %v550 = vadd.f32 %v125, %v549
  %v551 = vpop.f32.mrb[0].mxu0
  %552 = vmatprep.mubr.f32.mxu0 0.0
  %553 = vmatmul.mubr.f32.gmra.mrb[0].mxu0 %v165
  %v554 = vpop.f32.mrb[0].mxu0
  %v555 = vadd.f32 %v125, %v554
  %v556 = vpop.f32.mrb[0].mxu0
  %557 = vmatprep.mubr.f32.mxu0 0.0
  %558 = vmatmul.mubr.f32.gmra.mrb[0].mxu0 %v168
  %v559 = vpop.f32.mrb[0].mxu0
  %v560 = vadd.f32 %v125, %v559
  %v561 = vpop.f32.mrb[0].mxu0
  %562 = vmatprep.mubr.f32.mxu0 0.0
  %563 = vmatmul.mubr.f32.gmra.mrb[0].mxu0 %v171
  %v564 = vpop.f32.mrb[0].mxu0
  %v565 = vadd.f32 %v125, %v564
  %v566 = vpop.f32.mrb[0].mxu0
  %567 = vmatprep.mubr.f32.mxu0 0.0
  %568 = vmatmul.mubr.f32.gmra.mrb[0].mxu0 %v174
  %v569 = vpop.f32.mrb[0].mxu0
  %v570 = vadd.f32 %v125, %v569
  %v571 = vpop.f32.mrb[0].mxu0
  %572 = vmatprep.mubr.f32.mxu0 0.0
  %573 = vmatmul.mubr.f32.gmra.mrb[0].mxu0 %v177
  %v574 = vpop.f32.mrb[0].mxu0
  %v575 = vadd.f32 %v125, %v574
  %v576 = vpop.f32.mrb[0].mxu0
  %577 = vmatprep.mubr.f32.mxu0 0.0
  %578 = vmatmul.mubr.f32.gmra.mrb[0].mxu0 %v180
  %v579 = vpop.f32.mrb[0].mxu0
  %v580 = vadd.f32 %v125, %v579
  %v581 = vpop.f32.mrb[0].mxu0
  %582 = vmatprep.mubr.f32.mxu0 0.0
  %583 = vmatmul.mubr.f32.gmra.mrb[0].mxu0 %v183
  %v584 = vpop.f32.mrb[0].mxu0
  %v585 = vadd.f32 %v125, %v584
  %v586 = vpop.f32.mrb[0].mxu0
  %587 = vmatprep.mubr.f32.mxu0 0.0
  %588 = vmatmul.mubr.f32.gmra.mrb[0].mxu0 %v186
  %v589 = vpop.f32.mrb[0].mxu0
  %v590 = vadd.f32 %v125, %v589
  %v591 = vpop.f32.mrb[0].mxu0
  %592 = vmatprep.mubr.f32.mxu0 0.0
  %593 = vmatmul.mubr.f32.gmra.mrb[0].mxu0 %v189
  %v594 = vpop.f32.mrb[0].mxu0
  %v595 = vadd.f32 %v125, %v594
  %v596 = vpop.f32.mrb[0].mxu0
  %597 = vmatprep.mubr.f32.mxu0 0.0
  %598 = vmatmul.mubr.f32.gmra.mrb[0].mxu0 %v192
  %v599 = vpop.f32.mrb[0].mxu0
  %v600 = vadd.f32 %v125, %v599
  %v601 = vpop.f32.mrb[0].mxu0
  %602 = vmatprep.mubr.f32.mxu0 0.0
  %603 = vmatmul.mubr.f32.gmra.mrb[0].mxu0 %v195
  %v604 = vpop.f32.mrb[0].mxu0
  %v605 = vadd.f32 %v125, %v604
  %v606 = vpop.f32.mrb[0].mxu0
  %607 = vmatprep.mubr.f32.mxu0 0.0
  %608 = vmatmul.mubr.f32.gmra.mrb[0].mxu0 %v198
  %v609 = vpop.f32.mrb[0].mxu0
  %v610 = vadd.f32 %v125, %v609
  %v611 = vpop.f32.mrb[0].mxu0
  %612 = vmatprep.mubr.f32.mxu0 0.0
  %613 = vmatmul.mubr.f32.gmra.mrb[0].mxu0 %v201
  %v614 = vpop.f32.mrb[0].mxu0
  %v615 = vadd.f32 %v125, %v614
  %v616 = vpop.f32.mrb[0].mxu0
  %617 = vmatprep.mubr.f32.mxu0 0.0
  %618 = vmatmul.mubr.f32.gmra.mrb[0].mxu0 %v204
  %v619 = vpop.f32.mrb[0].mxu0
  %v620 = vadd.f32 %v125, %v619
  %v621 = vpop.f32.mrb[0].mxu0
  %622 = vmatprep.mubr.f32.mxu0 0.0
  %623 = vmatmul.mubr.f32.gmra.mrb[0].mxu0 %v207
  %v624 = vpop.f32.mrb[0].mxu0
  %v625 = vadd.f32 %v125, %v624
  %v626 = vpop.f32.mrb[0].mxu0
  %627 = vmatprep.mubr.f32.mxu0 0.0
  %628 = vmatmul.mubr.f32.gmra.mrb[0].mxu0 %v210
  %v629 = vpop.f32.mrb[0].mxu0
  %v630 = vadd.f32 %v125, %v629
  %v631 = vpop.f32.mrb[0].mxu0
  %632 = vmatprep.mubr.f32.mxu0 0.0
  %633 = vmatmul.mubr.f32.gmra.mrb[0].mxu0 %v213
  %v634 = vpop.f32.mrb[0].mxu0
  %v635 = vadd.f32 %v125, %v634
  %v636 = vpop.f32.mrb[0].mxu0
  %637 = vmatprep.mubr.f32.mxu0 0.0
  %638 = vmatmul.mubr.f32.gmra.mrb[0].mxu0 %v216
  %v639 = vpop.f32.mrb[0].mxu0
  %v640 = vadd.f32 %v125, %v639
  %v641 = vpop.f32.mrb[0].mxu0
  %642 = vmatprep.mubr.f32.mxu0 0.0
  %643 = vmatmul.mubr.f32.gmra.mrb[0].mxu0 %v219
  %v644 = vpop.f32.mrb[0].mxu0
  %v645 = vadd.f32 %v125, %v644
  %v646 = vpop.f32.mrb[0].mxu0
  %647 = vmatprep.mubr.f32.mxu0 0.0
  %648 = vmatmul.mubr.f32.gmra.mrb[0].mxu0 %v222
  %v649 = vpop.f32.mrb[0].mxu0
  %v650 = vadd.f32 %v125, %v649
  %v651 = vpop.f32.mrb[0].mxu0
  %652 = vmatprep.mubr.f32.mxu0 0.0
  %653 = vmatmul.mubr.f32.gmra.mrb[0].mxu0 %v225
  %v654 = vpop.f32.mrb[0].mxu0
  %v655 = vadd.f32 %v125, %v654
  %v656 = vpop.f32.mrb[0].mxu0
  %657 = vmatprep.mubr.f32.mxu0 0.0
  %658 = vmatmul.mubr.f32.gmra.mrb[0].mxu0 %v228
  %v659 = vpop.f32.mrb[0].mxu0
  %v660 = vadd.f32 %v125, %v659
  %v661 = vpop.f32.mrb[0].mxu0
  %662 = vmatprep.mubr.f32.mxu0 0.0
  %663 = vmatmul.mubr.f32.gmra.mrb[0].mxu0 %v231
  %v664 = vpop.f32.mrb[0].mxu0
  %v665 = vadd.f32 %v125, %v664
  %v666 = vpop.f32.mrb[0].mxu0
  %667 = vmatprep.mubr.f32.mxu0 0.0
  %668 = vmatmul.mubr.f32.gmra.mrb[0].mxu0 %v234
  %v669 = vpop.f32.mrb[0].mxu0
  %v670 = vadd.f32 %v125, %v669
  %v671 = vpop.f32.mrb[0].mxu0
  %672 = vmatprep.mubr.f32.mxu0 0.0
  %673 = vmatmul.mubr.f32.gmra.mrb[0].mxu0 %v237
  %v674 = vpop.f32.mrb[0].mxu0
  %v675 = vadd.f32 %v125, %v674
  %v676 = vpop.f32.mrb[0].mxu0
  %677 = vmatprep.mubr.f32.mxu0 0.0
  %678 = vmatmul.mubr.f32.gmra.mrb[0].mxu0 %v240
  %v679 = vpop.f32.mrb[0].mxu0
  %v680 = vadd.f32 %v125, %v679
  %v681 = vpop.f32.mrb[0].mxu0
  %682 = vmatprep.mubr.f32.mxu0 0.0
  %683 = vmatmul.mubr.f32.gmra.mrb[0].mxu0 %v243
  %v684 = vpop.f32.mrb[0].mxu0
  %v685 = vadd.f32 %v125, %v684
  %v686 = vpop.f32.mrb[0].mxu0
  %687 = vmatprep.mubr.f32.mxu0 0.0
  %688 = vmatmul.mubr.f32.gmra.mrb[0].mxu0 %v246
  %v689 = vpop.f32.mrb[0].mxu0
  %v690 = vadd.f32 %v125, %v689
  %v691 = vpop.f32.mrb[0].mxu0
  %692 = vmatprep.mubr.f32.mxu0 0.0
  %693 = vmatmul.mubr.f32.gmra.mrb[0].mxu0 %v249
  %v694 = vpop.f32.mrb[0].mxu0
  %v695 = vadd.f32 %v125, %v694
  %v696 = vpop.f32.mrb[0].mxu0
  %697 = vmatprep.mubr.f32.mxu0 0.0
  %698 = vmatmul.mubr.f32.gmra.mrb[0].mxu0 %v252
  %v699 = vpop.f32.mrb[0].mxu0
  %v700 = vadd.f32 %v125, %v699
  %v701 = vpop.f32.mrb[0].mxu0
  %702 = vmatprep.mubr.f32.mxu0 0.0
  %703 = vmatmul.mubr.f32.gmra.mrb[0].mxu0 %v255
  %v704 = vpop.f32.mrb[0].mxu0
  %v705 = vadd.f32 %v125, %v704
  %v706 = vpop.f32.mrb[0].mxu0
  %707 = vmatprep.mubr.f32.mxu0 0.0
  %708 = vmatmul.mubr.f32.gmra.mrb[0].mxu0 %v258
  %v709 = vpop.f32.mrb[0].mxu0
  %v710 = vadd.f32 %v125, %v709
  %v711 = vpop.f32.mrb[0].mxu0
  %712 = vmatprep.mubr.f32.mxu0 0.0
  %713 = vmatmul.mubr.f32.gmra.mrb[0].mxu0 %v261
  %v714 = vpop.f32.mrb[0].mxu0
  %v715 = vadd.f32 %v125, %v714
  %v716 = vpop.f32.mrb[0].mxu0
  %717 = vmatprep.mubr.f32.mxu0 0.0
  %718 = vmatmul.mubr.f32.gmra.mrb[0].mxu0 %v264
  %v719 = vpop.f32.mrb[0].mxu0
  %v720 = vadd.f32 %v125, %v719
  %v721 = vpop.f32.mrb[0].mxu0
  %722 = vmatprep.mubr.f32.mxu0 0.0
  %723 = vmatmul.mubr.f32.gmra.mrb[0].mxu0 %v267
  %v724 = vpop.f32.mrb[0].mxu0
  %v725 = vadd.f32 %v125, %v724
  %v726 = vpop.f32.mrb[0].mxu0
  %727 = vmatprep.mubr.f32.mxu0 0.0
  %728 = vmatmul.mubr.f32.gmra.mrb[0].mxu0 %v270
  %v729 = vpop.f32.mrb[0].mxu0
  %v730 = vadd.f32 %v125, %v729
  %v731 = vpop.f32.mrb[0].mxu0
  %732 = vmatprep.mubr.f32.mxu0 0.0
  %733 = vmatmul.mubr.f32.gmra.mrb[0].mxu0 %v273
  %v734 = vpop.f32.mrb[0].mxu0
  %v735 = vadd.f32 %v125, %v734
  %v736 = vpop.f32.mrb[0].mxu0
  %737 = vmatprep.mubr.f32.mxu0 0.0
  %738 = vmatmul.mubr.f32.gmra.mrb[0].mxu0 %v276
  %v739 = vpop.f32.mrb[0].mxu0
  %v740 = vadd.f32 %v125, %v739
  %v741 = vpop.f32.mrb[0].mxu0
  %742 = vmatprep.mubr.f32.mxu0 0.0
  %743 = vmatmul.mubr.f32.gmra.mrb[0].mxu0 %v279
  %v744 = vpop.f32.mrb[0].mxu0
  %v745 = vadd.f32 %v125, %v744
  %v746 = vpop.f32.mrb[0].mxu0
  %747 = vmatprep.mubr.f32.mxu0 0.0
  %748 = vmatmul.mubr.f32.gmra.mrb[0].mxu0 %v282
  %v749 = vpop.f32.mrb[0].mxu0
  %v750 = vadd.f32 %v125, %v749
  %v751 = vpop.f32.mrb[0].mxu0
  %752 = vmatprep.mubr.f32.mxu0 0.0
  %753 = vmatmul.mubr.f32.gmra.mrb[0].mxu0 %v285
  %v754 = vpop.f32.mrb[0].mxu0
  %v755 = vadd.f32 %v125, %v754
  %v756 = vpop.f32.mrb[0].mxu0
  %757 = vmatprep.mubr.f32.mxu0 0.0
  %758 = vmatmul.mubr.f32.gmra.mrb[0].mxu0 %v288
  %v759 = vpop.f32.mrb[0].mxu0
  %v760 = vadd.f32 %v125, %v759
  %v761 = vpop.f32.mrb[0].mxu0
  %762 = vmatprep.mubr.f32.mxu0 0.0
  %763 = vmatmul.mubr.f32.gmra.mrb[0].mxu0 %v291
  %v764 = vpop.f32.mrb[0].mxu0
  %v765 = vadd.f32 %v125, %v764
  %v766 = vpop.f32.mrb[0].mxu0
  %767 = vmatprep.mubr.f32.mxu0 0.0
  %768 = vmatmul.mubr.f32.gmra.mrb[0].mxu0 %v294
  %v769 = vpop.f32.mrb[0].mxu0
  %v770 = vadd.f32 %v125, %v769
  %v771 = vpop.f32.mrb[0].mxu0
  %772 = vmatprep.mubr.f32.mxu0 0.0
  %773 = vmatmul.mubr.f32.gmra.mrb[0].mxu0 %v297
  %v774 = vpop.f32.mrb[0].mxu0
  %v775 = vadd.f32 %v125, %v774
  %v776 = vpop.f32.mrb[0].mxu0
  %777 = vmatprep.mubr.f32.mxu0 0.0
  %778 = vmatmul.mubr.f32.gmra.mrb[0].mxu0 %v300
  %v779 = vpop.f32.mrb[0].mxu0
  %v780 = vadd.f32 %v125, %v779
  %v781 = vpop.f32.mrb[0].mxu0
  %782 = vmatprep.mubr.f32.mxu0 0.0
  %783 = vmatmul.mubr.f32.gmra.mrb[0].mxu0 %v303
  %v784 = vpop.f32.mrb[0].mxu0
  %v785 = vadd.f32 %v125, %v784
  %v786 = vpop.f32.mrb[0].mxu0
  %787 = vmatprep.mubr.f32.mxu0 0.0
  %788 = vmatmul.mubr.f32.gmra.mrb[0].mxu0 %v306
  %v789 = vpop.f32.mrb[0].mxu0
  %v790 = vadd.f32 %v125, %v789
  %v791 = vpop.f32.mrb[0].mxu0
  %792 = vmatprep.mubr.f32.mxu0 0.0
  %793 = vmatmul.mubr.f32.gmra.mrb[0].mxu0 %v309
  %v794 = vpop.f32.mrb[0].mxu0
  %v795 = vadd.f32 %v125, %v794
  %v796 = vpop.f32.mrb[0].mxu0
  %797 = vmatprep.mubr.f32.mxu0 0.0
  %798 = vmatmul.mubr.f32.gmra.mrb[0].mxu0 %v312
  %v799 = vpop.f32.mrb[0].mxu0
  %v800 = vadd.f32 %v125, %v799
  %v801 = vpop.f32.mrb[0].mxu0
  %802 = vmatprep.mubr.f32.mxu0 0.0
  %803 = vmatmul.mubr.f32.gmra.mrb[0].mxu0 %v315
  %v804 = vpop.f32.mrb[0].mxu0
  %v805 = vadd.f32 %v125, %v804
  %v806 = vpop.f32.mrb[0].mxu0
  %807 = vmatprep.mubr.f32.mxu0 0.0
  %808 = vmatmul.mubr.f32.gmra.mrb[0].mxu0 %v318
  %v809 = vpop.f32.mrb[0].mxu0
  %v810 = vadd.f32 %v125, %v809
  %v811 = vpop.f32.mrb[0].mxu0
  %812 = vmatprep.mubr.f32.mxu0 0.0
  %813 = vmatmul.mubr.f32.gmra.mrb[0].mxu0 %v321
  %v814 = vpop.f32.mrb[0].mxu0
  %v815 = vadd.f32 %v125, %v814
  %v816 = vpop.f32.mrb[0].mxu0
  %817 = vmatprep.mubr.f32.mxu0 0.0
  %818 = vmatmul.mubr.f32.gmra.mrb[0].mxu0 %v324
  %v819 = vpop.f32.mrb[0].mxu0
  %v820 = vadd.f32 %v125, %v819
  %v821 = vpop.f32.mrb[0].mxu0
  %822 = vmatprep.mubr.f32.mxu0 0.0
  %823 = vmatmul.mubr.f32.gmra.mrb[0].mxu0 %v327
  %v824 = vpop.f32.mrb[0].mxu0
  %v825 = vadd.f32 %v125, %v824
  %v826 = vpop.f32.mrb[0].mxu0
  %827 = vmatprep.mubr.f32.mxu0 0.0
  %828 = vmatmul.mubr.f32.gmra.mrb[0].mxu0 %v330
  %v829 = vpop.f32.mrb[0].mxu0
  %v830 = vadd.f32 %v125, %v829
  %v831 = vpop.f32.mrb[0].mxu0
  %832 = vmatprep.mubr.f32.mxu0 0.0
  %833 = vmatmul.mubr.f32.gmra.mrb[0].mxu0 %v333
  %v834 = vpop.f32.mrb[0].mxu0
  %v835 = vadd.f32 %v125, %v834
  %v836 = vpop.f32.mrb[0].mxu0
  %837 = vmatprep.mubr.f32.mxu0 0.0
  %838 = vmatmul.mubr.f32.gmra.mrb[0].mxu0 %v336
  %v839 = vpop.f32.mrb[0].mxu0
  %v840 = vadd.f32 %v125, %v839
  %v841 = vpop.f32.mrb[0].mxu0
  %842 = vmatprep.mubr.f32.mxu0 0.0
  %843 = vmatmul.mubr.f32.gmra.mrb[0].mxu0 %v339
  %v844 = vpop.f32.mrb[0].mxu0
  %v845 = vadd.f32 %v125, %v844
  %v846 = vpop.f32.mrb[0].mxu0
  %847 = vmatprep.mubr.f32.mxu0 0.0
  %848 = vmatmul.mubr.f32.gmra.mrb[0].mxu0 %v342
  %v849 = vpop.f32.mrb[0].mxu0
  %v850 = vadd.f32 %v125, %v849
  %v851 = vpop.f32.mrb[0].mxu0
  %852 = vmatprep.mubr.f32.mxu0 0.0
  %853 = vmatmul.mubr.f32.gmra.mrb[0].mxu0 %v345
  %v854 = vpop.f32.mrb[0].mxu0
  %v855 = vadd.f32 %v125, %v854
  %v856 = vpop.f32.mrb[0].mxu0
  %857 = vmatprep.mubr.f32.mxu0 0.0
  %858 = vmatmul.mubr.f32.gmra.mrb[0].mxu0 %v348
  %v859 = vpop.f32.mrb[0].mxu0
  %v860 = vadd.f32 %v125, %v859
  %v861 = vpop.f32.mrb[0].mxu0
  %862 = vmatprep.mubr.f32.mxu0 0.0
  %863 = vmatmul.mubr.f32.gmra.mrb[0].mxu0 %v351
  %v864 = vpop.f32.mrb[0].mxu0
  %v865 = vadd.f32 %v125, %v864
  %v866 = vpop.f32.mrb[0].mxu0
  %867 = vmatprep.mubr.f32.mxu0 0.0
  %868 = vmatmul.mubr.f32.gmra.mrb[0].mxu0 %v354
  %v869 = vpop.f32.mrb[0].mxu0
  %v870 = vadd.f32 %v125, %v869
  %v871 = vpop.f32.mrb[0].mxu0
  %872 = vmatprep.mubr.f32.mxu0 0.0
  %873 = vmatmul.mubr.f32.gmra.mrb[0].mxu0 %v357
  %v874 = vpop.f32.mrb[0].mxu0
  %v875 = vadd.f32 %v125, %v874
  %v876 = vpop.f32.mrb[0].mxu0
  %877 = vmatprep.mubr.f32.mxu0 0.0
  %878 = vmatmul.mubr.f32.gmra.mrb[0].mxu0 %v360
  %v879 = vpop.f32.mrb[0].mxu0
  %v880 = vadd.f32 %v125, %v879
  %v881 = vpop.f32.mrb[0].mxu0
  %882 = vmatprep.mubr.f32.mxu0 0.0
  %883 = vmatmul.mubr.f32.gmra.mrb[0].mxu0 %v363
  %v884 = vpop.f32.mrb[0].mxu0
  %v885 = vadd.f32 %v125, %v884
  %v886 = vpop.f32.mrb[0].mxu0
  %887 = vmatprep.mubr.f32.mxu0 0.0
  %888 = vmatmul.mubr.f32.gmra.mrb[0].mxu0 %v366
  %v889 = vpop.f32.mrb[0].mxu0
  %v890 = vadd.f32 %v125, %v889
  %v891 = vpop.f32.mrb[0].mxu0
  %892 = vmatprep.mubr.f32.mxu0 0.0
  %893 = vmatmul.mubr.f32.gmra.mrb[0].mxu0 %v369
  %v894 = vpop.f32.mrb[0].mxu0
  %v895 = vadd.f32 %v125, %v894
  %v896 = vpop.f32.mrb[0].mxu0
  %897 = vmatprep.mubr.f32.mxu0 0.0
  %898 = vmatmul.mubr.f32.gmra.mrb[0].mxu0 %v372
  %v899 = vpop.f32.mrb[0].mxu0
  %v900 = vadd.f32 %v125, %v899
  %v901 = vpop.f32.mrb[0].mxu0
  %902 = vmatprep.mubr.f32.mxu0 0.0
  %903 = vmatmul.mubr.f32.gmra.mrb[0].mxu0 %v375
  %v904 = vpop.f32.mrb[0].mxu0
  %v905 = vadd.f32 %v125, %v904
  %v906 = vpop.f32.mrb[0].mxu0
  %907 = vmatprep.mubr.f32.mxu0 0.0
  %908 = vmatmul.mubr.f32.gmra.mrb[0].mxu0 %v378
  %v909 = vpop.f32.mrb[0].mxu0
  %v910 = vadd.f32 %v125, %v909
  %v911 = vpop.f32.mrb[0].mxu0
  %912 = vmatprep.mubr.f32.mxu0 0.0
  %913 = vmatmul.mubr.f32.gmra.mrb[0].mxu0 %v381
  %v914 = vpop.f32.mrb[0].mxu0
  %v915 = vadd.f32 %v125, %v914
  %v916 = vpop.f32.mrb[0].mxu0
  %917 = vmatprep.mubr.f32.mxu0 0.0
  %918 = vmatmul.mubr.f32.gmra.mrb[0].mxu0 %v384
  %v919 = vpop.f32.mrb[0].mxu0
  %v920 = vadd.f32 %v125, %v919
  %v921 = vpop.f32.mrb[0].mxu0
  %922 = vmatprep.mubr.f32.mxu0 0.0
  %923 = vmatmul.mubr.f32.gmra.mrb[0].mxu0 %v387
  %v924 = vpop.f32.mrb[0].mxu0
  %v925 = vadd.f32 %v125, %v924
  %v926 = vpop.f32.mrb[0].mxu0
  %927 = vmatprep.mubr.f32.mxu0 0.0
  %928 = vmatmul.mubr.f32.gmra.mrb[0].mxu0 %v390
  %v929 = vpop.f32.mrb[0].mxu0
  %v930 = vadd.f32 %v125, %v929
  %v931 = vpop.f32.mrb[0].mxu0
  %932 = vmatprep.mubr.f32.mxu0 0.0
  %933 = vmatmul.mubr.f32.gmra.mrb[0].mxu0 %v393
  %v934 = vpop.f32.mrb[0].mxu0
  %v935 = vadd.f32 %v125, %v934
  %v936 = vpop.f32.mrb[0].mxu0
  %937 = vmatprep.mubr.f32.mxu0 0.0
  %938 = vmatmul.mubr.f32.gmra.mrb[0].mxu0 %v396
  %v939 = vpop.f32.mrb[0].mxu0
  %v940 = vadd.f32 %v125, %v939
  %v941 = vpop.f32.mrb[0].mxu0
  %942 = vmatprep.mubr.f32.mxu0 0.0
  %943 = vmatmul.mubr.f32.gmra.mrb[0].mxu0 %v399
  %v944 = vpop.f32.mrb[0].mxu0
  %v945 = vadd.f32 %v125, %v944
  %v946 = vpop.f32.mrb[0].mxu0
  %947 = vmatprep.mubr.f32.mxu0 0.0
  %948 = vmatmul.mubr.f32.gmra.mrb[0].mxu0 %v402
  %v949 = vpop.f32.mrb[0].mxu0
  %v950 = vadd.f32 %v125, %v949
  %v951 = vpop.f32.mrb[0].mxu0
  %952 = vmatprep.mubr.f32.mxu0 0.0
  %953 = vmatmul.mubr.f32.gmra.mrb[0].mxu0 %v405
  %v954 = vpop.f32.mrb[0].mxu0
  %v955 = vadd.f32 %v125, %v954
  %v956 = vpop.f32.mrb[0].mxu0
  %957 = vmatprep.mubr.f32.mxu0 0.0
  %958 = vmatmul.mubr.f32.gmra.mrb[0].mxu0 %v408
  %v959 = vpop.f32.mrb[0].mxu0
  %v960 = vadd.f32 %v125, %v959
  %v961 = vpop.f32.mrb[0].mxu0
  %962 = vmatprep.mubr.f32.mxu0 0.0
  %963 = vmatmul.mubr.f32.gmra.mrb[0].mxu0 %v411
  %v964 = vpop.f32.mrb[0].mxu0
  %v965 = vadd.f32 %v125, %v964
  %v966 = vpop.f32.mrb[0].mxu0
  %967 = vmatprep.mubr.f32.mxu0 0.0
  %968 = vmatmul.mubr.f32.gmra.mrb[0].mxu0 %v414
  %v969 = vpop.f32.mrb[0].mxu0
  %v970 = vadd.f32 %v125, %v969
  %v971 = vpop.f32.mrb[0].mxu0
  %972 = vmatprep.mubr.f32.mxu0 0.0
  %973 = vmatmul.mubr.f32.gmra.mrb[0].mxu0 %v417
  %v974 = vpop.f32.mrb[0].mxu0
  %v975 = vadd.f32 %v125, %v974
  %v976 = vpop.f32.mrb[0].mxu0
  %977 = vmatprep.mubr.f32.mxu0 0.0
  %978 = vmatmul.mubr.f32.gmra.mrb[0].mxu0 %v420
  %v979 = vpop.f32.mrb[0].mxu0
  %v980 = vadd.f32 %v125, %v979
  %v981 = vpop.f32.mrb[0].mxu0
  %982 = vmatprep.mubr.f32.mxu0 0.0
  %983 = vmatmul.mubr.f32.gmra.mrb[0].mxu0 %v423
  %v984 = vpop.f32.mrb[0].mxu0
  %v985 = vadd.f32 %v125, %v984
  %v986 = vpop.f32.mrb[0].mxu0
  %987 = vmatprep.mubr.f32.mxu0 0.0
  %988 = vmatmul.mubr.f32.gmra.mrb[0].mxu0 %v426
  %v989 = vpop.f32.mrb[0].mxu0
  %v990 = vadd.f32 %v125, %v989
  %v991 = vpop.f32.mrb[0].mxu0
  %992 = vdwg.mxu0
  %vm993 = vcmp.gt.f32.partialorder %v495, 0.0
  %vm994 = vcmp.gt.f32.partialorder %v500, 0.0
  %vm995 = vcmp.gt.f32.partialorder %v505, 0.0
  %vm996 = vcmp.gt.f32.partialorder %v510, 0.0
  %vm997 = vcmp.gt.f32.partialorder %v515, 0.0
  %vm998 = vcmp.gt.f32.partialorder %v520, 0.0
  %vm999 = vcmp.gt.f32.partialorder %v525, 0.0
  %vm1000 = vcmp.gt.f32.partialorder %v530, 0.0
  %vm1001 = vcmp.gt.f32.partialorder %v535, 0.0
  %vm1002 = vcmp.gt.f32.partialorder %v540, 0.0
  %vm1003 = vcmp.gt.f32.partialorder %v545, 0.0
  %vm1004 = vcmp.gt.f32.partialorder %v550, 0.0
  %vm1005 = vcmp.gt.f32.partialorder %v555, 0.0
  %vm1006 = vcmp.gt.f32.partialorder %v560, 0.0
  %vm1007 = vcmp.gt.f32.partialorder %v565, 0.0
  %vm1008 = vcmp.gt.f32.partialorder %v570, 0.0
  %vm1009 = vcmp.gt.f32.partialorder %v575, 0.0
  %vm1010 = vcmp.gt.f32.partialorder %v580, 0.0
  %vm1011 = vcmp.gt.f32.partialorder %v585, 0.0
  %vm1012 = vcmp.gt.f32.partialorder %v590, 0.0
  %vm1013 = vcmp.gt.f32.partialorder %v595, 0.0
  %vm1014 = vcmp.gt.f32.partialorder %v600, 0.0
  %vm1015 = vcmp.gt.f32.partialorder %v605, 0.0
  %vm1016 = vcmp.gt.f32.partialorder %v610, 0.0
  %vm1017 = vcmp.gt.f32.partialorder %v615, 0.0
  %vm1018 = vcmp.gt.f32.partialorder %v620, 0.0
  %vm1019 = vcmp.gt.f32.partialorder %v625, 0.0
  %vm1020 = vcmp.gt.f32.partialorder %v630, 0.0
  %vm1021 = vcmp.gt.f32.partialorder %v635, 0.0
  %vm1022 = vcmp.gt.f32.partialorder %v640, 0.0
  %vm1023 = vcmp.gt.f32.partialorder %v645, 0.0
  %vm1024 = vcmp.gt.f32.partialorder %v650, 0.0
  %vm1025 = vcmp.gt.f32.partialorder %v655, 0.0
  %vm1026 = vcmp.gt.f32.partialorder %v660, 0.0
  %vm1027 = vcmp.gt.f32.partialorder %v665, 0.0
  %vm1028 = vcmp.gt.f32.partialorder %v670, 0.0
  %vm1029 = vcmp.gt.f32.partialorder %v675, 0.0
  %vm1030 = vcmp.gt.f32.partialorder %v680, 0.0
  %vm1031 = vcmp.gt.f32.partialorder %v685, 0.0
  %vm1032 = vcmp.gt.f32.partialorder %v690, 0.0
  %vm1033 = vcmp.gt.f32.partialorder %v695, 0.0
  %vm1034 = vcmp.gt.f32.partialorder %v700, 0.0
  %vm1035 = vcmp.gt.f32.partialorder %v705, 0.0
  %vm1036 = vcmp.gt.f32.partialorder %v710, 0.0
  %vm1037 = vcmp.gt.f32.partialorder %v715, 0.0
  %vm1038 = vcmp.gt.f32.partialorder %v720, 0.0
  %vm1039 = vcmp.gt.f32.partialorder %v725, 0.0
  %vm1040 = vcmp.gt.f32.partialorder %v730, 0.0
  %vm1041 = vcmp.gt.f32.partialorder %v735, 0.0
  %vm1042 = vcmp.gt.f32.partialorder %v740, 0.0
  %vm1043 = vcmp.gt.f32.partialorder %v745, 0.0
  %vm1044 = vcmp.gt.f32.partialorder %v750, 0.0
  %vm1045 = vcmp.gt.f32.partialorder %v755, 0.0
  %vm1046 = vcmp.gt.f32.partialorder %v760, 0.0
  %vm1047 = vcmp.gt.f32.partialorder %v765, 0.0
  %vm1048 = vcmp.gt.f32.partialorder %v770, 0.0
  %vm1049 = vcmp.gt.f32.partialorder %v775, 0.0
  %vm1050 = vcmp.gt.f32.partialorder %v780, 0.0
  %vm1051 = vcmp.gt.f32.partialorder %v785, 0.0
  %vm1052 = vcmp.gt.f32.partialorder %v790, 0.0
  %vm1053 = vcmp.gt.f32.partialorder %v795, 0.0
  %vm1054 = vcmp.gt.f32.partialorder %v800, 0.0
  %vm1055 = vcmp.gt.f32.partialorder %v805, 0.0
  %vm1056 = vcmp.gt.f32.partialorder %v810, 0.0
  %vm1057 = vcmp.gt.f32.partialorder %v815, 0.0
  %vm1058 = vcmp.gt.f32.partialorder %v820, 0.0
  %vm1059 = vcmp.gt.f32.partialorder %v825, 0.0
  %vm1060 = vcmp.gt.f32.partialorder %v830, 0.0
  %vm1061 = vcmp.gt.f32.partialorder %v835, 0.0
  %vm1062 = vcmp.gt.f32.partialorder %v840, 0.0
  %vm1063 = vcmp.gt.f32.partialorder %v845, 0.0
  %vm1064 = vcmp.gt.f32.partialorder %v850, 0.0
  %vm1065 = vcmp.gt.f32.partialorder %v855, 0.0
  %vm1066 = vcmp.gt.f32.partialorder %v860, 0.0
  %vm1067 = vcmp.gt.f32.partialorder %v865, 0.0
  %vm1068 = vcmp.gt.f32.partialorder %v870, 0.0
  %vm1069 = vcmp.gt.f32.partialorder %v875, 0.0
  %vm1070 = vcmp.gt.f32.partialorder %v880, 0.0
  %vm1071 = vcmp.gt.f32.partialorder %v885, 0.0
  %vm1072 = vcmp.gt.f32.partialorder %v890, 0.0
  %vm1073 = vcmp.gt.f32.partialorder %v895, 0.0
  %vm1074 = vcmp.gt.f32.partialorder %v900, 0.0
  %vm1075 = vcmp.gt.f32.partialorder %v905, 0.0
  %vm1076 = vcmp.gt.f32.partialorder %v910, 0.0
  %vm1077 = vcmp.gt.f32.partialorder %v915, 0.0
  %vm1078 = vcmp.gt.f32.partialorder %v920, 0.0
  %vm1079 = vcmp.gt.f32.partialorder %v925, 0.0
  %vm1080 = vcmp.gt.f32.partialorder %v930, 0.0
  %vm1081 = vcmp.gt.f32.partialorder %v935, 0.0
  %vm1082 = vcmp.gt.f32.partialorder %v940, 0.0
  %vm1083 = vcmp.gt.f32.partialorder %v945, 0.0
  %vm1084 = vcmp.gt.f32.partialorder %v950, 0.0
  %vm1085 = vcmp.gt.f32.partialorder %v955, 0.0
  %vm1086 = vcmp.gt.f32.partialorder %v960, 0.0
  %vm1087 = vcmp.gt.f32.partialorder %v965, 0.0
  %vm1088 = vcmp.gt.f32.partialorder %v970, 0.0
  %vm1089 = vcmp.gt.f32.partialorder %v975, 0.0
  %vm1090 = vcmp.gt.f32.partialorder %v980, 0.0
  %vm1091 = vcmp.gt.f32.partialorder %v985, 0.0
  %vm1092 = vcmp.gt.f32.partialorder %v990, 0.0
  %v1093 = vmul.f32 %v495, 1.442695
  %v1094 = vpow.pop %v1093
  %v1095 = vmul.f32 %v500, 1.442695
  %v1096 = vpow.pop %v1095
  %v1097 = vmul.f32 %v505, 1.442695
  %v1098 = vpow.pop %v1097
  %v1099 = vmul.f32 %v510, 1.442695
  %v1100 = vpow.pop %v1099
  %v1101 = vmul.f32 %v515, 1.442695
  %v1102 = vpow.pop %v1101
  %v1103 = vmul.f32 %v520, 1.442695
  %v1104 = vpow.pop %v1103
  %v1105 = vmul.f32 %v525, 1.442695
  %v1106 = vpow.pop %v1105
  %v1107 = vmul.f32 %v530, 1.442695
  %v1108 = vpow.pop %v1107
  %v1109 = vmul.f32 %v535, 1.442695
  %v1110 = vpow.pop %v1109
  %v1111 = vmul.f32 %v540, 1.442695
  %v1112 = vpow.pop %v1111
  %v1113 = vmul.f32 %v545, 1.442695
  %v1114 = vpow.pop %v1113
  %v1115 = vmul.f32 %v550, 1.442695
  %v1116 = vpow.pop %v1115
  %v1117 = vmul.f32 %v555, 1.442695
  %v1118 = vpow.pop %v1117
  %v1119 = vmul.f32 %v560, 1.442695
  %v1120 = vpow.pop %v1119
  %v1121 = vmul.f32 %v565, 1.442695
  %v1122 = vpow.pop %v1121
  %v1123 = vmul.f32 %v570, 1.442695
  %v1124 = vpow.pop %v1123
  %v1125 = vmul.f32 %v575, 1.442695
  %v1126 = vpow.pop %v1125
  %v1127 = vmul.f32 %v580, 1.442695
  %v1128 = vpow.pop %v1127
  %v1129 = vmul.f32 %v585, 1.442695
  %v1130 = vpow.pop %v1129
  %v1131 = vmul.f32 %v590, 1.442695
  %v1132 = vpow.pop %v1131
  %v1133 = vmul.f32 %v595, 1.442695
  %v1134 = vpow.pop %v1133
  %v1135 = vmul.f32 %v600, 1.442695
  %v1136 = vpow.pop %v1135
  %v1137 = vmul.f32 %v605, 1.442695
  %v1138 = vpow.pop %v1137
  %v1139 = vmul.f32 %v610, 1.442695
  %v1140 = vpow.pop %v1139
  %v1141 = vmul.f32 %v615, 1.442695
  %v1142 = vpow.pop %v1141
  %v1143 = vmul.f32 %v620, 1.442695
  %v1144 = vpow.pop %v1143
  %v1145 = vmul.f32 %v625, 1.442695
  %v1146 = vpow.pop %v1145
  %v1147 = vmul.f32 %v630, 1.442695
  %v1148 = vpow.pop %v1147
  %v1149 = vmul.f32 %v635, 1.442695
  %v1150 = vpow.pop %v1149
  %v1151 = vmul.f32 %v640, 1.442695
  %v1152 = vpow.pop %v1151
  %v1153 = vmul.f32 %v645, 1.442695
  %v1154 = vpow.pop %v1153
  %v1155 = vmul.f32 %v650, 1.442695
  %v1156 = vpow.pop %v1155
  %v1157 = vmul.f32 %v655, 1.442695
  %v1158 = vpow.pop %v1157
  %v1159 = vmul.f32 %v660, 1.442695
  %v1160 = vpow.pop %v1159
  %v1161 = vmul.f32 %v665, 1.442695
  %v1162 = vpow.pop %v1161
  %v1163 = vmul.f32 %v670, 1.442695
  %v1164 = vpow.pop %v1163
  %v1165 = vmul.f32 %v675, 1.442695
  %v1166 = vpow.pop %v1165
  %v1167 = vmul.f32 %v680, 1.442695
  %v1168 = vpow.pop %v1167
  %v1169 = vmul.f32 %v685, 1.442695
  %v1170 = vpow.pop %v1169
  %v1171 = vmul.f32 %v690, 1.442695
  %v1172 = vpow.pop %v1171
  %v1173 = vmul.f32 %v695, 1.442695
  %v1174 = vpow.pop %v1173
  %v1175 = vmul.f32 %v700, 1.442695
  %v1176 = vpow.pop %v1175
  %v1177 = vmul.f32 %v705, 1.442695
  %v1178 = vpow.pop %v1177
  %v1179 = vmul.f32 %v710, 1.442695
  %v1180 = vpow.pop %v1179
  %v1181 = vmul.f32 %v715, 1.442695
  %v1182 = vpow.pop %v1181
  %v1183 = vmul.f32 %v720, 1.442695
  %v1184 = vpow.pop %v1183
  %v1185 = vmul.f32 %v725, 1.442695
  %v1186 = vpow.pop %v1185
  %v1187 = vmul.f32 %v730, 1.442695
  %v1188 = vpow.pop %v1187
  %v1189 = vmul.f32 %v735, 1.442695
  %v1190 = vpow.pop %v1189
  %v1191 = vmul.f32 %v740, 1.442695
  %v1192 = vpow.pop %v1191
  %v1193 = vmul.f32 %v745, 1.442695
  %v1194 = vpow.pop %v1193
  %v1195 = vmul.f32 %v750, 1.442695
  %v1196 = vpow.pop %v1195
  %v1197 = vmul.f32 %v755, 1.442695
  %v1198 = vpow.pop %v1197
  %v1199 = vmul.f32 %v760, 1.442695
  %v1200 = vpow.pop %v1199
  %v1201 = vmul.f32 %v765, 1.442695
  %v1202 = vpow.pop %v1201
  %v1203 = vmul.f32 %v770, 1.442695
  %v1204 = vpow.pop %v1203
  %v1205 = vmul.f32 %v775, 1.442695
  %v1206 = vpow.pop %v1205
  %v1207 = vmul.f32 %v780, 1.442695
  %v1208 = vpow.pop %v1207
  %v1209 = vmul.f32 %v785, 1.442695
  %v1210 = vpow.pop %v1209
  %v1211 = vmul.f32 %v790, 1.442695
  %v1212 = vpow.pop %v1211
  %v1213 = vmul.f32 %v795, 1.442695
  %v1214 = vpow.pop %v1213
  %v1215 = vmul.f32 %v800, 1.442695
  %v1216 = vpow.pop %v1215
  %v1217 = vmul.f32 %v805, 1.442695
  %v1218 = vpow.pop %v1217
  %v1219 = vmul.f32 %v810, 1.442695
  %v1220 = vpow.pop %v1219
  %v1221 = vmul.f32 %v815, 1.442695
  %v1222 = vpow.pop %v1221
  %v1223 = vmul.f32 %v820, 1.442695
  %v1224 = vpow.pop %v1223
  %v1225 = vmul.f32 %v825, 1.442695
  %v1226 = vpow.pop %v1225
  %v1227 = vmul.f32 %v830, 1.442695
  %v1228 = vpow.pop %v1227
  %v1229 = vmul.f32 %v835, 1.442695
  %v1230 = vpow.pop %v1229
  %v1231 = vmul.f32 %v840, 1.442695
  %v1232 = vpow.pop %v1231
  %v1233 = vmul.f32 %v845, 1.442695
  %v1234 = vpow.pop %v1233
  %v1235 = vmul.f32 %v850, 1.442695
  %v1236 = vpow.pop %v1235
  %v1237 = vmul.f32 %v855, 1.442695
  %v1238 = vpow.pop %v1237
  %v1239 = vmul.f32 %v860, 1.442695
  %v1240 = vpow.pop %v1239
  %v1241 = vmul.f32 %v865, 1.442695
  %v1242 = vpow.pop %v1241
  %v1243 = vmul.f32 %v870, 1.442695
  %v1244 = vpow.pop %v1243
  %v1245 = vmul.f32 %v875, 1.442695
  %v1246 = vpow.pop %v1245
  %v1247 = vmul.f32 %v880, 1.442695
  %v1248 = vpow.pop %v1247
  %v1249 = vmul.f32 %v885, 1.442695
  %v1250 = vpow.pop %v1249
  %v1251 = vmul.f32 %v890, 1.442695
  %v1252 = vpow.pop %v1251
  %v1253 = vmul.f32 %v895, 1.442695
  %v1254 = vpow.pop %v1253
  %v1255 = vmul.f32 %v900, 1.442695
  %v1256 = vpow.pop %v1255
  %v1257 = vmul.f32 %v905, 1.442695
  %v1258 = vpow.pop %v1257
  %v1259 = vmul.f32 %v910, 1.442695
  %v1260 = vpow.pop %v1259
  %v1261 = vmul.f32 %v915, 1.442695
  %v1262 = vpow.pop %v1261
  %v1263 = vmul.f32 %v920, 1.442695
  %v1264 = vpow.pop %v1263
  %v1265 = vmul.f32 %v925, 1.442695
  %v1266 = vpow.pop %v1265
  %v1267 = vmul.f32 %v930, 1.442695
  %v1268 = vpow.pop %v1267
  %v1269 = vmul.f32 %v935, 1.442695
  %v1270 = vpow.pop %v1269
  %v1271 = vmul.f32 %v940, 1.442695
  %v1272 = vpow.pop %v1271
  %v1273 = vmul.f32 %v945, 1.442695
  %v1274 = vpow.pop %v1273
  %v1275 = vmul.f32 %v950, 1.442695
  %v1276 = vpow.pop %v1275
  %v1277 = vmul.f32 %v955, 1.442695
  %v1278 = vpow.pop %v1277
  %v1279 = vmul.f32 %v960, 1.442695
  %v1280 = vpow.pop %v1279
  %v1281 = vmul.f32 %v965, 1.442695
  %v1282 = vpow.pop %v1281
  %v1283 = vmul.f32 %v970, 1.442695
  %v1284 = vpow.pop %v1283
  %v1285 = vmul.f32 %v975, 1.442695
  %v1286 = vpow.pop %v1285
  %v1287 = vmul.f32 %v980, 1.442695
  %v1288 = vpow.pop %v1287
  %v1289 = vmul.f32 %v985, 1.442695
  %v1290 = vpow.pop %v1289
  %v1291 = vmul.f32 %v990, 1.442695
  %v1292 = vpow.pop %v1291
  %v1293 = vsub.f32 %v1094, 1.0
  %v1294 = vsub.f32 %v1096, 1.0
  %v1295 = vsub.f32 %v1098, 1.0
  %v1296 = vsub.f32 %v1100, 1.0
  %v1297 = vsub.f32 %v1102, 1.0
  %v1298 = vsub.f32 %v1104, 1.0
  %v1299 = vsub.f32 %v1106, 1.0
  %v1300 = vsub.f32 %v1108, 1.0
  %v1301 = vsub.f32 %v1110, 1.0
  %v1302 = vsub.f32 %v1112, 1.0
  %v1303 = vsub.f32 %v1114, 1.0
  %v1304 = vsub.f32 %v1116, 1.0
  %v1305 = vsub.f32 %v1118, 1.0
  %v1306 = vsub.f32 %v1120, 1.0
  %v1307 = vsub.f32 %v1122, 1.0
  %v1308 = vsub.f32 %v1124, 1.0
  %v1309 = vsub.f32 %v1126, 1.0
  %v1310 = vsub.f32 %v1128, 1.0
  %v1311 = vsub.f32 %v1130, 1.0
  %v1312 = vsub.f32 %v1132, 1.0
  %v1313 = vsub.f32 %v1134, 1.0
  %v1314 = vsub.f32 %v1136, 1.0
  %v1315 = vsub.f32 %v1138, 1.0
  %v1316 = vsub.f32 %v1140, 1.0
  %v1317 = vsub.f32 %v1142, 1.0
  %v1318 = vsub.f32 %v1144, 1.0
  %v1319 = vsub.f32 %v1146, 1.0
  %v1320 = vsub.f32 %v1148, 1.0
  %v1321 = vsub.f32 %v1150, 1.0
  %v1322 = vsub.f32 %v1152, 1.0
  %v1323 = vsub.f32 %v1154, 1.0
  %v1324 = vsub.f32 %v1156, 1.0
  %v1325 = vsub.f32 %v1158, 1.0
  %v1326 = vsub.f32 %v1160, 1.0
  %v1327 = vsub.f32 %v1162, 1.0
  %v1328 = vsub.f32 %v1164, 1.0
  %v1329 = vsub.f32 %v1166, 1.0
  %v1330 = vsub.f32 %v1168, 1.0
  %v1331 = vsub.f32 %v1170, 1.0
  %v1332 = vsub.f32 %v1172, 1.0
  %v1333 = vsub.f32 %v1174, 1.0
  %v1334 = vsub.f32 %v1176, 1.0
  %v1335 = vsub.f32 %v1178, 1.0
  %v1336 = vsub.f32 %v1180, 1.0
  %v1337 = vsub.f32 %v1182, 1.0
  %v1338 = vsub.f32 %v1184, 1.0
  %v1339 = vsub.f32 %v1186, 1.0
  %v1340 = vsub.f32 %v1188, 1.0
  %v1341 = vsub.f32 %v1190, 1.0
  %v1342 = vsub.f32 %v1192, 1.0
  %v1343 = vsub.f32 %v1194, 1.0
  %v1344 = vsub.f32 %v1196, 1.0
  %v1345 = vsub.f32 %v1198, 1.0
  %v1346 = vsub.f32 %v1200, 1.0
  %v1347 = vsub.f32 %v1202, 1.0
  %v1348 = vsub.f32 %v1204, 1.0
  %v1349 = vsub.f32 %v1206, 1.0
  %v1350 = vsub.f32 %v1208, 1.0
  %v1351 = vsub.f32 %v1210, 1.0
  %v1352 = vsub.f32 %v1212, 1.0
  %v1353 = vsub.f32 %v1214, 1.0
  %v1354 = vsub.f32 %v1216, 1.0
  %v1355 = vsub.f32 %v1218, 1.0
  %v1356 = vsub.f32 %v1220, 1.0
  %v1357 = vsub.f32 %v1222, 1.0
  %v1358 = vsub.f32 %v1224, 1.0
  %v1359 = vsub.f32 %v1226, 1.0
  %v1360 = vsub.f32 %v1228, 1.0
  %v1361 = vsub.f32 %v1230, 1.0
  %v1362 = vsub.f32 %v1232, 1.0
  %v1363 = vsub.f32 %v1234, 1.0
  %v1364 = vsub.f32 %v1236, 1.0
  %v1365 = vsub.f32 %v1238, 1.0
  %v1366 = vsub.f32 %v1240, 1.0
  %v1367 = vsub.f32 %v1242, 1.0
  %v1368 = vsub.f32 %v1244, 1.0
  %v1369 = vsub.f32 %v1246, 1.0
  %v1370 = vsub.f32 %v1248, 1.0
  %v1371 = vsub.f32 %v1250, 1.0
  %v1372 = vsub.f32 %v1252, 1.0
  %v1373 = vsub.f32 %v1254, 1.0
  %v1374 = vsub.f32 %v1256, 1.0
  %v1375 = vsub.f32 %v1258, 1.0
  %v1376 = vsub.f32 %v1260, 1.0
  %v1377 = vsub.f32 %v1262, 1.0
  %v1378 = vsub.f32 %v1264, 1.0
  %v1379 = vsub.f32 %v1266, 1.0
  %v1380 = vsub.f32 %v1268, 1.0
  %v1381 = vsub.f32 %v1270, 1.0
  %v1382 = vsub.f32 %v1272, 1.0
  %v1383 = vsub.f32 %v1274, 1.0
  %v1384 = vsub.f32 %v1276, 1.0
  %v1385 = vsub.f32 %v1278, 1.0
  %v1386 = vsub.f32 %v1280, 1.0
  %v1387 = vsub.f32 %v1282, 1.0
  %v1388 = vsub.f32 %v1284, 1.0
  %v1389 = vsub.f32 %v1286, 1.0
  %v1390 = vsub.f32 %v1288, 1.0
  %v1391 = vsub.f32 %v1290, 1.0
  %v1392 = vsub.f32 %v1292, 1.0
  %v1393 = vsel %vm993, %v495, %v1293
  %v1394 = vsel %vm994, %v500, %v1294
  %v1395 = vsel %vm995, %v505, %v1295
  %v1396 = vsel %vm996, %v510, %v1296
  %v1397 = vsel %vm997, %v515, %v1297
  %v1398 = vsel %vm998, %v520, %v1298
  %v1399 = vsel %vm999, %v525, %v1299
  %v1400 = vsel %vm1000, %v530, %v1300
  %v1401 = vsel %vm1001, %v535, %v1301
  %v1402 = vsel %vm1002, %v540, %v1302
  %v1403 = vsel %vm1003, %v545, %v1303
  %v1404 = vsel %vm1004, %v550, %v1304
  %v1405 = vsel %vm1005, %v555, %v1305
  %v1406 = vsel %vm1006, %v560, %v1306
  %v1407 = vsel %vm1007, %v565, %v1307
  %v1408 = vsel %vm1008, %v570, %v1308
  %v1409 = vsel %vm1009, %v575, %v1309
  %v1410 = vsel %vm1010, %v580, %v1310
  %v1411 = vsel %vm1011, %v585, %v1311
  %v1412 = vsel %vm1012, %v590, %v1312
  %v1413 = vsel %vm1013, %v595, %v1313
  %v1414 = vsel %vm1014, %v600, %v1314
  %v1415 = vsel %vm1015, %v605, %v1315
  %v1416 = vsel %vm1016, %v610, %v1316
  %v1417 = vsel %vm1017, %v615, %v1317
  %v1418 = vsel %vm1018, %v620, %v1318
  %v1419 = vsel %vm1019, %v625, %v1319
  %v1420 = vsel %vm1020, %v630, %v1320
  %v1421 = vsel %vm1021, %v635, %v1321
  %v1422 = vsel %vm1022, %v640, %v1322
  %v1423 = vsel %vm1023, %v645, %v1323
  %v1424 = vsel %vm1024, %v650, %v1324
  %v1425 = vsel %vm1025, %v655, %v1325
  %v1426 = vsel %vm1026, %v660, %v1326
  %v1427 = vsel %vm1027, %v665, %v1327
  %v1428 = vsel %vm1028, %v670, %v1328
  %v1429 = vsel %vm1029, %v675, %v1329
  %v1430 = vsel %vm1030, %v680, %v1330
  %v1431 = vsel %vm1031, %v685, %v1331
  %v1432 = vsel %vm1032, %v690, %v1332
  %v1433 = vsel %vm1033, %v695, %v1333
  %v1434 = vsel %vm1034, %v700, %v1334
  %v1435 = vsel %vm1035, %v705, %v1335
  %v1436 = vsel %vm1036, %v710, %v1336
  %v1437 = vsel %vm1037, %v715, %v1337
  %v1438 = vsel %vm1038, %v720, %v1338
  %v1439 = vsel %vm1039, %v725, %v1339
  %v1440 = vsel %vm1040, %v730, %v1340
  %v1441 = vsel %vm1041, %v735, %v1341
  %v1442 = vsel %vm1042, %v740, %v1342
  %v1443 = vsel %vm1043, %v745, %v1343
  %v1444 = vsel %vm1044, %v750, %v1344
  %v1445 = vsel %vm1045, %v755, %v1345
  %v1446 = vsel %vm1046, %v760, %v1346
  %v1447 = vsel %vm1047, %v765, %v1347
  %v1448 = vsel %vm1048, %v770, %v1348
  %v1449 = vsel %vm1049, %v775, %v1349
  %v1450 = vsel %vm1050, %v780, %v1350
  %v1451 = vsel %vm1051, %v785, %v1351
  %v1452 = vsel %vm1052, %v790, %v1352
  %v1453 = vsel %vm1053, %v795, %v1353
  %v1454 = vsel %vm1054, %v800, %v1354
  %v1455 = vsel %vm1055, %v805, %v1355
  %v1456 = vsel %vm1056, %v810, %v1356
  %v1457 = vsel %vm1057, %v815, %v1357
  %v1458 = vsel %vm1058, %v820, %v1358
  %v1459 = vsel %vm1059, %v825, %v1359
  %v1460 = vsel %vm1060, %v830, %v1360
  %v1461 = vsel %vm1061, %v835, %v1361
  %v1462 = vsel %vm1062, %v840, %v1362
  %v1463 = vsel %vm1063, %v845, %v1363
  %v1464 = vsel %vm1064, %v850, %v1364
  %v1465 = vsel %vm1065, %v855, %v1365
  %v1466 = vsel %vm1066, %v860, %v1366
  %v1467 = vsel %vm1067, %v865, %v1367
  %v1468 = vsel %vm1068, %v870, %v1368
  %v1469 = vsel %vm1069, %v875, %v1369
  %v1470 = vsel %vm1070, %v880, %v1370
  %v1471 = vsel %vm1071, %v885, %v1371
  %v1472 = vsel %vm1072, %v890, %v1372
  %v1473 = vsel %vm1073, %v895, %v1373
  %v1474 = vsel %vm1074, %v900, %v1374
  %v1475 = vsel %vm1075, %v905, %v1375
  %v1476 = vsel %vm1076, %v910, %v1376
  %v1477 = vsel %vm1077, %v915, %v1377
  %v1478 = vsel %vm1078, %v920, %v1378
  %v1479 = vsel %vm1079, %v925, %v1379
  %v1480 = vsel %vm1080, %v930, %v1380
  %v1481 = vsel %vm1081, %v935, %v1381
  %v1482 = vsel %vm1082, %v940, %v1382
  %v1483 = vsel %vm1083, %v945, %v1383
  %v1484 = vsel %vm1084, %v950, %v1384
  %v1485 = vsel %vm1085, %v955, %v1385
  %v1486 = vsel %vm1086, %v960, %v1386
  %v1487 = vsel %vm1087, %v965, %v1387
  %v1488 = vsel %vm1088, %v970, %v1388
  %v1489 = vsel %vm1089, %v975, %v1389
  %v1490 = vsel %vm1090, %v980, %v1390
  %v1491 = vsel %vm1091, %v985, %v1391
  %v1492 = vsel %vm1092, %v990, %v1392
  %vm1493 = vcmask 130048
  %1494 = vst.msk [vmem:[%s3] sm:$0xff] %vm1493, %v1393
  %1495 = vst.msk [vmem:[%s3 + $0x8] sm:$0xff] %vm1493, %v1394
  %1496 = vst.msk [vmem:[%s3 + $0x10] sm:$0xff] %vm1493, %v1395
  %1497 = vst.msk [vmem:[%s3 + $0x18] sm:$0xff] %vm1493, %v1396
  %1498 = vst.msk [vmem:[%s3 + $0x20] sm:$0xff] %vm1493, %v1397
  %1499 = vst.msk [vmem:[%s3 + $0x28] sm:$0xff] %vm1493, %v1398
  %1500 = vst.msk [vmem:[%s3 + $0x30] sm:$0xff] %vm1493, %v1399
  %1501 = vst.msk [vmem:[%s3 + $0x38] sm:$0xff] %vm1493, %v1400
  %1502 = vst.msk [vmem:[%s3 + $0x40] sm:$0xff] %vm1493, %v1401
  %1503 = vst.msk [vmem:[%s3 + $0x48] sm:$0xff] %vm1493, %v1402
  %1504 = vst.msk [vmem:[%s3 + $0x50] sm:$0xff] %vm1493, %v1403
  %1505 = vst.msk [vmem:[%s3 + $0x58] sm:$0xff] %vm1493, %v1404
  %1506 = vst.msk [vmem:[%s3 + $0x60] sm:$0xff] %vm1493, %v1405
  %1507 = vst.msk [vmem:[%s3 + $0x68] sm:$0xff] %vm1493, %v1406
  %1508 = vst.msk [vmem:[%s3 + $0x70] sm:$0xff] %vm1493, %v1407
  %1509 = vst.msk [vmem:[%s3 + $0x78] sm:$0xff] %vm1493, %v1408
  %1510 = vst.msk [vmem:[%s3 + $0x80] sm:$0xff] %vm1493, %v1409
  %1511 = vst.msk [vmem:[%s3 + $0x88] sm:$0xff] %vm1493, %v1410
  %1512 = vst.msk [vmem:[%s3 + $0x90] sm:$0xff] %vm1493, %v1411
  %1513 = vst.msk [vmem:[%s3 + $0x98] sm:$0xff] %vm1493, %v1412
  %1514 = vst.msk [vmem:[%s3 + $0xa0] sm:$0xff] %vm1493, %v1413
  %1515 = vst.msk [vmem:[%s3 + $0xa8] sm:$0xff] %vm1493, %v1414
  %1516 = vst.msk [vmem:[%s3 + $0xb0] sm:$0xff] %vm1493, %v1415
  %1517 = vst.msk [vmem:[%s3 + $0xb8] sm:$0xff] %vm1493, %v1416
  %1518 = vst.msk [vmem:[%s3 + $0xc0] sm:$0xff] %vm1493, %v1417
  %1519 = vst.msk [vmem:[%s3 + $0xc8] sm:$0xff] %vm1493, %v1418
  %1520 = vst.msk [vmem:[%s3 + $0xd0] sm:$0xff] %vm1493, %v1419
  %1521 = vst.msk [vmem:[%s3 + $0xd8] sm:$0xff] %vm1493, %v1420
  %1522 = vst.msk [vmem:[%s3 + $0xe0] sm:$0xff] %vm1493, %v1421
  %1523 = vst.msk [vmem:[%s3 + $0xe8] sm:$0xff] %vm1493, %v1422
  %1524 = vst.msk [vmem:[%s3 + $0xf0] sm:$0xff] %vm1493, %v1423
  %1525 = vst.msk [vmem:[%s3 + $0xf8] sm:$0xff] %vm1493, %v1424
  %1526 = vst.msk [vmem:[%s3 + $0x100] sm:$0xff] %vm1493, %v1425
  %1527 = vst.msk [vmem:[%s3 + $0x108] sm:$0xff] %vm1493, %v1426
  %1528 = vst.msk [vmem:[%s3 + $0x110] sm:$0xff] %vm1493, %v1427
  %1529 = vst.msk [vmem:[%s3 + $0x118] sm:$0xff] %vm1493, %v1428
  %1530 = vst.msk [vmem:[%s3 + $0x120] sm:$0xff] %vm1493, %v1429
  %1531 = vst.msk [vmem:[%s3 + $0x128] sm:$0xff] %vm1493, %v1430
  %1532 = vst.msk [vmem:[%s3 + $0x130] sm:$0xff] %vm1493, %v1431
  %1533 = vst.msk [vmem:[%s3 + $0x138] sm:$0xff] %vm1493, %v1432
  %1534 = vst.msk [vmem:[%s3 + $0x140] sm:$0xff] %vm1493, %v1433
  %1535 = vst.msk [vmem:[%s3 + $0x148] sm:$0xff] %vm1493, %v1434
  %1536 = vst.msk [vmem:[%s3 + $0x150] sm:$0xff] %vm1493, %v1435
  %1537 = vst.msk [vmem:[%s3 + $0x158] sm:$0xff] %vm1493, %v1436
  %1538 = vst.msk [vmem:[%s3 + $0x160] sm:$0xff] %vm1493, %v1437
  %1539 = vst.msk [vmem:[%s3 + $0x168] sm:$0xff] %vm1493, %v1438
  %1540 = vst.msk [vmem:[%s3 + $0x170] sm:$0xff] %vm1493, %v1439
  %1541 = vst.msk [vmem:[%s3 + $0x178] sm:$0xff] %vm1493, %v1440
  %1542 = vst.msk [vmem:[%s3 + $0x180] sm:$0xff] %vm1493, %v1441
  %1543 = vst.msk [vmem:[%s3 + $0x188] sm:$0xff] %vm1493, %v1442
  %1544 = vst.msk [vmem:[%s3 + $0x190] sm:$0xff] %vm1493, %v1443
  %1545 = vst.msk [vmem:[%s3 + $0x198] sm:$0xff] %vm1493, %v1444
  %1546 = vst.msk [vmem:[%s3 + $0x1a0] sm:$0xff] %vm1493, %v1445
  %1547 = vst.msk [vmem:[%s3 + $0x1a8] sm:$0xff] %vm1493, %v1446
  %1548 = vst.msk [vmem:[%s3 + $0x1b0] sm:$0xff] %vm1493, %v1447
  %1549 = vst.msk [vmem:[%s3 + $0x1b8] sm:$0xff] %vm1493, %v1448
  %1550 = vst.msk [vmem:[%s3 + $0x1c0] sm:$0xff] %vm1493, %v1449
  %1551 = vst.msk [vmem:[%s3 + $0x1c8] sm:$0xff] %vm1493, %v1450
  %1552 = vst.msk [vmem:[%s3 + $0x1d0] sm:$0xff] %vm1493, %v1451
  %1553 = vst.msk [vmem:[%s3 + $0x1d8] sm:$0xff] %vm1493, %v1452
  %1554 = vst.msk [vmem:[%s3 + $0x1e0] sm:$0xff] %vm1493, %v1453
  %1555 = vst.msk [vmem:[%s3 + $0x1e8] sm:$0xff] %vm1493, %v1454
  %1556 = vst.msk [vmem:[%s3 + $0x1f0] sm:$0xff] %vm1493, %v1455
  %1557 = vst.msk [vmem:[%s3 + $0x1f8] sm:$0xff] %vm1493, %v1456
  %1558 = vst.msk [vmem:[%s3 + $0x200] sm:$0xff] %vm1493, %v1457
  %1559 = vst.msk [vmem:[%s3 + $0x208] sm:$0xff] %vm1493, %v1458
  %1560 = vst.msk [vmem:[%s3 + $0x210] sm:$0xff] %vm1493, %v1459
  %1561 = vst.msk [vmem:[%s3 + $0x218] sm:$0xff] %vm1493, %v1460
  %1562 = vst.msk [vmem:[%s3 + $0x220] sm:$0xff] %vm1493, %v1461
  %1563 = vst.msk [vmem:[%s3 + $0x228] sm:$0xff] %vm1493, %v1462
  %1564 = vst.msk [vmem:[%s3 + $0x230] sm:$0xff] %vm1493, %v1463
  %1565 = vst.msk [vmem:[%s3 + $0x238] sm:$0xff] %vm1493, %v1464
  %1566 = vst.msk [vmem:[%s3 + $0x240] sm:$0xff] %vm1493, %v1465
  %1567 = vst.msk [vmem:[%s3 + $0x248] sm:$0xff] %vm1493, %v1466
  %1568 = vst.msk [vmem:[%s3 + $0x250] sm:$0xff] %vm1493, %v1467
  %1569 = vst.msk [vmem:[%s3 + $0x258] sm:$0xff] %vm1493, %v1468
  %1570 = vst.msk [vmem:[%s3 + $0x260] sm:$0xff] %vm1493, %v1469
  %1571 = vst.msk [vmem:[%s3 + $0x268] sm:$0xff] %vm1493, %v1470
  %1572 = vst.msk [vmem:[%s3 + $0x270] sm:$0xff] %vm1493, %v1471
  %1573 = vst.msk [vmem:[%s3 + $0x278] sm:$0xff] %vm1493, %v1472
  %1574 = vst.msk [vmem:[%s3 + $0x280] sm:$0xff] %vm1493, %v1473
  %1575 = vst.msk [vmem:[%s3 + $0x288] sm:$0xff] %vm1493, %v1474
  %1576 = vst.msk [vmem:[%s3 + $0x290] sm:$0xff] %vm1493, %v1475
  %1577 = vst.msk [vmem:[%s3 + $0x298] sm:$0xff] %vm1493, %v1476
  %1578 = vst.msk [vmem:[%s3 + $0x2a0] sm:$0xff] %vm1493, %v1477
  %1579 = vst.msk [vmem:[%s3 + $0x2a8] sm:$0xff] %vm1493, %v1478
  %1580 = vst.msk [vmem:[%s3 + $0x2b0] sm:$0xff] %vm1493, %v1479
  %1581 = vst.msk [vmem:[%s3 + $0x2b8] sm:$0xff] %vm1493, %v1480
  %1582 = vst.msk [vmem:[%s3 + $0x2c0] sm:$0xff] %vm1493, %v1481
  %1583 = vst.msk [vmem:[%s3 + $0x2c8] sm:$0xff] %vm1493, %v1482
  %1584 = vst.msk [vmem:[%s3 + $0x2d0] sm:$0xff] %vm1493, %v1483
  %1585 = vst.msk [vmem:[%s3 + $0x2d8] sm:$0xff] %vm1493, %v1484
  %1586 = vst.msk [vmem:[%s3 + $0x2e0] sm:$0xff] %vm1493, %v1485
  %1587 = vst.msk [vmem:[%s3 + $0x2e8] sm:$0xff] %vm1493, %v1486
  %1588 = vst.msk [vmem:[%s3 + $0x2f0] sm:$0xff] %vm1493, %v1487
  %1589 = vst.msk [vmem:[%s3 + $0x2f8] sm:$0xff] %vm1493, %v1488
  %1590 = vst.msk [vmem:[%s3 + $0x300] sm:$0xff] %vm1493, %v1489
  %1591 = vst.msk [vmem:[%s3 + $0x308] sm:$0xff] %vm1493, %v1490
  %1592 = vst.msk [vmem:[%s3 + $0x310] sm:$0xff] %vm1493, %v1491
  %1593 = vst.msk [vmem:[%s3 + $0x318] sm:$0xff] %vm1493, %v1492
  // Predicated region
  $region14: #{dae_forward.8} parent=0 // pred_check
    _
  $region15: #{dae_forward.8} parent=0 // pred_check_branch
    %1595 = sbr.rel (0) target = $region17
  $region16: #{dae_forward.8} parent=0 // pred_region
    _
  $region17: #{dae_forward.8} parent=0 // pred_fallthru
    _
  // Predicated region
  $region18: #{dae_forward.8} parent=0 // pred_check
    _
  $region19: #{dae_forward.8} parent=0 // pred_check_branch
    %1597 = sbr.rel (0) target = $region21
  $region20: #{dae_forward.8} parent=0 // pred_region
    _
  $region21: #{dae_forward.8} parent=0 // pred_fallthru
    _

// kernel: dae_forward.9
$region0: #{dae_forward.9}
  #allocation0 [shape = 'u32[]', space=smem, size = 0x4, offset = 0x4, fixed_abs, tag = 'smem constant byte address 0x4 - core index']
  #allocation1 [shape = 'u32[144,128]{1,0:T(1,128)}', space=vmem, size = 0x12000, scoped, tag = 'internal scratch']
  %s0 = inlined_call_operand.vmem [shape: f32[200,256], index: 0, kind: input, shape index: {}]
  %s1 = inlined_call_operand.vmem [shape: f32[256,32], index: 1, kind: input, shape index: {}]
  %s2 = inlined_call_operand.vmem [shape: f32[1,32], index: 2, kind: input, shape index: {}]
  %s3 = inlined_call_operand.vmem [shape: f32[200,32], index: 3, kind: output, shape index: {}]
  %s4 = sld [smem:[#allocation0]]
  $region22: #{dae_forward.9} parent=0
    _
  %s6 = ssub.s32 1, %s4
  %s7 = scalar_select 0, %s6, %s4
  // Predicated region
  $region2: #{dae_forward.9} parent=0 // pred_check
    _
  $region3: #{dae_forward.9} parent=0 // pred_check_branch
    %9 = sbr.rel (0) target = $region5
  $region4: #{dae_forward.9} parent=0 // pred_region
    _
  $region5: #{dae_forward.9} parent=0 // pred_fallthru
    _
  // Predicated region
  $region6: #{dae_forward.9} parent=0 // pred_check
    _
  $region7: #{dae_forward.9} parent=0 // pred_check_branch
    %11 = sbr.rel (0) target = $region9
  $region8: #{dae_forward.9} parent=0 // pred_region
    _
  $region9: #{dae_forward.9} parent=0 // pred_fallthru
    _
  // Predicated region
  $region10: #{dae_forward.9} parent=0 // pred_check
    _
  $region11: #{dae_forward.9} parent=0 // pred_check_branch
    %13 = sbr.rel (0) target = $region13
  $region12: #{dae_forward.9} parent=0 // pred_region
    _
  $region13: #{dae_forward.9} parent=0 // pred_fallthru
    _
  %v14 = vld [vmem:[%s0] sm:$0xff]
  %v15 = vld [vmem:[%s0 + $0x8] sm:$0xff]
  %v16 = vld [vmem:[%s0 + $0x10] sm:$0xff]
  %v17 = vld [vmem:[%s0 + $0x18] sm:$0xff]
  %v18 = vld [vmem:[%s0 + $0x20] sm:$0xff]
  %v19 = vld [vmem:[%s0 + $0x28] sm:$0xff]
  %v20 = vld [vmem:[%s0 + $0x30] sm:$0xff]
  %v21 = vld [vmem:[%s0 + $0x38] sm:$0xff]
  %v22 = vld [vmem:[%s0 + $0x40] sm:$0xff]
  %v23 = vld [vmem:[%s0 + $0x48] sm:$0xff]
  %v24 = vld [vmem:[%s0 + $0x50] sm:$0xff]
  %v25 = vld [vmem:[%s0 + $0x58] sm:$0xff]
  %v26 = vld [vmem:[%s0 + $0x60] sm:$0xff]
  %v27 = vld [vmem:[%s0 + $0x68] sm:$0xff]
  %v28 = vld [vmem:[%s0 + $0x70] sm:$0xff]
  %v29 = vld [vmem:[%s0 + $0x78] sm:$0xff]
  %v30 = vld [vmem:[%s0 + $0x80] sm:$0xff]
  %v31 = vld [vmem:[%s0 + $0x88] sm:$0xff]
  %v32 = vld [vmem:[%s0 + $0x90] sm:$0xff]
  %v33 = vld [vmem:[%s0 + $0x98] sm:$0xff]
  %v34 = vld [vmem:[%s0 + $0xa0] sm:$0xff]
  %v35 = vld [vmem:[%s0 + $0xa8] sm:$0xff]
  %v36 = vld [vmem:[%s0 + $0xb0] sm:$0xff]
  %v37 = vld [vmem:[%s0 + $0xb8] sm:$0xff]
  %v38 = vld [vmem:[%s0 + $0xc0] sm:$0xff]
  %v39 = vld [vmem:[%s0 + $0xc8] sm:$0xff]
  %v40 = vld [vmem:[%s0 + $0xd0] sm:$0xff]
  %v41 = vld [vmem:[%s0 + $0xd8] sm:$0xff]
  %v42 = vld [vmem:[%s0 + $0xe0] sm:$0xff]
  %v43 = vld [vmem:[%s0 + $0xe8] sm:$0xff]
  %v44 = vld [vmem:[%s0 + $0xf0] sm:$0xff]
  %v45 = vld [vmem:[%s0 + $0xf8] sm:$0xff]
  %v46 = vld [vmem:[%s0 + $0x100] sm:$0xff]
  %v47 = vld [vmem:[%s0 + $0x108] sm:$0xff]
  %v48 = vld [vmem:[%s0 + $0x110] sm:$0xff]
  %v49 = vld [vmem:[%s0 + $0x118] sm:$0xff]
  %v50 = vld [vmem:[%s0 + $0x120] sm:$0xff]
  %v51 = vld [vmem:[%s0 + $0x128] sm:$0xff]
  %v52 = vld [vmem:[%s0 + $0x130] sm:$0xff]
  %v53 = vld [vmem:[%s0 + $0x138] sm:$0xff]
  %v54 = vld [vmem:[%s0 + $0x140] sm:$0xff]
  %v55 = vld [vmem:[%s0 + $0x148] sm:$0xff]
  %v56 = vld [vmem:[%s0 + $0x150] sm:$0xff]
  %v57 = vld [vmem:[%s0 + $0x158] sm:$0xff]
  %v58 = vld [vmem:[%s0 + $0x160] sm:$0xff]
  %v59 = vld [vmem:[%s0 + $0x168] sm:$0xff]
  %v60 = vld [vmem:[%s0 + $0x170] sm:$0xff]
  %v61 = vld [vmem:[%s0 + $0x178] sm:$0xff]
  %v62 = vld [vmem:[%s0 + $0x180] sm:$0xff]
  %v63 = vld [vmem:[%s0 + $0x188] sm:$0xff]
  %v64 = vld [vmem:[%s1] sm:$0xff]
  %v65 = vld [vmem:[%s1 + $0x8] sm:$0xff]
  %v66 = vld [vmem:[%s1 + $0x10] sm:$0xff]
  %v67 = vld [vmem:[%s1 + $0x18] sm:$0xff]
  %v68 = vld [vmem:[%s1 + $0x20] sm:$0xff]
  %v69 = vld [vmem:[%s1 + $0x28] sm:$0xff]
  %v70 = vld [vmem:[%s1 + $0x30] sm:$0xff]
  %v71 = vld [vmem:[%s1 + $0x38] sm:$0xff]
  %v72 = vld [vmem:[%s1 + $0x40] sm:$0xff]
  %v73 = vld [vmem:[%s1 + $0x48] sm:$0xff]
  %v74 = vld [vmem:[%s1 + $0x50] sm:$0xff]
  %v75 = vld [vmem:[%s1 + $0x58] sm:$0xff]
  %v76 = vld [vmem:[%s1 + $0x60] sm:$0xff]
  %v77 = vld [vmem:[%s1 + $0x68] sm:$0xff]
  %v78 = vld [vmem:[%s1 + $0x70] sm:$0xff]
  %v79 = vld [vmem:[%s1 + $0x78] sm:$0xff]
  %v80 = vld [vmem:[%s1 + $0x80] sm:$0xff]
  %v81 = vld [vmem:[%s1 + $0x88] sm:$0xff]
  %v82 = vld [vmem:[%s1 + $0x90] sm:$0xff]
  %v83 = vld [vmem:[%s1 + $0x98] sm:$0xff]
  %v84 = vld [vmem:[%s1 + $0xa0] sm:$0xff]
  %v85 = vld [vmem:[%s1 + $0xa8] sm:$0xff]
  %v86 = vld [vmem:[%s1 + $0xb0] sm:$0xff]
  %v87 = vld [vmem:[%s1 + $0xb8] sm:$0xff]
  %v88 = vld [vmem:[%s1 + $0xc0] sm:$0xff]
  %v89 = vld [vmem:[%s1 + $0xc8] sm:$0xff]
  %v90 = vld [vmem:[%s1 + $0xd0] sm:$0xff]
  %v91 = vld [vmem:[%s1 + $0xd8] sm:$0xff]
  %v92 = vld [vmem:[%s1 + $0xe0] sm:$0xff]
  %v93 = vld [vmem:[%s1 + $0xe8] sm:$0xff]
  %v94 = vld [vmem:[%s1 + $0xf0] sm:$0xff]
  %v95 = vld [vmem:[%s1 + $0xf8] sm:$0xff]
  %v96 = vld [vmem:[%s2] sm:$0x1]
  %v98 = vlaneseq
  %v99 = vshrl.u32 %v98, 7
  %v100 = vsub.s32 0, %v99
  %v101 = vrot.slane %v96, %v100
  %103 = vmatprep.subr.mxu0 0.0
  %104 = vmatpush1.msra.mxu0 %v64
  %105 = vmatprep.subr.mxu0 0.0
  %106 = vmatpush1.msra.mxu0 %v65
  %107 = vmatprep.subr.mxu0 0.0
  %108 = vmatpush1.msra.mxu0 %v66
  %109 = vmatprep.subr.mxu0 0.0
  %110 = vmatpush1.msra.mxu0 %v67
  %111 = vmatprep.subr.mxu0 0.0
  %112 = vmatpush1.msra.mxu0 %v68
  %113 = vmatprep.subr.mxu0 0.0
  %114 = vmatpush1.msra.mxu0 %v69
  %115 = vmatprep.subr.mxu0 0.0
  %116 = vmatpush1.msra.mxu0 %v70
  %117 = vmatprep.subr.mxu0 0.0
  %118 = vmatpush1.msra.mxu0 %v71
  %119 = vmatprep.subr.mxu0 0.0
  %120 = vmatpush1.msra.mxu0 %v72
  %121 = vmatprep.subr.mxu0 0.0
  %122 = vmatpush1.msra.mxu0 %v73
  %123 = vmatprep.subr.mxu0 0.0
  %124 = vmatpush1.msra.mxu0 %v74
  %125 = vmatprep.subr.mxu0 0.0
  %126 = vmatpush1.msra.mxu0 %v75
  %127 = vmatprep.subr.mxu0 0.0
  %128 = vmatpush1.msra.mxu0 %v76
  %129 = vmatprep.subr.mxu0 0.0
  %130 = vmatpush1.msra.mxu0 %v77
  %131 = vmatprep.subr.mxu0 0.0
  %132 = vmatpush1.msra.mxu0 %v78
  %133 = vmatprep.subr.mxu0 0.0
  %134 = vmatpush1.msra.mxu0 %v79
  %135 = vmatprep.subr.mxu0 0.0
  %136 = vmatpush1.msra.mxu0 %v80
  %137 = vmatprep.subr.mxu0 0.0
  %138 = vmatpush1.msra.mxu0 %v81
  %139 = vmatprep.subr.mxu0 0.0
  %140 = vmatpush1.msra.mxu0 %v82
  %141 = vmatprep.subr.mxu0 0.0
  %142 = vmatpush1.msra.mxu0 %v83
  %143 = vmatprep.subr.mxu0 0.0
  %144 = vmatpush1.msra.mxu0 %v84
  %145 = vmatprep.subr.mxu0 0.0
  %146 = vmatpush1.msra.mxu0 %v85
  %147 = vmatprep.subr.mxu0 0.0
  %148 = vmatpush1.msra.mxu0 %v86
  %149 = vmatprep.subr.mxu0 0.0
  %150 = vmatpush1.msra.mxu0 %v87
  %151 = vmatprep.subr.mxu0 0.0
  %152 = vmatpush1.msra.mxu0 %v88
  %153 = vmatprep.subr.mxu0 0.0
  %154 = vmatpush1.msra.mxu0 %v89
  %155 = vmatprep.subr.mxu0 0.0
  %156 = vmatpush1.msra.mxu0 %v90
  %157 = vmatprep.subr.mxu0 0.0
  %158 = vmatpush1.msra.mxu0 %v91
  %159 = vmatprep.subr.mxu0 0.0
  %160 = vmatpush1.msra.mxu0 %v92
  %161 = vmatprep.subr.mxu0 0.0
  %162 = vmatpush1.msra.mxu0 %v93
  %163 = vmatprep.subr.mxu0 0.0
  %164 = vmatpush1.msra.mxu0 %v94
  %165 = vmatprep.subr.mxu0 0.0
  %166 = vmatpush1.msra.mxu0 %v95
  %167 = vmatprep.mubr.f32.mxu0 %v15
  %168 = vmatmul.mubr.f32.gmra.mrb[0].mxu0 %v14
  %v169 = vpop.f32.mrb[0].mxu0
  %v170 = vadd.f32 %v101, %v169
  %v171 = vpop.f32.mrb[0].mxu0
  %172 = vmatprep.mubr.f32.mxu0 %v17
  %173 = vmatmul.mubr.f32.gmra.mrb[0].mxu0 %v16
  %v174 = vpop.f32.mrb[0].mxu0
  %v175 = vadd.f32 %v101, %v174
  %v176 = vpop.f32.mrb[0].mxu0
  %177 = vmatprep.mubr.f32.mxu0 %v19
  %178 = vmatmul.mubr.f32.gmra.mrb[0].mxu0 %v18
  %v179 = vpop.f32.mrb[0].mxu0
  %v180 = vadd.f32 %v101, %v179
  %v181 = vpop.f32.mrb[0].mxu0
  %182 = vmatprep.mubr.f32.mxu0 %v21
  %183 = vmatmul.mubr.f32.gmra.mrb[0].mxu0 %v20
  %v184 = vpop.f32.mrb[0].mxu0
  %v185 = vadd.f32 %v101, %v184
  %v186 = vpop.f32.mrb[0].mxu0
  %187 = vmatprep.mubr.f32.mxu0 %v23
  %188 = vmatmul.mubr.f32.gmra.mrb[0].mxu0 %v22
  %v189 = vpop.f32.mrb[0].mxu0
  %v190 = vadd.f32 %v101, %v189
  %v191 = vpop.f32.mrb[0].mxu0
  %192 = vmatprep.mubr.f32.mxu0 %v25
  %193 = vmatmul.mubr.f32.gmra.mrb[0].mxu0 %v24
  %v194 = vpop.f32.mrb[0].mxu0
  %v195 = vadd.f32 %v101, %v194
  %v196 = vpop.f32.mrb[0].mxu0
  %197 = vmatprep.mubr.f32.mxu0 %v27
  %198 = vmatmul.mubr.f32.gmra.mrb[0].mxu0 %v26
  %v199 = vpop.f32.mrb[0].mxu0
  %v200 = vadd.f32 %v101, %v199
  %v201 = vpop.f32.mrb[0].mxu0
  %202 = vmatprep.mubr.f32.mxu0 %v29
  %203 = vmatmul.mubr.f32.gmra.mrb[0].mxu0 %v28
  %v204 = vpop.f32.mrb[0].mxu0
  %v205 = vadd.f32 %v101, %v204
  %v206 = vpop.f32.mrb[0].mxu0
  %207 = vmatprep.mubr.f32.mxu0 %v31
  %208 = vmatmul.mubr.f32.gmra.mrb[0].mxu0 %v30
  %v209 = vpop.f32.mrb[0].mxu0
  %v210 = vadd.f32 %v101, %v209
  %v211 = vpop.f32.mrb[0].mxu0
  %212 = vmatprep.mubr.f32.mxu0 %v33
  %213 = vmatmul.mubr.f32.gmra.mrb[0].mxu0 %v32
  %v214 = vpop.f32.mrb[0].mxu0
  %v215 = vadd.f32 %v101, %v214
  %v216 = vpop.f32.mrb[0].mxu0
  %217 = vmatprep.mubr.f32.mxu0 %v35
  %218 = vmatmul.mubr.f32.gmra.mrb[0].mxu0 %v34
  %v219 = vpop.f32.mrb[0].mxu0
  %v220 = vadd.f32 %v101, %v219
  %v221 = vpop.f32.mrb[0].mxu0
  %222 = vmatprep.mubr.f32.mxu0 %v37
  %223 = vmatmul.mubr.f32.gmra.mrb[0].mxu0 %v36
  %v224 = vpop.f32.mrb[0].mxu0
  %v225 = vadd.f32 %v101, %v224
  %v226 = vpop.f32.mrb[0].mxu0
  %227 = vmatprep.mubr.f32.mxu0 %v39
  %228 = vmatmul.mubr.f32.gmra.mrb[0].mxu0 %v38
  %v229 = vpop.f32.mrb[0].mxu0
  %v230 = vadd.f32 %v101, %v229
  %v231 = vpop.f32.mrb[0].mxu0
  %232 = vmatprep.mubr.f32.mxu0 %v41
  %233 = vmatmul.mubr.f32.gmra.mrb[0].mxu0 %v40
  %v234 = vpop.f32.mrb[0].mxu0
  %v235 = vadd.f32 %v101, %v234
  %v236 = vpop.f32.mrb[0].mxu0
  %237 = vmatprep.mubr.f32.mxu0 %v43
  %238 = vmatmul.mubr.f32.gmra.mrb[0].mxu0 %v42
  %v239 = vpop.f32.mrb[0].mxu0
  %v240 = vadd.f32 %v101, %v239
  %v241 = vpop.f32.mrb[0].mxu0
  %242 = vmatprep.mubr.f32.mxu0 %v45
  %243 = vmatmul.mubr.f32.gmra.mrb[0].mxu0 %v44
  %v244 = vpop.f32.mrb[0].mxu0
  %v245 = vadd.f32 %v101, %v244
  %v246 = vpop.f32.mrb[0].mxu0
  %247 = vmatprep.mubr.f32.mxu0 %v47
  %248 = vmatmul.mubr.f32.gmra.mrb[0].mxu0 %v46
  %v249 = vpop.f32.mrb[0].mxu0
  %v250 = vadd.f32 %v101, %v249
  %v251 = vpop.f32.mrb[0].mxu0
  %252 = vmatprep.mubr.f32.mxu0 %v49
  %253 = vmatmul.mubr.f32.gmra.mrb[0].mxu0 %v48
  %v254 = vpop.f32.mrb[0].mxu0
  %v255 = vadd.f32 %v101, %v254
  %v256 = vpop.f32.mrb[0].mxu0
  %257 = vmatprep.mubr.f32.mxu0 %v51
  %258 = vmatmul.mubr.f32.gmra.mrb[0].mxu0 %v50
  %v259 = vpop.f32.mrb[0].mxu0
  %v260 = vadd.f32 %v101, %v259
  %v261 = vpop.f32.mrb[0].mxu0
  %262 = vmatprep.mubr.f32.mxu0 %v53
  %263 = vmatmul.mubr.f32.gmra.mrb[0].mxu0 %v52
  %v264 = vpop.f32.mrb[0].mxu0
  %v265 = vadd.f32 %v101, %v264
  %v266 = vpop.f32.mrb[0].mxu0
  %267 = vmatprep.mubr.f32.mxu0 %v55
  %268 = vmatmul.mubr.f32.gmra.mrb[0].mxu0 %v54
  %v269 = vpop.f32.mrb[0].mxu0
  %v270 = vadd.f32 %v101, %v269
  %v271 = vpop.f32.mrb[0].mxu0
  %272 = vmatprep.mubr.f32.mxu0 %v57
  %273 = vmatmul.mubr.f32.gmra.mrb[0].mxu0 %v56
  %v274 = vpop.f32.mrb[0].mxu0
  %v275 = vadd.f32 %v101, %v274
  %v276 = vpop.f32.mrb[0].mxu0
  %277 = vmatprep.mubr.f32.mxu0 %v59
  %278 = vmatmul.mubr.f32.gmra.mrb[0].mxu0 %v58
  %v279 = vpop.f32.mrb[0].mxu0
  %v280 = vadd.f32 %v101, %v279
  %v281 = vpop.f32.mrb[0].mxu0
  %282 = vmatprep.mubr.f32.mxu0 %v61
  %283 = vmatmul.mubr.f32.gmra.mrb[0].mxu0 %v60
  %v284 = vpop.f32.mrb[0].mxu0
  %v285 = vadd.f32 %v101, %v284
  %v286 = vpop.f32.mrb[0].mxu0
  %287 = vmatprep.mubr.f32.mxu0 %v63
  %288 = vmatmul.mubr.f32.gmra.mrb[0].mxu0 %v62
  %v289 = vpop.f32.mrb[0].mxu0
  %v290 = vadd.f32 %v101, %v289
  %v291 = vpop.f32.mrb[0].mxu0
  %292 = vdwg.mxu0
  %vm293 = vcmp.gt.f32.partialorder %v170, 0.0
  %vm294 = vcmp.gt.f32.partialorder %v175, 0.0
  %vm295 = vcmp.gt.f32.partialorder %v180, 0.0
  %vm296 = vcmp.gt.f32.partialorder %v185, 0.0
  %vm297 = vcmp.gt.f32.partialorder %v190, 0.0
  %vm298 = vcmp.gt.f32.partialorder %v195, 0.0
  %vm299 = vcmp.gt.f32.partialorder %v200, 0.0
  %vm300 = vcmp.gt.f32.partialorder %v205, 0.0
  %vm301 = vcmp.gt.f32.partialorder %v210, 0.0
  %vm302 = vcmp.gt.f32.partialorder %v215, 0.0
  %vm303 = vcmp.gt.f32.partialorder %v220, 0.0
  %vm304 = vcmp.gt.f32.partialorder %v225, 0.0
  %vm305 = vcmp.gt.f32.partialorder %v230, 0.0
  %vm306 = vcmp.gt.f32.partialorder %v235, 0.0
  %vm307 = vcmp.gt.f32.partialorder %v240, 0.0
  %vm308 = vcmp.gt.f32.partialorder %v245, 0.0
  %vm309 = vcmp.gt.f32.partialorder %v250, 0.0
  %vm310 = vcmp.gt.f32.partialorder %v255, 0.0
  %vm311 = vcmp.gt.f32.partialorder %v260, 0.0
  %vm312 = vcmp.gt.f32.partialorder %v265, 0.0
  %vm313 = vcmp.gt.f32.partialorder %v270, 0.0
  %vm314 = vcmp.gt.f32.partialorder %v275, 0.0
  %vm315 = vcmp.gt.f32.partialorder %v280, 0.0
  %vm316 = vcmp.gt.f32.partialorder %v285, 0.0
  %vm317 = vcmp.gt.f32.partialorder %v290, 0.0
  %v318 = vmul.f32 %v170, 1.442695
  %v319 = vpow.pop %v318
  %v320 = vmul.f32 %v175, 1.442695
  %v321 = vpow.pop %v320
  %v322 = vmul.f32 %v180, 1.442695
  %v323 = vpow.pop %v322
  %v324 = vmul.f32 %v185, 1.442695
  %v325 = vpow.pop %v324
  %v326 = vmul.f32 %v190, 1.442695
  %v327 = vpow.pop %v326
  %v328 = vmul.f32 %v195, 1.442695
  %v329 = vpow.pop %v328
  %v330 = vmul.f32 %v200, 1.442695
  %v331 = vpow.pop %v330
  %v332 = vmul.f32 %v205, 1.442695
  %v333 = vpow.pop %v332
  %v334 = vmul.f32 %v210, 1.442695
  %v335 = vpow.pop %v334
  %v336 = vmul.f32 %v215, 1.442695
  %v337 = vpow.pop %v336
  %v338 = vmul.f32 %v220, 1.442695
  %v339 = vpow.pop %v338
  %v340 = vmul.f32 %v225, 1.442695
  %v341 = vpow.pop %v340
  %v342 = vmul.f32 %v230, 1.442695
  %v343 = vpow.pop %v342
  %v344 = vmul.f32 %v235, 1.442695
  %v345 = vpow.pop %v344
  %v346 = vmul.f32 %v240, 1.442695
  %v347 = vpow.pop %v346
  %v348 = vmul.f32 %v245, 1.442695
  %v349 = vpow.pop %v348
  %v350 = vmul.f32 %v250, 1.442695
  %v351 = vpow.pop %v350
  %v352 = vmul.f32 %v255, 1.442695
  %v353 = vpow.pop %v352
  %v354 = vmul.f32 %v260, 1.442695
  %v355 = vpow.pop %v354
  %v356 = vmul.f32 %v265, 1.442695
  %v357 = vpow.pop %v356
  %v358 = vmul.f32 %v270, 1.442695
  %v359 = vpow.pop %v358
  %v360 = vmul.f32 %v275, 1.442695
  %v361 = vpow.pop %v360
  %v362 = vmul.f32 %v280, 1.442695
  %v363 = vpow.pop %v362
  %v364 = vmul.f32 %v285, 1.442695
  %v365 = vpow.pop %v364
  %v366 = vmul.f32 %v290, 1.442695
  %v367 = vpow.pop %v366
  %v368 = vsub.f32 %v319, 1.0
  %v369 = vsub.f32 %v321, 1.0
  %v370 = vsub.f32 %v323, 1.0
  %v371 = vsub.f32 %v325, 1.0
  %v372 = vsub.f32 %v327, 1.0
  %v373 = vsub.f32 %v329, 1.0
  %v374 = vsub.f32 %v331, 1.0
  %v375 = vsub.f32 %v333, 1.0
  %v376 = vsub.f32 %v335, 1.0
  %v377 = vsub.f32 %v337, 1.0
  %v378 = vsub.f32 %v339, 1.0
  %v379 = vsub.f32 %v341, 1.0
  %v380 = vsub.f32 %v343, 1.0
  %v381 = vsub.f32 %v345, 1.0
  %v382 = vsub.f32 %v347, 1.0
  %v383 = vsub.f32 %v349, 1.0
  %v384 = vsub.f32 %v351, 1.0
  %v385 = vsub.f32 %v353, 1.0
  %v386 = vsub.f32 %v355, 1.0
  %v387 = vsub.f32 %v357, 1.0
  %v388 = vsub.f32 %v359, 1.0
  %v389 = vsub.f32 %v361, 1.0
  %v390 = vsub.f32 %v363, 1.0
  %v391 = vsub.f32 %v365, 1.0
  %v392 = vsub.f32 %v367, 1.0
  %v393 = vsel %vm293, %v170, %v368
  %v394 = vsel %vm294, %v175, %v369
  %v395 = vsel %vm295, %v180, %v370
  %v396 = vsel %vm296, %v185, %v371
  %v397 = vsel %vm297, %v190, %v372
  %v398 = vsel %vm298, %v195, %v373
  %v399 = vsel %vm299, %v200, %v374
  %v400 = vsel %vm300, %v205, %v375
  %v401 = vsel %vm301, %v210, %v376
  %v402 = vsel %vm302, %v215, %v377
  %v403 = vsel %vm303, %v220, %v378
  %v404 = vsel %vm304, %v225, %v379
  %v405 = vsel %vm305, %v230, %v380
  %v406 = vsel %vm306, %v235, %v381
  %v407 = vsel %vm307, %v240, %v382
  %v408 = vsel %vm308, %v245, %v383
  %v409 = vsel %vm309, %v250, %v384
  %v410 = vsel %vm310, %v255, %v385
  %v411 = vsel %vm311, %v260, %v386
  %v412 = vsel %vm312, %v265, %v387
  %v413 = vsel %vm313, %v270, %v388
  %v414 = vsel %vm314, %v275, %v389
  %v415 = vsel %vm315, %v280, %v390
  %v416 = vsel %vm316, %v285, %v391
  %v417 = vsel %vm317, %v290, %v392
  %vm418 = vcmask 261120
  %419 = vst.msk [vmem:[%s3] sm:$0xff] %vm418, %v393
  %420 = vst.msk [vmem:[%s3 + $0x8] sm:$0xff] %vm418, %v394
  %421 = vst.msk [vmem:[%s3 + $0x10] sm:$0xff] %vm418, %v395
  %422 = vst.msk [vmem:[%s3 + $0x18] sm:$0xff] %vm418, %v396
  %423 = vst.msk [vmem:[%s3 + $0x20] sm:$0xff] %vm418, %v397
  %424 = vst.msk [vmem:[%s3 + $0x28] sm:$0xff] %vm418, %v398
  %425 = vst.msk [vmem:[%s3 + $0x30] sm:$0xff] %vm418, %v399
  %426 = vst.msk [vmem:[%s3 + $0x38] sm:$0xff] %vm418, %v400
  %427 = vst.msk [vmem:[%s3 + $0x40] sm:$0xff] %vm418, %v401
  %428 = vst.msk [vmem:[%s3 + $0x48] sm:$0xff] %vm418, %v402
  %429 = vst.msk [vmem:[%s3 + $0x50] sm:$0xff] %vm418, %v403
  %430 = vst.msk [vmem:[%s3 + $0x58] sm:$0xff] %vm418, %v404
  %431 = vst.msk [vmem:[%s3 + $0x60] sm:$0xff] %vm418, %v405
  %432 = vst.msk [vmem:[%s3 + $0x68] sm:$0xff] %vm418, %v406
  %433 = vst.msk [vmem:[%s3 + $0x70] sm:$0xff] %vm418, %v407
  %434 = vst.msk [vmem:[%s3 + $0x78] sm:$0xff] %vm418, %v408
  %435 = vst.msk [vmem:[%s3 + $0x80] sm:$0xff] %vm418, %v409
  %436 = vst.msk [vmem:[%s3 + $0x88] sm:$0xff] %vm418, %v410
  %437 = vst.msk [vmem:[%s3 + $0x90] sm:$0xff] %vm418, %v411
  %438 = vst.msk [vmem:[%s3 + $0x98] sm:$0xff] %vm418, %v412
  %439 = vst.msk [vmem:[%s3 + $0xa0] sm:$0xff] %vm418, %v413
  %440 = vst.msk [vmem:[%s3 + $0xa8] sm:$0xff] %vm418, %v414
  %441 = vst.msk [vmem:[%s3 + $0xb0] sm:$0xff] %vm418, %v415
  %442 = vst.msk [vmem:[%s3 + $0xb8] sm:$0xff] %vm418, %v416
  %443 = vst.msk [vmem:[%s3 + $0xc0] sm:$0xff] %vm418, %v417
  // Predicated region
  $region14: #{dae_forward.9} parent=0 // pred_check
    _
  $region15: #{dae_forward.9} parent=0 // pred_check_branch
    %445 = sbr.rel (0) target = $region17
  $region16: #{dae_forward.9} parent=0 // pred_region
    _
  $region17: #{dae_forward.9} parent=0 // pred_fallthru
    _
  // Predicated region
  $region18: #{dae_forward.9} parent=0 // pred_check
    _
  $region19: #{dae_forward.9} parent=0 // pred_check_branch
    %447 = sbr.rel (0) target = $region21
  $region20: #{dae_forward.9} parent=0 // pred_region
    _
  $region21: #{dae_forward.9} parent=0 // pred_fallthru
    _

// kernel: dae_forward.10
$region0: #{dae_forward.10}
  #allocation0 [shape = 'u32[]', space=smem, size = 0x4, offset = 0x4, fixed_abs, tag = 'smem constant byte address 0x4 - core index']
  #allocation1 [shape = 'u32[144,128]{1,0:T(1,128)}', space=vmem, size = 0x12000, scoped, tag = 'internal scratch']
  %s0 = inlined_call_operand.vmem [shape: f32[50,512], index: 0, kind: input, shape index: {}]
  %s1 = inlined_call_operand.vmem [shape: f32[512,64], index: 1, kind: input, shape index: {}]
  %s2 = inlined_call_operand.vmem [shape: f32[1,64], index: 2, kind: input, shape index: {}]
  %s3 = inlined_call_operand.vmem [shape: f32[50,64], index: 3, kind: output, shape index: {}]
  %s4 = sld [smem:[#allocation0]]
  $region22: #{dae_forward.10} parent=0
    _
  %s6 = ssub.s32 1, %s4
  %s7 = scalar_select 0, %s6, %s4
  // Predicated region
  $region2: #{dae_forward.10} parent=0 // pred_check
    _
  $region3: #{dae_forward.10} parent=0 // pred_check_branch
    %9 = sbr.rel (0) target = $region5
  $region4: #{dae_forward.10} parent=0 // pred_region
    _
  $region5: #{dae_forward.10} parent=0 // pred_fallthru
    _
  // Predicated region
  $region6: #{dae_forward.10} parent=0 // pred_check
    _
  $region7: #{dae_forward.10} parent=0 // pred_check_branch
    %11 = sbr.rel (0) target = $region9
  $region8: #{dae_forward.10} parent=0 // pred_region
    _
  $region9: #{dae_forward.10} parent=0 // pred_fallthru
    _
  // Predicated region
  $region10: #{dae_forward.10} parent=0 // pred_check
    _
  $region11: #{dae_forward.10} parent=0 // pred_check_branch
    %13 = sbr.rel (0) target = $region13
  $region12: #{dae_forward.10} parent=0 // pred_region
    _
  $region13: #{dae_forward.10} parent=0 // pred_fallthru
    _
  %v14 = vld [vmem:[%s0] sm:$0xff]
  %v15 = vld [vmem:[%s0 + $0x8] sm:$0xff]
  %v16 = vld [vmem:[%s0 + $0x10] sm:$0xff]
  %v17 = vld [vmem:[%s0 + $0x18] sm:$0xff]
  %v18 = vld [vmem:[%s0 + $0x20] sm:$0xff]
  %v19 = vld [vmem:[%s0 + $0x28] sm:$0xff]
  %v20 = vld [vmem:[%s0 + $0x30] sm:$0xff]
  %v21 = vld [vmem:[%s0 + $0x38] sm:$0xff]
  %v22 = vld [vmem:[%s0 + $0x40] sm:$0xff]
  %v23 = vld [vmem:[%s0 + $0x48] sm:$0xff]
  %v24 = vld [vmem:[%s0 + $0x50] sm:$0xff]
  %v25 = vld [vmem:[%s0 + $0x58] sm:$0xff]
  %v26 = vld [vmem:[%s0 + $0x60] sm:$0xff]
  %v27 = vld [vmem:[%s0 + $0x68] sm:$0xff]
  %v28 = vld [vmem:[%s0 + $0x70] sm:$0xff]
  %v29 = vld [vmem:[%s0 + $0x78] sm:$0xff]
  %v30 = vld [vmem:[%s0 + $0x80] sm:$0xff]
  %v31 = vld [vmem:[%s0 + $0x88] sm:$0xff]
  %v32 = vld [vmem:[%s0 + $0x90] sm:$0xff]
  %v33 = vld [vmem:[%s0 + $0x98] sm:$0xff]
  %v34 = vld [vmem:[%s0 + $0xa0] sm:$0xff]
  %v35 = vld [vmem:[%s0 + $0xa8] sm:$0xff]
  %v36 = vld [vmem:[%s0 + $0xb0] sm:$0xff]
  %v37 = vld [vmem:[%s0 + $0xb8] sm:$0xff]
  %v38 = vld [vmem:[%s0 + $0xc0] sm:$0x3]
  %v39 = vld [vmem:[%s0 + $0xc8] sm:$0x3]
  %v40 = vld [vmem:[%s0 + $0xd0] sm:$0x3]
  %v41 = vld [vmem:[%s0 + $0xd8] sm:$0x3]
  %v42 = vld [vmem:[%s1] sm:$0xff]
  %v43 = vld [vmem:[%s1 + $0x8] sm:$0xff]
  %v44 = vld [vmem:[%s1 + $0x10] sm:$0xff]
  %v45 = vld [vmem:[%s1 + $0x18] sm:$0xff]
  %v46 = vld [vmem:[%s1 + $0x20] sm:$0xff]
  %v47 = vld [vmem:[%s1 + $0x28] sm:$0xff]
  %v48 = vld [vmem:[%s1 + $0x30] sm:$0xff]
  %v49 = vld [vmem:[%s1 + $0x38] sm:$0xff]
  %v50 = vld [vmem:[%s1 + $0x40] sm:$0xff]
  %v51 = vld [vmem:[%s1 + $0x48] sm:$0xff]
  %v52 = vld [vmem:[%s1 + $0x50] sm:$0xff]
  %v53 = vld [vmem:[%s1 + $0x58] sm:$0xff]
  %v54 = vld [vmem:[%s1 + $0x60] sm:$0xff]
  %v55 = vld [vmem:[%s1 + $0x68] sm:$0xff]
  %v56 = vld [vmem:[%s1 + $0x70] sm:$0xff]
  %v57 = vld [vmem:[%s1 + $0x78] sm:$0xff]
  %v58 = vld [vmem:[%s1 + $0x80] sm:$0xff]
  %v59 = vld [vmem:[%s1 + $0x88] sm:$0xff]
  %v60 = vld [vmem:[%s1 + $0x90] sm:$0xff]
  %v61 = vld [vmem:[%s1 + $0x98] sm:$0xff]
  %v62 = vld [vmem:[%s1 + $0xa0] sm:$0xff]
  %v63 = vld [vmem:[%s1 + $0xa8] sm:$0xff]
  %v64 = vld [vmem:[%s1 + $0xb0] sm:$0xff]
  %v65 = vld [vmem:[%s1 + $0xb8] sm:$0xff]
  %v66 = vld [vmem:[%s1 + $0xc0] sm:$0xff]
  %v67 = vld [vmem:[%s1 + $0xc8] sm:$0xff]
  %v68 = vld [vmem:[%s1 + $0xd0] sm:$0xff]
  %v69 = vld [vmem:[%s1 + $0xd8] sm:$0xff]
  %v70 = vld [vmem:[%s1 + $0xe0] sm:$0xff]
  %v71 = vld [vmem:[%s1 + $0xe8] sm:$0xff]
  %v72 = vld [vmem:[%s1 + $0xf0] sm:$0xff]
  %v73 = vld [vmem:[%s1 + $0xf8] sm:$0xff]
  %v74 = vld [vmem:[%s1 + $0x100] sm:$0xff]
  %v75 = vld [vmem:[%s1 + $0x108] sm:$0xff]
  %v76 = vld [vmem:[%s1 + $0x110] sm:$0xff]
  %v77 = vld [vmem:[%s1 + $0x118] sm:$0xff]
  %v78 = vld [vmem:[%s1 + $0x120] sm:$0xff]
  %v79 = vld [vmem:[%s1 + $0x128] sm:$0xff]
  %v80 = vld [vmem:[%s1 + $0x130] sm:$0xff]
  %v81 = vld [vmem:[%s1 + $0x138] sm:$0xff]
  %v82 = vld [vmem:[%s1 + $0x140] sm:$0xff]
  %v83 = vld [vmem:[%s1 + $0x148] sm:$0xff]
  %v84 = vld [vmem:[%s1 + $0x150] sm:$0xff]
  %v85 = vld [vmem:[%s1 + $0x158] sm:$0xff]
  %v86 = vld [vmem:[%s1 + $0x160] sm:$0xff]
  %v87 = vld [vmem:[%s1 + $0x168] sm:$0xff]
  %v88 = vld [vmem:[%s1 + $0x170] sm:$0xff]
  %v89 = vld [vmem:[%s1 + $0x178] sm:$0xff]
  %v90 = vld [vmem:[%s1 + $0x180] sm:$0xff]
  %v91 = vld [vmem:[%s1 + $0x188] sm:$0xff]
  %v92 = vld [vmem:[%s1 + $0x190] sm:$0xff]
  %v93 = vld [vmem:[%s1 + $0x198] sm:$0xff]
  %v94 = vld [vmem:[%s1 + $0x1a0] sm:$0xff]
  %v95 = vld [vmem:[%s1 + $0x1a8] sm:$0xff]
  %v96 = vld [vmem:[%s1 + $0x1b0] sm:$0xff]
  %v97 = vld [vmem:[%s1 + $0x1b8] sm:$0xff]
  %v98 = vld [vmem:[%s1 + $0x1c0] sm:$0xff]
  %v99 = vld [vmem:[%s1 + $0x1c8] sm:$0xff]
  %v100 = vld [vmem:[%s1 + $0x1d0] sm:$0xff]
  %v101 = vld [vmem:[%s1 + $0x1d8] sm:$0xff]
  %v102 = vld [vmem:[%s1 + $0x1e0] sm:$0xff]
  %v103 = vld [vmem:[%s1 + $0x1e8] sm:$0xff]
  %v104 = vld [vmem:[%s1 + $0x1f0] sm:$0xff]
  %v105 = vld [vmem:[%s1 + $0x1f8] sm:$0xff]
  %v106 = vld [vmem:[%s2] sm:$0x1]
  %v108 = vlaneseq
  %v109 = vshrl.u32 %v108, 7
  %v110 = vsub.s32 0, %v109
  %v111 = vrot.slane %v106, %v110
  %113 = vmatprep.subr.mxu0 0.0
  %114 = vmatpush1.msra.mxu0 %v42
  %115 = vmatprep.subr.mxu0 0.0
  %116 = vmatpush1.msra.mxu0 %v43
  %117 = vmatprep.subr.mxu0 0.0
  %118 = vmatpush1.msra.mxu0 %v44
  %119 = vmatprep.subr.mxu0 0.0
  %120 = vmatpush1.msra.mxu0 %v45
  %121 = vmatprep.subr.mxu0 0.0
  %122 = vmatpush1.msra.mxu0 %v46
  %123 = vmatprep.subr.mxu0 0.0
  %124 = vmatpush1.msra.mxu0 %v47
  %125 = vmatprep.subr.mxu0 0.0
  %126 = vmatpush1.msra.mxu0 %v48
  %127 = vmatprep.subr.mxu0 0.0
  %128 = vmatpush1.msra.mxu0 %v49
  %129 = vmatprep.subr.mxu0 0.0
  %130 = vmatpush1.msra.mxu0 %v50
  %131 = vmatprep.subr.mxu0 0.0
  %132 = vmatpush1.msra.mxu0 %v51
  %133 = vmatprep.subr.mxu0 0.0
  %134 = vmatpush1.msra.mxu0 %v52
  %135 = vmatprep.subr.mxu0 0.0
  %136 = vmatpush1.msra.mxu0 %v53
  %137 = vmatprep.subr.mxu0 0.0
  %138 = vmatpush1.msra.mxu0 %v54
  %139 = vmatprep.subr.mxu0 0.0
  %140 = vmatpush1.msra.mxu0 %v55
  %141 = vmatprep.subr.mxu0 0.0
  %142 = vmatpush1.msra.mxu0 %v56
  %143 = vmatprep.subr.mxu0 0.0
  %144 = vmatpush1.msra.mxu0 %v57
  %145 = vmatprep.subr.mxu0 0.0
  %146 = vmatpush1.msra.mxu0 %v58
  %147 = vmatprep.subr.mxu0 0.0
  %148 = vmatpush1.msra.mxu0 %v59
  %149 = vmatprep.subr.mxu0 0.0
  %150 = vmatpush1.msra.mxu0 %v60
  %151 = vmatprep.subr.mxu0 0.0
  %152 = vmatpush1.msra.mxu0 %v61
  %153 = vmatprep.subr.mxu0 0.0
  %154 = vmatpush1.msra.mxu0 %v62
  %155 = vmatprep.subr.mxu0 0.0
  %156 = vmatpush1.msra.mxu0 %v63
  %157 = vmatprep.subr.mxu0 0.0
  %158 = vmatpush1.msra.mxu0 %v64
  %159 = vmatprep.subr.mxu0 0.0
  %160 = vmatpush1.msra.mxu0 %v65
  %161 = vmatprep.subr.mxu0 0.0
  %162 = vmatpush1.msra.mxu0 %v66
  %163 = vmatprep.subr.mxu0 0.0
  %164 = vmatpush1.msra.mxu0 %v67
  %165 = vmatprep.subr.mxu0 0.0
  %166 = vmatpush1.msra.mxu0 %v68
  %167 = vmatprep.subr.mxu0 0.0
  %168 = vmatpush1.msra.mxu0 %v69
  %169 = vmatprep.subr.mxu0 0.0
  %170 = vmatpush1.msra.mxu0 %v70
  %171 = vmatprep.subr.mxu0 0.0
  %172 = vmatpush1.msra.mxu0 %v71
  %173 = vmatprep.subr.mxu0 0.0
  %174 = vmatpush1.msra.mxu0 %v72
  %175 = vmatprep.subr.mxu0 0.0
  %176 = vmatpush1.msra.mxu0 %v73
  %177 = vmatprep.mubr.f32.mxu0 %v15
  %178 = vmatmul.mubr.f32.gmra.mrb[0].mxu0 %v14
  %v179 = vpop.f32.mrb[0].mxu0
  %v180 = vadd.f32 %v111, %v179
  %v181 = vpop.f32.mrb[0].mxu0
  %182 = vmatprep.mubr.f32.mxu0 %v19
  %183 = vmatmul.mubr.f32.gmra.mrb[0].mxu0 %v18
  %v184 = vpop.f32.mrb[0].mxu0
  %v185 = vadd.f32 %v111, %v184
  %v186 = vpop.f32.mrb[0].mxu0
  %187 = vmatprep.mubr.f32.mxu0 %v23
  %188 = vmatmul.mubr.f32.gmra.mrb[0].mxu0 %v22
  %v189 = vpop.f32.mrb[0].mxu0
  %v190 = vadd.f32 %v111, %v189
  %v191 = vpop.f32.mrb[0].mxu0
  %192 = vmatprep.mubr.f32.mxu0 %v27
  %193 = vmatmul.mubr.f32.gmra.mrb[0].mxu0 %v26
  %v194 = vpop.f32.mrb[0].mxu0
  %v195 = vadd.f32 %v111, %v194
  %v196 = vpop.f32.mrb[0].mxu0
  %197 = vmatprep.mubr.f32.mxu0 %v31
  %198 = vmatmul.mubr.f32.gmra.mrb[0].mxu0 %v30
  %v199 = vpop.f32.mrb[0].mxu0
  %v200 = vadd.f32 %v111, %v199
  %v201 = vpop.f32.mrb[0].mxu0
  %202 = vmatprep.mubr.f32.mxu0 %v35
  %203 = vmatmul.mubr.f32.gmra.mrb[0].mxu0 %v34
  %v204 = vpop.f32.mrb[0].mxu0
  %v205 = vadd.f32 %v111, %v204
  %v206 = vpop.f32.mrb[0].mxu0
  %207 = vmatprep.mubr.f32.mxu0 %v39
  %208 = vmatmul.mubr.f32.gmra.mrb[0].mxu0 %v38
  %v209 = vpop.f32.mrb[0].mxu0
  %v210 = vadd.f32 %v111, %v209
  %v211 = vpop.f32.mrb[0].mxu0
  %212 = vdwg.mxu0
  %213 = vmatprep.subr.mxu0 0.0
  %214 = vmatpush1.msra.mxu0 %v74
  %215 = vmatprep.subr.mxu0 0.0
  %216 = vmatpush1.msra.mxu0 %v75
  %217 = vmatprep.subr.mxu0 0.0
  %218 = vmatpush1.msra.mxu0 %v76
  %219 = vmatprep.subr.mxu0 0.0
  %220 = vmatpush1.msra.mxu0 %v77
  %221 = vmatprep.subr.mxu0 0.0
  %222 = vmatpush1.msra.mxu0 %v78
  %223 = vmatprep.subr.mxu0 0.0
  %224 = vmatpush1.msra.mxu0 %v79
  %225 = vmatprep.subr.mxu0 0.0
  %226 = vmatpush1.msra.mxu0 %v80
  %227 = vmatprep.subr.mxu0 0.0
  %228 = vmatpush1.msra.mxu0 %v81
  %229 = vmatprep.subr.mxu0 0.0
  %230 = vmatpush1.msra.mxu0 %v82
  %231 = vmatprep.subr.mxu0 0.0
  %232 = vmatpush1.msra.mxu0 %v83
  %233 = vmatprep.subr.mxu0 0.0
  %234 = vmatpush1.msra.mxu0 %v84
  %235 = vmatprep.subr.mxu0 0.0
  %236 = vmatpush1.msra.mxu0 %v85
  %237 = vmatprep.subr.mxu0 0.0
  %238 = vmatpush1.msra.mxu0 %v86
  %239 = vmatprep.subr.mxu0 0.0
  %240 = vmatpush1.msra.mxu0 %v87
  %241 = vmatprep.subr.mxu0 0.0
  %242 = vmatpush1.msra.mxu0 %v88
  %243 = vmatprep.subr.mxu0 0.0
  %244 = vmatpush1.msra.mxu0 %v89
  %245 = vmatprep.subr.mxu0 0.0
  %246 = vmatpush1.msra.mxu0 %v90
  %247 = vmatprep.subr.mxu0 0.0
  %248 = vmatpush1.msra.mxu0 %v91
  %249 = vmatprep.subr.mxu0 0.0
  %250 = vmatpush1.msra.mxu0 %v92
  %251 = vmatprep.subr.mxu0 0.0
  %252 = vmatpush1.msra.mxu0 %v93
  %253 = vmatprep.subr.mxu0 0.0
  %254 = vmatpush1.msra.mxu0 %v94
  %255 = vmatprep.subr.mxu0 0.0
  %256 = vmatpush1.msra.mxu0 %v95
  %257 = vmatprep.subr.mxu0 0.0
  %258 = vmatpush1.msra.mxu0 %v96
  %259 = vmatprep.subr.mxu0 0.0
  %260 = vmatpush1.msra.mxu0 %v97
  %261 = vmatprep.subr.mxu0 0.0
  %262 = vmatpush1.msra.mxu0 %v98
  %263 = vmatprep.subr.mxu0 0.0
  %264 = vmatpush1.msra.mxu0 %v99
  %265 = vmatprep.subr.mxu0 0.0
  %266 = vmatpush1.msra.mxu0 %v100
  %267 = vmatprep.subr.mxu0 0.0
  %268 = vmatpush1.msra.mxu0 %v101
  %269 = vmatprep.subr.mxu0 0.0
  %270 = vmatpush1.msra.mxu0 %v102
  %271 = vmatprep.subr.mxu0 0.0
  %272 = vmatpush1.msra.mxu0 %v103
  %273 = vmatprep.subr.mxu0 0.0
  %274 = vmatpush1.msra.mxu0 %v104
  %275 = vmatprep.subr.mxu0 0.0
  %276 = vmatpush1.msra.mxu0 %v105
  %277 = vmatprep.mubr.f32.mxu0 %v17
  %278 = vmatmul.mubr.f32.gmra.mrb[0].mxu0 %v16
  %v279 = vpop.f32.mrb[0].mxu0
  %v280 = vadd.f32 %v180, %v279
  %v281 = vpop.f32.mrb[0].mxu0
  %282 = vmatprep.mubr.f32.mxu0 %v21
  %283 = vmatmul.mubr.f32.gmra.mrb[0].mxu0 %v20
  %v284 = vpop.f32.mrb[0].mxu0
  %v285 = vadd.f32 %v185, %v284
  %v286 = vpop.f32.mrb[0].mxu0
  %287 = vmatprep.mubr.f32.mxu0 %v25
  %288 = vmatmul.mubr.f32.gmra.mrb[0].mxu0 %v24
  %v289 = vpop.f32.mrb[0].mxu0
  %v290 = vadd.f32 %v190, %v289
  %v291 = vpop.f32.mrb[0].mxu0
  %292 = vmatprep.mubr.f32.mxu0 %v29
  %293 = vmatmul.mubr.f32.gmra.mrb[0].mxu0 %v28
  %v294 = vpop.f32.mrb[0].mxu0
  %v295 = vadd.f32 %v195, %v294
  %v296 = vpop.f32.mrb[0].mxu0
  %297 = vmatprep.mubr.f32.mxu0 %v33
  %298 = vmatmul.mubr.f32.gmra.mrb[0].mxu0 %v32
  %v299 = vpop.f32.mrb[0].mxu0
  %v300 = vadd.f32 %v200, %v299
  %v301 = vpop.f32.mrb[0].mxu0
  %302 = vmatprep.mubr.f32.mxu0 %v37
  %303 = vmatmul.mubr.f32.gmra.mrb[0].mxu0 %v36
  %v304 = vpop.f32.mrb[0].mxu0
  %v305 = vadd.f32 %v205, %v304
  %v306 = vpop.f32.mrb[0].mxu0
  %307 = vmatprep.mubr.f32.mxu0 %v41
  %308 = vmatmul.mubr.f32.gmra.mrb[0].mxu0 %v40
  %v309 = vpop.f32.mrb[0].mxu0
  %v310 = vadd.f32 %v210, %v309
  %v311 = vpop.f32.mrb[0].mxu0
  %312 = vdwg.mxu0
  %vm313 = vcmp.gt.f32.partialorder %v280, 0.0
  %vm314 = vcmp.gt.f32.partialorder %v285, 0.0
  %vm315 = vcmp.gt.f32.partialorder %v290, 0.0
  %vm316 = vcmp.gt.f32.partialorder %v295, 0.0
  %vm317 = vcmp.gt.f32.partialorder %v300, 0.0
  %vm318 = vcmp.gt.f32.partialorder %v305, 0.0
  %vm319 = vcmp.gt.f32.partialorder %v310, 0.0
  %v320 = vmul.f32 %v280, 1.442695
  %v321 = vpow.pop %v320
  %v322 = vmul.f32 %v285, 1.442695
  %v323 = vpow.pop %v322
  %v324 = vmul.f32 %v290, 1.442695
  %v325 = vpow.pop %v324
  %v326 = vmul.f32 %v295, 1.442695
  %v327 = vpow.pop %v326
  %v328 = vmul.f32 %v300, 1.442695
  %v329 = vpow.pop %v328
  %v330 = vmul.f32 %v305, 1.442695
  %v331 = vpow.pop %v330
  %v332 = vmul.f32 %v310, 1.442695
  %v333 = vpow.pop %v332
  %v334 = vsub.f32 %v321, 1.0
  %v335 = vsub.f32 %v323, 1.0
  %v336 = vsub.f32 %v325, 1.0
  %v337 = vsub.f32 %v327, 1.0
  %v338 = vsub.f32 %v329, 1.0
  %v339 = vsub.f32 %v331, 1.0
  %v340 = vsub.f32 %v333, 1.0
  %v341 = vsel %vm313, %v280, %v334
  %v342 = vsel %vm314, %v285, %v335
  %v343 = vsel %vm315, %v290, %v336
  %v344 = vsel %vm316, %v295, %v337
  %v345 = vsel %vm317, %v300, %v338
  %v346 = vsel %vm318, %v305, %v339
  %v347 = vsel %vm319, %v310, %v340
  %vm348 = vcmask 523264
  %349 = vst.msk [vmem:[%s3] sm:$0xff] %vm348, %v341
  %350 = vst.msk [vmem:[%s3 + $0x8] sm:$0xff] %vm348, %v342
  %351 = vst.msk [vmem:[%s3 + $0x10] sm:$0xff] %vm348, %v343
  %352 = vst.msk [vmem:[%s3 + $0x18] sm:$0xff] %vm348, %v344
  %353 = vst.msk [vmem:[%s3 + $0x20] sm:$0xff] %vm348, %v345
  %354 = vst.msk [vmem:[%s3 + $0x28] sm:$0xff] %vm348, %v346
  %vm355 = vcmask 517120
  %356 = vst.msk [vmem:[%s3 + $0x30] sm:$0x3] %vm355, %v347
  // Predicated region
  $region14: #{dae_forward.10} parent=0 // pred_check
    _
  $region15: #{dae_forward.10} parent=0 // pred_check_branch
    %358 = sbr.rel (0) target = $region17
  $region16: #{dae_forward.10} parent=0 // pred_region
    _
  $region17: #{dae_forward.10} parent=0 // pred_fallthru
    _
  // Predicated region
  $region18: #{dae_forward.10} parent=0 // pred_check
    _
  $region19: #{dae_forward.10} parent=0 // pred_check_branch
    %360 = sbr.rel (0) target = $region21
  $region20: #{dae_forward.10} parent=0 // pred_region
    _
  $region21: #{dae_forward.10} parent=0 // pred_fallthru
    _

// kernel: dae_forward.11
$region0: #{dae_forward.11}
  #allocation0 [shape = 'u32[]', space=smem, size = 0x4, offset = 0x4, fixed_abs, tag = 'smem constant byte address 0x4 - core index']
  #allocation1 [shape = 'u32[144,128]{1,0:T(1,128)}', space=vmem, size = 0x12000, scoped, tag = 'internal scratch']
  %s0 = inlined_call_operand.vmem [shape: f32[2,1600], index: 0, kind: input, shape index: {}]
  %s1 = inlined_call_operand.vmem [shape: f32[1600,32], index: 1, kind: input, shape index: {}]
  %s2 = inlined_call_operand.vmem [shape: f32[1,32], index: 2, kind: input, shape index: {}]
  %s3 = inlined_call_operand.vmem [shape: f32[2,32], index: 3, kind: output, shape index: {}]
  %s4 = sld [smem:[#allocation0]]
  $region22: #{dae_forward.11} parent=0
    _
  %s6 = ssub.s32 1, %s4
  %s7 = scalar_select 0, %s6, %s4
  // Predicated region
  $region2: #{dae_forward.11} parent=0 // pred_check
    _
  $region3: #{dae_forward.11} parent=0 // pred_check_branch
    %9 = sbr.rel (0) target = $region5
  $region4: #{dae_forward.11} parent=0 // pred_region
    _
  $region5: #{dae_forward.11} parent=0 // pred_fallthru
    _
  // Predicated region
  $region6: #{dae_forward.11} parent=0 // pred_check
    _
  $region7: #{dae_forward.11} parent=0 // pred_check_branch
    %11 = sbr.rel (0) target = $region9
  $region8: #{dae_forward.11} parent=0 // pred_region
    _
  $region9: #{dae_forward.11} parent=0 // pred_fallthru
    _
  // Predicated region
  $region10: #{dae_forward.11} parent=0 // pred_check
    _
  $region11: #{dae_forward.11} parent=0 // pred_check_branch
    %13 = sbr.rel (0) target = $region13
  $region12: #{dae_forward.11} parent=0 // pred_region
    _
  $region13: #{dae_forward.11} parent=0 // pred_fallthru
    _
  %v14 = vld [vmem:[%s0] sm:$0xff]
  %v15 = vld [vmem:[%s0 + $0x8] sm:$0xff]
  %v16 = vld [vmem:[%s0 + $0x10] sm:$0xff]
  %v17 = vld [vmem:[%s0 + $0x18] sm:$0x3]
  %v18 = vld [vmem:[%s1] sm:$0xff]
  %v19 = vld [vmem:[%s1 + $0x8] sm:$0xff]
  %v20 = vld [vmem:[%s1 + $0x10] sm:$0xff]
  %v21 = vld [vmem:[%s1 + $0x18] sm:$0xff]
  %v22 = vld [vmem:[%s1 + $0x20] sm:$0xff]
  %v23 = vld [vmem:[%s1 + $0x28] sm:$0xff]
  %v24 = vld [vmem:[%s1 + $0x30] sm:$0xff]
  %v25 = vld [vmem:[%s1 + $0x38] sm:$0xff]
  %v26 = vld [vmem:[%s1 + $0x40] sm:$0xff]
  %v27 = vld [vmem:[%s1 + $0x48] sm:$0xff]
  %v28 = vld [vmem:[%s1 + $0x50] sm:$0xff]
  %v29 = vld [vmem:[%s1 + $0x58] sm:$0xff]
  %v30 = vld [vmem:[%s1 + $0x60] sm:$0xff]
  %v31 = vld [vmem:[%s1 + $0x68] sm:$0xff]
  %v32 = vld [vmem:[%s1 + $0x70] sm:$0xff]
  %v33 = vld [vmem:[%s1 + $0x78] sm:$0xff]
  %v34 = vld [vmem:[%s1 + $0x80] sm:$0xff]
  %v35 = vld [vmem:[%s1 + $0x88] sm:$0xff]
  %v36 = vld [vmem:[%s1 + $0x90] sm:$0xff]
  %v37 = vld [vmem:[%s1 + $0x98] sm:$0xff]
  %v38 = vld [vmem:[%s1 + $0xa0] sm:$0xff]
  %v39 = vld [vmem:[%s1 + $0xa8] sm:$0xff]
  %v40 = vld [vmem:[%s1 + $0xb0] sm:$0xff]
  %v41 = vld [vmem:[%s1 + $0xb8] sm:$0xff]
  %v42 = vld [vmem:[%s1 + $0xc0] sm:$0xff]
  %v43 = vld [vmem:[%s1 + $0xc8] sm:$0xff]
  %v44 = vld [vmem:[%s1 + $0xd0] sm:$0xff]
  %v45 = vld [vmem:[%s1 + $0xd8] sm:$0xff]
  %v46 = vld [vmem:[%s1 + $0xe0] sm:$0xff]
  %v47 = vld [vmem:[%s1 + $0xe8] sm:$0xff]
  %v48 = vld [vmem:[%s1 + $0xf0] sm:$0xff]
  %v49 = vld [vmem:[%s1 + $0xf8] sm:$0xff]
  %v50 = vld [vmem:[%s1 + $0x100] sm:$0xff]
  %v51 = vld [vmem:[%s1 + $0x108] sm:$0xff]
  %v52 = vld [vmem:[%s1 + $0x110] sm:$0xff]
  %v53 = vld [vmem:[%s1 + $0x118] sm:$0xff]
  %v54 = vld [vmem:[%s1 + $0x120] sm:$0xff]
  %v55 = vld [vmem:[%s1 + $0x128] sm:$0xff]
  %v56 = vld [vmem:[%s1 + $0x130] sm:$0xff]
  %v57 = vld [vmem:[%s1 + $0x138] sm:$0xff]
  %v58 = vld [vmem:[%s1 + $0x140] sm:$0xff]
  %v59 = vld [vmem:[%s1 + $0x148] sm:$0xff]
  %v60 = vld [vmem:[%s1 + $0x150] sm:$0xff]
  %v61 = vld [vmem:[%s1 + $0x158] sm:$0xff]
  %v62 = vld [vmem:[%s1 + $0x160] sm:$0xff]
  %v63 = vld [vmem:[%s1 + $0x168] sm:$0xff]
  %v64 = vld [vmem:[%s1 + $0x170] sm:$0xff]
  %v65 = vld [vmem:[%s1 + $0x178] sm:$0xff]
  %v66 = vld [vmem:[%s1 + $0x180] sm:$0xff]
  %v67 = vld [vmem:[%s1 + $0x188] sm:$0xff]
  %v68 = vld [vmem:[%s1 + $0x190] sm:$0xff]
  %v69 = vld [vmem:[%s1 + $0x198] sm:$0xff]
  %v70 = vld [vmem:[%s1 + $0x1a0] sm:$0xff]
  %v71 = vld [vmem:[%s1 + $0x1a8] sm:$0xff]
  %v72 = vld [vmem:[%s1 + $0x1b0] sm:$0xff]
  %v73 = vld [vmem:[%s1 + $0x1b8] sm:$0xff]
  %v74 = vld [vmem:[%s1 + $0x1c0] sm:$0xff]
  %v75 = vld [vmem:[%s1 + $0x1c8] sm:$0xff]
  %v76 = vld [vmem:[%s1 + $0x1d0] sm:$0xff]
  %v77 = vld [vmem:[%s1 + $0x1d8] sm:$0xff]
  %v78 = vld [vmem:[%s1 + $0x1e0] sm:$0xff]
  %v79 = vld [vmem:[%s1 + $0x1e8] sm:$0xff]
  %v80 = vld [vmem:[%s1 + $0x1f0] sm:$0xff]
  %v81 = vld [vmem:[%s1 + $0x1f8] sm:$0xff]
  %v82 = vld [vmem:[%s1 + $0x200] sm:$0xff]
  %v83 = vld [vmem:[%s1 + $0x208] sm:$0xff]
  %v84 = vld [vmem:[%s1 + $0x210] sm:$0xff]
  %v85 = vld [vmem:[%s1 + $0x218] sm:$0xff]
  %v86 = vld [vmem:[%s1 + $0x220] sm:$0xff]
  %v87 = vld [vmem:[%s1 + $0x228] sm:$0xff]
  %v88 = vld [vmem:[%s1 + $0x230] sm:$0xff]
  %v89 = vld [vmem:[%s1 + $0x238] sm:$0xff]
  %v90 = vld [vmem:[%s1 + $0x240] sm:$0xff]
  %v91 = vld [vmem:[%s1 + $0x248] sm:$0xff]
  %v92 = vld [vmem:[%s1 + $0x250] sm:$0xff]
  %v93 = vld [vmem:[%s1 + $0x258] sm:$0xff]
  %v94 = vld [vmem:[%s1 + $0x260] sm:$0xff]
  %v95 = vld [vmem:[%s1 + $0x268] sm:$0xff]
  %v96 = vld [vmem:[%s1 + $0x270] sm:$0xff]
  %v97 = vld [vmem:[%s1 + $0x278] sm:$0xff]
  %v98 = vld [vmem:[%s1 + $0x280] sm:$0xff]
  %v99 = vld [vmem:[%s1 + $0x288] sm:$0xff]
  %v100 = vld [vmem:[%s1 + $0x290] sm:$0xff]
  %v101 = vld [vmem:[%s1 + $0x298] sm:$0xff]
  %v102 = vld [vmem:[%s1 + $0x2a0] sm:$0xff]
  %v103 = vld [vmem:[%s1 + $0x2a8] sm:$0xff]
  %v104 = vld [vmem:[%s1 + $0x2b0] sm:$0xff]
  %v105 = vld [vmem:[%s1 + $0x2b8] sm:$0xff]
  %v106 = vld [vmem:[%s1 + $0x2c0] sm:$0xff]
  %v107 = vld [vmem:[%s1 + $0x2c8] sm:$0xff]
  %v108 = vld [vmem:[%s1 + $0x2d0] sm:$0xff]
  %v109 = vld [vmem:[%s1 + $0x2d8] sm:$0xff]
  %v110 = vld [vmem:[%s1 + $0x2e0] sm:$0xff]
  %v111 = vld [vmem:[%s1 + $0x2e8] sm:$0xff]
  %v112 = vld [vmem:[%s1 + $0x2f0] sm:$0xff]
  %v113 = vld [vmem:[%s1 + $0x2f8] sm:$0xff]
  %v114 = vld [vmem:[%s1 + $0x300] sm:$0xff]
  %v115 = vld [vmem:[%s1 + $0x308] sm:$0xff]
  %v116 = vld [vmem:[%s1 + $0x310] sm:$0xff]
  %v117 = vld [vmem:[%s1 + $0x318] sm:$0xff]
  %v118 = vld [vmem:[%s1 + $0x320] sm:$0xff]
  %v119 = vld [vmem:[%s1 + $0x328] sm:$0xff]
  %v120 = vld [vmem:[%s1 + $0x330] sm:$0xff]
  %v121 = vld [vmem:[%s1 + $0x338] sm:$0xff]
  %v122 = vld [vmem:[%s1 + $0x340] sm:$0xff]
  %v123 = vld [vmem:[%s1 + $0x348] sm:$0xff]
  %v124 = vld [vmem:[%s1 + $0x350] sm:$0xff]
  %v125 = vld [vmem:[%s1 + $0x358] sm:$0xff]
  %v126 = vld [vmem:[%s1 + $0x360] sm:$0xff]
  %v127 = vld [vmem:[%s1 + $0x368] sm:$0xff]
  %v128 = vld [vmem:[%s1 + $0x370] sm:$0xff]
  %v129 = vld [vmem:[%s1 + $0x378] sm:$0xff]
  %v130 = vld [vmem:[%s1 + $0x380] sm:$0xff]
  %v131 = vld [vmem:[%s1 + $0x388] sm:$0xff]
  %v132 = vld [vmem:[%s1 + $0x390] sm:$0xff]
  %v133 = vld [vmem:[%s1 + $0x398] sm:$0xff]
  %v134 = vld [vmem:[%s1 + $0x3a0] sm:$0xff]
  %v135 = vld [vmem:[%s1 + $0x3a8] sm:$0xff]
  %v136 = vld [vmem:[%s1 + $0x3b0] sm:$0xff]
  %v137 = vld [vmem:[%s1 + $0x3b8] sm:$0xff]
  %v138 = vld [vmem:[%s1 + $0x3c0] sm:$0xff]
  %v139 = vld [vmem:[%s1 + $0x3c8] sm:$0xff]
  %v140 = vld [vmem:[%s1 + $0x3d0] sm:$0xff]
  %v141 = vld [vmem:[%s1 + $0x3d8] sm:$0xff]
  %v142 = vld [vmem:[%s1 + $0x3e0] sm:$0xff]
  %v143 = vld [vmem:[%s1 + $0x3e8] sm:$0xff]
  %v144 = vld [vmem:[%s1 + $0x3f0] sm:$0xff]
  %v145 = vld [vmem:[%s1 + $0x3f8] sm:$0xff]
  %v146 = vld [vmem:[%s1 + $0x400] sm:$0xff]
  %v147 = vld [vmem:[%s1 + $0x408] sm:$0xff]
  %v148 = vld [vmem:[%s1 + $0x410] sm:$0xff]
  %v149 = vld [vmem:[%s1 + $0x418] sm:$0xff]
  %v150 = vld [vmem:[%s1 + $0x420] sm:$0xff]
  %v151 = vld [vmem:[%s1 + $0x428] sm:$0xff]
  %v152 = vld [vmem:[%s1 + $0x430] sm:$0xff]
  %v153 = vld [vmem:[%s1 + $0x438] sm:$0xff]
  %v154 = vld [vmem:[%s1 + $0x440] sm:$0xff]
  %v155 = vld [vmem:[%s1 + $0x448] sm:$0xff]
  %v156 = vld [vmem:[%s1 + $0x450] sm:$0xff]
  %v157 = vld [vmem:[%s1 + $0x458] sm:$0xff]
  %v158 = vld [vmem:[%s1 + $0x460] sm:$0xff]
  %v159 = vld [vmem:[%s1 + $0x468] sm:$0xff]
  %v160 = vld [vmem:[%s1 + $0x470] sm:$0xff]
  %v161 = vld [vmem:[%s1 + $0x478] sm:$0xff]
  %v162 = vld [vmem:[%s1 + $0x480] sm:$0xff]
  %v163 = vld [vmem:[%s1 + $0x488] sm:$0xff]
  %v164 = vld [vmem:[%s1 + $0x490] sm:$0xff]
  %v165 = vld [vmem:[%s1 + $0x498] sm:$0xff]
  %v166 = vld [vmem:[%s1 + $0x4a0] sm:$0xff]
  %v167 = vld [vmem:[%s1 + $0x4a8] sm:$0xff]
  %v168 = vld [vmem:[%s1 + $0x4b0] sm:$0xff]
  %v169 = vld [vmem:[%s1 + $0x4b8] sm:$0xff]
  %v170 = vld [vmem:[%s1 + $0x4c0] sm:$0xff]
  %v171 = vld [vmem:[%s1 + $0x4c8] sm:$0xff]
  %v172 = vld [vmem:[%s1 + $0x4d0] sm:$0xff]
  %v173 = vld [vmem:[%s1 + $0x4d8] sm:$0xff]
  %v174 = vld [vmem:[%s1 + $0x4e0] sm:$0xff]
  %v175 = vld [vmem:[%s1 + $0x4e8] sm:$0xff]
  %v176 = vld [vmem:[%s1 + $0x4f0] sm:$0xff]
  %v177 = vld [vmem:[%s1 + $0x4f8] sm:$0xff]
  %v178 = vld [vmem:[%s1 + $0x500] sm:$0xff]
  %v179 = vld [vmem:[%s1 + $0x508] sm:$0xff]
  %v180 = vld [vmem:[%s1 + $0x510] sm:$0xff]
  %v181 = vld [vmem:[%s1 + $0x518] sm:$0xff]
  %v182 = vld [vmem:[%s1 + $0x520] sm:$0xff]
  %v183 = vld [vmem:[%s1 + $0x528] sm:$0xff]
  %v184 = vld [vmem:[%s1 + $0x530] sm:$0xff]
  %v185 = vld [vmem:[%s1 + $0x538] sm:$0xff]
  %v186 = vld [vmem:[%s1 + $0x540] sm:$0xff]
  %v187 = vld [vmem:[%s1 + $0x548] sm:$0xff]
  %v188 = vld [vmem:[%s1 + $0x550] sm:$0xff]
  %v189 = vld [vmem:[%s1 + $0x558] sm:$0xff]
  %v190 = vld [vmem:[%s1 + $0x560] sm:$0xff]
  %v191 = vld [vmem:[%s1 + $0x568] sm:$0xff]
  %v192 = vld [vmem:[%s1 + $0x570] sm:$0xff]
  %v193 = vld [vmem:[%s1 + $0x578] sm:$0xff]
  %v194 = vld [vmem:[%s1 + $0x580] sm:$0xff]
  %v195 = vld [vmem:[%s1 + $0x588] sm:$0xff]
  %v196 = vld [vmem:[%s1 + $0x590] sm:$0xff]
  %v197 = vld [vmem:[%s1 + $0x598] sm:$0xff]
  %v198 = vld [vmem:[%s1 + $0x5a0] sm:$0xff]
  %v199 = vld [vmem:[%s1 + $0x5a8] sm:$0xff]
  %v200 = vld [vmem:[%s1 + $0x5b0] sm:$0xff]
  %v201 = vld [vmem:[%s1 + $0x5b8] sm:$0xff]
  %v202 = vld [vmem:[%s1 + $0x5c0] sm:$0xff]
  %v203 = vld [vmem:[%s1 + $0x5c8] sm:$0xff]
  %v204 = vld [vmem:[%s1 + $0x5d0] sm:$0xff]
  %v205 = vld [vmem:[%s1 + $0x5d8] sm:$0xff]
  %v206 = vld [vmem:[%s1 + $0x5e0] sm:$0xff]
  %v207 = vld [vmem:[%s1 + $0x5e8] sm:$0xff]
  %v208 = vld [vmem:[%s1 + $0x5f0] sm:$0xff]
  %v209 = vld [vmem:[%s1 + $0x5f8] sm:$0xff]
  %v210 = vld [vmem:[%s1 + $0x600] sm:$0xff]
  %v211 = vld [vmem:[%s1 + $0x608] sm:$0xff]
  %v212 = vld [vmem:[%s1 + $0x610] sm:$0xff]
  %v213 = vld [vmem:[%s1 + $0x618] sm:$0xff]
  %v214 = vld [vmem:[%s1 + $0x620] sm:$0xff]
  %v215 = vld [vmem:[%s1 + $0x628] sm:$0xff]
  %v216 = vld [vmem:[%s1 + $0x630] sm:$0xff]
  %v217 = vld [vmem:[%s1 + $0x638] sm:$0xff]
  %v218 = vld [vmem:[%s2] sm:$0x1]
  %v220 = vlaneseq
  %v221 = vshrl.u32 %v220, 7
  %v222 = vsub.s32 0, %v221
  %v223 = vrot.slane %v218, %v222
  %v229 = vcombine.high %v14, %v14
  %v231 = vunpack.c.l.s4 1983009808
  %v232 = vunpack.c.0.s8 %v231
  %v233 = vlaneseq
  %v234 = vshrl.u32 %v233, 7
  %v235 = vsub.s32 %v232, %v234
  %v236 = vrot.slane %v14, %v235
  %v238 = vunpack.c.l.s4 1983009808
  %v239 = vunpack.c.0.s8 %v238
  %v240 = vlaneseq
  %v241 = vshrl.u32 %v240, 7
  %v242 = vsub.s32 %v239, %v241
  %v243 = vrot.slane %v229, %v242
  %v244 = vcombine.high %v236, %v236
  %v245 = vcombine.high %v243, %v243
  %v246 = vcombine.high %v15, %v15
  %v248 = vunpack.c.l.s4 1983009808
  %v249 = vunpack.c.0.s8 %v248
  %v250 = vlaneseq
  %v251 = vshrl.u32 %v250, 7
  %v252 = vsub.s32 %v249, %v251
  %v253 = vrot.slane %v15, %v252
  %v255 = vunpack.c.l.s4 1983009808
  %v256 = vunpack.c.0.s8 %v255
  %v257 = vlaneseq
  %v258 = vshrl.u32 %v257, 7
  %v259 = vsub.s32 %v256, %v258
  %v260 = vrot.slane %v246, %v259
  %v261 = vcombine.high %v253, %v253
  %v262 = vcombine.high %v260, %v260
  %v263 = vcombine.high %v16, %v16
  %v265 = vunpack.c.l.s4 1983009808
  %v266 = vunpack.c.0.s8 %v265
  %v267 = vlaneseq
  %v268 = vshrl.u32 %v267, 7
  %v269 = vsub.s32 %v266, %v268
  %v270 = vrot.slane %v16, %v269
  %v272 = vunpack.c.l.s4 1983009808
  %v273 = vunpack.c.0.s8 %v272
  %v274 = vlaneseq
  %v275 = vshrl.u32 %v274, 7
  %v276 = vsub.s32 %v273, %v275
  %v277 = vrot.slane %v263, %v276
  %v278 = vcombine.high %v270, %v270
  %v279 = vcombine.high %v277, %v277
  %v281 = vunpack.c.l.s4 1983009808
  %v282 = vunpack.c.0.s8 %v281
  %v283 = vlaneseq
  %v284 = vshrl.u32 %v283, 7
  %v285 = vsub.s32 %v282, %v284
  %v286 = vrot.slane %v17, %v285
  %vm299 = vcmask 523264
  %v300 = vsel %vm299, %v286, 0
  %302 = vmatprep.subr.mxu0 0.0
  %303 = vmatpush1.msra.mxu0 %v18
  %304 = vmatprep.subr.mxu0 0.0
  %305 = vmatpush1.msra.mxu0 %v19
  %306 = vmatprep.subr.mxu0 0.0
  %307 = vmatpush1.msra.mxu0 %v20
  %308 = vmatprep.subr.mxu0 0.0
  %309 = vmatpush1.msra.mxu0 %v21
  %310 = vmatprep.subr.mxu0 0.0
  %311 = vmatpush1.msra.mxu0 %v22
  %312 = vmatprep.subr.mxu0 0.0
  %313 = vmatpush1.msra.mxu0 %v23
  %314 = vmatprep.subr.mxu0 0.0
  %315 = vmatpush1.msra.mxu0 %v24
  %316 = vmatprep.subr.mxu0 0.0
  %317 = vmatpush1.msra.mxu0 %v25
  %318 = vmatprep.subr.mxu0 0.0
  %319 = vmatpush1.msra.mxu0 %v26
  %320 = vmatprep.subr.mxu0 0.0
  %321 = vmatpush1.msra.mxu0 %v27
  %322 = vmatprep.subr.mxu0 0.0
  %323 = vmatpush1.msra.mxu0 %v28
  %324 = vmatprep.subr.mxu0 0.0
  %325 = vmatpush1.msra.mxu0 %v29
  %326 = vmatprep.subr.mxu0 0.0
  %327 = vmatpush1.msra.mxu0 %v30
  %328 = vmatprep.subr.mxu0 0.0
  %329 = vmatpush1.msra.mxu0 %v31
  %330 = vmatprep.subr.mxu0 0.0
  %331 = vmatpush1.msra.mxu0 %v32
  %332 = vmatprep.subr.mxu0 0.0
  %333 = vmatpush1.msra.mxu0 %v33
  %334 = vmatprep.subr.mxu0 0.0
  %335 = vmatpush1.msra.mxu0 %v34
  %336 = vmatprep.subr.mxu0 0.0
  %337 = vmatpush1.msra.mxu0 %v35
  %338 = vmatprep.subr.mxu0 0.0
  %339 = vmatpush1.msra.mxu0 %v36
  %340 = vmatprep.subr.mxu0 0.0
  %341 = vmatpush1.msra.mxu0 %v37
  %342 = vmatprep.subr.mxu0 0.0
  %343 = vmatpush1.msra.mxu0 %v38
  %344 = vmatprep.subr.mxu0 0.0
  %345 = vmatpush1.msra.mxu0 %v39
  %346 = vmatprep.subr.mxu0 0.0
  %347 = vmatpush1.msra.mxu0 %v40
  %348 = vmatprep.subr.mxu0 0.0
  %349 = vmatpush1.msra.mxu0 %v41
  %350 = vmatprep.subr.mxu0 0.0
  %351 = vmatpush1.msra.mxu0 %v42
  %352 = vmatprep.subr.mxu0 0.0
  %353 = vmatpush1.msra.mxu0 %v43
  %354 = vmatprep.subr.mxu0 0.0
  %355 = vmatpush1.msra.mxu0 %v44
  %356 = vmatprep.subr.mxu0 0.0
  %357 = vmatpush1.msra.mxu0 %v45
  %358 = vmatprep.subr.mxu0 0.0
  %359 = vmatpush1.msra.mxu0 %v46
  %360 = vmatprep.subr.mxu0 0.0
  %361 = vmatpush1.msra.mxu0 %v47
  %362 = vmatprep.subr.mxu0 0.0
  %363 = vmatpush1.msra.mxu0 %v48
  %364 = vmatprep.subr.mxu0 0.0
  %365 = vmatpush1.msra.mxu0 %v49
  %366 = vmatprep.mubr.f32.mxu0 %v244
  %367 = vmatmul.mubr.f32.gmra.mrb[0].mxu0 %v236
  %v368 = vpop.f32.mrb[0].mxu0
  %v369 = vadd.f32 %v223, %v368
  %v370 = vpop.f32.mrb[0].mxu0
  %371 = vdwg.mxu0
  %372 = vmatprep.subr.mxu0 0.0
  %373 = vmatpush1.msra.mxu0 %v50
  %374 = vmatprep.subr.mxu0 0.0
  %375 = vmatpush1.msra.mxu0 %v51
  %376 = vmatprep.subr.mxu0 0.0
  %377 = vmatpush1.msra.mxu0 %v52
  %378 = vmatprep.subr.mxu0 0.0
  %379 = vmatpush1.msra.mxu0 %v53
  %380 = vmatprep.subr.mxu0 0.0
  %381 = vmatpush1.msra.mxu0 %v54
  %382 = vmatprep.subr.mxu0 0.0
  %383 = vmatpush1.msra.mxu0 %v55
  %384 = vmatprep.subr.mxu0 0.0
  %385 = vmatpush1.msra.mxu0 %v56
  %386 = vmatprep.subr.mxu0 0.0
  %387 = vmatpush1.msra.mxu0 %v57
  %388 = vmatprep.subr.mxu0 0.0
  %389 = vmatpush1.msra.mxu0 %v58
  %390 = vmatprep.subr.mxu0 0.0
  %391 = vmatpush1.msra.mxu0 %v59
  %392 = vmatprep.subr.mxu0 0.0
  %393 = vmatpush1.msra.mxu0 %v60
  %394 = vmatprep.subr.mxu0 0.0
  %395 = vmatpush1.msra.mxu0 %v61
  %396 = vmatprep.subr.mxu0 0.0
  %397 = vmatpush1.msra.mxu0 %v62
  %398 = vmatprep.subr.mxu0 0.0
  %399 = vmatpush1.msra.mxu0 %v63
  %400 = vmatprep.subr.mxu0 0.0
  %401 = vmatpush1.msra.mxu0 %v64
  %402 = vmatprep.subr.mxu0 0.0
  %403 = vmatpush1.msra.mxu0 %v65
  %404 = vmatprep.subr.mxu0 0.0
  %405 = vmatpush1.msra.mxu0 %v66
  %406 = vmatprep.subr.mxu0 0.0
  %407 = vmatpush1.msra.mxu0 %v67
  %408 = vmatprep.subr.mxu0 0.0
  %409 = vmatpush1.msra.mxu0 %v68
  %410 = vmatprep.subr.mxu0 0.0
  %411 = vmatpush1.msra.mxu0 %v69
  %412 = vmatprep.subr.mxu0 0.0
  %413 = vmatpush1.msra.mxu0 %v70
  %414 = vmatprep.subr.mxu0 0.0
  %415 = vmatpush1.msra.mxu0 %v71
  %416 = vmatprep.subr.mxu0 0.0
  %417 = vmatpush1.msra.mxu0 %v72
  %418 = vmatprep.subr.mxu0 0.0
  %419 = vmatpush1.msra.mxu0 %v73
  %420 = vmatprep.subr.mxu0 0.0
  %421 = vmatpush1.msra.mxu0 %v74
  %422 = vmatprep.subr.mxu0 0.0
  %423 = vmatpush1.msra.mxu0 %v75
  %424 = vmatprep.subr.mxu0 0.0
  %425 = vmatpush1.msra.mxu0 %v76
  %426 = vmatprep.subr.mxu0 0.0
  %427 = vmatpush1.msra.mxu0 %v77
  %428 = vmatprep.subr.mxu0 0.0
  %429 = vmatpush1.msra.mxu0 %v78
  %430 = vmatprep.subr.mxu0 0.0
  %431 = vmatpush1.msra.mxu0 %v79
  %432 = vmatprep.subr.mxu0 0.0
  %433 = vmatpush1.msra.mxu0 %v80
  %434 = vmatprep.subr.mxu0 0.0
  %435 = vmatpush1.msra.mxu0 %v81
  %436 = vmatprep.mubr.f32.mxu0 %v245
  %437 = vmatmul.mubr.f32.gmra.mrb[0].mxu0 %v243
  %v438 = vpop.f32.mrb[0].mxu0
  %v439 = vadd.f32 %v369, %v438
  %v440 = vpop.f32.mrb[0].mxu0
  %441 = vdwg.mxu0
  %442 = vmatprep.subr.mxu0 0.0
  %443 = vmatpush1.msra.mxu0 %v82
  %444 = vmatprep.subr.mxu0 0.0
  %445 = vmatpush1.msra.mxu0 %v83
  %446 = vmatprep.subr.mxu0 0.0
  %447 = vmatpush1.msra.mxu0 %v84
  %448 = vmatprep.subr.mxu0 0.0
  %449 = vmatpush1.msra.mxu0 %v85
  %450 = vmatprep.subr.mxu0 0.0
  %451 = vmatpush1.msra.mxu0 %v86
  %452 = vmatprep.subr.mxu0 0.0
  %453 = vmatpush1.msra.mxu0 %v87
  %454 = vmatprep.subr.mxu0 0.0
  %455 = vmatpush1.msra.mxu0 %v88
  %456 = vmatprep.subr.mxu0 0.0
  %457 = vmatpush1.msra.mxu0 %v89
  %458 = vmatprep.subr.mxu0 0.0
  %459 = vmatpush1.msra.mxu0 %v90
  %460 = vmatprep.subr.mxu0 0.0
  %461 = vmatpush1.msra.mxu0 %v91
  %462 = vmatprep.subr.mxu0 0.0
  %463 = vmatpush1.msra.mxu0 %v92
  %464 = vmatprep.subr.mxu0 0.0
  %465 = vmatpush1.msra.mxu0 %v93
  %466 = vmatprep.subr.mxu0 0.0
  %467 = vmatpush1.msra.mxu0 %v94
  %468 = vmatprep.subr.mxu0 0.0
  %469 = vmatpush1.msra.mxu0 %v95
  %470 = vmatprep.subr.mxu0 0.0
  %471 = vmatpush1.msra.mxu0 %v96
  %472 = vmatprep.subr.mxu0 0.0
  %473 = vmatpush1.msra.mxu0 %v97
  %474 = vmatprep.subr.mxu0 0.0
  %475 = vmatpush1.msra.mxu0 %v98
  %476 = vmatprep.subr.mxu0 0.0
  %477 = vmatpush1.msra.mxu0 %v99
  %478 = vmatprep.subr.mxu0 0.0
  %479 = vmatpush1.msra.mxu0 %v100
  %480 = vmatprep.subr.mxu0 0.0
  %481 = vmatpush1.msra.mxu0 %v101
  %482 = vmatprep.subr.mxu0 0.0
  %483 = vmatpush1.msra.mxu0 %v102
  %484 = vmatprep.subr.mxu0 0.0
  %485 = vmatpush1.msra.mxu0 %v103
  %486 = vmatprep.subr.mxu0 0.0
  %487 = vmatpush1.msra.mxu0 %v104
  %488 = vmatprep.subr.mxu0 0.0
  %489 = vmatpush1.msra.mxu0 %v105
  %490 = vmatprep.subr.mxu0 0.0
  %491 = vmatpush1.msra.mxu0 %v106
  %492 = vmatprep.subr.mxu0 0.0
  %493 = vmatpush1.msra.mxu0 %v107
  %494 = vmatprep.subr.mxu0 0.0
  %495 = vmatpush1.msra.mxu0 %v108
  %496 = vmatprep.subr.mxu0 0.0
  %497 = vmatpush1.msra.mxu0 %v109
  %498 = vmatprep.subr.mxu0 0.0
  %499 = vmatpush1.msra.mxu0 %v110
  %500 = vmatprep.subr.mxu0 0.0
  %501 = vmatpush1.msra.mxu0 %v111
  %502 = vmatprep.subr.mxu0 0.0
  %503 = vmatpush1.msra.mxu0 %v112
  %504 = vmatprep.subr.mxu0 0.0
  %505 = vmatpush1.msra.mxu0 %v113
  %506 = vmatprep.mubr.f32.mxu0 %v261
  %507 = vmatmul.mubr.f32.gmra.mrb[0].mxu0 %v253
  %v508 = vpop.f32.mrb[0].mxu0
  %v509 = vadd.f32 %v439, %v508
  %v510 = vpop.f32.mrb[0].mxu0
  %511 = vdwg.mxu0
  %512 = vmatprep.subr.mxu0 0.0
  %513 = vmatpush1.msra.mxu0 %v114
  %514 = vmatprep.subr.mxu0 0.0
  %515 = vmatpush1.msra.mxu0 %v115
  %516 = vmatprep.subr.mxu0 0.0
  %517 = vmatpush1.msra.mxu0 %v116
  %518 = vmatprep.subr.mxu0 0.0
  %519 = vmatpush1.msra.mxu0 %v117
  %520 = vmatprep.subr.mxu0 0.0
  %521 = vmatpush1.msra.mxu0 %v118
  %522 = vmatprep.subr.mxu0 0.0
  %523 = vmatpush1.msra.mxu0 %v119
  %524 = vmatprep.subr.mxu0 0.0
  %525 = vmatpush1.msra.mxu0 %v120
  %526 = vmatprep.subr.mxu0 0.0
  %527 = vmatpush1.msra.mxu0 %v121
  %528 = vmatprep.subr.mxu0 0.0
  %529 = vmatpush1.msra.mxu0 %v122
  %530 = vmatprep.subr.mxu0 0.0
  %531 = vmatpush1.msra.mxu0 %v123
  %532 = vmatprep.subr.mxu0 0.0
  %533 = vmatpush1.msra.mxu0 %v124
  %534 = vmatprep.subr.mxu0 0.0
  %535 = vmatpush1.msra.mxu0 %v125
  %536 = vmatprep.subr.mxu0 0.0
  %537 = vmatpush1.msra.mxu0 %v126
  %538 = vmatprep.subr.mxu0 0.0
  %539 = vmatpush1.msra.mxu0 %v127
  %540 = vmatprep.subr.mxu0 0.0
  %541 = vmatpush1.msra.mxu0 %v128
  %542 = vmatprep.subr.mxu0 0.0
  %543 = vmatpush1.msra.mxu0 %v129
  %544 = vmatprep.subr.mxu0 0.0
  %545 = vmatpush1.msra.mxu0 %v130
  %546 = vmatprep.subr.mxu0 0.0
  %547 = vmatpush1.msra.mxu0 %v131
  %548 = vmatprep.subr.mxu0 0.0
  %549 = vmatpush1.msra.mxu0 %v132
  %550 = vmatprep.subr.mxu0 0.0
  %551 = vmatpush1.msra.mxu0 %v133
  %552 = vmatprep.subr.mxu0 0.0
  %553 = vmatpush1.msra.mxu0 %v134
  %554 = vmatprep.subr.mxu0 0.0
  %555 = vmatpush1.msra.mxu0 %v135
  %556 = vmatprep.subr.mxu0 0.0
  %557 = vmatpush1.msra.mxu0 %v136
  %558 = vmatprep.subr.mxu0 0.0
  %559 = vmatpush1.msra.mxu0 %v137
  %560 = vmatprep.subr.mxu0 0.0
  %561 = vmatpush1.msra.mxu0 %v138
  %562 = vmatprep.subr.mxu0 0.0
  %563 = vmatpush1.msra.mxu0 %v139
  %564 = vmatprep.subr.mxu0 0.0
  %565 = vmatpush1.msra.mxu0 %v140
  %566 = vmatprep.subr.mxu0 0.0
  %567 = vmatpush1.msra.mxu0 %v141
  %568 = vmatprep.subr.mxu0 0.0
  %569 = vmatpush1.msra.mxu0 %v142
  %570 = vmatprep.subr.mxu0 0.0
  %571 = vmatpush1.msra.mxu0 %v143
  %572 = vmatprep.subr.mxu0 0.0
  %573 = vmatpush1.msra.mxu0 %v144
  %574 = vmatprep.subr.mxu0 0.0
  %575 = vmatpush1.msra.mxu0 %v145
  %576 = vmatprep.mubr.f32.mxu0 %v262
  %577 = vmatmul.mubr.f32.gmra.mrb[0].mxu0 %v260
  %v578 = vpop.f32.mrb[0].mxu0
  %v579 = vadd.f32 %v509, %v578
  %v580 = vpop.f32.mrb[0].mxu0
  %581 = vdwg.mxu0
  %582 = vmatprep.subr.mxu0 0.0
  %583 = vmatpush1.msra.mxu0 %v146
  %584 = vmatprep.subr.mxu0 0.0
  %585 = vmatpush1.msra.mxu0 %v147
  %586 = vmatprep.subr.mxu0 0.0
  %587 = vmatpush1.msra.mxu0 %v148
  %588 = vmatprep.subr.mxu0 0.0
  %589 = vmatpush1.msra.mxu0 %v149
  %590 = vmatprep.subr.mxu0 0.0
  %591 = vmatpush1.msra.mxu0 %v150
  %592 = vmatprep.subr.mxu0 0.0
  %593 = vmatpush1.msra.mxu0 %v151
  %594 = vmatprep.subr.mxu0 0.0
  %595 = vmatpush1.msra.mxu0 %v152
  %596 = vmatprep.subr.mxu0 0.0
  %597 = vmatpush1.msra.mxu0 %v153
  %598 = vmatprep.subr.mxu0 0.0
  %599 = vmatpush1.msra.mxu0 %v154
  %600 = vmatprep.subr.mxu0 0.0
  %601 = vmatpush1.msra.mxu0 %v155
  %602 = vmatprep.subr.mxu0 0.0
  %603 = vmatpush1.msra.mxu0 %v156
  %604 = vmatprep.subr.mxu0 0.0
  %605 = vmatpush1.msra.mxu0 %v157
  %606 = vmatprep.subr.mxu0 0.0
  %607 = vmatpush1.msra.mxu0 %v158
  %608 = vmatprep.subr.mxu0 0.0
  %609 = vmatpush1.msra.mxu0 %v159
  %610 = vmatprep.subr.mxu0 0.0
  %611 = vmatpush1.msra.mxu0 %v160
  %612 = vmatprep.subr.mxu0 0.0
  %613 = vmatpush1.msra.mxu0 %v161
  %614 = vmatprep.subr.mxu0 0.0
  %615 = vmatpush1.msra.mxu0 %v162
  %616 = vmatprep.subr.mxu0 0.0
  %617 = vmatpush1.msra.mxu0 %v163
  %618 = vmatprep.subr.mxu0 0.0
  %619 = vmatpush1.msra.mxu0 %v164
  %620 = vmatprep.subr.mxu0 0.0
  %621 = vmatpush1.msra.mxu0 %v165
  %622 = vmatprep.subr.mxu0 0.0
  %623 = vmatpush1.msra.mxu0 %v166
  %624 = vmatprep.subr.mxu0 0.0
  %625 = vmatpush1.msra.mxu0 %v167
  %626 = vmatprep.subr.mxu0 0.0
  %627 = vmatpush1.msra.mxu0 %v168
  %628 = vmatprep.subr.mxu0 0.0
  %629 = vmatpush1.msra.mxu0 %v169
  %630 = vmatprep.subr.mxu0 0.0
  %631 = vmatpush1.msra.mxu0 %v170
  %632 = vmatprep.subr.mxu0 0.0
  %633 = vmatpush1.msra.mxu0 %v171
  %634 = vmatprep.subr.mxu0 0.0
  %635 = vmatpush1.msra.mxu0 %v172
  %636 = vmatprep.subr.mxu0 0.0
  %637 = vmatpush1.msra.mxu0 %v173
  %638 = vmatprep.subr.mxu0 0.0
  %639 = vmatpush1.msra.mxu0 %v174
  %640 = vmatprep.subr.mxu0 0.0
  %641 = vmatpush1.msra.mxu0 %v175
  %642 = vmatprep.subr.mxu0 0.0
  %643 = vmatpush1.msra.mxu0 %v176
  %644 = vmatprep.subr.mxu0 0.0
  %645 = vmatpush1.msra.mxu0 %v177
  %646 = vmatprep.mubr.f32.mxu0 %v278
  %647 = vmatmul.mubr.f32.gmra.mrb[0].mxu0 %v270
  %v648 = vpop.f32.mrb[0].mxu0
  %v649 = vadd.f32 %v579, %v648
  %v650 = vpop.f32.mrb[0].mxu0
  %651 = vdwg.mxu0
  %652 = vmatprep.subr.mxu0 0.0
  %653 = vmatpush1.msra.mxu0 %v178
  %654 = vmatprep.subr.mxu0 0.0
  %655 = vmatpush1.msra.mxu0 %v179
  %656 = vmatprep.subr.mxu0 0.0
  %657 = vmatpush1.msra.mxu0 %v180
  %658 = vmatprep.subr.mxu0 0.0
  %659 = vmatpush1.msra.mxu0 %v181
  %660 = vmatprep.subr.mxu0 0.0
  %661 = vmatpush1.msra.mxu0 %v182
  %662 = vmatprep.subr.mxu0 0.0
  %663 = vmatpush1.msra.mxu0 %v183
  %664 = vmatprep.subr.mxu0 0.0
  %665 = vmatpush1.msra.mxu0 %v184
  %666 = vmatprep.subr.mxu0 0.0
  %667 = vmatpush1.msra.mxu0 %v185
  %668 = vmatprep.subr.mxu0 0.0
  %669 = vmatpush1.msra.mxu0 %v186
  %670 = vmatprep.subr.mxu0 0.0
  %671 = vmatpush1.msra.mxu0 %v187
  %672 = vmatprep.subr.mxu0 0.0
  %673 = vmatpush1.msra.mxu0 %v188
  %674 = vmatprep.subr.mxu0 0.0
  %675 = vmatpush1.msra.mxu0 %v189
  %676 = vmatprep.subr.mxu0 0.0
  %677 = vmatpush1.msra.mxu0 %v190
  %678 = vmatprep.subr.mxu0 0.0
  %679 = vmatpush1.msra.mxu0 %v191
  %680 = vmatprep.subr.mxu0 0.0
  %681 = vmatpush1.msra.mxu0 %v192
  %682 = vmatprep.subr.mxu0 0.0
  %683 = vmatpush1.msra.mxu0 %v193
  %684 = vmatprep.subr.mxu0 0.0
  %685 = vmatpush1.msra.mxu0 %v194
  %686 = vmatprep.subr.mxu0 0.0
  %687 = vmatpush1.msra.mxu0 %v195
  %688 = vmatprep.subr.mxu0 0.0
  %689 = vmatpush1.msra.mxu0 %v196
  %690 = vmatprep.subr.mxu0 0.0
  %691 = vmatpush1.msra.mxu0 %v197
  %692 = vmatprep.subr.mxu0 0.0
  %693 = vmatpush1.msra.mxu0 %v198
  %694 = vmatprep.subr.mxu0 0.0
  %695 = vmatpush1.msra.mxu0 %v199
  %696 = vmatprep.subr.mxu0 0.0
  %697 = vmatpush1.msra.mxu0 %v200
  %698 = vmatprep.subr.mxu0 0.0
  %699 = vmatpush1.msra.mxu0 %v201
  %700 = vmatprep.subr.mxu0 0.0
  %701 = vmatpush1.msra.mxu0 %v202
  %702 = vmatprep.subr.mxu0 0.0
  %703 = vmatpush1.msra.mxu0 %v203
  %704 = vmatprep.subr.mxu0 0.0
  %705 = vmatpush1.msra.mxu0 %v204
  %706 = vmatprep.subr.mxu0 0.0
  %707 = vmatpush1.msra.mxu0 %v205
  %708 = vmatprep.subr.mxu0 0.0
  %709 = vmatpush1.msra.mxu0 %v206
  %710 = vmatprep.subr.mxu0 0.0
  %711 = vmatpush1.msra.mxu0 %v207
  %712 = vmatprep.subr.mxu0 0.0
  %713 = vmatpush1.msra.mxu0 %v208
  %714 = vmatprep.subr.mxu0 0.0
  %715 = vmatpush1.msra.mxu0 %v209
  %716 = vmatprep.mubr.f32.mxu0 %v279
  %717 = vmatmul.mubr.f32.gmra.mrb[0].mxu0 %v277
  %v718 = vpop.f32.mrb[0].mxu0
  %v719 = vadd.f32 %v649, %v718
  %v720 = vpop.f32.mrb[0].mxu0
  %721 = vdwg.mxu0
  %722 = vmatprep.subr.mxu0 0.0
  %723 = vmatpush1.msra.mxu0 %v210
  %724 = vmatprep.subr.mxu0 0.0
  %725 = vmatpush1.msra.mxu0 %v211
  %726 = vmatprep.subr.mxu0 0.0
  %727 = vmatpush1.msra.mxu0 %v212
  %728 = vmatprep.subr.mxu0 0.0
  %729 = vmatpush1.msra.mxu0 %v213
  %730 = vmatprep.subr.mxu0 0.0
  %731 = vmatpush1.msra.mxu0 %v214
  %732 = vmatprep.subr.mxu0 0.0
  %733 = vmatpush1.msra.mxu0 %v215
  %734 = vmatprep.subr.mxu0 0.0
  %735 = vmatpush1.msra.mxu0 %v216
  %736 = vmatprep.subr.mxu0 0.0
  %737 = vmatpush1.msra.mxu0 %v217
  %738 = vmatprep.subr.mxu0 0.0
  %739 = vmatpush1.msra.mxu0 0.0
  %740 = vmatprep.subr.mxu0 0.0
  %741 = vmatpush1.msra.mxu0 0.0
  %742 = vmatprep.subr.mxu0 0.0
  %743 = vmatpush1.msra.mxu0 0.0
  %744 = vmatprep.subr.mxu0 0.0
  %745 = vmatpush1.msra.mxu0 0.0
  %746 = vmatprep.subr.mxu0 0.0
  %747 = vmatpush1.msra.mxu0 0.0
  %748 = vmatprep.subr.mxu0 0.0
  %749 = vmatpush1.msra.mxu0 0.0
  %750 = vmatprep.subr.mxu0 0.0
  %751 = vmatpush1.msra.mxu0 0.0
  %752 = vmatprep.subr.mxu0 0.0
  %753 = vmatpush1.msra.mxu0 0.0
  %754 = vmatprep.subr.mxu0 0.0
  %755 = vmatpush1.msra.mxu0 0.0
  %756 = vmatprep.subr.mxu0 0.0
  %757 = vmatpush1.msra.mxu0 0.0
  %758 = vmatprep.subr.mxu0 0.0
  %759 = vmatpush1.msra.mxu0 0.0
  %760 = vmatprep.subr.mxu0 0.0
  %761 = vmatpush1.msra.mxu0 0.0
  %762 = vmatprep.subr.mxu0 0.0
  %763 = vmatpush1.msra.mxu0 0.0
  %764 = vmatprep.subr.mxu0 0.0
  %765 = vmatpush1.msra.mxu0 0.0
  %766 = vmatprep.subr.mxu0 0.0
  %767 = vmatpush1.msra.mxu0 0.0
  %768 = vmatprep.subr.mxu0 0.0
  %769 = vmatpush1.msra.mxu0 0.0
  %770 = vmatprep.subr.mxu0 0.0
  %771 = vmatpush1.msra.mxu0 0.0
  %772 = vmatprep.subr.mxu0 0.0
  %773 = vmatpush1.msra.mxu0 0.0
  %774 = vmatprep.subr.mxu0 0.0
  %775 = vmatpush1.msra.mxu0 0.0
  %776 = vmatprep.subr.mxu0 0.0
  %777 = vmatpush1.msra.mxu0 0.0
  %778 = vmatprep.subr.mxu0 0.0
  %779 = vmatpush1.msra.mxu0 0.0
  %780 = vmatprep.subr.mxu0 0.0
  %781 = vmatpush1.msra.mxu0 0.0
  %782 = vmatprep.subr.mxu0 0.0
  %783 = vmatpush1.msra.mxu0 0.0
  %784 = vmatprep.subr.mxu0 0.0
  %785 = vmatpush1.msra.mxu0 0.0
  %786 = vmatprep.mubr.f32.mxu0 0.0
  %787 = vmatmul.mubr.f32.gmra.mrb[0].mxu0 %v300
  %v788 = vpop.f32.mrb[0].mxu0
  %v789 = vadd.f32 %v719, %v788
  %v790 = vpop.f32.mrb[0].mxu0
  %791 = vdwg.mxu0
  %vm792 = vcmask 254976
  %793 = vst.msk [vmem:[%s3] sm:$0x3] %vm792, %v789
  // Predicated region
  $region14: #{dae_forward.11} parent=0 // pred_check
    _
  $region15: #{dae_forward.11} parent=0 // pred_check_branch
    %795 = sbr.rel (0) target = $region17
  $region16: #{dae_forward.11} parent=0 // pred_region
    _
  $region17: #{dae_forward.11} parent=0 // pred_fallthru
    _
  // Predicated region
  $region18: #{dae_forward.11} parent=0 // pred_check
    _
  $region19: #{dae_forward.11} parent=0 // pred_check_branch
    %797 = sbr.rel (0) target = $region21
  $region20: #{dae_forward.11} parent=0 // pred_region
    _
  $region21: #{dae_forward.11} parent=0 // pred_fallthru
    _

// kernel: dae_forward.12
$region0: #{dae_forward.12}
  #allocation0 [shape = 'u32[]', space=smem, size = 0x4, offset = 0x4, fixed_abs, tag = 'smem constant byte address 0x4 - core index']
  #allocation1 [shape = 'u32[144,128]{1,0:T(1,128)}', space=vmem, size = 0x12000, scoped, tag = 'internal scratch']
  %s0 = inlined_call_operand.vmem [shape: f32[2,32], index: 0, kind: input, shape index: {}]
  %s1 = inlined_call_operand.vmem [shape: f32[32,1600], index: 1, kind: input, shape index: {}]
  %s2 = inlined_call_operand.vmem [shape: f32[1,1600], index: 2, kind: input, shape index: {}]
  %s3 = inlined_call_operand.vmem [shape: f32[2,1600], index: 3, kind: output, shape index: {}]
  %s4 = sld [smem:[#allocation0]]
  $region22: #{dae_forward.12} parent=0
    _
  %s6 = ssub.s32 1, %s4
  %s7 = scalar_select 0, %s6, %s4
  // Predicated region
  $region2: #{dae_forward.12} parent=0 // pred_check
    _
  $region3: #{dae_forward.12} parent=0 // pred_check_branch
    %9 = sbr.rel (0) target = $region5
  $region4: #{dae_forward.12} parent=0 // pred_region
    _
  $region5: #{dae_forward.12} parent=0 // pred_fallthru
    _
  // Predicated region
  $region6: #{dae_forward.12} parent=0 // pred_check
    _
  $region7: #{dae_forward.12} parent=0 // pred_check_branch
    %11 = sbr.rel (0) target = $region9
  $region8: #{dae_forward.12} parent=0 // pred_region
    _
  $region9: #{dae_forward.12} parent=0 // pred_fallthru
    _
  // Predicated region
  $region10: #{dae_forward.12} parent=0 // pred_check
    _
  $region11: #{dae_forward.12} parent=0 // pred_check_branch
    %13 = sbr.rel (0) target = $region13
  $region12: #{dae_forward.12} parent=0 // pred_region
    _
  $region13: #{dae_forward.12} parent=0 // pred_fallthru
    _
  %v14 = vld [vmem:[%s0] sm:$0x3]
  %v15 = vld [vmem:[%s1] sm:$0xff]
  %v16 = vld [vmem:[%s1 + $0x8] sm:$0xff]
  %v17 = vld [vmem:[%s1 + $0x10] sm:$0xff]
  %v18 = vld [vmem:[%s1 + $0x18] sm:$0xff]
  %v19 = vld [vmem:[%s1 + $0x20] sm:$0xff]
  %v20 = vld [vmem:[%s1 + $0x28] sm:$0xff]
  %v21 = vld [vmem:[%s1 + $0x30] sm:$0xff]
  %v22 = vld [vmem:[%s1 + $0x38] sm:$0xff]
  %v23 = vld [vmem:[%s1 + $0x40] sm:$0xff]
  %v24 = vld [vmem:[%s1 + $0x48] sm:$0xff]
  %v25 = vld [vmem:[%s1 + $0x50] sm:$0xff]
  %v26 = vld [vmem:[%s1 + $0x58] sm:$0xff]
  %v27 = vld [vmem:[%s1 + $0x60] sm:$0xff]
  %v28 = vld [vmem:[%s1 + $0x68] sm:$0xff]
  %v29 = vld [vmem:[%s1 + $0x70] sm:$0xff]
  %v30 = vld [vmem:[%s1 + $0x78] sm:$0xff]
  %v31 = vld [vmem:[%s1 + $0x80] sm:$0xff]
  %v32 = vld [vmem:[%s1 + $0x88] sm:$0xff]
  %v33 = vld [vmem:[%s1 + $0x90] sm:$0xff]
  %v34 = vld [vmem:[%s1 + $0x98] sm:$0xff]
  %v35 = vld [vmem:[%s1 + $0xa0] sm:$0xff]
  %v36 = vld [vmem:[%s1 + $0xa8] sm:$0xff]
  %v37 = vld [vmem:[%s1 + $0xb0] sm:$0xff]
  %v38 = vld [vmem:[%s1 + $0xb8] sm:$0xff]
  %v39 = vld [vmem:[%s1 + $0xc0] sm:$0xff]
  %v40 = vld [vmem:[%s1 + $0xc8] sm:$0xff]
  %v41 = vld [vmem:[%s1 + $0xd0] sm:$0xff]
  %v42 = vld [vmem:[%s1 + $0xd8] sm:$0xff]
  %v43 = vld [vmem:[%s1 + $0xe0] sm:$0xff]
  %v44 = vld [vmem:[%s1 + $0xe8] sm:$0xff]
  %v45 = vld [vmem:[%s1 + $0xf0] sm:$0xff]
  %v46 = vld [vmem:[%s1 + $0xf8] sm:$0xff]
  %v47 = vld [vmem:[%s1 + $0x100] sm:$0xff]
  %v48 = vld [vmem:[%s1 + $0x108] sm:$0xff]
  %v49 = vld [vmem:[%s1 + $0x110] sm:$0xff]
  %v50 = vld [vmem:[%s1 + $0x118] sm:$0xff]
  %v51 = vld [vmem:[%s1 + $0x120] sm:$0xff]
  %v52 = vld [vmem:[%s1 + $0x128] sm:$0xff]
  %v53 = vld [vmem:[%s1 + $0x130] sm:$0xff]
  %v54 = vld [vmem:[%s1 + $0x138] sm:$0xff]
  %v55 = vld [vmem:[%s1 + $0x140] sm:$0xff]
  %v56 = vld [vmem:[%s1 + $0x148] sm:$0xff]
  %v57 = vld [vmem:[%s1 + $0x150] sm:$0xff]
  %v58 = vld [vmem:[%s1 + $0x158] sm:$0xff]
  %v59 = vld [vmem:[%s1 + $0x160] sm:$0xff]
  %v60 = vld [vmem:[%s1 + $0x168] sm:$0xff]
  %v61 = vld [vmem:[%s1 + $0x170] sm:$0xff]
  %v62 = vld [vmem:[%s1 + $0x178] sm:$0xff]
  %v63 = vld [vmem:[%s1 + $0x180] sm:$0xff]
  %v64 = vld [vmem:[%s1 + $0x188] sm:$0xff]
  %v65 = vld [vmem:[%s1 + $0x190] sm:$0xff]
  %v66 = vld [vmem:[%s1 + $0x198] sm:$0xff]
  %v67 = vld [vmem:[%s2] sm:$0xff]
  %v68 = vld [vmem:[%s2 + $0x8] sm:$0x1f]
  %v71 = vlaneseq
  %v72 = vshrl.u32 %v71, 7
  %v73 = vsub.s32 0, %v72
  %v74 = vrot.slane %v67, %v73
  %v75 = vlaneseq
  %v76 = vshrl.u32 %v75, 7
  %v77 = vsub.s32 1, %v76
  %v78 = vrot.slane %v67, %v77
  %v79 = vlaneseq
  %v80 = vshrl.u32 %v79, 7
  %v81 = vsub.s32 2, %v80
  %v82 = vrot.slane %v67, %v81
  %v83 = vlaneseq
  %v84 = vshrl.u32 %v83, 7
  %v85 = vsub.s32 3, %v84
  %v86 = vrot.slane %v67, %v85
  %v87 = vlaneseq
  %v88 = vshrl.u32 %v87, 7
  %v89 = vsub.s32 4, %v88
  %v90 = vrot.slane %v67, %v89
  %v91 = vlaneseq
  %v92 = vshrl.u32 %v91, 7
  %v93 = vsub.s32 5, %v92
  %v94 = vrot.slane %v67, %v93
  %v95 = vlaneseq
  %v96 = vshrl.u32 %v95, 7
  %v97 = vsub.s32 6, %v96
  %v98 = vrot.slane %v67, %v97
  %v99 = vlaneseq
  %v100 = vshrl.u32 %v99, 7
  %v101 = vsub.s32 7, %v100
  %v102 = vrot.slane %v67, %v101
  %v103 = vlaneseq
  %v104 = vshrl.u32 %v103, 7
  %v105 = vsub.s32 0, %v104
  %v106 = vrot.slane %v68, %v105
  %v107 = vlaneseq
  %v108 = vshrl.u32 %v107, 7
  %v109 = vsub.s32 1, %v108
  %v110 = vrot.slane %v68, %v109
  %v111 = vlaneseq
  %v112 = vshrl.u32 %v111, 7
  %v113 = vsub.s32 2, %v112
  %v114 = vrot.slane %v68, %v113
  %v115 = vlaneseq
  %v116 = vshrl.u32 %v115, 7
  %v117 = vsub.s32 3, %v116
  %v118 = vrot.slane %v68, %v117
  %v119 = vlaneseq
  %v120 = vshrl.u32 %v119, 7
  %v121 = vsub.s32 4, %v120
  %v122 = vrot.slane %v68, %v121
  %vm136 = vcmask 261120
  %v138 = vsel %vm136, %v14, 0
  %140 = vmatprep.subr.mxu0 %v16
  %141 = vmatpush1.msra.mxu0 %v15
  %142 = vmatprep.subr.mxu0 %v29
  %143 = vmatpush1.msra.mxu0 %v28
  %144 = vmatprep.subr.mxu0 %v42
  %145 = vmatpush1.msra.mxu0 %v41
  %146 = vmatprep.subr.mxu0 %v55
  %147 = vmatpush1.msra.mxu0 %v54
  %148 = vmatprep.subr.mxu0 0.0
  %149 = vmatpush1.msra.mxu0 0.0
  %150 = vmatprep.subr.mxu0 0.0
  %151 = vmatpush1.msra.mxu0 0.0
  %152 = vmatprep.subr.mxu0 0.0
  %153 = vmatpush1.msra.mxu0 0.0
  %154 = vmatprep.subr.mxu0 0.0
  %155 = vmatpush1.msra.mxu0 0.0
  %156 = vmatprep.subr.mxu0 0.0
  %157 = vmatpush1.msra.mxu0 0.0
  %158 = vmatprep.subr.mxu0 0.0
  %159 = vmatpush1.msra.mxu0 0.0
  %160 = vmatprep.subr.mxu0 0.0
  %161 = vmatpush1.msra.mxu0 0.0
  %162 = vmatprep.subr.mxu0 0.0
  %163 = vmatpush1.msra.mxu0 0.0
  %164 = vmatprep.subr.mxu0 0.0
  %165 = vmatpush1.msra.mxu0 0.0
  %166 = vmatprep.subr.mxu0 0.0
  %167 = vmatpush1.msra.mxu0 0.0
  %168 = vmatprep.subr.mxu0 0.0
  %169 = vmatpush1.msra.mxu0 0.0
  %170 = vmatprep.subr.mxu0 0.0
  %171 = vmatpush1.msra.mxu0 0.0
  %172 = vmatprep.subr.mxu0 0.0
  %173 = vmatpush1.msra.mxu0 0.0
  %174 = vmatprep.subr.mxu0 0.0
  %175 = vmatpush1.msra.mxu0 0.0
  %176 = vmatprep.subr.mxu0 0.0
  %177 = vmatpush1.msra.mxu0 0.0
  %178 = vmatprep.subr.mxu0 0.0
  %179 = vmatpush1.msra.mxu0 0.0
  %180 = vmatprep.subr.mxu0 0.0
  %181 = vmatpush1.msra.mxu0 0.0
  %182 = vmatprep.subr.mxu0 0.0
  %183 = vmatpush1.msra.mxu0 0.0
  %184 = vmatprep.subr.mxu0 0.0
  %185 = vmatpush1.msra.mxu0 0.0
  %186 = vmatprep.subr.mxu0 0.0
  %187 = vmatpush1.msra.mxu0 0.0
  %188 = vmatprep.subr.mxu0 0.0
  %189 = vmatpush1.msra.mxu0 0.0
  %190 = vmatprep.subr.mxu0 0.0
  %191 = vmatpush1.msra.mxu0 0.0
  %192 = vmatprep.subr.mxu0 0.0
  %193 = vmatpush1.msra.mxu0 0.0
  %194 = vmatprep.subr.mxu0 0.0
  %195 = vmatpush1.msra.mxu0 0.0
  %196 = vmatprep.subr.mxu0 0.0
  %197 = vmatpush1.msra.mxu0 0.0
  %198 = vmatprep.subr.mxu0 0.0
  %199 = vmatpush1.msra.mxu0 0.0
  %200 = vmatprep.subr.mxu0 0.0
  %201 = vmatpush1.msra.mxu0 0.0
  %202 = vmatprep.subr.mxu0 0.0
  %203 = vmatpush1.msra.mxu0 0.0
  %204 = vmatprep.mubr.f32.mxu0 0.0
  %205 = vmatmul.mubr.f32.gmra.mrb[0].mxu0 %v138
  %v206 = vpop.f32.mrb[0].mxu0
  %v207 = vadd.f32 %v74, %v206
  %v208 = vpop.f32.mrb[0].mxu0
  %v209 = vadd.f32 %v78, %v208
  %210 = vdwg.mxu0
  %211 = vmatprep.subr.mxu0 %v18
  %212 = vmatpush1.msra.mxu0 %v17
  %213 = vmatprep.subr.mxu0 %v31
  %214 = vmatpush1.msra.mxu0 %v30
  %215 = vmatprep.subr.mxu0 %v44
  %216 = vmatpush1.msra.mxu0 %v43
  %217 = vmatprep.subr.mxu0 %v57
  %218 = vmatpush1.msra.mxu0 %v56
  %219 = vmatprep.subr.mxu0 0.0
  %220 = vmatpush1.msra.mxu0 0.0
  %221 = vmatprep.subr.mxu0 0.0
  %222 = vmatpush1.msra.mxu0 0.0
  %223 = vmatprep.subr.mxu0 0.0
  %224 = vmatpush1.msra.mxu0 0.0
  %225 = vmatprep.subr.mxu0 0.0
  %226 = vmatpush1.msra.mxu0 0.0
  %227 = vmatprep.subr.mxu0 0.0
  %228 = vmatpush1.msra.mxu0 0.0
  %229 = vmatprep.subr.mxu0 0.0
  %230 = vmatpush1.msra.mxu0 0.0
  %231 = vmatprep.subr.mxu0 0.0
  %232 = vmatpush1.msra.mxu0 0.0
  %233 = vmatprep.subr.mxu0 0.0
  %234 = vmatpush1.msra.mxu0 0.0
  %235 = vmatprep.subr.mxu0 0.0
  %236 = vmatpush1.msra.mxu0 0.0
  %237 = vmatprep.subr.mxu0 0.0
  %238 = vmatpush1.msra.mxu0 0.0
  %239 = vmatprep.subr.mxu0 0.0
  %240 = vmatpush1.msra.mxu0 0.0
  %241 = vmatprep.subr.mxu0 0.0
  %242 = vmatpush1.msra.mxu0 0.0
  %243 = vmatprep.subr.mxu0 0.0
  %244 = vmatpush1.msra.mxu0 0.0
  %245 = vmatprep.subr.mxu0 0.0
  %246 = vmatpush1.msra.mxu0 0.0
  %247 = vmatprep.subr.mxu0 0.0
  %248 = vmatpush1.msra.mxu0 0.0
  %249 = vmatprep.subr.mxu0 0.0
  %250 = vmatpush1.msra.mxu0 0.0
  %251 = vmatprep.subr.mxu0 0.0
  %252 = vmatpush1.msra.mxu0 0.0
  %253 = vmatprep.subr.mxu0 0.0
  %254 = vmatpush1.msra.mxu0 0.0
  %255 = vmatprep.subr.mxu0 0.0
  %256 = vmatpush1.msra.mxu0 0.0
  %257 = vmatprep.subr.mxu0 0.0
  %258 = vmatpush1.msra.mxu0 0.0
  %259 = vmatprep.subr.mxu0 0.0
  %260 = vmatpush1.msra.mxu0 0.0
  %261 = vmatprep.subr.mxu0 0.0
  %262 = vmatpush1.msra.mxu0 0.0
  %263 = vmatprep.subr.mxu0 0.0
  %264 = vmatpush1.msra.mxu0 0.0
  %265 = vmatprep.subr.mxu0 0.0
  %266 = vmatpush1.msra.mxu0 0.0
  %267 = vmatprep.subr.mxu0 0.0
  %268 = vmatpush1.msra.mxu0 0.0
  %269 = vmatprep.subr.mxu0 0.0
  %270 = vmatpush1.msra.mxu0 0.0
  %271 = vmatprep.subr.mxu0 0.0
  %272 = vmatpush1.msra.mxu0 0.0
  %273 = vmatprep.subr.mxu0 0.0
  %274 = vmatpush1.msra.mxu0 0.0
  %275 = vmatprep.mubr.f32.mxu0 0.0
  %276 = vmatmul.mubr.f32.gmra.mrb[0].mxu0 %v138
  %v277 = vpop.f32.mrb[0].mxu0
  %v278 = vadd.f32 %v82, %v277
  %v279 = vpop.f32.mrb[0].mxu0
  %v280 = vadd.f32 %v86, %v279
  %281 = vdwg.mxu0
  %282 = vmatprep.subr.mxu0 %v20
  %283 = vmatpush1.msra.mxu0 %v19
  %284 = vmatprep.subr.mxu0 %v33
  %285 = vmatpush1.msra.mxu0 %v32
  %286 = vmatprep.subr.mxu0 %v46
  %287 = vmatpush1.msra.mxu0 %v45
  %288 = vmatprep.subr.mxu0 %v59
  %289 = vmatpush1.msra.mxu0 %v58
  %290 = vmatprep.subr.mxu0 0.0
  %291 = vmatpush1.msra.mxu0 0.0
  %292 = vmatprep.subr.mxu0 0.0
  %293 = vmatpush1.msra.mxu0 0.0
  %294 = vmatprep.subr.mxu0 0.0
  %295 = vmatpush1.msra.mxu0 0.0
  %296 = vmatprep.subr.mxu0 0.0
  %297 = vmatpush1.msra.mxu0 0.0
  %298 = vmatprep.subr.mxu0 0.0
  %299 = vmatpush1.msra.mxu0 0.0
  %300 = vmatprep.subr.mxu0 0.0
  %301 = vmatpush1.msra.mxu0 0.0
  %302 = vmatprep.subr.mxu0 0.0
  %303 = vmatpush1.msra.mxu0 0.0
  %304 = vmatprep.subr.mxu0 0.0
  %305 = vmatpush1.msra.mxu0 0.0
  %306 = vmatprep.subr.mxu0 0.0
  %307 = vmatpush1.msra.mxu0 0.0
  %308 = vmatprep.subr.mxu0 0.0
  %309 = vmatpush1.msra.mxu0 0.0
  %310 = vmatprep.subr.mxu0 0.0
  %311 = vmatpush1.msra.mxu0 0.0
  %312 = vmatprep.subr.mxu0 0.0
  %313 = vmatpush1.msra.mxu0 0.0
  %314 = vmatprep.subr.mxu0 0.0
  %315 = vmatpush1.msra.mxu0 0.0
  %316 = vmatprep.subr.mxu0 0.0
  %317 = vmatpush1.msra.mxu0 0.0
  %318 = vmatprep.subr.mxu0 0.0
  %319 = vmatpush1.msra.mxu0 0.0
  %320 = vmatprep.subr.mxu0 0.0
  %321 = vmatpush1.msra.mxu0 0.0
  %322 = vmatprep.subr.mxu0 0.0
  %323 = vmatpush1.msra.mxu0 0.0
  %324 = vmatprep.subr.mxu0 0.0
  %325 = vmatpush1.msra.mxu0 0.0
  %326 = vmatprep.subr.mxu0 0.0
  %327 = vmatpush1.msra.mxu0 0.0
  %328 = vmatprep.subr.mxu0 0.0
  %329 = vmatpush1.msra.mxu0 0.0
  %330 = vmatprep.subr.mxu0 0.0
  %331 = vmatpush1.msra.mxu0 0.0
  %332 = vmatprep.subr.mxu0 0.0
  %333 = vmatpush1.msra.mxu0 0.0
  %334 = vmatprep.subr.mxu0 0.0
  %335 = vmatpush1.msra.mxu0 0.0
  %336 = vmatprep.subr.mxu0 0.0
  %337 = vmatpush1.msra.mxu0 0.0
  %338 = vmatprep.subr.mxu0 0.0
  %339 = vmatpush1.msra.mxu0 0.0
  %340 = vmatprep.subr.mxu0 0.0
  %341 = vmatpush1.msra.mxu0 0.0
  %342 = vmatprep.subr.mxu0 0.0
  %343 = vmatpush1.msra.mxu0 0.0
  %344 = vmatprep.subr.mxu0 0.0
  %345 = vmatpush1.msra.mxu0 0.0
  %346 = vmatprep.mubr.f32.mxu0 0.0
  %347 = vmatmul.mubr.f32.gmra.mrb[0].mxu0 %v138
  %v348 = vpop.f32.mrb[0].mxu0
  %v349 = vadd.f32 %v90, %v348
  %v350 = vpop.f32.mrb[0].mxu0
  %v351 = vadd.f32 %v94, %v350
  %352 = vdwg.mxu0
  %353 = vmatprep.subr.mxu0 %v22
  %354 = vmatpush1.msra.mxu0 %v21
  %355 = vmatprep.subr.mxu0 %v35
  %356 = vmatpush1.msra.mxu0 %v34
  %357 = vmatprep.subr.mxu0 %v48
  %358 = vmatpush1.msra.mxu0 %v47
  %359 = vmatprep.subr.mxu0 %v61
  %360 = vmatpush1.msra.mxu0 %v60
  %361 = vmatprep.subr.mxu0 0.0
  %362 = vmatpush1.msra.mxu0 0.0
  %363 = vmatprep.subr.mxu0 0.0
  %364 = vmatpush1.msra.mxu0 0.0
  %365 = vmatprep.subr.mxu0 0.0
  %366 = vmatpush1.msra.mxu0 0.0
  %367 = vmatprep.subr.mxu0 0.0
  %368 = vmatpush1.msra.mxu0 0.0
  %369 = vmatprep.subr.mxu0 0.0
  %370 = vmatpush1.msra.mxu0 0.0
  %371 = vmatprep.subr.mxu0 0.0
  %372 = vmatpush1.msra.mxu0 0.0
  %373 = vmatprep.subr.mxu0 0.0
  %374 = vmatpush1.msra.mxu0 0.0
  %375 = vmatprep.subr.mxu0 0.0
  %376 = vmatpush1.msra.mxu0 0.0
  %377 = vmatprep.subr.mxu0 0.0
  %378 = vmatpush1.msra.mxu0 0.0
  %379 = vmatprep.subr.mxu0 0.0
  %380 = vmatpush1.msra.mxu0 0.0
  %381 = vmatprep.subr.mxu0 0.0
  %382 = vmatpush1.msra.mxu0 0.0
  %383 = vmatprep.subr.mxu0 0.0
  %384 = vmatpush1.msra.mxu0 0.0
  %385 = vmatprep.subr.mxu0 0.0
  %386 = vmatpush1.msra.mxu0 0.0
  %387 = vmatprep.subr.mxu0 0.0
  %388 = vmatpush1.msra.mxu0 0.0
  %389 = vmatprep.subr.mxu0 0.0
  %390 = vmatpush1.msra.mxu0 0.0
  %391 = vmatprep.subr.mxu0 0.0
  %392 = vmatpush1.msra.mxu0 0.0
  %393 = vmatprep.subr.mxu0 0.0
  %394 = vmatpush1.msra.mxu0 0.0
  %395 = vmatprep.subr.mxu0 0.0
  %396 = vmatpush1.msra.mxu0 0.0
  %397 = vmatprep.subr.mxu0 0.0
  %398 = vmatpush1.msra.mxu0 0.0
  %399 = vmatprep.subr.mxu0 0.0
  %400 = vmatpush1.msra.mxu0 0.0
  %401 = vmatprep.subr.mxu0 0.0
  %402 = vmatpush1.msra.mxu0 0.0
  %403 = vmatprep.subr.mxu0 0.0
  %404 = vmatpush1.msra.mxu0 0.0
  %405 = vmatprep.subr.mxu0 0.0
  %406 = vmatpush1.msra.mxu0 0.0
  %407 = vmatprep.subr.mxu0 0.0
  %408 = vmatpush1.msra.mxu0 0.0
  %409 = vmatprep.subr.mxu0 0.0
  %410 = vmatpush1.msra.mxu0 0.0
  %411 = vmatprep.subr.mxu0 0.0
  %412 = vmatpush1.msra.mxu0 0.0
  %413 = vmatprep.subr.mxu0 0.0
  %414 = vmatpush1.msra.mxu0 0.0
  %415 = vmatprep.subr.mxu0 0.0
  %416 = vmatpush1.msra.mxu0 0.0
  %417 = vmatprep.mubr.f32.mxu0 0.0
  %418 = vmatmul.mubr.f32.gmra.mrb[0].mxu0 %v138
  %v419 = vpop.f32.mrb[0].mxu0
  %v420 = vadd.f32 %v98, %v419
  %v421 = vpop.f32.mrb[0].mxu0
  %v422 = vadd.f32 %v102, %v421
  %423 = vdwg.mxu0
  %424 = vmatprep.subr.mxu0 %v24
  %425 = vmatpush1.msra.mxu0 %v23
  %426 = vmatprep.subr.mxu0 %v37
  %427 = vmatpush1.msra.mxu0 %v36
  %428 = vmatprep.subr.mxu0 %v50
  %429 = vmatpush1.msra.mxu0 %v49
  %430 = vmatprep.subr.mxu0 %v63
  %431 = vmatpush1.msra.mxu0 %v62
  %432 = vmatprep.subr.mxu0 0.0
  %433 = vmatpush1.msra.mxu0 0.0
  %434 = vmatprep.subr.mxu0 0.0
  %435 = vmatpush1.msra.mxu0 0.0
  %436 = vmatprep.subr.mxu0 0.0
  %437 = vmatpush1.msra.mxu0 0.0
  %438 = vmatprep.subr.mxu0 0.0
  %439 = vmatpush1.msra.mxu0 0.0
  %440 = vmatprep.subr.mxu0 0.0
  %441 = vmatpush1.msra.mxu0 0.0
  %442 = vmatprep.subr.mxu0 0.0
  %443 = vmatpush1.msra.mxu0 0.0
  %444 = vmatprep.subr.mxu0 0.0
  %445 = vmatpush1.msra.mxu0 0.0
  %446 = vmatprep.subr.mxu0 0.0
  %447 = vmatpush1.msra.mxu0 0.0
  %448 = vmatprep.subr.mxu0 0.0
  %449 = vmatpush1.msra.mxu0 0.0
  %450 = vmatprep.subr.mxu0 0.0
  %451 = vmatpush1.msra.mxu0 0.0
  %452 = vmatprep.subr.mxu0 0.0
  %453 = vmatpush1.msra.mxu0 0.0
  %454 = vmatprep.subr.mxu0 0.0
  %455 = vmatpush1.msra.mxu0 0.0
  %456 = vmatprep.subr.mxu0 0.0
  %457 = vmatpush1.msra.mxu0 0.0
  %458 = vmatprep.subr.mxu0 0.0
  %459 = vmatpush1.msra.mxu0 0.0
  %460 = vmatprep.subr.mxu0 0.0
  %461 = vmatpush1.msra.mxu0 0.0
  %462 = vmatprep.subr.mxu0 0.0
  %463 = vmatpush1.msra.mxu0 0.0
  %464 = vmatprep.subr.mxu0 0.0
  %465 = vmatpush1.msra.mxu0 0.0
  %466 = vmatprep.subr.mxu0 0.0
  %467 = vmatpush1.msra.mxu0 0.0
  %468 = vmatprep.subr.mxu0 0.0
  %469 = vmatpush1.msra.mxu0 0.0
  %470 = vmatprep.subr.mxu0 0.0
  %471 = vmatpush1.msra.mxu0 0.0
  %472 = vmatprep.subr.mxu0 0.0
  %473 = vmatpush1.msra.mxu0 0.0
  %474 = vmatprep.subr.mxu0 0.0
  %475 = vmatpush1.msra.mxu0 0.0
  %476 = vmatprep.subr.mxu0 0.0
  %477 = vmatpush1.msra.mxu0 0.0
  %478 = vmatprep.subr.mxu0 0.0
  %479 = vmatpush1.msra.mxu0 0.0
  %480 = vmatprep.subr.mxu0 0.0
  %481 = vmatpush1.msra.mxu0 0.0
  %482 = vmatprep.subr.mxu0 0.0
  %483 = vmatpush1.msra.mxu0 0.0
  %484 = vmatprep.subr.mxu0 0.0
  %485 = vmatpush1.msra.mxu0 0.0
  %486 = vmatprep.subr.mxu0 0.0
  %487 = vmatpush1.msra.mxu0 0.0
  %488 = vmatprep.mubr.f32.mxu0 0.0
  %489 = vmatmul.mubr.f32.gmra.mrb[0].mxu0 %v138
  %v490 = vpop.f32.mrb[0].mxu0
  %v491 = vadd.f32 %v106, %v490
  %v492 = vpop.f32.mrb[0].mxu0
  %v493 = vadd.f32 %v110, %v492
  %494 = vdwg.mxu0
  %495 = vmatprep.subr.mxu0 %v26
  %496 = vmatpush1.msra.mxu0 %v25
  %497 = vmatprep.subr.mxu0 %v39
  %498 = vmatpush1.msra.mxu0 %v38
  %499 = vmatprep.subr.mxu0 %v52
  %500 = vmatpush1.msra.mxu0 %v51
  %501 = vmatprep.subr.mxu0 %v65
  %502 = vmatpush1.msra.mxu0 %v64
  %503 = vmatprep.subr.mxu0 0.0
  %504 = vmatpush1.msra.mxu0 0.0
  %505 = vmatprep.subr.mxu0 0.0
  %506 = vmatpush1.msra.mxu0 0.0
  %507 = vmatprep.subr.mxu0 0.0
  %508 = vmatpush1.msra.mxu0 0.0
  %509 = vmatprep.subr.mxu0 0.0
  %510 = vmatpush1.msra.mxu0 0.0
  %511 = vmatprep.subr.mxu0 0.0
  %512 = vmatpush1.msra.mxu0 0.0
  %513 = vmatprep.subr.mxu0 0.0
  %514 = vmatpush1.msra.mxu0 0.0
  %515 = vmatprep.subr.mxu0 0.0
  %516 = vmatpush1.msra.mxu0 0.0
  %517 = vmatprep.subr.mxu0 0.0
  %518 = vmatpush1.msra.mxu0 0.0
  %519 = vmatprep.subr.mxu0 0.0
  %520 = vmatpush1.msra.mxu0 0.0
  %521 = vmatprep.subr.mxu0 0.0
  %522 = vmatpush1.msra.mxu0 0.0
  %523 = vmatprep.subr.mxu0 0.0
  %524 = vmatpush1.msra.mxu0 0.0
  %525 = vmatprep.subr.mxu0 0.0
  %526 = vmatpush1.msra.mxu0 0.0
  %527 = vmatprep.subr.mxu0 0.0
  %528 = vmatpush1.msra.mxu0 0.0
  %529 = vmatprep.subr.mxu0 0.0
  %530 = vmatpush1.msra.mxu0 0.0
  %531 = vmatprep.subr.mxu0 0.0
  %532 = vmatpush1.msra.mxu0 0.0
  %533 = vmatprep.subr.mxu0 0.0
  %534 = vmatpush1.msra.mxu0 0.0
  %535 = vmatprep.subr.mxu0 0.0
  %536 = vmatpush1.msra.mxu0 0.0
  %537 = vmatprep.subr.mxu0 0.0
  %538 = vmatpush1.msra.mxu0 0.0
  %539 = vmatprep.subr.mxu0 0.0
  %540 = vmatpush1.msra.mxu0 0.0
  %541 = vmatprep.subr.mxu0 0.0
  %542 = vmatpush1.msra.mxu0 0.0
  %543 = vmatprep.subr.mxu0 0.0
  %544 = vmatpush1.msra.mxu0 0.0
  %545 = vmatprep.subr.mxu0 0.0
  %546 = vmatpush1.msra.mxu0 0.0
  %547 = vmatprep.subr.mxu0 0.0
  %548 = vmatpush1.msra.mxu0 0.0
  %549 = vmatprep.subr.mxu0 0.0
  %550 = vmatpush1.msra.mxu0 0.0
  %551 = vmatprep.subr.mxu0 0.0
  %552 = vmatpush1.msra.mxu0 0.0
  %553 = vmatprep.subr.mxu0 0.0
  %554 = vmatpush1.msra.mxu0 0.0
  %555 = vmatprep.subr.mxu0 0.0
  %556 = vmatpush1.msra.mxu0 0.0
  %557 = vmatprep.subr.mxu0 0.0
  %558 = vmatpush1.msra.mxu0 0.0
  %559 = vmatprep.mubr.f32.mxu0 0.0
  %560 = vmatmul.mubr.f32.gmra.mrb[0].mxu0 %v138
  %v561 = vpop.f32.mrb[0].mxu0
  %v562 = vadd.f32 %v114, %v561
  %v563 = vpop.f32.mrb[0].mxu0
  %v564 = vadd.f32 %v118, %v563
  %565 = vdwg.mxu0
  %566 = vmatprep.subr.mxu0 0.0
  %567 = vmatpush1.msra.mxu0 %v27
  %568 = vmatprep.subr.mxu0 0.0
  %569 = vmatpush1.msra.mxu0 %v40
  %570 = vmatprep.subr.mxu0 0.0
  %571 = vmatpush1.msra.mxu0 %v53
  %572 = vmatprep.subr.mxu0 0.0
  %573 = vmatpush1.msra.mxu0 %v66
  %574 = vmatprep.subr.mxu0 0.0
  %575 = vmatpush1.msra.mxu0 0.0
  %576 = vmatprep.subr.mxu0 0.0
  %577 = vmatpush1.msra.mxu0 0.0
  %578 = vmatprep.subr.mxu0 0.0
  %579 = vmatpush1.msra.mxu0 0.0
  %580 = vmatprep.subr.mxu0 0.0
  %581 = vmatpush1.msra.mxu0 0.0
  %582 = vmatprep.subr.mxu0 0.0
  %583 = vmatpush1.msra.mxu0 0.0
  %584 = vmatprep.subr.mxu0 0.0
  %585 = vmatpush1.msra.mxu0 0.0
  %586 = vmatprep.subr.mxu0 0.0
  %587 = vmatpush1.msra.mxu0 0.0
  %588 = vmatprep.subr.mxu0 0.0
  %589 = vmatpush1.msra.mxu0 0.0
  %590 = vmatprep.subr.mxu0 0.0
  %591 = vmatpush1.msra.mxu0 0.0
  %592 = vmatprep.subr.mxu0 0.0
  %593 = vmatpush1.msra.mxu0 0.0
  %594 = vmatprep.subr.mxu0 0.0
  %595 = vmatpush1.msra.mxu0 0.0
  %596 = vmatprep.subr.mxu0 0.0
  %597 = vmatpush1.msra.mxu0 0.0
  %598 = vmatprep.subr.mxu0 0.0
  %599 = vmatpush1.msra.mxu0 0.0
  %600 = vmatprep.subr.mxu0 0.0
  %601 = vmatpush1.msra.mxu0 0.0
  %602 = vmatprep.subr.mxu0 0.0
  %603 = vmatpush1.msra.mxu0 0.0
  %604 = vmatprep.subr.mxu0 0.0
  %605 = vmatpush1.msra.mxu0 0.0
  %606 = vmatprep.subr.mxu0 0.0
  %607 = vmatpush1.msra.mxu0 0.0
  %608 = vmatprep.subr.mxu0 0.0
  %609 = vmatpush1.msra.mxu0 0.0
  %610 = vmatprep.subr.mxu0 0.0
  %611 = vmatpush1.msra.mxu0 0.0
  %612 = vmatprep.subr.mxu0 0.0
  %613 = vmatpush1.msra.mxu0 0.0
  %614 = vmatprep.subr.mxu0 0.0
  %615 = vmatpush1.msra.mxu0 0.0
  %616 = vmatprep.subr.mxu0 0.0
  %617 = vmatpush1.msra.mxu0 0.0
  %618 = vmatprep.subr.mxu0 0.0
  %619 = vmatpush1.msra.mxu0 0.0
  %620 = vmatprep.subr.mxu0 0.0
  %621 = vmatpush1.msra.mxu0 0.0
  %622 = vmatprep.subr.mxu0 0.0
  %623 = vmatpush1.msra.mxu0 0.0
  %624 = vmatprep.subr.mxu0 0.0
  %625 = vmatpush1.msra.mxu0 0.0
  %626 = vmatprep.subr.mxu0 0.0
  %627 = vmatpush1.msra.mxu0 0.0
  %628 = vmatprep.subr.mxu0 0.0
  %629 = vmatpush1.msra.mxu0 0.0
  %630 = vmatprep.mubr.f32.mxu0 0.0
  %631 = vmatmul.mubr.f32.gmra.mrb[0].mxu0 %v138
  %v632 = vpop.f32.mrb[0].mxu0
  %v633 = vadd.f32 %v122, %v632
  %v634 = vpop.f32.mrb[0].mxu0
  %635 = vdwg.mxu0
  %v649 = vcombine.low %v207, %v209
  %v650 = vcombine.low %v278, %v280
  %v652 = vunpack.c.l.s4 1983009808
  %v653 = vunpack.c.0.s8 %v652
  %v654 = vlaneseq
  %v655 = vshrl.u32 %v654, 7
  %v656 = vsub.s32 %v653, %v655
  %v657 = vrot.slane %v649, %v656
  %v659 = vunpack.c.l.s4 1983009808
  %v660 = vunpack.c.0.s8 %v659
  %v661 = vlaneseq
  %v662 = vshrl.u32 %v661, 7
  %v663 = vsub.s32 %v660, %v662
  %v664 = vrot.slane %v650, %v663
  %v665 = vcombine.low %v657, %v664
  %v666 = vcombine.low %v349, %v351
  %v667 = vcombine.low %v420, %v422
  %v669 = vunpack.c.l.s4 1983009808
  %v670 = vunpack.c.0.s8 %v669
  %v671 = vlaneseq
  %v672 = vshrl.u32 %v671, 7
  %v673 = vsub.s32 %v670, %v672
  %v674 = vrot.slane %v666, %v673
  %v676 = vunpack.c.l.s4 1983009808
  %v677 = vunpack.c.0.s8 %v676
  %v678 = vlaneseq
  %v679 = vshrl.u32 %v678, 7
  %v680 = vsub.s32 %v677, %v679
  %v681 = vrot.slane %v667, %v680
  %v682 = vcombine.low %v674, %v681
  %v683 = vcombine.low %v491, %v493
  %v684 = vcombine.low %v562, %v564
  %v686 = vunpack.c.l.s4 1983009808
  %v687 = vunpack.c.0.s8 %v686
  %v688 = vlaneseq
  %v689 = vshrl.u32 %v688, 7
  %v690 = vsub.s32 %v687, %v689
  %v691 = vrot.slane %v683, %v690
  %v693 = vunpack.c.l.s4 1983009808
  %v694 = vunpack.c.0.s8 %v693
  %v695 = vlaneseq
  %v696 = vshrl.u32 %v695, 7
  %v697 = vsub.s32 %v694, %v696
  %v698 = vrot.slane %v684, %v697
  %v699 = vcombine.low %v691, %v698
  %v701 = vunpack.c.l.s4 1983009808
  %v702 = vunpack.c.0.s8 %v701
  %v703 = vlaneseq
  %v704 = vshrl.u32 %v703, 7
  %v705 = vsub.s32 %v702, %v704
  %v706 = vrot.slane %v633, %v705
  %711 = vst [vmem:[%s3] sm:$0xff] %v665
  %712 = vst [vmem:[%s3 + $0x8] sm:$0xff] %v682
  %713 = vst [vmem:[%s3 + $0x10] sm:$0xff] %v699
  %vm714 = vcmask 517120
  %715 = vst.msk [vmem:[%s3 + $0x18] sm:$0x3] %vm714, %v706
  // Predicated region
  $region14: #{dae_forward.12} parent=0 // pred_check
    _
  $region15: #{dae_forward.12} parent=0 // pred_check_branch
    %717 = sbr.rel (0) target = $region17
  $region16: #{dae_forward.12} parent=0 // pred_region
    _
  $region17: #{dae_forward.12} parent=0 // pred_fallthru
    _
  // Predicated region
  $region18: #{dae_forward.12} parent=0 // pred_check
    _
  $region19: #{dae_forward.12} parent=0 // pred_check_branch
    %719 = sbr.rel (0) target = $region21
  $region20: #{dae_forward.12} parent=0 // pred_region
    _
  $region21: #{dae_forward.12} parent=0 // pred_fallthru
    _

// kernel: dae_forward.13
$region0: #{dae_forward.13}
  #allocation0 [shape = 'u32[]', space=smem, size = 0x4, offset = 0x4, fixed_abs, tag = 'smem constant byte address 0x4 - core index']
  #allocation1 [shape = 'u32[144,128]{1,0:T(1,128)}', space=vmem, size = 0x12000, scoped, tag = 'internal scratch']
  %s0 = inlined_call_operand.vmem [shape: f32[200,1024], index: 0, kind: input, shape index: {}]
  %s1 = inlined_call_operand.vmem [shape: f32[1024,32], index: 1, kind: input, shape index: {}]
  %s2 = inlined_call_operand.vmem [shape: f32[1,32], index: 2, kind: input, shape index: {}]
  %s3 = inlined_call_operand.vmem [shape: f32[200,32], index: 3, kind: output, shape index: {}]
  %s4 = sld [smem:[#allocation0]]
  $region22: #{dae_forward.13} parent=0
    _
  %s6 = ssub.s32 1, %s4
  %s7 = scalar_select 0, %s6, %s4
  // Predicated region
  $region2: #{dae_forward.13} parent=0 // pred_check
    _
  $region3: #{dae_forward.13} parent=0 // pred_check_branch
    %9 = sbr.rel (0) target = $region5
  $region4: #{dae_forward.13} parent=0 // pred_region
    _
  $region5: #{dae_forward.13} parent=0 // pred_fallthru
    _
  // Predicated region
  $region6: #{dae_forward.13} parent=0 // pred_check
    _
  $region7: #{dae_forward.13} parent=0 // pred_check_branch
    %11 = sbr.rel (0) target = $region9
  $region8: #{dae_forward.13} parent=0 // pred_region
    _
  $region9: #{dae_forward.13} parent=0 // pred_fallthru
    _
  // Predicated region
  $region10: #{dae_forward.13} parent=0 // pred_check
    _
  $region11: #{dae_forward.13} parent=0 // pred_check_branch
    %13 = sbr.rel (0) target = $region13
  $region12: #{dae_forward.13} parent=0 // pred_region
    _
  $region13: #{dae_forward.13} parent=0 // pred_fallthru
    _
  %v14 = vld [vmem:[%s0] sm:$0xff]
  %v15 = vld [vmem:[%s0 + $0x8] sm:$0xff]
  %v16 = vld [vmem:[%s0 + $0x10] sm:$0xff]
  %v17 = vld [vmem:[%s0 + $0x18] sm:$0xff]
  %v18 = vld [vmem:[%s0 + $0x20] sm:$0xff]
  %v19 = vld [vmem:[%s0 + $0x28] sm:$0xff]
  %v20 = vld [vmem:[%s0 + $0x30] sm:$0xff]
  %v21 = vld [vmem:[%s0 + $0x38] sm:$0xff]
  %v22 = vld [vmem:[%s0 + $0x40] sm:$0xff]
  %v23 = vld [vmem:[%s0 + $0x48] sm:$0xff]
  %v24 = vld [vmem:[%s0 + $0x50] sm:$0xff]
  %v25 = vld [vmem:[%s0 + $0x58] sm:$0xff]
  %v26 = vld [vmem:[%s0 + $0x60] sm:$0xff]
  %v27 = vld [vmem:[%s0 + $0x68] sm:$0xff]
  %v28 = vld [vmem:[%s0 + $0x70] sm:$0xff]
  %v29 = vld [vmem:[%s0 + $0x78] sm:$0xff]
  %v30 = vld [vmem:[%s0 + $0x80] sm:$0xff]
  %v31 = vld [vmem:[%s0 + $0x88] sm:$0xff]
  %v32 = vld [vmem:[%s0 + $0x90] sm:$0xff]
  %v33 = vld [vmem:[%s0 + $0x98] sm:$0xff]
  %v34 = vld [vmem:[%s0 + $0xa0] sm:$0xff]
  %v35 = vld [vmem:[%s0 + $0xa8] sm:$0xff]
  %v36 = vld [vmem:[%s0 + $0xb0] sm:$0xff]
  %v37 = vld [vmem:[%s0 + $0xb8] sm:$0xff]
  %v38 = vld [vmem:[%s0 + $0xc0] sm:$0xff]
  %v39 = vld [vmem:[%s0 + $0xc8] sm:$0xff]
  %v40 = vld [vmem:[%s0 + $0xd0] sm:$0xff]
  %v41 = vld [vmem:[%s0 + $0xd8] sm:$0xff]
  %v42 = vld [vmem:[%s0 + $0xe0] sm:$0xff]
  %v43 = vld [vmem:[%s0 + $0xe8] sm:$0xff]
  %v44 = vld [vmem:[%s0 + $0xf0] sm:$0xff]
  %v45 = vld [vmem:[%s0 + $0xf8] sm:$0xff]
  %v46 = vld [vmem:[%s0 + $0x100] sm:$0xff]
  %v47 = vld [vmem:[%s0 + $0x108] sm:$0xff]
  %v48 = vld [vmem:[%s0 + $0x110] sm:$0xff]
  %v49 = vld [vmem:[%s0 + $0x118] sm:$0xff]
  %v50 = vld [vmem:[%s0 + $0x120] sm:$0xff]
  %v51 = vld [vmem:[%s0 + $0x128] sm:$0xff]
  %v52 = vld [vmem:[%s0 + $0x130] sm:$0xff]
  %v53 = vld [vmem:[%s0 + $0x138] sm:$0xff]
  %v54 = vld [vmem:[%s0 + $0x140] sm:$0xff]
  %v55 = vld [vmem:[%s0 + $0x148] sm:$0xff]
  %v56 = vld [vmem:[%s0 + $0x150] sm:$0xff]
  %v57 = vld [vmem:[%s0 + $0x158] sm:$0xff]
  %v58 = vld [vmem:[%s0 + $0x160] sm:$0xff]
  %v59 = vld [vmem:[%s0 + $0x168] sm:$0xff]
  %v60 = vld [vmem:[%s0 + $0x170] sm:$0xff]
  %v61 = vld [vmem:[%s0 + $0x178] sm:$0xff]
  %v62 = vld [vmem:[%s0 + $0x180] sm:$0xff]
  %v63 = vld [vmem:[%s0 + $0x188] sm:$0xff]
  %v64 = vld [vmem:[%s0 + $0x190] sm:$0xff]
  %v65 = vld [vmem:[%s0 + $0x198] sm:$0xff]
  %v66 = vld [vmem:[%s0 + $0x1a0] sm:$0xff]
  %v67 = vld [vmem:[%s0 + $0x1a8] sm:$0xff]
  %v68 = vld [vmem:[%s0 + $0x1b0] sm:$0xff]
  %v69 = vld [vmem:[%s0 + $0x1b8] sm:$0xff]
  %v70 = vld [vmem:[%s0 + $0x1c0] sm:$0xff]
  %v71 = vld [vmem:[%s0 + $0x1c8] sm:$0xff]
  %v72 = vld [vmem:[%s0 + $0x1d0] sm:$0xff]
  %v73 = vld [vmem:[%s0 + $0x1d8] sm:$0xff]
  %v74 = vld [vmem:[%s0 + $0x1e0] sm:$0xff]
  %v75 = vld [vmem:[%s0 + $0x1e8] sm:$0xff]
  %v76 = vld [vmem:[%s0 + $0x1f0] sm:$0xff]
  %v77 = vld [vmem:[%s0 + $0x1f8] sm:$0xff]
  %v78 = vld [vmem:[%s0 + $0x200] sm:$0xff]
  %v79 = vld [vmem:[%s0 + $0x208] sm:$0xff]
  %v80 = vld [vmem:[%s0 + $0x210] sm:$0xff]
  %v81 = vld [vmem:[%s0 + $0x218] sm:$0xff]
  %v82 = vld [vmem:[%s0 + $0x220] sm:$0xff]
  %v83 = vld [vmem:[%s0 + $0x228] sm:$0xff]
  %v84 = vld [vmem:[%s0 + $0x230] sm:$0xff]
  %v85 = vld [vmem:[%s0 + $0x238] sm:$0xff]
  %v86 = vld [vmem:[%s0 + $0x240] sm:$0xff]
  %v87 = vld [vmem:[%s0 + $0x248] sm:$0xff]
  %v88 = vld [vmem:[%s0 + $0x250] sm:$0xff]
  %v89 = vld [vmem:[%s0 + $0x258] sm:$0xff]
  %v90 = vld [vmem:[%s0 + $0x260] sm:$0xff]
  %v91 = vld [vmem:[%s0 + $0x268] sm:$0xff]
  %v92 = vld [vmem:[%s0 + $0x270] sm:$0xff]
  %v93 = vld [vmem:[%s0 + $0x278] sm:$0xff]
  %v94 = vld [vmem:[%s0 + $0x280] sm:$0xff]
  %v95 = vld [vmem:[%s0 + $0x288] sm:$0xff]
  %v96 = vld [vmem:[%s0 + $0x290] sm:$0xff]
  %v97 = vld [vmem:[%s0 + $0x298] sm:$0xff]
  %v98 = vld [vmem:[%s0 + $0x2a0] sm:$0xff]
  %v99 = vld [vmem:[%s0 + $0x2a8] sm:$0xff]
  %v100 = vld [vmem:[%s0 + $0x2b0] sm:$0xff]
  %v101 = vld [vmem:[%s0 + $0x2b8] sm:$0xff]
  %v102 = vld [vmem:[%s0 + $0x2c0] sm:$0xff]
  %v103 = vld [vmem:[%s0 + $0x2c8] sm:$0xff]
  %v104 = vld [vmem:[%s0 + $0x2d0] sm:$0xff]
  %v105 = vld [vmem:[%s0 + $0x2d8] sm:$0xff]
  %v106 = vld [vmem:[%s0 + $0x2e0] sm:$0xff]
  %v107 = vld [vmem:[%s0 + $0x2e8] sm:$0xff]
  %v108 = vld [vmem:[%s0 + $0x2f0] sm:$0xff]
  %v109 = vld [vmem:[%s0 + $0x2f8] sm:$0xff]
  %v110 = vld [vmem:[%s0 + $0x300] sm:$0xff]
  %v111 = vld [vmem:[%s0 + $0x308] sm:$0xff]
  %v112 = vld [vmem:[%s0 + $0x310] sm:$0xff]
  %v113 = vld [vmem:[%s0 + $0x318] sm:$0xff]
  %v114 = vld [vmem:[%s0 + $0x320] sm:$0xff]
  %v115 = vld [vmem:[%s0 + $0x328] sm:$0xff]
  %v116 = vld [vmem:[%s0 + $0x330] sm:$0xff]
  %v117 = vld [vmem:[%s0 + $0x338] sm:$0xff]
  %v118 = vld [vmem:[%s0 + $0x340] sm:$0xff]
  %v119 = vld [vmem:[%s0 + $0x348] sm:$0xff]
  %v120 = vld [vmem:[%s0 + $0x350] sm:$0xff]
  %v121 = vld [vmem:[%s0 + $0x358] sm:$0xff]
  %v122 = vld [vmem:[%s0 + $0x360] sm:$0xff]
  %v123 = vld [vmem:[%s0 + $0x368] sm:$0xff]
  %v124 = vld [vmem:[%s0 + $0x370] sm:$0xff]
  %v125 = vld [vmem:[%s0 + $0x378] sm:$0xff]
  %v126 = vld [vmem:[%s0 + $0x380] sm:$0xff]
  %v127 = vld [vmem:[%s0 + $0x388] sm:$0xff]
  %v128 = vld [vmem:[%s0 + $0x390] sm:$0xff]
  %v129 = vld [vmem:[%s0 + $0x398] sm:$0xff]
  %v130 = vld [vmem:[%s0 + $0x3a0] sm:$0xff]
  %v131 = vld [vmem:[%s0 + $0x3a8] sm:$0xff]
  %v132 = vld [vmem:[%s0 + $0x3b0] sm:$0xff]
  %v133 = vld [vmem:[%s0 + $0x3b8] sm:$0xff]
  %v134 = vld [vmem:[%s0 + $0x3c0] sm:$0xff]
  %v135 = vld [vmem:[%s0 + $0x3c8] sm:$0xff]
  %v136 = vld [vmem:[%s0 + $0x3d0] sm:$0xff]
  %v137 = vld [vmem:[%s0 + $0x3d8] sm:$0xff]
  %v138 = vld [vmem:[%s0 + $0x3e0] sm:$0xff]
  %v139 = vld [vmem:[%s0 + $0x3e8] sm:$0xff]
  %v140 = vld [vmem:[%s0 + $0x3f0] sm:$0xff]
  %v141 = vld [vmem:[%s0 + $0x3f8] sm:$0xff]
  %v142 = vld [vmem:[%s0 + $0x400] sm:$0xff]
  %v143 = vld [vmem:[%s0 + $0x408] sm:$0xff]
  %v144 = vld [vmem:[%s0 + $0x410] sm:$0xff]
  %v145 = vld [vmem:[%s0 + $0x418] sm:$0xff]
  %v146 = vld [vmem:[%s0 + $0x420] sm:$0xff]
  %v147 = vld [vmem:[%s0 + $0x428] sm:$0xff]
  %v148 = vld [vmem:[%s0 + $0x430] sm:$0xff]
  %v149 = vld [vmem:[%s0 + $0x438] sm:$0xff]
  %v150 = vld [vmem:[%s0 + $0x440] sm:$0xff]
  %v151 = vld [vmem:[%s0 + $0x448] sm:$0xff]
  %v152 = vld [vmem:[%s0 + $0x450] sm:$0xff]
  %v153 = vld [vmem:[%s0 + $0x458] sm:$0xff]
  %v154 = vld [vmem:[%s0 + $0x460] sm:$0xff]
  %v155 = vld [vmem:[%s0 + $0x468] sm:$0xff]
  %v156 = vld [vmem:[%s0 + $0x470] sm:$0xff]
  %v157 = vld [vmem:[%s0 + $0x478] sm:$0xff]
  %v158 = vld [vmem:[%s0 + $0x480] sm:$0xff]
  %v159 = vld [vmem:[%s0 + $0x488] sm:$0xff]
  %v160 = vld [vmem:[%s0 + $0x490] sm:$0xff]
  %v161 = vld [vmem:[%s0 + $0x498] sm:$0xff]
  %v162 = vld [vmem:[%s0 + $0x4a0] sm:$0xff]
  %v163 = vld [vmem:[%s0 + $0x4a8] sm:$0xff]
  %v164 = vld [vmem:[%s0 + $0x4b0] sm:$0xff]
  %v165 = vld [vmem:[%s0 + $0x4b8] sm:$0xff]
  %v166 = vld [vmem:[%s0 + $0x4c0] sm:$0xff]
  %v167 = vld [vmem:[%s0 + $0x4c8] sm:$0xff]
  %v168 = vld [vmem:[%s0 + $0x4d0] sm:$0xff]
  %v169 = vld [vmem:[%s0 + $0x4d8] sm:$0xff]
  %v170 = vld [vmem:[%s0 + $0x4e0] sm:$0xff]
  %v171 = vld [vmem:[%s0 + $0x4e8] sm:$0xff]
  %v172 = vld [vmem:[%s0 + $0x4f0] sm:$0xff]
  %v173 = vld [vmem:[%s0 + $0x4f8] sm:$0xff]
  %v174 = vld [vmem:[%s0 + $0x500] sm:$0xff]
  %v175 = vld [vmem:[%s0 + $0x508] sm:$0xff]
  %v176 = vld [vmem:[%s0 + $0x510] sm:$0xff]
  %v177 = vld [vmem:[%s0 + $0x518] sm:$0xff]
  %v178 = vld [vmem:[%s0 + $0x520] sm:$0xff]
  %v179 = vld [vmem:[%s0 + $0x528] sm:$0xff]
  %v180 = vld [vmem:[%s0 + $0x530] sm:$0xff]
  %v181 = vld [vmem:[%s0 + $0x538] sm:$0xff]
  %v182 = vld [vmem:[%s0 + $0x540] sm:$0xff]
  %v183 = vld [vmem:[%s0 + $0x548] sm:$0xff]
  %v184 = vld [vmem:[%s0 + $0x550] sm:$0xff]
  %v185 = vld [vmem:[%s0 + $0x558] sm:$0xff]
  %v186 = vld [vmem:[%s0 + $0x560] sm:$0xff]
  %v187 = vld [vmem:[%s0 + $0x568] sm:$0xff]
  %v188 = vld [vmem:[%s0 + $0x570] sm:$0xff]
  %v189 = vld [vmem:[%s0 + $0x578] sm:$0xff]
  %v190 = vld [vmem:[%s0 + $0x580] sm:$0xff]
  %v191 = vld [vmem:[%s0 + $0x588] sm:$0xff]
  %v192 = vld [vmem:[%s0 + $0x590] sm:$0xff]
  %v193 = vld [vmem:[%s0 + $0x598] sm:$0xff]
  %v194 = vld [vmem:[%s0 + $0x5a0] sm:$0xff]
  %v195 = vld [vmem:[%s0 + $0x5a8] sm:$0xff]
  %v196 = vld [vmem:[%s0 + $0x5b0] sm:$0xff]
  %v197 = vld [vmem:[%s0 + $0x5b8] sm:$0xff]
  %v198 = vld [vmem:[%s0 + $0x5c0] sm:$0xff]
  %v199 = vld [vmem:[%s0 + $0x5c8] sm:$0xff]
  %v200 = vld [vmem:[%s0 + $0x5d0] sm:$0xff]
  %v201 = vld [vmem:[%s0 + $0x5d8] sm:$0xff]
  %v202 = vld [vmem:[%s0 + $0x5e0] sm:$0xff]
  %v203 = vld [vmem:[%s0 + $0x5e8] sm:$0xff]
  %v204 = vld [vmem:[%s0 + $0x5f0] sm:$0xff]
  %v205 = vld [vmem:[%s0 + $0x5f8] sm:$0xff]
  %v206 = vld [vmem:[%s0 + $0x600] sm:$0xff]
  %v207 = vld [vmem:[%s0 + $0x608] sm:$0xff]
  %v208 = vld [vmem:[%s0 + $0x610] sm:$0xff]
  %v209 = vld [vmem:[%s0 + $0x618] sm:$0xff]
  %v210 = vld [vmem:[%s0 + $0x620] sm:$0xff]
  %v211 = vld [vmem:[%s0 + $0x628] sm:$0xff]
  %v212 = vld [vmem:[%s0 + $0x630] sm:$0xff]
  %v213 = vld [vmem:[%s0 + $0x638] sm:$0xff]
  %v214 = vld [vmem:[%s1] sm:$0xff]
  %v215 = vld [vmem:[%s1 + $0x8] sm:$0xff]
  %v216 = vld [vmem:[%s1 + $0x10] sm:$0xff]
  %v217 = vld [vmem:[%s1 + $0x18] sm:$0xff]
  %v218 = vld [vmem:[%s1 + $0x20] sm:$0xff]
  %v219 = vld [vmem:[%s1 + $0x28] sm:$0xff]
  %v220 = vld [vmem:[%s1 + $0x30] sm:$0xff]
  %v221 = vld [vmem:[%s1 + $0x38] sm:$0xff]
  %v222 = vld [vmem:[%s1 + $0x40] sm:$0xff]
  %v223 = vld [vmem:[%s1 + $0x48] sm:$0xff]
  %v224 = vld [vmem:[%s1 + $0x50] sm:$0xff]
  %v225 = vld [vmem:[%s1 + $0x58] sm:$0xff]
  %v226 = vld [vmem:[%s1 + $0x60] sm:$0xff]
  %v227 = vld [vmem:[%s1 + $0x68] sm:$0xff]
  %v228 = vld [vmem:[%s1 + $0x70] sm:$0xff]
  %v229 = vld [vmem:[%s1 + $0x78] sm:$0xff]
  %v230 = vld [vmem:[%s1 + $0x80] sm:$0xff]
  %v231 = vld [vmem:[%s1 + $0x88] sm:$0xff]
  %v232 = vld [vmem:[%s1 + $0x90] sm:$0xff]
  %v233 = vld [vmem:[%s1 + $0x98] sm:$0xff]
  %v234 = vld [vmem:[%s1 + $0xa0] sm:$0xff]
  %v235 = vld [vmem:[%s1 + $0xa8] sm:$0xff]
  %v236 = vld [vmem:[%s1 + $0xb0] sm:$0xff]
  %v237 = vld [vmem:[%s1 + $0xb8] sm:$0xff]
  %v238 = vld [vmem:[%s1 + $0xc0] sm:$0xff]
  %v239 = vld [vmem:[%s1 + $0xc8] sm:$0xff]
  %v240 = vld [vmem:[%s1 + $0xd0] sm:$0xff]
  %v241 = vld [vmem:[%s1 + $0xd8] sm:$0xff]
  %v242 = vld [vmem:[%s1 + $0xe0] sm:$0xff]
  %v243 = vld [vmem:[%s1 + $0xe8] sm:$0xff]
  %v244 = vld [vmem:[%s1 + $0xf0] sm:$0xff]
  %v245 = vld [vmem:[%s1 + $0xf8] sm:$0xff]
  %v246 = vld [vmem:[%s1 + $0x100] sm:$0xff]
  %v247 = vld [vmem:[%s1 + $0x108] sm:$0xff]
  %v248 = vld [vmem:[%s1 + $0x110] sm:$0xff]
  %v249 = vld [vmem:[%s1 + $0x118] sm:$0xff]
  %v250 = vld [vmem:[%s1 + $0x120] sm:$0xff]
  %v251 = vld [vmem:[%s1 + $0x128] sm:$0xff]
  %v252 = vld [vmem:[%s1 + $0x130] sm:$0xff]
  %v253 = vld [vmem:[%s1 + $0x138] sm:$0xff]
  %v254 = vld [vmem:[%s1 + $0x140] sm:$0xff]
  %v255 = vld [vmem:[%s1 + $0x148] sm:$0xff]
  %v256 = vld [vmem:[%s1 + $0x150] sm:$0xff]
  %v257 = vld [vmem:[%s1 + $0x158] sm:$0xff]
  %v258 = vld [vmem:[%s1 + $0x160] sm:$0xff]
  %v259 = vld [vmem:[%s1 + $0x168] sm:$0xff]
  %v260 = vld [vmem:[%s1 + $0x170] sm:$0xff]
  %v261 = vld [vmem:[%s1 + $0x178] sm:$0xff]
  %v262 = vld [vmem:[%s1 + $0x180] sm:$0xff]
  %v263 = vld [vmem:[%s1 + $0x188] sm:$0xff]
  %v264 = vld [vmem:[%s1 + $0x190] sm:$0xff]
  %v265 = vld [vmem:[%s1 + $0x198] sm:$0xff]
  %v266 = vld [vmem:[%s1 + $0x1a0] sm:$0xff]
  %v267 = vld [vmem:[%s1 + $0x1a8] sm:$0xff]
  %v268 = vld [vmem:[%s1 + $0x1b0] sm:$0xff]
  %v269 = vld [vmem:[%s1 + $0x1b8] sm:$0xff]
  %v270 = vld [vmem:[%s1 + $0x1c0] sm:$0xff]
  %v271 = vld [vmem:[%s1 + $0x1c8] sm:$0xff]
  %v272 = vld [vmem:[%s1 + $0x1d0] sm:$0xff]
  %v273 = vld [vmem:[%s1 + $0x1d8] sm:$0xff]
  %v274 = vld [vmem:[%s1 + $0x1e0] sm:$0xff]
  %v275 = vld [vmem:[%s1 + $0x1e8] sm:$0xff]
  %v276 = vld [vmem:[%s1 + $0x1f0] sm:$0xff]
  %v277 = vld [vmem:[%s1 + $0x1f8] sm:$0xff]
  %v278 = vld [vmem:[%s1 + $0x200] sm:$0xff]
  %v279 = vld [vmem:[%s1 + $0x208] sm:$0xff]
  %v280 = vld [vmem:[%s1 + $0x210] sm:$0xff]
  %v281 = vld [vmem:[%s1 + $0x218] sm:$0xff]
  %v282 = vld [vmem:[%s1 + $0x220] sm:$0xff]
  %v283 = vld [vmem:[%s1 + $0x228] sm:$0xff]
  %v284 = vld [vmem:[%s1 + $0x230] sm:$0xff]
  %v285 = vld [vmem:[%s1 + $0x238] sm:$0xff]
  %v286 = vld [vmem:[%s1 + $0x240] sm:$0xff]
  %v287 = vld [vmem:[%s1 + $0x248] sm:$0xff]
  %v288 = vld [vmem:[%s1 + $0x250] sm:$0xff]
  %v289 = vld [vmem:[%s1 + $0x258] sm:$0xff]
  %v290 = vld [vmem:[%s1 + $0x260] sm:$0xff]
  %v291 = vld [vmem:[%s1 + $0x268] sm:$0xff]
  %v292 = vld [vmem:[%s1 + $0x270] sm:$0xff]
  %v293 = vld [vmem:[%s1 + $0x278] sm:$0xff]
  %v294 = vld [vmem:[%s1 + $0x280] sm:$0xff]
  %v295 = vld [vmem:[%s1 + $0x288] sm:$0xff]
  %v296 = vld [vmem:[%s1 + $0x290] sm:$0xff]
  %v297 = vld [vmem:[%s1 + $0x298] sm:$0xff]
  %v298 = vld [vmem:[%s1 + $0x2a0] sm:$0xff]
  %v299 = vld [vmem:[%s1 + $0x2a8] sm:$0xff]
  %v300 = vld [vmem:[%s1 + $0x2b0] sm:$0xff]
  %v301 = vld [vmem:[%s1 + $0x2b8] sm:$0xff]
  %v302 = vld [vmem:[%s1 + $0x2c0] sm:$0xff]
  %v303 = vld [vmem:[%s1 + $0x2c8] sm:$0xff]
  %v304 = vld [vmem:[%s1 + $0x2d0] sm:$0xff]
  %v305 = vld [vmem:[%s1 + $0x2d8] sm:$0xff]
  %v306 = vld [vmem:[%s1 + $0x2e0] sm:$0xff]
  %v307 = vld [vmem:[%s1 + $0x2e8] sm:$0xff]
  %v308 = vld [vmem:[%s1 + $0x2f0] sm:$0xff]
  %v309 = vld [vmem:[%s1 + $0x2f8] sm:$0xff]
  %v310 = vld [vmem:[%s1 + $0x300] sm:$0xff]
  %v311 = vld [vmem:[%s1 + $0x308] sm:$0xff]
  %v312 = vld [vmem:[%s1 + $0x310] sm:$0xff]
  %v313 = vld [vmem:[%s1 + $0x318] sm:$0xff]
  %v314 = vld [vmem:[%s1 + $0x320] sm:$0xff]
  %v315 = vld [vmem:[%s1 + $0x328] sm:$0xff]
  %v316 = vld [vmem:[%s1 + $0x330] sm:$0xff]
  %v317 = vld [vmem:[%s1 + $0x338] sm:$0xff]
  %v318 = vld [vmem:[%s1 + $0x340] sm:$0xff]
  %v319 = vld [vmem:[%s1 + $0x348] sm:$0xff]
  %v320 = vld [vmem:[%s1 + $0x350] sm:$0xff]
  %v321 = vld [vmem:[%s1 + $0x358] sm:$0xff]
  %v322 = vld [vmem:[%s1 + $0x360] sm:$0xff]
  %v323 = vld [vmem:[%s1 + $0x368] sm:$0xff]
  %v324 = vld [vmem:[%s1 + $0x370] sm:$0xff]
  %v325 = vld [vmem:[%s1 + $0x378] sm:$0xff]
  %v326 = vld [vmem:[%s1 + $0x380] sm:$0xff]
  %v327 = vld [vmem:[%s1 + $0x388] sm:$0xff]
  %v328 = vld [vmem:[%s1 + $0x390] sm:$0xff]
  %v329 = vld [vmem:[%s1 + $0x398] sm:$0xff]
  %v330 = vld [vmem:[%s1 + $0x3a0] sm:$0xff]
  %v331 = vld [vmem:[%s1 + $0x3a8] sm:$0xff]
  %v332 = vld [vmem:[%s1 + $0x3b0] sm:$0xff]
  %v333 = vld [vmem:[%s1 + $0x3b8] sm:$0xff]
  %v334 = vld [vmem:[%s1 + $0x3c0] sm:$0xff]
  %v335 = vld [vmem:[%s1 + $0x3c8] sm:$0xff]
  %v336 = vld [vmem:[%s1 + $0x3d0] sm:$0xff]
  %v337 = vld [vmem:[%s1 + $0x3d8] sm:$0xff]
  %v338 = vld [vmem:[%s1 + $0x3e0] sm:$0xff]
  %v339 = vld [vmem:[%s1 + $0x3e8] sm:$0xff]
  %v340 = vld [vmem:[%s1 + $0x3f0] sm:$0xff]
  %v341 = vld [vmem:[%s1 + $0x3f8] sm:$0xff]
  %v342 = vld [vmem:[%s2] sm:$0x1]
  %v344 = vlaneseq
  %v345 = vshrl.u32 %v344, 7
  %v346 = vsub.s32 0, %v345
  %v347 = vrot.slane %v342, %v346
  %349 = vmatprep.subr.mxu0 0.0
  %350 = vmatpush1.msra.mxu0 %v214
  %351 = vmatprep.subr.mxu0 0.0
  %352 = vmatpush1.msra.mxu0 %v215
  %353 = vmatprep.subr.mxu0 0.0
  %354 = vmatpush1.msra.mxu0 %v216
  %355 = vmatprep.subr.mxu0 0.0
  %356 = vmatpush1.msra.mxu0 %v217
  %357 = vmatprep.subr.mxu0 0.0
  %358 = vmatpush1.msra.mxu0 %v218
  %359 = vmatprep.subr.mxu0 0.0
  %360 = vmatpush1.msra.mxu0 %v219
  %361 = vmatprep.subr.mxu0 0.0
  %362 = vmatpush1.msra.mxu0 %v220
  %363 = vmatprep.subr.mxu0 0.0
  %364 = vmatpush1.msra.mxu0 %v221
  %365 = vmatprep.subr.mxu0 0.0
  %366 = vmatpush1.msra.mxu0 %v222
  %367 = vmatprep.subr.mxu0 0.0
  %368 = vmatpush1.msra.mxu0 %v223
  %369 = vmatprep.subr.mxu0 0.0
  %370 = vmatpush1.msra.mxu0 %v224
  %371 = vmatprep.subr.mxu0 0.0
  %372 = vmatpush1.msra.mxu0 %v225
  %373 = vmatprep.subr.mxu0 0.0
  %374 = vmatpush1.msra.mxu0 %v226
  %375 = vmatprep.subr.mxu0 0.0
  %376 = vmatpush1.msra.mxu0 %v227
  %377 = vmatprep.subr.mxu0 0.0
  %378 = vmatpush1.msra.mxu0 %v228
  %379 = vmatprep.subr.mxu0 0.0
  %380 = vmatpush1.msra.mxu0 %v229
  %381 = vmatprep.subr.mxu0 0.0
  %382 = vmatpush1.msra.mxu0 %v230
  %383 = vmatprep.subr.mxu0 0.0
  %384 = vmatpush1.msra.mxu0 %v231
  %385 = vmatprep.subr.mxu0 0.0
  %386 = vmatpush1.msra.mxu0 %v232
  %387 = vmatprep.subr.mxu0 0.0
  %388 = vmatpush1.msra.mxu0 %v233
  %389 = vmatprep.subr.mxu0 0.0
  %390 = vmatpush1.msra.mxu0 %v234
  %391 = vmatprep.subr.mxu0 0.0
  %392 = vmatpush1.msra.mxu0 %v235
  %393 = vmatprep.subr.mxu0 0.0
  %394 = vmatpush1.msra.mxu0 %v236
  %395 = vmatprep.subr.mxu0 0.0
  %396 = vmatpush1.msra.mxu0 %v237
  %397 = vmatprep.subr.mxu0 0.0
  %398 = vmatpush1.msra.mxu0 %v238
  %399 = vmatprep.subr.mxu0 0.0
  %400 = vmatpush1.msra.mxu0 %v239
  %401 = vmatprep.subr.mxu0 0.0
  %402 = vmatpush1.msra.mxu0 %v240
  %403 = vmatprep.subr.mxu0 0.0
  %404 = vmatpush1.msra.mxu0 %v241
  %405 = vmatprep.subr.mxu0 0.0
  %406 = vmatpush1.msra.mxu0 %v242
  %407 = vmatprep.subr.mxu0 0.0
  %408 = vmatpush1.msra.mxu0 %v243
  %409 = vmatprep.subr.mxu0 0.0
  %410 = vmatpush1.msra.mxu0 %v244
  %411 = vmatprep.subr.mxu0 0.0
  %412 = vmatpush1.msra.mxu0 %v245
  %413 = vmatprep.mubr.f32.mxu0 %v15
  %414 = vmatmul.mubr.f32.gmra.mrb[0].mxu0 %v14
  %v415 = vpop.f32.mrb[0].mxu0
  %v416 = vadd.f32 %v347, %v415
  %v417 = vpop.f32.mrb[0].mxu0
  %418 = vmatprep.mubr.f32.mxu0 %v23
  %419 = vmatmul.mubr.f32.gmra.mrb[0].mxu0 %v22
  %v420 = vpop.f32.mrb[0].mxu0
  %v421 = vadd.f32 %v347, %v420
  %v422 = vpop.f32.mrb[0].mxu0
  %423 = vmatprep.mubr.f32.mxu0 %v31
  %424 = vmatmul.mubr.f32.gmra.mrb[0].mxu0 %v30
  %v425 = vpop.f32.mrb[0].mxu0
  %v426 = vadd.f32 %v347, %v425
  %v427 = vpop.f32.mrb[0].mxu0
  %428 = vmatprep.mubr.f32.mxu0 %v39
  %429 = vmatmul.mubr.f32.gmra.mrb[0].mxu0 %v38
  %v430 = vpop.f32.mrb[0].mxu0
  %v431 = vadd.f32 %v347, %v430
  %v432 = vpop.f32.mrb[0].mxu0
  %433 = vmatprep.mubr.f32.mxu0 %v47
  %434 = vmatmul.mubr.f32.gmra.mrb[0].mxu0 %v46
  %v435 = vpop.f32.mrb[0].mxu0
  %v436 = vadd.f32 %v347, %v435
  %v437 = vpop.f32.mrb[0].mxu0
  %438 = vmatprep.mubr.f32.mxu0 %v55
  %439 = vmatmul.mubr.f32.gmra.mrb[0].mxu0 %v54
  %v440 = vpop.f32.mrb[0].mxu0
  %v441 = vadd.f32 %v347, %v440
  %v442 = vpop.f32.mrb[0].mxu0
  %443 = vmatprep.mubr.f32.mxu0 %v63
  %444 = vmatmul.mubr.f32.gmra.mrb[0].mxu0 %v62
  %v445 = vpop.f32.mrb[0].mxu0
  %v446 = vadd.f32 %v347, %v445
  %v447 = vpop.f32.mrb[0].mxu0
  %448 = vmatprep.mubr.f32.mxu0 %v71
  %449 = vmatmul.mubr.f32.gmra.mrb[0].mxu0 %v70
  %v450 = vpop.f32.mrb[0].mxu0
  %v451 = vadd.f32 %v347, %v450
  %v452 = vpop.f32.mrb[0].mxu0
  %453 = vmatprep.mubr.f32.mxu0 %v79
  %454 = vmatmul.mubr.f32.gmra.mrb[0].mxu0 %v78
  %v455 = vpop.f32.mrb[0].mxu0
  %v456 = vadd.f32 %v347, %v455
  %v457 = vpop.f32.mrb[0].mxu0
  %458 = vmatprep.mubr.f32.mxu0 %v87
  %459 = vmatmul.mubr.f32.gmra.mrb[0].mxu0 %v86
  %v460 = vpop.f32.mrb[0].mxu0
  %v461 = vadd.f32 %v347, %v460
  %v462 = vpop.f32.mrb[0].mxu0
  %463 = vmatprep.mubr.f32.mxu0 %v95
  %464 = vmatmul.mubr.f32.gmra.mrb[0].mxu0 %v94
  %v465 = vpop.f32.mrb[0].mxu0
  %v466 = vadd.f32 %v347, %v465
  %v467 = vpop.f32.mrb[0].mxu0
  %468 = vmatprep.mubr.f32.mxu0 %v103
  %469 = vmatmul.mubr.f32.gmra.mrb[0].mxu0 %v102
  %v470 = vpop.f32.mrb[0].mxu0
  %v471 = vadd.f32 %v347, %v470
  %v472 = vpop.f32.mrb[0].mxu0
  %473 = vmatprep.mubr.f32.mxu0 %v111
  %474 = vmatmul.mubr.f32.gmra.mrb[0].mxu0 %v110
  %v475 = vpop.f32.mrb[0].mxu0
  %v476 = vadd.f32 %v347, %v475
  %v477 = vpop.f32.mrb[0].mxu0
  %478 = vmatprep.mubr.f32.mxu0 %v119
  %479 = vmatmul.mubr.f32.gmra.mrb[0].mxu0 %v118
  %v480 = vpop.f32.mrb[0].mxu0
  %v481 = vadd.f32 %v347, %v480
  %v482 = vpop.f32.mrb[0].mxu0
  %483 = vmatprep.mubr.f32.mxu0 %v127
  %484 = vmatmul.mubr.f32.gmra.mrb[0].mxu0 %v126
  %v485 = vpop.f32.mrb[0].mxu0
  %v486 = vadd.f32 %v347, %v485
  %v487 = vpop.f32.mrb[0].mxu0
  %488 = vmatprep.mubr.f32.mxu0 %v135
  %489 = vmatmul.mubr.f32.gmra.mrb[0].mxu0 %v134
  %v490 = vpop.f32.mrb[0].mxu0
  %v491 = vadd.f32 %v347, %v490
  %v492 = vpop.f32.mrb[0].mxu0
  %493 = vmatprep.mubr.f32.mxu0 %v143
  %494 = vmatmul.mubr.f32.gmra.mrb[0].mxu0 %v142
  %v495 = vpop.f32.mrb[0].mxu0
  %v496 = vadd.f32 %v347, %v495
  %v497 = vpop.f32.mrb[0].mxu0
  %498 = vmatprep.mubr.f32.mxu0 %v151
  %499 = vmatmul.mubr.f32.gmra.mrb[0].mxu0 %v150
  %v500 = vpop.f32.mrb[0].mxu0
  %v501 = vadd.f32 %v347, %v500
  %v502 = vpop.f32.mrb[0].mxu0
  %503 = vmatprep.mubr.f32.mxu0 %v159
  %504 = vmatmul.mubr.f32.gmra.mrb[0].mxu0 %v158
  %v505 = vpop.f32.mrb[0].mxu0
  %v506 = vadd.f32 %v347, %v505
  %v507 = vpop.f32.mrb[0].mxu0
  %508 = vmatprep.mubr.f32.mxu0 %v167
  %509 = vmatmul.mubr.f32.gmra.mrb[0].mxu0 %v166
  %v510 = vpop.f32.mrb[0].mxu0
  %v511 = vadd.f32 %v347, %v510
  %v512 = vpop.f32.mrb[0].mxu0
  %513 = vmatprep.mubr.f32.mxu0 %v175
  %514 = vmatmul.mubr.f32.gmra.mrb[0].mxu0 %v174
  %v515 = vpop.f32.mrb[0].mxu0
  %v516 = vadd.f32 %v347, %v515
  %v517 = vpop.f32.mrb[0].mxu0
  %518 = vmatprep.mubr.f32.mxu0 %v183
  %519 = vmatmul.mubr.f32.gmra.mrb[0].mxu0 %v182
  %v520 = vpop.f32.mrb[0].mxu0
  %v521 = vadd.f32 %v347, %v520
  %v522 = vpop.f32.mrb[0].mxu0
  %523 = vmatprep.mubr.f32.mxu0 %v191
  %524 = vmatmul.mubr.f32.gmra.mrb[0].mxu0 %v190
  %v525 = vpop.f32.mrb[0].mxu0
  %v526 = vadd.f32 %v347, %v525
  %v527 = vpop.f32.mrb[0].mxu0
  %528 = vmatprep.mubr.f32.mxu0 %v199
  %529 = vmatmul.mubr.f32.gmra.mrb[0].mxu0 %v198
  %v530 = vpop.f32.mrb[0].mxu0
  %v531 = vadd.f32 %v347, %v530
  %v532 = vpop.f32.mrb[0].mxu0
  %533 = vmatprep.mubr.f32.mxu0 %v207
  %534 = vmatmul.mubr.f32.gmra.mrb[0].mxu0 %v206
  %v535 = vpop.f32.mrb[0].mxu0
  %v536 = vadd.f32 %v347, %v535
  %v537 = vpop.f32.mrb[0].mxu0
  %538 = vdwg.mxu0
  %539 = vmatprep.subr.mxu0 0.0
  %540 = vmatpush1.msra.mxu0 %v246
  %541 = vmatprep.subr.mxu0 0.0
  %542 = vmatpush1.msra.mxu0 %v247
  %543 = vmatprep.subr.mxu0 0.0
  %544 = vmatpush1.msra.mxu0 %v248
  %545 = vmatprep.subr.mxu0 0.0
  %546 = vmatpush1.msra.mxu0 %v249
  %547 = vmatprep.subr.mxu0 0.0
  %548 = vmatpush1.msra.mxu0 %v250
  %549 = vmatprep.subr.mxu0 0.0
  %550 = vmatpush1.msra.mxu0 %v251
  %551 = vmatprep.subr.mxu0 0.0
  %552 = vmatpush1.msra.mxu0 %v252
  %553 = vmatprep.subr.mxu0 0.0
  %554 = vmatpush1.msra.mxu0 %v253
  %555 = vmatprep.subr.mxu0 0.0
  %556 = vmatpush1.msra.mxu0 %v254
  %557 = vmatprep.subr.mxu0 0.0
  %558 = vmatpush1.msra.mxu0 %v255
  %559 = vmatprep.subr.mxu0 0.0
  %560 = vmatpush1.msra.mxu0 %v256
  %561 = vmatprep.subr.mxu0 0.0
  %562 = vmatpush1.msra.mxu0 %v257
  %563 = vmatprep.subr.mxu0 0.0
  %564 = vmatpush1.msra.mxu0 %v258
  %565 = vmatprep.subr.mxu0 0.0
  %566 = vmatpush1.msra.mxu0 %v259
  %567 = vmatprep.subr.mxu0 0.0
  %568 = vmatpush1.msra.mxu0 %v260
  %569 = vmatprep.subr.mxu0 0.0
  %570 = vmatpush1.msra.mxu0 %v261
  %571 = vmatprep.subr.mxu0 0.0
  %572 = vmatpush1.msra.mxu0 %v262
  %573 = vmatprep.subr.mxu0 0.0
  %574 = vmatpush1.msra.mxu0 %v263
  %575 = vmatprep.subr.mxu0 0.0
  %576 = vmatpush1.msra.mxu0 %v264
  %577 = vmatprep.subr.mxu0 0.0
  %578 = vmatpush1.msra.mxu0 %v265
  %579 = vmatprep.subr.mxu0 0.0
  %580 = vmatpush1.msra.mxu0 %v266
  %581 = vmatprep.subr.mxu0 0.0
  %582 = vmatpush1.msra.mxu0 %v267
  %583 = vmatprep.subr.mxu0 0.0
  %584 = vmatpush1.msra.mxu0 %v268
  %585 = vmatprep.subr.mxu0 0.0
  %586 = vmatpush1.msra.mxu0 %v269
  %587 = vmatprep.subr.mxu0 0.0
  %588 = vmatpush1.msra.mxu0 %v270
  %589 = vmatprep.subr.mxu0 0.0
  %590 = vmatpush1.msra.mxu0 %v271
  %591 = vmatprep.subr.mxu0 0.0
  %592 = vmatpush1.msra.mxu0 %v272
  %593 = vmatprep.subr.mxu0 0.0
  %594 = vmatpush1.msra.mxu0 %v273
  %595 = vmatprep.subr.mxu0 0.0
  %596 = vmatpush1.msra.mxu0 %v274
  %597 = vmatprep.subr.mxu0 0.0
  %598 = vmatpush1.msra.mxu0 %v275
  %599 = vmatprep.subr.mxu0 0.0
  %600 = vmatpush1.msra.mxu0 %v276
  %601 = vmatprep.subr.mxu0 0.0
  %602 = vmatpush1.msra.mxu0 %v277
  %603 = vmatprep.mubr.f32.mxu0 %v17
  %604 = vmatmul.mubr.f32.gmra.mrb[0].mxu0 %v16
  %v605 = vpop.f32.mrb[0].mxu0
  %v606 = vadd.f32 %v416, %v605
  %v607 = vpop.f32.mrb[0].mxu0
  %608 = vmatprep.mubr.f32.mxu0 %v25
  %609 = vmatmul.mubr.f32.gmra.mrb[0].mxu0 %v24
  %v610 = vpop.f32.mrb[0].mxu0
  %v611 = vadd.f32 %v421, %v610
  %v612 = vpop.f32.mrb[0].mxu0
  %613 = vmatprep.mubr.f32.mxu0 %v33
  %614 = vmatmul.mubr.f32.gmra.mrb[0].mxu0 %v32
  %v615 = vpop.f32.mrb[0].mxu0
  %v616 = vadd.f32 %v426, %v615
  %v617 = vpop.f32.mrb[0].mxu0
  %618 = vmatprep.mubr.f32.mxu0 %v41
  %619 = vmatmul.mubr.f32.gmra.mrb[0].mxu0 %v40
  %v620 = vpop.f32.mrb[0].mxu0
  %v621 = vadd.f32 %v431, %v620
  %v622 = vpop.f32.mrb[0].mxu0
  %623 = vmatprep.mubr.f32.mxu0 %v49
  %624 = vmatmul.mubr.f32.gmra.mrb[0].mxu0 %v48
  %v625 = vpop.f32.mrb[0].mxu0
  %v626 = vadd.f32 %v436, %v625
  %v627 = vpop.f32.mrb[0].mxu0
  %628 = vmatprep.mubr.f32.mxu0 %v57
  %629 = vmatmul.mubr.f32.gmra.mrb[0].mxu0 %v56
  %v630 = vpop.f32.mrb[0].mxu0
  %v631 = vadd.f32 %v441, %v630
  %v632 = vpop.f32.mrb[0].mxu0
  %633 = vmatprep.mubr.f32.mxu0 %v65
  %634 = vmatmul.mubr.f32.gmra.mrb[0].mxu0 %v64
  %v635 = vpop.f32.mrb[0].mxu0
  %v636 = vadd.f32 %v446, %v635
  %v637 = vpop.f32.mrb[0].mxu0
  %638 = vmatprep.mubr.f32.mxu0 %v73
  %639 = vmatmul.mubr.f32.gmra.mrb[0].mxu0 %v72
  %v640 = vpop.f32.mrb[0].mxu0
  %v641 = vadd.f32 %v451, %v640
  %v642 = vpop.f32.mrb[0].mxu0
  %643 = vmatprep.mubr.f32.mxu0 %v81
  %644 = vmatmul.mubr.f32.gmra.mrb[0].mxu0 %v80
  %v645 = vpop.f32.mrb[0].mxu0
  %v646 = vadd.f32 %v456, %v645
  %v647 = vpop.f32.mrb[0].mxu0
  %648 = vmatprep.mubr.f32.mxu0 %v89
  %649 = vmatmul.mubr.f32.gmra.mrb[0].mxu0 %v88
  %v650 = vpop.f32.mrb[0].mxu0
  %v651 = vadd.f32 %v461, %v650
  %v652 = vpop.f32.mrb[0].mxu0
  %653 = vmatprep.mubr.f32.mxu0 %v97
  %654 = vmatmul.mubr.f32.gmra.mrb[0].mxu0 %v96
  %v655 = vpop.f32.mrb[0].mxu0
  %v656 = vadd.f32 %v466, %v655
  %v657 = vpop.f32.mrb[0].mxu0
  %658 = vmatprep.mubr.f32.mxu0 %v105
  %659 = vmatmul.mubr.f32.gmra.mrb[0].mxu0 %v104
  %v660 = vpop.f32.mrb[0].mxu0
  %v661 = vadd.f32 %v471, %v660
  %v662 = vpop.f32.mrb[0].mxu0
  %663 = vmatprep.mubr.f32.mxu0 %v113
  %664 = vmatmul.mubr.f32.gmra.mrb[0].mxu0 %v112
  %v665 = vpop.f32.mrb[0].mxu0
  %v666 = vadd.f32 %v476, %v665
  %v667 = vpop.f32.mrb[0].mxu0
  %668 = vmatprep.mubr.f32.mxu0 %v121
  %669 = vmatmul.mubr.f32.gmra.mrb[0].mxu0 %v120
  %v670 = vpop.f32.mrb[0].mxu0
  %v671 = vadd.f32 %v481, %v670
  %v672 = vpop.f32.mrb[0].mxu0
  %673 = vmatprep.mubr.f32.mxu0 %v129
  %674 = vmatmul.mubr.f32.gmra.mrb[0].mxu0 %v128
  %v675 = vpop.f32.mrb[0].mxu0
  %v676 = vadd.f32 %v486, %v675
  %v677 = vpop.f32.mrb[0].mxu0
  %678 = vmatprep.mubr.f32.mxu0 %v137
  %679 = vmatmul.mubr.f32.gmra.mrb[0].mxu0 %v136
  %v680 = vpop.f32.mrb[0].mxu0
  %v681 = vadd.f32 %v491, %v680
  %v682 = vpop.f32.mrb[0].mxu0
  %683 = vmatprep.mubr.f32.mxu0 %v145
  %684 = vmatmul.mubr.f32.gmra.mrb[0].mxu0 %v144
  %v685 = vpop.f32.mrb[0].mxu0
  %v686 = vadd.f32 %v496, %v685
  %v687 = vpop.f32.mrb[0].mxu0
  %688 = vmatprep.mubr.f32.mxu0 %v153
  %689 = vmatmul.mubr.f32.gmra.mrb[0].mxu0 %v152
  %v690 = vpop.f32.mrb[0].mxu0
  %v691 = vadd.f32 %v501, %v690
  %v692 = vpop.f32.mrb[0].mxu0
  %693 = vmatprep.mubr.f32.mxu0 %v161
  %694 = vmatmul.mubr.f32.gmra.mrb[0].mxu0 %v160
  %v695 = vpop.f32.mrb[0].mxu0
  %v696 = vadd.f32 %v506, %v695
  %v697 = vpop.f32.mrb[0].mxu0
  %698 = vmatprep.mubr.f32.mxu0 %v169
  %699 = vmatmul.mubr.f32.gmra.mrb[0].mxu0 %v168
  %v700 = vpop.f32.mrb[0].mxu0
  %v701 = vadd.f32 %v511, %v700
  %v702 = vpop.f32.mrb[0].mxu0
  %703 = vmatprep.mubr.f32.mxu0 %v177
  %704 = vmatmul.mubr.f32.gmra.mrb[0].mxu0 %v176
  %v705 = vpop.f32.mrb[0].mxu0
  %v706 = vadd.f32 %v516, %v705
  %v707 = vpop.f32.mrb[0].mxu0
  %708 = vmatprep.mubr.f32.mxu0 %v185
  %709 = vmatmul.mubr.f32.gmra.mrb[0].mxu0 %v184
  %v710 = vpop.f32.mrb[0].mxu0
  %v711 = vadd.f32 %v521, %v710
  %v712 = vpop.f32.mrb[0].mxu0
  %713 = vmatprep.mubr.f32.mxu0 %v193
  %714 = vmatmul.mubr.f32.gmra.mrb[0].mxu0 %v192
  %v715 = vpop.f32.mrb[0].mxu0
  %v716 = vadd.f32 %v526, %v715
  %v717 = vpop.f32.mrb[0].mxu0
  %718 = vmatprep.mubr.f32.mxu0 %v201
  %719 = vmatmul.mubr.f32.gmra.mrb[0].mxu0 %v200
  %v720 = vpop.f32.mrb[0].mxu0
  %v721 = vadd.f32 %v531, %v720
  %v722 = vpop.f32.mrb[0].mxu0
  %723 = vmatprep.mubr.f32.mxu0 %v209
  %724 = vmatmul.mubr.f32.gmra.mrb[0].mxu0 %v208
  %v725 = vpop.f32.mrb[0].mxu0
  %v726 = vadd.f32 %v536, %v725
  %v727 = vpop.f32.mrb[0].mxu0
  %728 = vdwg.mxu0
  %729 = vmatprep.subr.mxu0 0.0
  %730 = vmatpush1.msra.mxu0 %v278
  %731 = vmatprep.subr.mxu0 0.0
  %732 = vmatpush1.msra.mxu0 %v279
  %733 = vmatprep.subr.mxu0 0.0
  %734 = vmatpush1.msra.mxu0 %v280
  %735 = vmatprep.subr.mxu0 0.0
  %736 = vmatpush1.msra.mxu0 %v281
  %737 = vmatprep.subr.mxu0 0.0
  %738 = vmatpush1.msra.mxu0 %v282
  %739 = vmatprep.subr.mxu0 0.0
  %740 = vmatpush1.msra.mxu0 %v283
  %741 = vmatprep.subr.mxu0 0.0
  %742 = vmatpush1.msra.mxu0 %v284
  %743 = vmatprep.subr.mxu0 0.0
  %744 = vmatpush1.msra.mxu0 %v285
  %745 = vmatprep.subr.mxu0 0.0
  %746 = vmatpush1.msra.mxu0 %v286
  %747 = vmatprep.subr.mxu0 0.0
  %748 = vmatpush1.msra.mxu0 %v287
  %749 = vmatprep.subr.mxu0 0.0
  %750 = vmatpush1.msra.mxu0 %v288
  %751 = vmatprep.subr.mxu0 0.0
  %752 = vmatpush1.msra.mxu0 %v289
  %753 = vmatprep.subr.mxu0 0.0
  %754 = vmatpush1.msra.mxu0 %v290
  %755 = vmatprep.subr.mxu0 0.0
  %756 = vmatpush1.msra.mxu0 %v291
  %757 = vmatprep.subr.mxu0 0.0
  %758 = vmatpush1.msra.mxu0 %v292
  %759 = vmatprep.subr.mxu0 0.0
  %760 = vmatpush1.msra.mxu0 %v293
  %761 = vmatprep.subr.mxu0 0.0
  %762 = vmatpush1.msra.mxu0 %v294
  %763 = vmatprep.subr.mxu0 0.0
  %764 = vmatpush1.msra.mxu0 %v295
  %765 = vmatprep.subr.mxu0 0.0
  %766 = vmatpush1.msra.mxu0 %v296
  %767 = vmatprep.subr.mxu0 0.0
  %768 = vmatpush1.msra.mxu0 %v297
  %769 = vmatprep.subr.mxu0 0.0
  %770 = vmatpush1.msra.mxu0 %v298
  %771 = vmatprep.subr.mxu0 0.0
  %772 = vmatpush1.msra.mxu0 %v299
  %773 = vmatprep.subr.mxu0 0.0
  %774 = vmatpush1.msra.mxu0 %v300
  %775 = vmatprep.subr.mxu0 0.0
  %776 = vmatpush1.msra.mxu0 %v301
  %777 = vmatprep.subr.mxu0 0.0
  %778 = vmatpush1.msra.mxu0 %v302
  %779 = vmatprep.subr.mxu0 0.0
  %780 = vmatpush1.msra.mxu0 %v303
  %781 = vmatprep.subr.mxu0 0.0
  %782 = vmatpush1.msra.mxu0 %v304
  %783 = vmatprep.subr.mxu0 0.0
  %784 = vmatpush1.msra.mxu0 %v305
  %785 = vmatprep.subr.mxu0 0.0
  %786 = vmatpush1.msra.mxu0 %v306
  %787 = vmatprep.subr.mxu0 0.0
  %788 = vmatpush1.msra.mxu0 %v307
  %789 = vmatprep.subr.mxu0 0.0
  %790 = vmatpush1.msra.mxu0 %v308
  %791 = vmatprep.subr.mxu0 0.0
  %792 = vmatpush1.msra.mxu0 %v309
  %793 = vmatprep.mubr.f32.mxu0 %v19
  %794 = vmatmul.mubr.f32.gmra.mrb[0].mxu0 %v18
  %v795 = vpop.f32.mrb[0].mxu0
  %v796 = vadd.f32 %v606, %v795
  %v797 = vpop.f32.mrb[0].mxu0
  %798 = vmatprep.mubr.f32.mxu0 %v27
  %799 = vmatmul.mubr.f32.gmra.mrb[0].mxu0 %v26
  %v800 = vpop.f32.mrb[0].mxu0
  %v801 = vadd.f32 %v611, %v800
  %v802 = vpop.f32.mrb[0].mxu0
  %803 = vmatprep.mubr.f32.mxu0 %v35
  %804 = vmatmul.mubr.f32.gmra.mrb[0].mxu0 %v34
  %v805 = vpop.f32.mrb[0].mxu0
  %v806 = vadd.f32 %v616, %v805
  %v807 = vpop.f32.mrb[0].mxu0
  %808 = vmatprep.mubr.f32.mxu0 %v43
  %809 = vmatmul.mubr.f32.gmra.mrb[0].mxu0 %v42
  %v810 = vpop.f32.mrb[0].mxu0
  %v811 = vadd.f32 %v621, %v810
  %v812 = vpop.f32.mrb[0].mxu0
  %813 = vmatprep.mubr.f32.mxu0 %v51
  %814 = vmatmul.mubr.f32.gmra.mrb[0].mxu0 %v50
  %v815 = vpop.f32.mrb[0].mxu0
  %v816 = vadd.f32 %v626, %v815
  %v817 = vpop.f32.mrb[0].mxu0
  %818 = vmatprep.mubr.f32.mxu0 %v59
  %819 = vmatmul.mubr.f32.gmra.mrb[0].mxu0 %v58
  %v820 = vpop.f32.mrb[0].mxu0
  %v821 = vadd.f32 %v631, %v820
  %v822 = vpop.f32.mrb[0].mxu0
  %823 = vmatprep.mubr.f32.mxu0 %v67
  %824 = vmatmul.mubr.f32.gmra.mrb[0].mxu0 %v66
  %v825 = vpop.f32.mrb[0].mxu0
  %v826 = vadd.f32 %v636, %v825
  %v827 = vpop.f32.mrb[0].mxu0
  %828 = vmatprep.mubr.f32.mxu0 %v75
  %829 = vmatmul.mubr.f32.gmra.mrb[0].mxu0 %v74
  %v830 = vpop.f32.mrb[0].mxu0
  %v831 = vadd.f32 %v641, %v830
  %v832 = vpop.f32.mrb[0].mxu0
  %833 = vmatprep.mubr.f32.mxu0 %v83
  %834 = vmatmul.mubr.f32.gmra.mrb[0].mxu0 %v82
  %v835 = vpop.f32.mrb[0].mxu0
  %v836 = vadd.f32 %v646, %v835
  %v837 = vpop.f32.mrb[0].mxu0
  %838 = vmatprep.mubr.f32.mxu0 %v91
  %839 = vmatmul.mubr.f32.gmra.mrb[0].mxu0 %v90
  %v840 = vpop.f32.mrb[0].mxu0
  %v841 = vadd.f32 %v651, %v840
  %v842 = vpop.f32.mrb[0].mxu0
  %843 = vmatprep.mubr.f32.mxu0 %v99
  %844 = vmatmul.mubr.f32.gmra.mrb[0].mxu0 %v98
  %v845 = vpop.f32.mrb[0].mxu0
  %v846 = vadd.f32 %v656, %v845
  %v847 = vpop.f32.mrb[0].mxu0
  %848 = vmatprep.mubr.f32.mxu0 %v107
  %849 = vmatmul.mubr.f32.gmra.mrb[0].mxu0 %v106
  %v850 = vpop.f32.mrb[0].mxu0
  %v851 = vadd.f32 %v661, %v850
  %v852 = vpop.f32.mrb[0].mxu0
  %853 = vmatprep.mubr.f32.mxu0 %v115
  %854 = vmatmul.mubr.f32.gmra.mrb[0].mxu0 %v114
  %v855 = vpop.f32.mrb[0].mxu0
  %v856 = vadd.f32 %v666, %v855
  %v857 = vpop.f32.mrb[0].mxu0
  %858 = vmatprep.mubr.f32.mxu0 %v123
  %859 = vmatmul.mubr.f32.gmra.mrb[0].mxu0 %v122
  %v860 = vpop.f32.mrb[0].mxu0
  %v861 = vadd.f32 %v671, %v860
  %v862 = vpop.f32.mrb[0].mxu0
  %863 = vmatprep.mubr.f32.mxu0 %v131
  %864 = vmatmul.mubr.f32.gmra.mrb[0].mxu0 %v130
  %v865 = vpop.f32.mrb[0].mxu0
  %v866 = vadd.f32 %v676, %v865
  %v867 = vpop.f32.mrb[0].mxu0
  %868 = vmatprep.mubr.f32.mxu0 %v139
  %869 = vmatmul.mubr.f32.gmra.mrb[0].mxu0 %v138
  %v870 = vpop.f32.mrb[0].mxu0
  %v871 = vadd.f32 %v681, %v870
  %v872 = vpop.f32.mrb[0].mxu0
  %873 = vmatprep.mubr.f32.mxu0 %v147
  %874 = vmatmul.mubr.f32.gmra.mrb[0].mxu0 %v146
  %v875 = vpop.f32.mrb[0].mxu0
  %v876 = vadd.f32 %v686, %v875
  %v877 = vpop.f32.mrb[0].mxu0
  %878 = vmatprep.mubr.f32.mxu0 %v155
  %879 = vmatmul.mubr.f32.gmra.mrb[0].mxu0 %v154
  %v880 = vpop.f32.mrb[0].mxu0
  %v881 = vadd.f32 %v691, %v880
  %v882 = vpop.f32.mrb[0].mxu0
  %883 = vmatprep.mubr.f32.mxu0 %v163
  %884 = vmatmul.mubr.f32.gmra.mrb[0].mxu0 %v162
  %v885 = vpop.f32.mrb[0].mxu0
  %v886 = vadd.f32 %v696, %v885
  %v887 = vpop.f32.mrb[0].mxu0
  %888 = vmatprep.mubr.f32.mxu0 %v171
  %889 = vmatmul.mubr.f32.gmra.mrb[0].mxu0 %v170
  %v890 = vpop.f32.mrb[0].mxu0
  %v891 = vadd.f32 %v701, %v890
  %v892 = vpop.f32.mrb[0].mxu0
  %893 = vmatprep.mubr.f32.mxu0 %v179
  %894 = vmatmul.mubr.f32.gmra.mrb[0].mxu0 %v178
  %v895 = vpop.f32.mrb[0].mxu0
  %v896 = vadd.f32 %v706, %v895
  %v897 = vpop.f32.mrb[0].mxu0
  %898 = vmatprep.mubr.f32.mxu0 %v187
  %899 = vmatmul.mubr.f32.gmra.mrb[0].mxu0 %v186
  %v900 = vpop.f32.mrb[0].mxu0
  %v901 = vadd.f32 %v711, %v900
  %v902 = vpop.f32.mrb[0].mxu0
  %903 = vmatprep.mubr.f32.mxu0 %v195
  %904 = vmatmul.mubr.f32.gmra.mrb[0].mxu0 %v194
  %v905 = vpop.f32.mrb[0].mxu0
  %v906 = vadd.f32 %v716, %v905
  %v907 = vpop.f32.mrb[0].mxu0
  %908 = vmatprep.mubr.f32.mxu0 %v203
  %909 = vmatmul.mubr.f32.gmra.mrb[0].mxu0 %v202
  %v910 = vpop.f32.mrb[0].mxu0
  %v911 = vadd.f32 %v721, %v910
  %v912 = vpop.f32.mrb[0].mxu0
  %913 = vmatprep.mubr.f32.mxu0 %v211
  %914 = vmatmul.mubr.f32.gmra.mrb[0].mxu0 %v210
  %v915 = vpop.f32.mrb[0].mxu0
  %v916 = vadd.f32 %v726, %v915
  %v917 = vpop.f32.mrb[0].mxu0
  %918 = vdwg.mxu0
  %919 = vmatprep.subr.mxu0 0.0
  %920 = vmatpush1.msra.mxu0 %v310
  %921 = vmatprep.subr.mxu0 0.0
  %922 = vmatpush1.msra.mxu0 %v311
  %923 = vmatprep.subr.mxu0 0.0
  %924 = vmatpush1.msra.mxu0 %v312
  %925 = vmatprep.subr.mxu0 0.0
  %926 = vmatpush1.msra.mxu0 %v313
  %927 = vmatprep.subr.mxu0 0.0
  %928 = vmatpush1.msra.mxu0 %v314
  %929 = vmatprep.subr.mxu0 0.0
  %930 = vmatpush1.msra.mxu0 %v315
  %931 = vmatprep.subr.mxu0 0.0
  %932 = vmatpush1.msra.mxu0 %v316
  %933 = vmatprep.subr.mxu0 0.0
  %934 = vmatpush1.msra.mxu0 %v317
  %935 = vmatprep.subr.mxu0 0.0
  %936 = vmatpush1.msra.mxu0 %v318
  %937 = vmatprep.subr.mxu0 0.0
  %938 = vmatpush1.msra.mxu0 %v319
  %939 = vmatprep.subr.mxu0 0.0
  %940 = vmatpush1.msra.mxu0 %v320
  %941 = vmatprep.subr.mxu0 0.0
  %942 = vmatpush1.msra.mxu0 %v321
  %943 = vmatprep.subr.mxu0 0.0
  %944 = vmatpush1.msra.mxu0 %v322
  %945 = vmatprep.subr.mxu0 0.0
  %946 = vmatpush1.msra.mxu0 %v323
  %947 = vmatprep.subr.mxu0 0.0
  %948 = vmatpush1.msra.mxu0 %v324
  %949 = vmatprep.subr.mxu0 0.0
  %950 = vmatpush1.msra.mxu0 %v325
  %951 = vmatprep.subr.mxu0 0.0
  %952 = vmatpush1.msra.mxu0 %v326
  %953 = vmatprep.subr.mxu0 0.0
  %954 = vmatpush1.msra.mxu0 %v327
  %955 = vmatprep.subr.mxu0 0.0
  %956 = vmatpush1.msra.mxu0 %v328
  %957 = vmatprep.subr.mxu0 0.0
  %958 = vmatpush1.msra.mxu0 %v329
  %959 = vmatprep.subr.mxu0 0.0
  %960 = vmatpush1.msra.mxu0 %v330
  %961 = vmatprep.subr.mxu0 0.0
  %962 = vmatpush1.msra.mxu0 %v331
  %963 = vmatprep.subr.mxu0 0.0
  %964 = vmatpush1.msra.mxu0 %v332
  %965 = vmatprep.subr.mxu0 0.0
  %966 = vmatpush1.msra.mxu0 %v333
  %967 = vmatprep.subr.mxu0 0.0
  %968 = vmatpush1.msra.mxu0 %v334
  %969 = vmatprep.subr.mxu0 0.0
  %970 = vmatpush1.msra.mxu0 %v335
  %971 = vmatprep.subr.mxu0 0.0
  %972 = vmatpush1.msra.mxu0 %v336
  %973 = vmatprep.subr.mxu0 0.0
  %974 = vmatpush1.msra.mxu0 %v337
  %975 = vmatprep.subr.mxu0 0.0
  %976 = vmatpush1.msra.mxu0 %v338
  %977 = vmatprep.subr.mxu0 0.0
  %978 = vmatpush1.msra.mxu0 %v339
  %979 = vmatprep.subr.mxu0 0.0
  %980 = vmatpush1.msra.mxu0 %v340
  %981 = vmatprep.subr.mxu0 0.0
  %982 = vmatpush1.msra.mxu0 %v341
  %983 = vmatprep.mubr.f32.mxu0 %v21
  %984 = vmatmul.mubr.f32.gmra.mrb[0].mxu0 %v20
  %v985 = vpop.f32.mrb[0].mxu0
  %v986 = vadd.f32 %v796, %v985
  %v987 = vpop.f32.mrb[0].mxu0
  %988 = vmatprep.mubr.f32.mxu0 %v29
  %989 = vmatmul.mubr.f32.gmra.mrb[0].mxu0 %v28
  %v990 = vpop.f32.mrb[0].mxu0
  %v991 = vadd.f32 %v801, %v990
  %v992 = vpop.f32.mrb[0].mxu0
  %993 = vmatprep.mubr.f32.mxu0 %v37
  %994 = vmatmul.mubr.f32.gmra.mrb[0].mxu0 %v36
  %v995 = vpop.f32.mrb[0].mxu0
  %v996 = vadd.f32 %v806, %v995
  %v997 = vpop.f32.mrb[0].mxu0
  %998 = vmatprep.mubr.f32.mxu0 %v45
  %999 = vmatmul.mubr.f32.gmra.mrb[0].mxu0 %v44
  %v1000 = vpop.f32.mrb[0].mxu0
  %v1001 = vadd.f32 %v811, %v1000
  %v1002 = vpop.f32.mrb[0].mxu0
  %1003 = vmatprep.mubr.f32.mxu0 %v53
  %1004 = vmatmul.mubr.f32.gmra.mrb[0].mxu0 %v52
  %v1005 = vpop.f32.mrb[0].mxu0
  %v1006 = vadd.f32 %v816, %v1005
  %v1007 = vpop.f32.mrb[0].mxu0
  %1008 = vmatprep.mubr.f32.mxu0 %v61
  %1009 = vmatmul.mubr.f32.gmra.mrb[0].mxu0 %v60
  %v1010 = vpop.f32.mrb[0].mxu0
  %v1011 = vadd.f32 %v821, %v1010
  %v1012 = vpop.f32.mrb[0].mxu0
  %1013 = vmatprep.mubr.f32.mxu0 %v69
  %1014 = vmatmul.mubr.f32.gmra.mrb[0].mxu0 %v68
  %v1015 = vpop.f32.mrb[0].mxu0
  %v1016 = vadd.f32 %v826, %v1015
  %v1017 = vpop.f32.mrb[0].mxu0
  %1018 = vmatprep.mubr.f32.mxu0 %v77
  %1019 = vmatmul.mubr.f32.gmra.mrb[0].mxu0 %v76
  %v1020 = vpop.f32.mrb[0].mxu0
  %v1021 = vadd.f32 %v831, %v1020
  %v1022 = vpop.f32.mrb[0].mxu0
  %1023 = vmatprep.mubr.f32.mxu0 %v85
  %1024 = vmatmul.mubr.f32.gmra.mrb[0].mxu0 %v84
  %v1025 = vpop.f32.mrb[0].mxu0
  %v1026 = vadd.f32 %v836, %v1025
  %v1027 = vpop.f32.mrb[0].mxu0
  %1028 = vmatprep.mubr.f32.mxu0 %v93
  %1029 = vmatmul.mubr.f32.gmra.mrb[0].mxu0 %v92
  %v1030 = vpop.f32.mrb[0].mxu0
  %v1031 = vadd.f32 %v841, %v1030
  %v1032 = vpop.f32.mrb[0].mxu0
  %1033 = vmatprep.mubr.f32.mxu0 %v101
  %1034 = vmatmul.mubr.f32.gmra.mrb[0].mxu0 %v100
  %v1035 = vpop.f32.mrb[0].mxu0
  %v1036 = vadd.f32 %v846, %v1035
  %v1037 = vpop.f32.mrb[0].mxu0
  %1038 = vmatprep.mubr.f32.mxu0 %v109
  %1039 = vmatmul.mubr.f32.gmra.mrb[0].mxu0 %v108
  %v1040 = vpop.f32.mrb[0].mxu0
  %v1041 = vadd.f32 %v851, %v1040
  %v1042 = vpop.f32.mrb[0].mxu0
  %1043 = vmatprep.mubr.f32.mxu0 %v117
  %1044 = vmatmul.mubr.f32.gmra.mrb[0].mxu0 %v116
  %v1045 = vpop.f32.mrb[0].mxu0
  %v1046 = vadd.f32 %v856, %v1045
  %v1047 = vpop.f32.mrb[0].mxu0
  %1048 = vmatprep.mubr.f32.mxu0 %v125
  %1049 = vmatmul.mubr.f32.gmra.mrb[0].mxu0 %v124
  %v1050 = vpop.f32.mrb[0].mxu0
  %v1051 = vadd.f32 %v861, %v1050
  %v1052 = vpop.f32.mrb[0].mxu0
  %1053 = vmatprep.mubr.f32.mxu0 %v133
  %1054 = vmatmul.mubr.f32.gmra.mrb[0].mxu0 %v132
  %v1055 = vpop.f32.mrb[0].mxu0
  %v1056 = vadd.f32 %v866, %v1055
  %v1057 = vpop.f32.mrb[0].mxu0
  %1058 = vmatprep.mubr.f32.mxu0 %v141
  %1059 = vmatmul.mubr.f32.gmra.mrb[0].mxu0 %v140
  %v1060 = vpop.f32.mrb[0].mxu0
  %v1061 = vadd.f32 %v871, %v1060
  %v1062 = vpop.f32.mrb[0].mxu0
  %1063 = vmatprep.mubr.f32.mxu0 %v149
  %1064 = vmatmul.mubr.f32.gmra.mrb[0].mxu0 %v148
  %v1065 = vpop.f32.mrb[0].mxu0
  %v1066 = vadd.f32 %v876, %v1065
  %v1067 = vpop.f32.mrb[0].mxu0
  %1068 = vmatprep.mubr.f32.mxu0 %v157
  %1069 = vmatmul.mubr.f32.gmra.mrb[0].mxu0 %v156
  %v1070 = vpop.f32.mrb[0].mxu0
  %v1071 = vadd.f32 %v881, %v1070
  %v1072 = vpop.f32.mrb[0].mxu0
  %1073 = vmatprep.mubr.f32.mxu0 %v165
  %1074 = vmatmul.mubr.f32.gmra.mrb[0].mxu0 %v164
  %v1075 = vpop.f32.mrb[0].mxu0
  %v1076 = vadd.f32 %v886, %v1075
  %v1077 = vpop.f32.mrb[0].mxu0
  %1078 = vmatprep.mubr.f32.mxu0 %v173
  %1079 = vmatmul.mubr.f32.gmra.mrb[0].mxu0 %v172
  %v1080 = vpop.f32.mrb[0].mxu0
  %v1081 = vadd.f32 %v891, %v1080
  %v1082 = vpop.f32.mrb[0].mxu0
  %1083 = vmatprep.mubr.f32.mxu0 %v181
  %1084 = vmatmul.mubr.f32.gmra.mrb[0].mxu0 %v180
  %v1085 = vpop.f32.mrb[0].mxu0
  %v1086 = vadd.f32 %v896, %v1085
  %v1087 = vpop.f32.mrb[0].mxu0
  %1088 = vmatprep.mubr.f32.mxu0 %v189
  %1089 = vmatmul.mubr.f32.gmra.mrb[0].mxu0 %v188
  %v1090 = vpop.f32.mrb[0].mxu0
  %v1091 = vadd.f32 %v901, %v1090
  %v1092 = vpop.f32.mrb[0].mxu0
  %1093 = vmatprep.mubr.f32.mxu0 %v197
  %1094 = vmatmul.mubr.f32.gmra.mrb[0].mxu0 %v196
  %v1095 = vpop.f32.mrb[0].mxu0
  %v1096 = vadd.f32 %v906, %v1095
  %v1097 = vpop.f32.mrb[0].mxu0
  %1098 = vmatprep.mubr.f32.mxu0 %v205
  %1099 = vmatmul.mubr.f32.gmra.mrb[0].mxu0 %v204
  %v1100 = vpop.f32.mrb[0].mxu0
  %v1101 = vadd.f32 %v911, %v1100
  %v1102 = vpop.f32.mrb[0].mxu0
  %1103 = vmatprep.mubr.f32.mxu0 %v213
  %1104 = vmatmul.mubr.f32.gmra.mrb[0].mxu0 %v212
  %v1105 = vpop.f32.mrb[0].mxu0
  %v1106 = vadd.f32 %v916, %v1105
  %v1107 = vpop.f32.mrb[0].mxu0
  %1108 = vdwg.mxu0
  %vm1109 = vcmp.gt.f32.partialorder %v986, 0.0
  %vm1110 = vcmp.gt.f32.partialorder %v991, 0.0
  %vm1111 = vcmp.gt.f32.partialorder %v996, 0.0
  %vm1112 = vcmp.gt.f32.partialorder %v1001, 0.0
  %vm1113 = vcmp.gt.f32.partialorder %v1006, 0.0
  %vm1114 = vcmp.gt.f32.partialorder %v1011, 0.0
  %vm1115 = vcmp.gt.f32.partialorder %v1016, 0.0
  %vm1116 = vcmp.gt.f32.partialorder %v1021, 0.0
  %vm1117 = vcmp.gt.f32.partialorder %v1026, 0.0
  %vm1118 = vcmp.gt.f32.partialorder %v1031, 0.0
  %vm1119 = vcmp.gt.f32.partialorder %v1036, 0.0
  %vm1120 = vcmp.gt.f32.partialorder %v1041, 0.0
  %vm1121 = vcmp.gt.f32.partialorder %v1046, 0.0
  %vm1122 = vcmp.gt.f32.partialorder %v1051, 0.0
  %vm1123 = vcmp.gt.f32.partialorder %v1056, 0.0
  %vm1124 = vcmp.gt.f32.partialorder %v1061, 0.0
  %vm1125 = vcmp.gt.f32.partialorder %v1066, 0.0
  %vm1126 = vcmp.gt.f32.partialorder %v1071, 0.0
  %vm1127 = vcmp.gt.f32.partialorder %v1076, 0.0
  %vm1128 = vcmp.gt.f32.partialorder %v1081, 0.0
  %vm1129 = vcmp.gt.f32.partialorder %v1086, 0.0
  %vm1130 = vcmp.gt.f32.partialorder %v1091, 0.0
  %vm1131 = vcmp.gt.f32.partialorder %v1096, 0.0
  %vm1132 = vcmp.gt.f32.partialorder %v1101, 0.0
  %vm1133 = vcmp.gt.f32.partialorder %v1106, 0.0
  %v1134 = vmul.f32 %v986, 1.442695
  %v1135 = vpow.pop %v1134
  %v1136 = vmul.f32 %v991, 1.442695
  %v1137 = vpow.pop %v1136
  %v1138 = vmul.f32 %v996, 1.442695
  %v1139 = vpow.pop %v1138
  %v1140 = vmul.f32 %v1001, 1.442695
  %v1141 = vpow.pop %v1140
  %v1142 = vmul.f32 %v1006, 1.442695
  %v1143 = vpow.pop %v1142
  %v1144 = vmul.f32 %v1011, 1.442695
  %v1145 = vpow.pop %v1144
  %v1146 = vmul.f32 %v1016, 1.442695
  %v1147 = vpow.pop %v1146
  %v1148 = vmul.f32 %v1021, 1.442695
  %v1149 = vpow.pop %v1148
  %v1150 = vmul.f32 %v1026, 1.442695
  %v1151 = vpow.pop %v1150
  %v1152 = vmul.f32 %v1031, 1.442695
  %v1153 = vpow.pop %v1152
  %v1154 = vmul.f32 %v1036, 1.442695
  %v1155 = vpow.pop %v1154
  %v1156 = vmul.f32 %v1041, 1.442695
  %v1157 = vpow.pop %v1156
  %v1158 = vmul.f32 %v1046, 1.442695
  %v1159 = vpow.pop %v1158
  %v1160 = vmul.f32 %v1051, 1.442695
  %v1161 = vpow.pop %v1160
  %v1162 = vmul.f32 %v1056, 1.442695
  %v1163 = vpow.pop %v1162
  %v1164 = vmul.f32 %v1061, 1.442695
  %v1165 = vpow.pop %v1164
  %v1166 = vmul.f32 %v1066, 1.442695
  %v1167 = vpow.pop %v1166
  %v1168 = vmul.f32 %v1071, 1.442695
  %v1169 = vpow.pop %v1168
  %v1170 = vmul.f32 %v1076, 1.442695
  %v1171 = vpow.pop %v1170
  %v1172 = vmul.f32 %v1081, 1.442695
  %v1173 = vpow.pop %v1172
  %v1174 = vmul.f32 %v1086, 1.442695
  %v1175 = vpow.pop %v1174
  %v1176 = vmul.f32 %v1091, 1.442695
  %v1177 = vpow.pop %v1176
  %v1178 = vmul.f32 %v1096, 1.442695
  %v1179 = vpow.pop %v1178
  %v1180 = vmul.f32 %v1101, 1.442695
  %v1181 = vpow.pop %v1180
  %v1182 = vmul.f32 %v1106, 1.442695
  %v1183 = vpow.pop %v1182
  %v1184 = vsub.f32 %v1135, 1.0
  %v1185 = vsub.f32 %v1137, 1.0
  %v1186 = vsub.f32 %v1139, 1.0
  %v1187 = vsub.f32 %v1141, 1.0
  %v1188 = vsub.f32 %v1143, 1.0
  %v1189 = vsub.f32 %v1145, 1.0
  %v1190 = vsub.f32 %v1147, 1.0
  %v1191 = vsub.f32 %v1149, 1.0
  %v1192 = vsub.f32 %v1151, 1.0
  %v1193 = vsub.f32 %v1153, 1.0
  %v1194 = vsub.f32 %v1155, 1.0
  %v1195 = vsub.f32 %v1157, 1.0
  %v1196 = vsub.f32 %v1159, 1.0
  %v1197 = vsub.f32 %v1161, 1.0
  %v1198 = vsub.f32 %v1163, 1.0
  %v1199 = vsub.f32 %v1165, 1.0
  %v1200 = vsub.f32 %v1167, 1.0
  %v1201 = vsub.f32 %v1169, 1.0
  %v1202 = vsub.f32 %v1171, 1.0
  %v1203 = vsub.f32 %v1173, 1.0
  %v1204 = vsub.f32 %v1175, 1.0
  %v1205 = vsub.f32 %v1177, 1.0
  %v1206 = vsub.f32 %v1179, 1.0
  %v1207 = vsub.f32 %v1181, 1.0
  %v1208 = vsub.f32 %v1183, 1.0
  %v1209 = vsel %vm1109, %v986, %v1184
  %v1210 = vsel %vm1110, %v991, %v1185
  %v1211 = vsel %vm1111, %v996, %v1186
  %v1212 = vsel %vm1112, %v1001, %v1187
  %v1213 = vsel %vm1113, %v1006, %v1188
  %v1214 = vsel %vm1114, %v1011, %v1189
  %v1215 = vsel %vm1115, %v1016, %v1190
  %v1216 = vsel %vm1116, %v1021, %v1191
  %v1217 = vsel %vm1117, %v1026, %v1192
  %v1218 = vsel %vm1118, %v1031, %v1193
  %v1219 = vsel %vm1119, %v1036, %v1194
  %v1220 = vsel %vm1120, %v1041, %v1195
  %v1221 = vsel %vm1121, %v1046, %v1196
  %v1222 = vsel %vm1122, %v1051, %v1197
  %v1223 = vsel %vm1123, %v1056, %v1198
  %v1224 = vsel %vm1124, %v1061, %v1199
  %v1225 = vsel %vm1125, %v1066, %v1200
  %v1226 = vsel %vm1126, %v1071, %v1201
  %v1227 = vsel %vm1127, %v1076, %v1202
  %v1228 = vsel %vm1128, %v1081, %v1203
  %v1229 = vsel %vm1129, %v1086, %v1204
  %v1230 = vsel %vm1130, %v1091, %v1205
  %v1231 = vsel %vm1131, %v1096, %v1206
  %v1232 = vsel %vm1132, %v1101, %v1207
  %v1233 = vsel %vm1133, %v1106, %v1208
  %vm1234 = vcmask 261120
  %1235 = vst.msk [vmem:[%s3] sm:$0xff] %vm1234, %v1209
  %1236 = vst.msk [vmem:[%s3 + $0x8] sm:$0xff] %vm1234, %v1210
  %1237 = vst.msk [vmem:[%s3 + $0x10] sm:$0xff] %vm1234, %v1211
  %1238 = vst.msk [vmem:[%s3 + $0x18] sm:$0xff] %vm1234, %v1212
  %1239 = vst.msk [vmem:[%s3 + $0x20] sm:$0xff] %vm1234, %v1213
  %1240 = vst.msk [vmem:[%s3 + $0x28] sm:$0xff] %vm1234, %v1214
  %1241 = vst.msk [vmem:[%s3 + $0x30] sm:$0xff] %vm1234, %v1215
  %1242 = vst.msk [vmem:[%s3 + $0x38] sm:$0xff] %vm1234, %v1216
  %1243 = vst.msk [vmem:[%s3 + $0x40] sm:$0xff] %vm1234, %v1217
  %1244 = vst.msk [vmem:[%s3 + $0x48] sm:$0xff] %vm1234, %v1218
  %1245 = vst.msk [vmem:[%s3 + $0x50] sm:$0xff] %vm1234, %v1219
  %1246 = vst.msk [vmem:[%s3 + $0x58] sm:$0xff] %vm1234, %v1220
  %1247 = vst.msk [vmem:[%s3 + $0x60] sm:$0xff] %vm1234, %v1221
  %1248 = vst.msk [vmem:[%s3 + $0x68] sm:$0xff] %vm1234, %v1222
  %1249 = vst.msk [vmem:[%s3 + $0x70] sm:$0xff] %vm1234, %v1223
  %1250 = vst.msk [vmem:[%s3 + $0x78] sm:$0xff] %vm1234, %v1224
  %1251 = vst.msk [vmem:[%s3 + $0x80] sm:$0xff] %vm1234, %v1225
  %1252 = vst.msk [vmem:[%s3 + $0x88] sm:$0xff] %vm1234, %v1226
  %1253 = vst.msk [vmem:[%s3 + $0x90] sm:$0xff] %vm1234, %v1227
  %1254 = vst.msk [vmem:[%s3 + $0x98] sm:$0xff] %vm1234, %v1228
  %1255 = vst.msk [vmem:[%s3 + $0xa0] sm:$0xff] %vm1234, %v1229
  %1256 = vst.msk [vmem:[%s3 + $0xa8] sm:$0xff] %vm1234, %v1230
  %1257 = vst.msk [vmem:[%s3 + $0xb0] sm:$0xff] %vm1234, %v1231
  %1258 = vst.msk [vmem:[%s3 + $0xb8] sm:$0xff] %vm1234, %v1232
  %1259 = vst.msk [vmem:[%s3 + $0xc0] sm:$0xff] %vm1234, %v1233
  // Predicated region
  $region14: #{dae_forward.13} parent=0 // pred_check
    _
  $region15: #{dae_forward.13} parent=0 // pred_check_branch
    %1261 = sbr.rel (0) target = $region17
  $region16: #{dae_forward.13} parent=0 // pred_region
    _
  $region17: #{dae_forward.13} parent=0 // pred_fallthru
    _
  // Predicated region
  $region18: #{dae_forward.13} parent=0 // pred_check
    _
  $region19: #{dae_forward.13} parent=0 // pred_check_branch
    %1263 = sbr.rel (0) target = $region21
  $region20: #{dae_forward.13} parent=0 // pred_region
    _
  $region21: #{dae_forward.13} parent=0 // pred_fallthru
    _

// kernel: dae_forward.14
$region0: #{dae_forward.14}
  #allocation0 [shape = 'u32[]', space=smem, size = 0x4, offset = 0x4, fixed_abs, tag = 'smem constant byte address 0x4 - core index']
  #allocation1 [shape = 'u32[144,128]{1,0:T(1,128)}', space=vmem, size = 0x12000, scoped, tag = 'internal scratch']
  %s0 = inlined_call_operand.vmem [shape: f32[800,512], index: 0, kind: input, shape index: {}]
  %s1 = inlined_call_operand.vmem [shape: f32[512,16], index: 1, kind: input, shape index: {}]
  %s2 = inlined_call_operand.vmem [shape: f32[1,16], index: 2, kind: input, shape index: {}]
  %s3 = inlined_call_operand.vmem [shape: f32[800,16], index: 3, kind: output, shape index: {}]
  %s4 = sld [smem:[#allocation0]]
  $region22: #{dae_forward.14} parent=0
    _
  %s6 = ssub.s32 1, %s4
  %s7 = scalar_select 0, %s6, %s4
  // Predicated region
  $region2: #{dae_forward.14} parent=0 // pred_check
    _
  $region3: #{dae_forward.14} parent=0 // pred_check_branch
    %9 = sbr.rel (0) target = $region5
  $region4: #{dae_forward.14} parent=0 // pred_region
    _
  $region5: #{dae_forward.14} parent=0 // pred_fallthru
    _
  // Predicated region
  $region6: #{dae_forward.14} parent=0 // pred_check
    _
  $region7: #{dae_forward.14} parent=0 // pred_check_branch
    %11 = sbr.rel (0) target = $region9
  $region8: #{dae_forward.14} parent=0 // pred_region
    _
  $region9: #{dae_forward.14} parent=0 // pred_fallthru
    _
  // Predicated region
  $region10: #{dae_forward.14} parent=0 // pred_check
    _
  $region11: #{dae_forward.14} parent=0 // pred_check_branch
    %13 = sbr.rel (0) target = $region13
  $region12: #{dae_forward.14} parent=0 // pred_region
    _
  $region13: #{dae_forward.14} parent=0 // pred_fallthru
    _
  %v14 = vld [vmem:[%s0] sm:$0xff]
  %v15 = vld [vmem:[%s0 + $0x8] sm:$0xff]
  %v16 = vld [vmem:[%s0 + $0x10] sm:$0xff]
  %v17 = vld [vmem:[%s0 + $0x18] sm:$0xff]
  %v18 = vld [vmem:[%s0 + $0x20] sm:$0xff]
  %v19 = vld [vmem:[%s0 + $0x28] sm:$0xff]
  %v20 = vld [vmem:[%s0 + $0x30] sm:$0xff]
  %v21 = vld [vmem:[%s0 + $0x38] sm:$0xff]
  %v22 = vld [vmem:[%s0 + $0x40] sm:$0xff]
  %v23 = vld [vmem:[%s0 + $0x48] sm:$0xff]
  %v24 = vld [vmem:[%s0 + $0x50] sm:$0xff]
  %v25 = vld [vmem:[%s0 + $0x58] sm:$0xff]
  %v26 = vld [vmem:[%s0 + $0x60] sm:$0xff]
  %v27 = vld [vmem:[%s0 + $0x68] sm:$0xff]
  %v28 = vld [vmem:[%s0 + $0x70] sm:$0xff]
  %v29 = vld [vmem:[%s0 + $0x78] sm:$0xff]
  %v30 = vld [vmem:[%s0 + $0x80] sm:$0xff]
  %v31 = vld [vmem:[%s0 + $0x88] sm:$0xff]
  %v32 = vld [vmem:[%s0 + $0x90] sm:$0xff]
  %v33 = vld [vmem:[%s0 + $0x98] sm:$0xff]
  %v34 = vld [vmem:[%s0 + $0xa0] sm:$0xff]
  %v35 = vld [vmem:[%s0 + $0xa8] sm:$0xff]
  %v36 = vld [vmem:[%s0 + $0xb0] sm:$0xff]
  %v37 = vld [vmem:[%s0 + $0xb8] sm:$0xff]
  %v38 = vld [vmem:[%s0 + $0xc0] sm:$0xff]
  %v39 = vld [vmem:[%s0 + $0xc8] sm:$0xff]
  %v40 = vld [vmem:[%s0 + $0xd0] sm:$0xff]
  %v41 = vld [vmem:[%s0 + $0xd8] sm:$0xff]
  %v42 = vld [vmem:[%s0 + $0xe0] sm:$0xff]
  %v43 = vld [vmem:[%s0 + $0xe8] sm:$0xff]
  %v44 = vld [vmem:[%s0 + $0xf0] sm:$0xff]
  %v45 = vld [vmem:[%s0 + $0xf8] sm:$0xff]
  %v46 = vld [vmem:[%s0 + $0x100] sm:$0xff]
  %v47 = vld [vmem:[%s0 + $0x108] sm:$0xff]
  %v48 = vld [vmem:[%s0 + $0x110] sm:$0xff]
  %v49 = vld [vmem:[%s0 + $0x118] sm:$0xff]
  %v50 = vld [vmem:[%s0 + $0x120] sm:$0xff]
  %v51 = vld [vmem:[%s0 + $0x128] sm:$0xff]
  %v52 = vld [vmem:[%s0 + $0x130] sm:$0xff]
  %v53 = vld [vmem:[%s0 + $0x138] sm:$0xff]
  %v54 = vld [vmem:[%s0 + $0x140] sm:$0xff]
  %v55 = vld [vmem:[%s0 + $0x148] sm:$0xff]
  %v56 = vld [vmem:[%s0 + $0x150] sm:$0xff]
  %v57 = vld [vmem:[%s0 + $0x158] sm:$0xff]
  %v58 = vld [vmem:[%s0 + $0x160] sm:$0xff]
  %v59 = vld [vmem:[%s0 + $0x168] sm:$0xff]
  %v60 = vld [vmem:[%s0 + $0x170] sm:$0xff]
  %v61 = vld [vmem:[%s0 + $0x178] sm:$0xff]
  %v62 = vld [vmem:[%s0 + $0x180] sm:$0xff]
  %v63 = vld [vmem:[%s0 + $0x188] sm:$0xff]
  %v64 = vld [vmem:[%s0 + $0x190] sm:$0xff]
  %v65 = vld [vmem:[%s0 + $0x198] sm:$0xff]
  %v66 = vld [vmem:[%s0 + $0x1a0] sm:$0xff]
  %v67 = vld [vmem:[%s0 + $0x1a8] sm:$0xff]
  %v68 = vld [vmem:[%s0 + $0x1b0] sm:$0xff]
  %v69 = vld [vmem:[%s0 + $0x1b8] sm:$0xff]
  %v70 = vld [vmem:[%s0 + $0x1c0] sm:$0xff]
  %v71 = vld [vmem:[%s0 + $0x1c8] sm:$0xff]
  %v72 = vld [vmem:[%s0 + $0x1d0] sm:$0xff]
  %v73 = vld [vmem:[%s0 + $0x1d8] sm:$0xff]
  %v74 = vld [vmem:[%s0 + $0x1e0] sm:$0xff]
  %v75 = vld [vmem:[%s0 + $0x1e8] sm:$0xff]
  %v76 = vld [vmem:[%s0 + $0x1f0] sm:$0xff]
  %v77 = vld [vmem:[%s0 + $0x1f8] sm:$0xff]
  %v78 = vld [vmem:[%s0 + $0x200] sm:$0xff]
  %v79 = vld [vmem:[%s0 + $0x208] sm:$0xff]
  %v80 = vld [vmem:[%s0 + $0x210] sm:$0xff]
  %v81 = vld [vmem:[%s0 + $0x218] sm:$0xff]
  %v82 = vld [vmem:[%s0 + $0x220] sm:$0xff]
  %v83 = vld [vmem:[%s0 + $0x228] sm:$0xff]
  %v84 = vld [vmem:[%s0 + $0x230] sm:$0xff]
  %v85 = vld [vmem:[%s0 + $0x238] sm:$0xff]
  %v86 = vld [vmem:[%s0 + $0x240] sm:$0xff]
  %v87 = vld [vmem:[%s0 + $0x248] sm:$0xff]
  %v88 = vld [vmem:[%s0 + $0x250] sm:$0xff]
  %v89 = vld [vmem:[%s0 + $0x258] sm:$0xff]
  %v90 = vld [vmem:[%s0 + $0x260] sm:$0xff]
  %v91 = vld [vmem:[%s0 + $0x268] sm:$0xff]
  %v92 = vld [vmem:[%s0 + $0x270] sm:$0xff]
  %v93 = vld [vmem:[%s0 + $0x278] sm:$0xff]
  %v94 = vld [vmem:[%s0 + $0x280] sm:$0xff]
  %v95 = vld [vmem:[%s0 + $0x288] sm:$0xff]
  %v96 = vld [vmem:[%s0 + $0x290] sm:$0xff]
  %v97 = vld [vmem:[%s0 + $0x298] sm:$0xff]
  %v98 = vld [vmem:[%s0 + $0x2a0] sm:$0xff]
  %v99 = vld [vmem:[%s0 + $0x2a8] sm:$0xff]
  %v100 = vld [vmem:[%s0 + $0x2b0] sm:$0xff]
  %v101 = vld [vmem:[%s0 + $0x2b8] sm:$0xff]
  %v102 = vld [vmem:[%s0 + $0x2c0] sm:$0xff]
  %v103 = vld [vmem:[%s0 + $0x2c8] sm:$0xff]
  %v104 = vld [vmem:[%s0 + $0x2d0] sm:$0xff]
  %v105 = vld [vmem:[%s0 + $0x2d8] sm:$0xff]
  %v106 = vld [vmem:[%s0 + $0x2e0] sm:$0xff]
  %v107 = vld [vmem:[%s0 + $0x2e8] sm:$0xff]
  %v108 = vld [vmem:[%s0 + $0x2f0] sm:$0xff]
  %v109 = vld [vmem:[%s0 + $0x2f8] sm:$0xff]
  %v110 = vld [vmem:[%s0 + $0x300] sm:$0xff]
  %v111 = vld [vmem:[%s0 + $0x308] sm:$0xff]
  %v112 = vld [vmem:[%s0 + $0x310] sm:$0xff]
  %v113 = vld [vmem:[%s0 + $0x318] sm:$0xff]
  %v114 = vld [vmem:[%s0 + $0x320] sm:$0xff]
  %v115 = vld [vmem:[%s0 + $0x328] sm:$0xff]
  %v116 = vld [vmem:[%s0 + $0x330] sm:$0xff]
  %v117 = vld [vmem:[%s0 + $0x338] sm:$0xff]
  %v118 = vld [vmem:[%s0 + $0x340] sm:$0xff]
  %v119 = vld [vmem:[%s0 + $0x348] sm:$0xff]
  %v120 = vld [vmem:[%s0 + $0x350] sm:$0xff]
  %v121 = vld [vmem:[%s0 + $0x358] sm:$0xff]
  %v122 = vld [vmem:[%s0 + $0x360] sm:$0xff]
  %v123 = vld [vmem:[%s0 + $0x368] sm:$0xff]
  %v124 = vld [vmem:[%s0 + $0x370] sm:$0xff]
  %v125 = vld [vmem:[%s0 + $0x378] sm:$0xff]
  %v126 = vld [vmem:[%s0 + $0x380] sm:$0xff]
  %v127 = vld [vmem:[%s0 + $0x388] sm:$0xff]
  %v128 = vld [vmem:[%s0 + $0x390] sm:$0xff]
  %v129 = vld [vmem:[%s0 + $0x398] sm:$0xff]
  %v130 = vld [vmem:[%s0 + $0x3a0] sm:$0xff]
  %v131 = vld [vmem:[%s0 + $0x3a8] sm:$0xff]
  %v132 = vld [vmem:[%s0 + $0x3b0] sm:$0xff]
  %v133 = vld [vmem:[%s0 + $0x3b8] sm:$0xff]
  %v134 = vld [vmem:[%s0 + $0x3c0] sm:$0xff]
  %v135 = vld [vmem:[%s0 + $0x3c8] sm:$0xff]
  %v136 = vld [vmem:[%s0 + $0x3d0] sm:$0xff]
  %v137 = vld [vmem:[%s0 + $0x3d8] sm:$0xff]
  %v138 = vld [vmem:[%s0 + $0x3e0] sm:$0xff]
  %v139 = vld [vmem:[%s0 + $0x3e8] sm:$0xff]
  %v140 = vld [vmem:[%s0 + $0x3f0] sm:$0xff]
  %v141 = vld [vmem:[%s0 + $0x3f8] sm:$0xff]
  %v142 = vld [vmem:[%s0 + $0x400] sm:$0xff]
  %v143 = vld [vmem:[%s0 + $0x408] sm:$0xff]
  %v144 = vld [vmem:[%s0 + $0x410] sm:$0xff]
  %v145 = vld [vmem:[%s0 + $0x418] sm:$0xff]
  %v146 = vld [vmem:[%s0 + $0x420] sm:$0xff]
  %v147 = vld [vmem:[%s0 + $0x428] sm:$0xff]
  %v148 = vld [vmem:[%s0 + $0x430] sm:$0xff]
  %v149 = vld [vmem:[%s0 + $0x438] sm:$0xff]
  %v150 = vld [vmem:[%s0 + $0x440] sm:$0xff]
  %v151 = vld [vmem:[%s0 + $0x448] sm:$0xff]
  %v152 = vld [vmem:[%s0 + $0x450] sm:$0xff]
  %v153 = vld [vmem:[%s0 + $0x458] sm:$0xff]
  %v154 = vld [vmem:[%s0 + $0x460] sm:$0xff]
  %v155 = vld [vmem:[%s0 + $0x468] sm:$0xff]
  %v156 = vld [vmem:[%s0 + $0x470] sm:$0xff]
  %v157 = vld [vmem:[%s0 + $0x478] sm:$0xff]
  %v158 = vld [vmem:[%s0 + $0x480] sm:$0xff]
  %v159 = vld [vmem:[%s0 + $0x488] sm:$0xff]
  %v160 = vld [vmem:[%s0 + $0x490] sm:$0xff]
  %v161 = vld [vmem:[%s0 + $0x498] sm:$0xff]
  %v162 = vld [vmem:[%s0 + $0x4a0] sm:$0xff]
  %v163 = vld [vmem:[%s0 + $0x4a8] sm:$0xff]
  %v164 = vld [vmem:[%s0 + $0x4b0] sm:$0xff]
  %v165 = vld [vmem:[%s0 + $0x4b8] sm:$0xff]
  %v166 = vld [vmem:[%s0 + $0x4c0] sm:$0xff]
  %v167 = vld [vmem:[%s0 + $0x4c8] sm:$0xff]
  %v168 = vld [vmem:[%s0 + $0x4d0] sm:$0xff]
  %v169 = vld [vmem:[%s0 + $0x4d8] sm:$0xff]
  %v170 = vld [vmem:[%s0 + $0x4e0] sm:$0xff]
  %v171 = vld [vmem:[%s0 + $0x4e8] sm:$0xff]
  %v172 = vld [vmem:[%s0 + $0x4f0] sm:$0xff]
  %v173 = vld [vmem:[%s0 + $0x4f8] sm:$0xff]
  %v174 = vld [vmem:[%s0 + $0x500] sm:$0xff]
  %v175 = vld [vmem:[%s0 + $0x508] sm:$0xff]
  %v176 = vld [vmem:[%s0 + $0x510] sm:$0xff]
  %v177 = vld [vmem:[%s0 + $0x518] sm:$0xff]
  %v178 = vld [vmem:[%s0 + $0x520] sm:$0xff]
  %v179 = vld [vmem:[%s0 + $0x528] sm:$0xff]
  %v180 = vld [vmem:[%s0 + $0x530] sm:$0xff]
  %v181 = vld [vmem:[%s0 + $0x538] sm:$0xff]
  %v182 = vld [vmem:[%s0 + $0x540] sm:$0xff]
  %v183 = vld [vmem:[%s0 + $0x548] sm:$0xff]
  %v184 = vld [vmem:[%s0 + $0x550] sm:$0xff]
  %v185 = vld [vmem:[%s0 + $0x558] sm:$0xff]
  %v186 = vld [vmem:[%s0 + $0x560] sm:$0xff]
  %v187 = vld [vmem:[%s0 + $0x568] sm:$0xff]
  %v188 = vld [vmem:[%s0 + $0x570] sm:$0xff]
  %v189 = vld [vmem:[%s0 + $0x578] sm:$0xff]
  %v190 = vld [vmem:[%s0 + $0x580] sm:$0xff]
  %v191 = vld [vmem:[%s0 + $0x588] sm:$0xff]
  %v192 = vld [vmem:[%s0 + $0x590] sm:$0xff]
  %v193 = vld [vmem:[%s0 + $0x598] sm:$0xff]
  %v194 = vld [vmem:[%s0 + $0x5a0] sm:$0xff]
  %v195 = vld [vmem:[%s0 + $0x5a8] sm:$0xff]
  %v196 = vld [vmem:[%s0 + $0x5b0] sm:$0xff]
  %v197 = vld [vmem:[%s0 + $0x5b8] sm:$0xff]
  %v198 = vld [vmem:[%s0 + $0x5c0] sm:$0xff]
  %v199 = vld [vmem:[%s0 + $0x5c8] sm:$0xff]
  %v200 = vld [vmem:[%s0 + $0x5d0] sm:$0xff]
  %v201 = vld [vmem:[%s0 + $0x5d8] sm:$0xff]
  %v202 = vld [vmem:[%s0 + $0x5e0] sm:$0xff]
  %v203 = vld [vmem:[%s0 + $0x5e8] sm:$0xff]
  %v204 = vld [vmem:[%s0 + $0x5f0] sm:$0xff]
  %v205 = vld [vmem:[%s0 + $0x5f8] sm:$0xff]
  %v206 = vld [vmem:[%s0 + $0x600] sm:$0xff]
  %v207 = vld [vmem:[%s0 + $0x608] sm:$0xff]
  %v208 = vld [vmem:[%s0 + $0x610] sm:$0xff]
  %v209 = vld [vmem:[%s0 + $0x618] sm:$0xff]
  %v210 = vld [vmem:[%s0 + $0x620] sm:$0xff]
  %v211 = vld [vmem:[%s0 + $0x628] sm:$0xff]
  %v212 = vld [vmem:[%s0 + $0x630] sm:$0xff]
  %v213 = vld [vmem:[%s0 + $0x638] sm:$0xff]
  %v214 = vld [vmem:[%s0 + $0x640] sm:$0xff]
  %v215 = vld [vmem:[%s0 + $0x648] sm:$0xff]
  %v216 = vld [vmem:[%s0 + $0x650] sm:$0xff]
  %v217 = vld [vmem:[%s0 + $0x658] sm:$0xff]
  %v218 = vld [vmem:[%s0 + $0x660] sm:$0xff]
  %v219 = vld [vmem:[%s0 + $0x668] sm:$0xff]
  %v220 = vld [vmem:[%s0 + $0x670] sm:$0xff]
  %v221 = vld [vmem:[%s0 + $0x678] sm:$0xff]
  %v222 = vld [vmem:[%s0 + $0x680] sm:$0xff]
  %v223 = vld [vmem:[%s0 + $0x688] sm:$0xff]
  %v224 = vld [vmem:[%s0 + $0x690] sm:$0xff]
  %v225 = vld [vmem:[%s0 + $0x698] sm:$0xff]
  %v226 = vld [vmem:[%s0 + $0x6a0] sm:$0xff]
  %v227 = vld [vmem:[%s0 + $0x6a8] sm:$0xff]
  %v228 = vld [vmem:[%s0 + $0x6b0] sm:$0xff]
  %v229 = vld [vmem:[%s0 + $0x6b8] sm:$0xff]
  %v230 = vld [vmem:[%s0 + $0x6c0] sm:$0xff]
  %v231 = vld [vmem:[%s0 + $0x6c8] sm:$0xff]
  %v232 = vld [vmem:[%s0 + $0x6d0] sm:$0xff]
  %v233 = vld [vmem:[%s0 + $0x6d8] sm:$0xff]
  %v234 = vld [vmem:[%s0 + $0x6e0] sm:$0xff]
  %v235 = vld [vmem:[%s0 + $0x6e8] sm:$0xff]
  %v236 = vld [vmem:[%s0 + $0x6f0] sm:$0xff]
  %v237 = vld [vmem:[%s0 + $0x6f8] sm:$0xff]
  %v238 = vld [vmem:[%s0 + $0x700] sm:$0xff]
  %v239 = vld [vmem:[%s0 + $0x708] sm:$0xff]
  %v240 = vld [vmem:[%s0 + $0x710] sm:$0xff]
  %v241 = vld [vmem:[%s0 + $0x718] sm:$0xff]
  %v242 = vld [vmem:[%s0 + $0x720] sm:$0xff]
  %v243 = vld [vmem:[%s0 + $0x728] sm:$0xff]
  %v244 = vld [vmem:[%s0 + $0x730] sm:$0xff]
  %v245 = vld [vmem:[%s0 + $0x738] sm:$0xff]
  %v246 = vld [vmem:[%s0 + $0x740] sm:$0xff]
  %v247 = vld [vmem:[%s0 + $0x748] sm:$0xff]
  %v248 = vld [vmem:[%s0 + $0x750] sm:$0xff]
  %v249 = vld [vmem:[%s0 + $0x758] sm:$0xff]
  %v250 = vld [vmem:[%s0 + $0x760] sm:$0xff]
  %v251 = vld [vmem:[%s0 + $0x768] sm:$0xff]
  %v252 = vld [vmem:[%s0 + $0x770] sm:$0xff]
  %v253 = vld [vmem:[%s0 + $0x778] sm:$0xff]
  %v254 = vld [vmem:[%s0 + $0x780] sm:$0xff]
  %v255 = vld [vmem:[%s0 + $0x788] sm:$0xff]
  %v256 = vld [vmem:[%s0 + $0x790] sm:$0xff]
  %v257 = vld [vmem:[%s0 + $0x798] sm:$0xff]
  %v258 = vld [vmem:[%s0 + $0x7a0] sm:$0xff]
  %v259 = vld [vmem:[%s0 + $0x7a8] sm:$0xff]
  %v260 = vld [vmem:[%s0 + $0x7b0] sm:$0xff]
  %v261 = vld [vmem:[%s0 + $0x7b8] sm:$0xff]
  %v262 = vld [vmem:[%s0 + $0x7c0] sm:$0xff]
  %v263 = vld [vmem:[%s0 + $0x7c8] sm:$0xff]
  %v264 = vld [vmem:[%s0 + $0x7d0] sm:$0xff]
  %v265 = vld [vmem:[%s0 + $0x7d8] sm:$0xff]
  %v266 = vld [vmem:[%s0 + $0x7e0] sm:$0xff]
  %v267 = vld [vmem:[%s0 + $0x7e8] sm:$0xff]
  %v268 = vld [vmem:[%s0 + $0x7f0] sm:$0xff]
  %v269 = vld [vmem:[%s0 + $0x7f8] sm:$0xff]
  %v270 = vld [vmem:[%s0 + $0x800] sm:$0xff]
  %v271 = vld [vmem:[%s0 + $0x808] sm:$0xff]
  %v272 = vld [vmem:[%s0 + $0x810] sm:$0xff]
  %v273 = vld [vmem:[%s0 + $0x818] sm:$0xff]
  %v274 = vld [vmem:[%s0 + $0x820] sm:$0xff]
  %v275 = vld [vmem:[%s0 + $0x828] sm:$0xff]
  %v276 = vld [vmem:[%s0 + $0x830] sm:$0xff]
  %v277 = vld [vmem:[%s0 + $0x838] sm:$0xff]
  %v278 = vld [vmem:[%s0 + $0x840] sm:$0xff]
  %v279 = vld [vmem:[%s0 + $0x848] sm:$0xff]
  %v280 = vld [vmem:[%s0 + $0x850] sm:$0xff]
  %v281 = vld [vmem:[%s0 + $0x858] sm:$0xff]
  %v282 = vld [vmem:[%s0 + $0x860] sm:$0xff]
  %v283 = vld [vmem:[%s0 + $0x868] sm:$0xff]
  %v284 = vld [vmem:[%s0 + $0x870] sm:$0xff]
  %v285 = vld [vmem:[%s0 + $0x878] sm:$0xff]
  %v286 = vld [vmem:[%s0 + $0x880] sm:$0xff]
  %v287 = vld [vmem:[%s0 + $0x888] sm:$0xff]
  %v288 = vld [vmem:[%s0 + $0x890] sm:$0xff]
  %v289 = vld [vmem:[%s0 + $0x898] sm:$0xff]
  %v290 = vld [vmem:[%s0 + $0x8a0] sm:$0xff]
  %v291 = vld [vmem:[%s0 + $0x8a8] sm:$0xff]
  %v292 = vld [vmem:[%s0 + $0x8b0] sm:$0xff]
  %v293 = vld [vmem:[%s0 + $0x8b8] sm:$0xff]
  %v294 = vld [vmem:[%s0 + $0x8c0] sm:$0xff]
  %v295 = vld [vmem:[%s0 + $0x8c8] sm:$0xff]
  %v296 = vld [vmem:[%s0 + $0x8d0] sm:$0xff]
  %v297 = vld [vmem:[%s0 + $0x8d8] sm:$0xff]
  %v298 = vld [vmem:[%s0 + $0x8e0] sm:$0xff]
  %v299 = vld [vmem:[%s0 + $0x8e8] sm:$0xff]
  %v300 = vld [vmem:[%s0 + $0x8f0] sm:$0xff]
  %v301 = vld [vmem:[%s0 + $0x8f8] sm:$0xff]
  %v302 = vld [vmem:[%s0 + $0x900] sm:$0xff]
  %v303 = vld [vmem:[%s0 + $0x908] sm:$0xff]
  %v304 = vld [vmem:[%s0 + $0x910] sm:$0xff]
  %v305 = vld [vmem:[%s0 + $0x918] sm:$0xff]
  %v306 = vld [vmem:[%s0 + $0x920] sm:$0xff]
  %v307 = vld [vmem:[%s0 + $0x928] sm:$0xff]
  %v308 = vld [vmem:[%s0 + $0x930] sm:$0xff]
  %v309 = vld [vmem:[%s0 + $0x938] sm:$0xff]
  %v310 = vld [vmem:[%s0 + $0x940] sm:$0xff]
  %v311 = vld [vmem:[%s0 + $0x948] sm:$0xff]
  %v312 = vld [vmem:[%s0 + $0x950] sm:$0xff]
  %v313 = vld [vmem:[%s0 + $0x958] sm:$0xff]
  %v314 = vld [vmem:[%s0 + $0x960] sm:$0xff]
  %v315 = vld [vmem:[%s0 + $0x968] sm:$0xff]
  %v316 = vld [vmem:[%s0 + $0x970] sm:$0xff]
  %v317 = vld [vmem:[%s0 + $0x978] sm:$0xff]
  %v318 = vld [vmem:[%s0 + $0x980] sm:$0xff]
  %v319 = vld [vmem:[%s0 + $0x988] sm:$0xff]
  %v320 = vld [vmem:[%s0 + $0x990] sm:$0xff]
  %v321 = vld [vmem:[%s0 + $0x998] sm:$0xff]
  %v322 = vld [vmem:[%s0 + $0x9a0] sm:$0xff]
  %v323 = vld [vmem:[%s0 + $0x9a8] sm:$0xff]
  %v324 = vld [vmem:[%s0 + $0x9b0] sm:$0xff]
  %v325 = vld [vmem:[%s0 + $0x9b8] sm:$0xff]
  %v326 = vld [vmem:[%s0 + $0x9c0] sm:$0xff]
  %v327 = vld [vmem:[%s0 + $0x9c8] sm:$0xff]
  %v328 = vld [vmem:[%s0 + $0x9d0] sm:$0xff]
  %v329 = vld [vmem:[%s0 + $0x9d8] sm:$0xff]
  %v330 = vld [vmem:[%s0 + $0x9e0] sm:$0xff]
  %v331 = vld [vmem:[%s0 + $0x9e8] sm:$0xff]
  %v332 = vld [vmem:[%s0 + $0x9f0] sm:$0xff]
  %v333 = vld [vmem:[%s0 + $0x9f8] sm:$0xff]
  %v334 = vld [vmem:[%s0 + $0xa00] sm:$0xff]
  %v335 = vld [vmem:[%s0 + $0xa08] sm:$0xff]
  %v336 = vld [vmem:[%s0 + $0xa10] sm:$0xff]
  %v337 = vld [vmem:[%s0 + $0xa18] sm:$0xff]
  %v338 = vld [vmem:[%s0 + $0xa20] sm:$0xff]
  %v339 = vld [vmem:[%s0 + $0xa28] sm:$0xff]
  %v340 = vld [vmem:[%s0 + $0xa30] sm:$0xff]
  %v341 = vld [vmem:[%s0 + $0xa38] sm:$0xff]
  %v342 = vld [vmem:[%s0 + $0xa40] sm:$0xff]
  %v343 = vld [vmem:[%s0 + $0xa48] sm:$0xff]
  %v344 = vld [vmem:[%s0 + $0xa50] sm:$0xff]
  %v345 = vld [vmem:[%s0 + $0xa58] sm:$0xff]
  %v346 = vld [vmem:[%s0 + $0xa60] sm:$0xff]
  %v347 = vld [vmem:[%s0 + $0xa68] sm:$0xff]
  %v348 = vld [vmem:[%s0 + $0xa70] sm:$0xff]
  %v349 = vld [vmem:[%s0 + $0xa78] sm:$0xff]
  %v350 = vld [vmem:[%s0 + $0xa80] sm:$0xff]
  %v351 = vld [vmem:[%s0 + $0xa88] sm:$0xff]
  %v352 = vld [vmem:[%s0 + $0xa90] sm:$0xff]
  %v353 = vld [vmem:[%s0 + $0xa98] sm:$0xff]
  %v354 = vld [vmem:[%s0 + $0xaa0] sm:$0xff]
  %v355 = vld [vmem:[%s0 + $0xaa8] sm:$0xff]
  %v356 = vld [vmem:[%s0 + $0xab0] sm:$0xff]
  %v357 = vld [vmem:[%s0 + $0xab8] sm:$0xff]
  %v358 = vld [vmem:[%s0 + $0xac0] sm:$0xff]
  %v359 = vld [vmem:[%s0 + $0xac8] sm:$0xff]
  %v360 = vld [vmem:[%s0 + $0xad0] sm:$0xff]
  %v361 = vld [vmem:[%s0 + $0xad8] sm:$0xff]
  %v362 = vld [vmem:[%s0 + $0xae0] sm:$0xff]
  %v363 = vld [vmem:[%s0 + $0xae8] sm:$0xff]
  %v364 = vld [vmem:[%s0 + $0xaf0] sm:$0xff]
  %v365 = vld [vmem:[%s0 + $0xaf8] sm:$0xff]
  %v366 = vld [vmem:[%s0 + $0xb00] sm:$0xff]
  %v367 = vld [vmem:[%s0 + $0xb08] sm:$0xff]
  %v368 = vld [vmem:[%s0 + $0xb10] sm:$0xff]
  %v369 = vld [vmem:[%s0 + $0xb18] sm:$0xff]
  %v370 = vld [vmem:[%s0 + $0xb20] sm:$0xff]
  %v371 = vld [vmem:[%s0 + $0xb28] sm:$0xff]
  %v372 = vld [vmem:[%s0 + $0xb30] sm:$0xff]
  %v373 = vld [vmem:[%s0 + $0xb38] sm:$0xff]
  %v374 = vld [vmem:[%s0 + $0xb40] sm:$0xff]
  %v375 = vld [vmem:[%s0 + $0xb48] sm:$0xff]
  %v376 = vld [vmem:[%s0 + $0xb50] sm:$0xff]
  %v377 = vld [vmem:[%s0 + $0xb58] sm:$0xff]
  %v378 = vld [vmem:[%s0 + $0xb60] sm:$0xff]
  %v379 = vld [vmem:[%s0 + $0xb68] sm:$0xff]
  %v380 = vld [vmem:[%s0 + $0xb70] sm:$0xff]
  %v381 = vld [vmem:[%s0 + $0xb78] sm:$0xff]
  %v382 = vld [vmem:[%s0 + $0xb80] sm:$0xff]
  %v383 = vld [vmem:[%s0 + $0xb88] sm:$0xff]
  %v384 = vld [vmem:[%s0 + $0xb90] sm:$0xff]
  %v385 = vld [vmem:[%s0 + $0xb98] sm:$0xff]
  %v386 = vld [vmem:[%s0 + $0xba0] sm:$0xff]
  %v387 = vld [vmem:[%s0 + $0xba8] sm:$0xff]
  %v388 = vld [vmem:[%s0 + $0xbb0] sm:$0xff]
  %v389 = vld [vmem:[%s0 + $0xbb8] sm:$0xff]
  %v390 = vld [vmem:[%s0 + $0xbc0] sm:$0xff]
  %v391 = vld [vmem:[%s0 + $0xbc8] sm:$0xff]
  %v392 = vld [vmem:[%s0 + $0xbd0] sm:$0xff]
  %v393 = vld [vmem:[%s0 + $0xbd8] sm:$0xff]
  %v394 = vld [vmem:[%s0 + $0xbe0] sm:$0xff]
  %v395 = vld [vmem:[%s0 + $0xbe8] sm:$0xff]
  %v396 = vld [vmem:[%s0 + $0xbf0] sm:$0xff]
  %v397 = vld [vmem:[%s0 + $0xbf8] sm:$0xff]
  %v398 = vld [vmem:[%s0 + $0xc00] sm:$0xff]
  %v399 = vld [vmem:[%s0 + $0xc08] sm:$0xff]
  %v400 = vld [vmem:[%s0 + $0xc10] sm:$0xff]
  %v401 = vld [vmem:[%s0 + $0xc18] sm:$0xff]
  %v402 = vld [vmem:[%s0 + $0xc20] sm:$0xff]
  %v403 = vld [vmem:[%s0 + $0xc28] sm:$0xff]
  %v404 = vld [vmem:[%s0 + $0xc30] sm:$0xff]
  %v405 = vld [vmem:[%s0 + $0xc38] sm:$0xff]
  %v406 = vld [vmem:[%s0 + $0xc40] sm:$0xff]
  %v407 = vld [vmem:[%s0 + $0xc48] sm:$0xff]
  %v408 = vld [vmem:[%s0 + $0xc50] sm:$0xff]
  %v409 = vld [vmem:[%s0 + $0xc58] sm:$0xff]
  %v410 = vld [vmem:[%s0 + $0xc60] sm:$0xff]
  %v411 = vld [vmem:[%s0 + $0xc68] sm:$0xff]
  %v412 = vld [vmem:[%s0 + $0xc70] sm:$0xff]
  %v413 = vld [vmem:[%s0 + $0xc78] sm:$0xff]
  %v414 = vld [vmem:[%s1] sm:$0xff]
  %v415 = vld [vmem:[%s1 + $0x8] sm:$0xff]
  %v416 = vld [vmem:[%s1 + $0x10] sm:$0xff]
  %v417 = vld [vmem:[%s1 + $0x18] sm:$0xff]
  %v418 = vld [vmem:[%s1 + $0x20] sm:$0xff]
  %v419 = vld [vmem:[%s1 + $0x28] sm:$0xff]
  %v420 = vld [vmem:[%s1 + $0x30] sm:$0xff]
  %v421 = vld [vmem:[%s1 + $0x38] sm:$0xff]
  %v422 = vld [vmem:[%s1 + $0x40] sm:$0xff]
  %v423 = vld [vmem:[%s1 + $0x48] sm:$0xff]
  %v424 = vld [vmem:[%s1 + $0x50] sm:$0xff]
  %v425 = vld [vmem:[%s1 + $0x58] sm:$0xff]
  %v426 = vld [vmem:[%s1 + $0x60] sm:$0xff]
  %v427 = vld [vmem:[%s1 + $0x68] sm:$0xff]
  %v428 = vld [vmem:[%s1 + $0x70] sm:$0xff]
  %v429 = vld [vmem:[%s1 + $0x78] sm:$0xff]
  %v430 = vld [vmem:[%s1 + $0x80] sm:$0xff]
  %v431 = vld [vmem:[%s1 + $0x88] sm:$0xff]
  %v432 = vld [vmem:[%s1 + $0x90] sm:$0xff]
  %v433 = vld [vmem:[%s1 + $0x98] sm:$0xff]
  %v434 = vld [vmem:[%s1 + $0xa0] sm:$0xff]
  %v435 = vld [vmem:[%s1 + $0xa8] sm:$0xff]
  %v436 = vld [vmem:[%s1 + $0xb0] sm:$0xff]
  %v437 = vld [vmem:[%s1 + $0xb8] sm:$0xff]
  %v438 = vld [vmem:[%s1 + $0xc0] sm:$0xff]
  %v439 = vld [vmem:[%s1 + $0xc8] sm:$0xff]
  %v440 = vld [vmem:[%s1 + $0xd0] sm:$0xff]
  %v441 = vld [vmem:[%s1 + $0xd8] sm:$0xff]
  %v442 = vld [vmem:[%s1 + $0xe0] sm:$0xff]
  %v443 = vld [vmem:[%s1 + $0xe8] sm:$0xff]
  %v444 = vld [vmem:[%s1 + $0xf0] sm:$0xff]
  %v445 = vld [vmem:[%s1 + $0xf8] sm:$0xff]
  %v446 = vld [vmem:[%s1 + $0x100] sm:$0xff]
  %v447 = vld [vmem:[%s1 + $0x108] sm:$0xff]
  %v448 = vld [vmem:[%s1 + $0x110] sm:$0xff]
  %v449 = vld [vmem:[%s1 + $0x118] sm:$0xff]
  %v450 = vld [vmem:[%s1 + $0x120] sm:$0xff]
  %v451 = vld [vmem:[%s1 + $0x128] sm:$0xff]
  %v452 = vld [vmem:[%s1 + $0x130] sm:$0xff]
  %v453 = vld [vmem:[%s1 + $0x138] sm:$0xff]
  %v454 = vld [vmem:[%s1 + $0x140] sm:$0xff]
  %v455 = vld [vmem:[%s1 + $0x148] sm:$0xff]
  %v456 = vld [vmem:[%s1 + $0x150] sm:$0xff]
  %v457 = vld [vmem:[%s1 + $0x158] sm:$0xff]
  %v458 = vld [vmem:[%s1 + $0x160] sm:$0xff]
  %v459 = vld [vmem:[%s1 + $0x168] sm:$0xff]
  %v460 = vld [vmem:[%s1 + $0x170] sm:$0xff]
  %v461 = vld [vmem:[%s1 + $0x178] sm:$0xff]
  %v462 = vld [vmem:[%s1 + $0x180] sm:$0xff]
  %v463 = vld [vmem:[%s1 + $0x188] sm:$0xff]
  %v464 = vld [vmem:[%s1 + $0x190] sm:$0xff]
  %v465 = vld [vmem:[%s1 + $0x198] sm:$0xff]
  %v466 = vld [vmem:[%s1 + $0x1a0] sm:$0xff]
  %v467 = vld [vmem:[%s1 + $0x1a8] sm:$0xff]
  %v468 = vld [vmem:[%s1 + $0x1b0] sm:$0xff]
  %v469 = vld [vmem:[%s1 + $0x1b8] sm:$0xff]
  %v470 = vld [vmem:[%s1 + $0x1c0] sm:$0xff]
  %v471 = vld [vmem:[%s1 + $0x1c8] sm:$0xff]
  %v472 = vld [vmem:[%s1 + $0x1d0] sm:$0xff]
  %v473 = vld [vmem:[%s1 + $0x1d8] sm:$0xff]
  %v474 = vld [vmem:[%s1 + $0x1e0] sm:$0xff]
  %v475 = vld [vmem:[%s1 + $0x1e8] sm:$0xff]
  %v476 = vld [vmem:[%s1 + $0x1f0] sm:$0xff]
  %v477 = vld [vmem:[%s1 + $0x1f8] sm:$0xff]
  %v478 = vld [vmem:[%s2] sm:$0x1]
  %v480 = vlaneseq
  %v481 = vshrl.u32 %v480, 7
  %v482 = vsub.s32 0, %v481
  %v483 = vrot.slane %v478, %v482
  %485 = vmatprep.subr.mxu0 0.0
  %486 = vmatpush1.msra.mxu0 %v414
  %487 = vmatprep.subr.mxu0 0.0
  %488 = vmatpush1.msra.mxu0 %v415
  %489 = vmatprep.subr.mxu0 0.0
  %490 = vmatpush1.msra.mxu0 %v416
  %491 = vmatprep.subr.mxu0 0.0
  %492 = vmatpush1.msra.mxu0 %v417
  %493 = vmatprep.subr.mxu0 0.0
  %494 = vmatpush1.msra.mxu0 %v418
  %495 = vmatprep.subr.mxu0 0.0
  %496 = vmatpush1.msra.mxu0 %v419
  %497 = vmatprep.subr.mxu0 0.0
  %498 = vmatpush1.msra.mxu0 %v420
  %499 = vmatprep.subr.mxu0 0.0
  %500 = vmatpush1.msra.mxu0 %v421
  %501 = vmatprep.subr.mxu0 0.0
  %502 = vmatpush1.msra.mxu0 %v422
  %503 = vmatprep.subr.mxu0 0.0
  %504 = vmatpush1.msra.mxu0 %v423
  %505 = vmatprep.subr.mxu0 0.0
  %506 = vmatpush1.msra.mxu0 %v424
  %507 = vmatprep.subr.mxu0 0.0
  %508 = vmatpush1.msra.mxu0 %v425
  %509 = vmatprep.subr.mxu0 0.0
  %510 = vmatpush1.msra.mxu0 %v426
  %511 = vmatprep.subr.mxu0 0.0
  %512 = vmatpush1.msra.mxu0 %v427
  %513 = vmatprep.subr.mxu0 0.0
  %514 = vmatpush1.msra.mxu0 %v428
  %515 = vmatprep.subr.mxu0 0.0
  %516 = vmatpush1.msra.mxu0 %v429
  %517 = vmatprep.subr.mxu0 0.0
  %518 = vmatpush1.msra.mxu0 %v430
  %519 = vmatprep.subr.mxu0 0.0
  %520 = vmatpush1.msra.mxu0 %v431
  %521 = vmatprep.subr.mxu0 0.0
  %522 = vmatpush1.msra.mxu0 %v432
  %523 = vmatprep.subr.mxu0 0.0
  %524 = vmatpush1.msra.mxu0 %v433
  %525 = vmatprep.subr.mxu0 0.0
  %526 = vmatpush1.msra.mxu0 %v434
  %527 = vmatprep.subr.mxu0 0.0
  %528 = vmatpush1.msra.mxu0 %v435
  %529 = vmatprep.subr.mxu0 0.0
  %530 = vmatpush1.msra.mxu0 %v436
  %531 = vmatprep.subr.mxu0 0.0
  %532 = vmatpush1.msra.mxu0 %v437
  %533 = vmatprep.subr.mxu0 0.0
  %534 = vmatpush1.msra.mxu0 %v438
  %535 = vmatprep.subr.mxu0 0.0
  %536 = vmatpush1.msra.mxu0 %v439
  %537 = vmatprep.subr.mxu0 0.0
  %538 = vmatpush1.msra.mxu0 %v440
  %539 = vmatprep.subr.mxu0 0.0
  %540 = vmatpush1.msra.mxu0 %v441
  %541 = vmatprep.subr.mxu0 0.0
  %542 = vmatpush1.msra.mxu0 %v442
  %543 = vmatprep.subr.mxu0 0.0
  %544 = vmatpush1.msra.mxu0 %v443
  %545 = vmatprep.subr.mxu0 0.0
  %546 = vmatpush1.msra.mxu0 %v444
  %547 = vmatprep.subr.mxu0 0.0
  %548 = vmatpush1.msra.mxu0 %v445
  %549 = vmatprep.mubr.f32.mxu0 %v15
  %550 = vmatmul.mubr.f32.gmra.mrb[0].mxu0 %v14
  %v551 = vpop.f32.mrb[0].mxu0
  %v552 = vadd.f32 %v483, %v551
  %v553 = vpop.f32.mrb[0].mxu0
  %554 = vmatprep.mubr.f32.mxu0 %v19
  %555 = vmatmul.mubr.f32.gmra.mrb[0].mxu0 %v18
  %v556 = vpop.f32.mrb[0].mxu0
  %v557 = vadd.f32 %v483, %v556
  %v558 = vpop.f32.mrb[0].mxu0
  %559 = vmatprep.mubr.f32.mxu0 %v23
  %560 = vmatmul.mubr.f32.gmra.mrb[0].mxu0 %v22
  %v561 = vpop.f32.mrb[0].mxu0
  %v562 = vadd.f32 %v483, %v561
  %v563 = vpop.f32.mrb[0].mxu0
  %564 = vmatprep.mubr.f32.mxu0 %v27
  %565 = vmatmul.mubr.f32.gmra.mrb[0].mxu0 %v26
  %v566 = vpop.f32.mrb[0].mxu0
  %v567 = vadd.f32 %v483, %v566
  %v568 = vpop.f32.mrb[0].mxu0
  %569 = vmatprep.mubr.f32.mxu0 %v31
  %570 = vmatmul.mubr.f32.gmra.mrb[0].mxu0 %v30
  %v571 = vpop.f32.mrb[0].mxu0
  %v572 = vadd.f32 %v483, %v571
  %v573 = vpop.f32.mrb[0].mxu0
  %574 = vmatprep.mubr.f32.mxu0 %v35
  %575 = vmatmul.mubr.f32.gmra.mrb[0].mxu0 %v34
  %v576 = vpop.f32.mrb[0].mxu0
  %v577 = vadd.f32 %v483, %v576
  %v578 = vpop.f32.mrb[0].mxu0
  %579 = vmatprep.mubr.f32.mxu0 %v39
  %580 = vmatmul.mubr.f32.gmra.mrb[0].mxu0 %v38
  %v581 = vpop.f32.mrb[0].mxu0
  %v582 = vadd.f32 %v483, %v581
  %v583 = vpop.f32.mrb[0].mxu0
  %584 = vmatprep.mubr.f32.mxu0 %v43
  %585 = vmatmul.mubr.f32.gmra.mrb[0].mxu0 %v42
  %v586 = vpop.f32.mrb[0].mxu0
  %v587 = vadd.f32 %v483, %v586
  %v588 = vpop.f32.mrb[0].mxu0
  %589 = vmatprep.mubr.f32.mxu0 %v47
  %590 = vmatmul.mubr.f32.gmra.mrb[0].mxu0 %v46
  %v591 = vpop.f32.mrb[0].mxu0
  %v592 = vadd.f32 %v483, %v591
  %v593 = vpop.f32.mrb[0].mxu0
  %594 = vmatprep.mubr.f32.mxu0 %v51
  %595 = vmatmul.mubr.f32.gmra.mrb[0].mxu0 %v50
  %v596 = vpop.f32.mrb[0].mxu0
  %v597 = vadd.f32 %v483, %v596
  %v598 = vpop.f32.mrb[0].mxu0
  %599 = vmatprep.mubr.f32.mxu0 %v55
  %600 = vmatmul.mubr.f32.gmra.mrb[0].mxu0 %v54
  %v601 = vpop.f32.mrb[0].mxu0
  %v602 = vadd.f32 %v483, %v601
  %v603 = vpop.f32.mrb[0].mxu0
  %604 = vmatprep.mubr.f32.mxu0 %v59
  %605 = vmatmul.mubr.f32.gmra.mrb[0].mxu0 %v58
  %v606 = vpop.f32.mrb[0].mxu0
  %v607 = vadd.f32 %v483, %v606
  %v608 = vpop.f32.mrb[0].mxu0
  %609 = vmatprep.mubr.f32.mxu0 %v63
  %610 = vmatmul.mubr.f32.gmra.mrb[0].mxu0 %v62
  %v611 = vpop.f32.mrb[0].mxu0
  %v612 = vadd.f32 %v483, %v611
  %v613 = vpop.f32.mrb[0].mxu0
  %614 = vmatprep.mubr.f32.mxu0 %v67
  %615 = vmatmul.mubr.f32.gmra.mrb[0].mxu0 %v66
  %v616 = vpop.f32.mrb[0].mxu0
  %v617 = vadd.f32 %v483, %v616
  %v618 = vpop.f32.mrb[0].mxu0
  %619 = vmatprep.mubr.f32.mxu0 %v71
  %620 = vmatmul.mubr.f32.gmra.mrb[0].mxu0 %v70
  %v621 = vpop.f32.mrb[0].mxu0
  %v622 = vadd.f32 %v483, %v621
  %v623 = vpop.f32.mrb[0].mxu0
  %624 = vmatprep.mubr.f32.mxu0 %v75
  %625 = vmatmul.mubr.f32.gmra.mrb[0].mxu0 %v74
  %v626 = vpop.f32.mrb[0].mxu0
  %v627 = vadd.f32 %v483, %v626
  %v628 = vpop.f32.mrb[0].mxu0
  %629 = vmatprep.mubr.f32.mxu0 %v79
  %630 = vmatmul.mubr.f32.gmra.mrb[0].mxu0 %v78
  %v631 = vpop.f32.mrb[0].mxu0
  %v632 = vadd.f32 %v483, %v631
  %v633 = vpop.f32.mrb[0].mxu0
  %634 = vmatprep.mubr.f32.mxu0 %v83
  %635 = vmatmul.mubr.f32.gmra.mrb[0].mxu0 %v82
  %v636 = vpop.f32.mrb[0].mxu0
  %v637 = vadd.f32 %v483, %v636
  %v638 = vpop.f32.mrb[0].mxu0
  %639 = vmatprep.mubr.f32.mxu0 %v87
  %640 = vmatmul.mubr.f32.gmra.mrb[0].mxu0 %v86
  %v641 = vpop.f32.mrb[0].mxu0
  %v642 = vadd.f32 %v483, %v641
  %v643 = vpop.f32.mrb[0].mxu0
  %644 = vmatprep.mubr.f32.mxu0 %v91
  %645 = vmatmul.mubr.f32.gmra.mrb[0].mxu0 %v90
  %v646 = vpop.f32.mrb[0].mxu0
  %v647 = vadd.f32 %v483, %v646
  %v648 = vpop.f32.mrb[0].mxu0
  %649 = vmatprep.mubr.f32.mxu0 %v95
  %650 = vmatmul.mubr.f32.gmra.mrb[0].mxu0 %v94
  %v651 = vpop.f32.mrb[0].mxu0
  %v652 = vadd.f32 %v483, %v651
  %v653 = vpop.f32.mrb[0].mxu0
  %654 = vmatprep.mubr.f32.mxu0 %v99
  %655 = vmatmul.mubr.f32.gmra.mrb[0].mxu0 %v98
  %v656 = vpop.f32.mrb[0].mxu0
  %v657 = vadd.f32 %v483, %v656
  %v658 = vpop.f32.mrb[0].mxu0
  %659 = vmatprep.mubr.f32.mxu0 %v103
  %660 = vmatmul.mubr.f32.gmra.mrb[0].mxu0 %v102
  %v661 = vpop.f32.mrb[0].mxu0
  %v662 = vadd.f32 %v483, %v661
  %v663 = vpop.f32.mrb[0].mxu0
  %664 = vmatprep.mubr.f32.mxu0 %v107
  %665 = vmatmul.mubr.f32.gmra.mrb[0].mxu0 %v106
  %v666 = vpop.f32.mrb[0].mxu0
  %v667 = vadd.f32 %v483, %v666
  %v668 = vpop.f32.mrb[0].mxu0
  %669 = vmatprep.mubr.f32.mxu0 %v111
  %670 = vmatmul.mubr.f32.gmra.mrb[0].mxu0 %v110
  %v671 = vpop.f32.mrb[0].mxu0
  %v672 = vadd.f32 %v483, %v671
  %v673 = vpop.f32.mrb[0].mxu0
  %674 = vmatprep.mubr.f32.mxu0 %v115
  %675 = vmatmul.mubr.f32.gmra.mrb[0].mxu0 %v114
  %v676 = vpop.f32.mrb[0].mxu0
  %v677 = vadd.f32 %v483, %v676
  %v678 = vpop.f32.mrb[0].mxu0
  %679 = vmatprep.mubr.f32.mxu0 %v119
  %680 = vmatmul.mubr.f32.gmra.mrb[0].mxu0 %v118
  %v681 = vpop.f32.mrb[0].mxu0
  %v682 = vadd.f32 %v483, %v681
  %v683 = vpop.f32.mrb[0].mxu0
  %684 = vmatprep.mubr.f32.mxu0 %v123
  %685 = vmatmul.mubr.f32.gmra.mrb[0].mxu0 %v122
  %v686 = vpop.f32.mrb[0].mxu0
  %v687 = vadd.f32 %v483, %v686
  %v688 = vpop.f32.mrb[0].mxu0
  %689 = vmatprep.mubr.f32.mxu0 %v127
  %690 = vmatmul.mubr.f32.gmra.mrb[0].mxu0 %v126
  %v691 = vpop.f32.mrb[0].mxu0
  %v692 = vadd.f32 %v483, %v691
  %v693 = vpop.f32.mrb[0].mxu0
  %694 = vmatprep.mubr.f32.mxu0 %v131
  %695 = vmatmul.mubr.f32.gmra.mrb[0].mxu0 %v130
  %v696 = vpop.f32.mrb[0].mxu0
  %v697 = vadd.f32 %v483, %v696
  %v698 = vpop.f32.mrb[0].mxu0
  %699 = vmatprep.mubr.f32.mxu0 %v135
  %700 = vmatmul.mubr.f32.gmra.mrb[0].mxu0 %v134
  %v701 = vpop.f32.mrb[0].mxu0
  %v702 = vadd.f32 %v483, %v701
  %v703 = vpop.f32.mrb[0].mxu0
  %704 = vmatprep.mubr.f32.mxu0 %v139
  %705 = vmatmul.mubr.f32.gmra.mrb[0].mxu0 %v138
  %v706 = vpop.f32.mrb[0].mxu0
  %v707 = vadd.f32 %v483, %v706
  %v708 = vpop.f32.mrb[0].mxu0
  %709 = vmatprep.mubr.f32.mxu0 %v143
  %710 = vmatmul.mubr.f32.gmra.mrb[0].mxu0 %v142
  %v711 = vpop.f32.mrb[0].mxu0
  %v712 = vadd.f32 %v483, %v711
  %v713 = vpop.f32.mrb[0].mxu0
  %714 = vmatprep.mubr.f32.mxu0 %v147
  %715 = vmatmul.mubr.f32.gmra.mrb[0].mxu0 %v146
  %v716 = vpop.f32.mrb[0].mxu0
  %v717 = vadd.f32 %v483, %v716
  %v718 = vpop.f32.mrb[0].mxu0
  %719 = vmatprep.mubr.f32.mxu0 %v151
  %720 = vmatmul.mubr.f32.gmra.mrb[0].mxu0 %v150
  %v721 = vpop.f32.mrb[0].mxu0
  %v722 = vadd.f32 %v483, %v721
  %v723 = vpop.f32.mrb[0].mxu0
  %724 = vmatprep.mubr.f32.mxu0 %v155
  %725 = vmatmul.mubr.f32.gmra.mrb[0].mxu0 %v154
  %v726 = vpop.f32.mrb[0].mxu0
  %v727 = vadd.f32 %v483, %v726
  %v728 = vpop.f32.mrb[0].mxu0
  %729 = vmatprep.mubr.f32.mxu0 %v159
  %730 = vmatmul.mubr.f32.gmra.mrb[0].mxu0 %v158
  %v731 = vpop.f32.mrb[0].mxu0
  %v732 = vadd.f32 %v483, %v731
  %v733 = vpop.f32.mrb[0].mxu0
  %734 = vmatprep.mubr.f32.mxu0 %v163
  %735 = vmatmul.mubr.f32.gmra.mrb[0].mxu0 %v162
  %v736 = vpop.f32.mrb[0].mxu0
  %v737 = vadd.f32 %v483, %v736
  %v738 = vpop.f32.mrb[0].mxu0
  %739 = vmatprep.mubr.f32.mxu0 %v167
  %740 = vmatmul.mubr.f32.gmra.mrb[0].mxu0 %v166
  %v741 = vpop.f32.mrb[0].mxu0
  %v742 = vadd.f32 %v483, %v741
  %v743 = vpop.f32.mrb[0].mxu0
  %744 = vmatprep.mubr.f32.mxu0 %v171
  %745 = vmatmul.mubr.f32.gmra.mrb[0].mxu0 %v170
  %v746 = vpop.f32.mrb[0].mxu0
  %v747 = vadd.f32 %v483, %v746
  %v748 = vpop.f32.mrb[0].mxu0
  %749 = vmatprep.mubr.f32.mxu0 %v175
  %750 = vmatmul.mubr.f32.gmra.mrb[0].mxu0 %v174
  %v751 = vpop.f32.mrb[0].mxu0
  %v752 = vadd.f32 %v483, %v751
  %v753 = vpop.f32.mrb[0].mxu0
  %754 = vmatprep.mubr.f32.mxu0 %v179
  %755 = vmatmul.mubr.f32.gmra.mrb[0].mxu0 %v178
  %v756 = vpop.f32.mrb[0].mxu0
  %v757 = vadd.f32 %v483, %v756
  %v758 = vpop.f32.mrb[0].mxu0
  %759 = vmatprep.mubr.f32.mxu0 %v183
  %760 = vmatmul.mubr.f32.gmra.mrb[0].mxu0 %v182
  %v761 = vpop.f32.mrb[0].mxu0
  %v762 = vadd.f32 %v483, %v761
  %v763 = vpop.f32.mrb[0].mxu0
  %764 = vmatprep.mubr.f32.mxu0 %v187
  %765 = vmatmul.mubr.f32.gmra.mrb[0].mxu0 %v186
  %v766 = vpop.f32.mrb[0].mxu0
  %v767 = vadd.f32 %v483, %v766
  %v768 = vpop.f32.mrb[0].mxu0
  %769 = vmatprep.mubr.f32.mxu0 %v191
  %770 = vmatmul.mubr.f32.gmra.mrb[0].mxu0 %v190
  %v771 = vpop.f32.mrb[0].mxu0
  %v772 = vadd.f32 %v483, %v771
  %v773 = vpop.f32.mrb[0].mxu0
  %774 = vmatprep.mubr.f32.mxu0 %v195
  %775 = vmatmul.mubr.f32.gmra.mrb[0].mxu0 %v194
  %v776 = vpop.f32.mrb[0].mxu0
  %v777 = vadd.f32 %v483, %v776
  %v778 = vpop.f32.mrb[0].mxu0
  %779 = vmatprep.mubr.f32.mxu0 %v199
  %780 = vmatmul.mubr.f32.gmra.mrb[0].mxu0 %v198
  %v781 = vpop.f32.mrb[0].mxu0
  %v782 = vadd.f32 %v483, %v781
  %v783 = vpop.f32.mrb[0].mxu0
  %784 = vmatprep.mubr.f32.mxu0 %v203
  %785 = vmatmul.mubr.f32.gmra.mrb[0].mxu0 %v202
  %v786 = vpop.f32.mrb[0].mxu0
  %v787 = vadd.f32 %v483, %v786
  %v788 = vpop.f32.mrb[0].mxu0
  %789 = vmatprep.mubr.f32.mxu0 %v207
  %790 = vmatmul.mubr.f32.gmra.mrb[0].mxu0 %v206
  %v791 = vpop.f32.mrb[0].mxu0
  %v792 = vadd.f32 %v483, %v791
  %v793 = vpop.f32.mrb[0].mxu0
  %794 = vmatprep.mubr.f32.mxu0 %v211
  %795 = vmatmul.mubr.f32.gmra.mrb[0].mxu0 %v210
  %v796 = vpop.f32.mrb[0].mxu0
  %v797 = vadd.f32 %v483, %v796
  %v798 = vpop.f32.mrb[0].mxu0
  %799 = vmatprep.mubr.f32.mxu0 %v215
  %800 = vmatmul.mubr.f32.gmra.mrb[0].mxu0 %v214
  %v801 = vpop.f32.mrb[0].mxu0
  %v802 = vadd.f32 %v483, %v801
  %v803 = vpop.f32.mrb[0].mxu0
  %804 = vmatprep.mubr.f32.mxu0 %v219
  %805 = vmatmul.mubr.f32.gmra.mrb[0].mxu0 %v218
  %v806 = vpop.f32.mrb[0].mxu0
  %v807 = vadd.f32 %v483, %v806
  %v808 = vpop.f32.mrb[0].mxu0
  %809 = vmatprep.mubr.f32.mxu0 %v223
  %810 = vmatmul.mubr.f32.gmra.mrb[0].mxu0 %v222
  %v811 = vpop.f32.mrb[0].mxu0
  %v812 = vadd.f32 %v483, %v811
  %v813 = vpop.f32.mrb[0].mxu0
  %814 = vmatprep.mubr.f32.mxu0 %v227
  %815 = vmatmul.mubr.f32.gmra.mrb[0].mxu0 %v226
  %v816 = vpop.f32.mrb[0].mxu0
  %v817 = vadd.f32 %v483, %v816
  %v818 = vpop.f32.mrb[0].mxu0
  %819 = vmatprep.mubr.f32.mxu0 %v231
  %820 = vmatmul.mubr.f32.gmra.mrb[0].mxu0 %v230
  %v821 = vpop.f32.mrb[0].mxu0
  %v822 = vadd.f32 %v483, %v821
  %v823 = vpop.f32.mrb[0].mxu0
  %824 = vmatprep.mubr.f32.mxu0 %v235
  %825 = vmatmul.mubr.f32.gmra.mrb[0].mxu0 %v234
  %v826 = vpop.f32.mrb[0].mxu0
  %v827 = vadd.f32 %v483, %v826
  %v828 = vpop.f32.mrb[0].mxu0
  %829 = vmatprep.mubr.f32.mxu0 %v239
  %830 = vmatmul.mubr.f32.gmra.mrb[0].mxu0 %v238
  %v831 = vpop.f32.mrb[0].mxu0
  %v832 = vadd.f32 %v483, %v831
  %v833 = vpop.f32.mrb[0].mxu0
  %834 = vmatprep.mubr.f32.mxu0 %v243
  %835 = vmatmul.mubr.f32.gmra.mrb[0].mxu0 %v242
  %v836 = vpop.f32.mrb[0].mxu0
  %v837 = vadd.f32 %v483, %v836
  %v838 = vpop.f32.mrb[0].mxu0
  %839 = vmatprep.mubr.f32.mxu0 %v247
  %840 = vmatmul.mubr.f32.gmra.mrb[0].mxu0 %v246
  %v841 = vpop.f32.mrb[0].mxu0
  %v842 = vadd.f32 %v483, %v841
  %v843 = vpop.f32.mrb[0].mxu0
  %844 = vmatprep.mubr.f32.mxu0 %v251
  %845 = vmatmul.mubr.f32.gmra.mrb[0].mxu0 %v250
  %v846 = vpop.f32.mrb[0].mxu0
  %v847 = vadd.f32 %v483, %v846
  %v848 = vpop.f32.mrb[0].mxu0
  %849 = vmatprep.mubr.f32.mxu0 %v255
  %850 = vmatmul.mubr.f32.gmra.mrb[0].mxu0 %v254
  %v851 = vpop.f32.mrb[0].mxu0
  %v852 = vadd.f32 %v483, %v851
  %v853 = vpop.f32.mrb[0].mxu0
  %854 = vmatprep.mubr.f32.mxu0 %v259
  %855 = vmatmul.mubr.f32.gmra.mrb[0].mxu0 %v258
  %v856 = vpop.f32.mrb[0].mxu0
  %v857 = vadd.f32 %v483, %v856
  %v858 = vpop.f32.mrb[0].mxu0
  %859 = vmatprep.mubr.f32.mxu0 %v263
  %860 = vmatmul.mubr.f32.gmra.mrb[0].mxu0 %v262
  %v861 = vpop.f32.mrb[0].mxu0
  %v862 = vadd.f32 %v483, %v861
  %v863 = vpop.f32.mrb[0].mxu0
  %864 = vmatprep.mubr.f32.mxu0 %v267
  %865 = vmatmul.mubr.f32.gmra.mrb[0].mxu0 %v266
  %v866 = vpop.f32.mrb[0].mxu0
  %v867 = vadd.f32 %v483, %v866
  %v868 = vpop.f32.mrb[0].mxu0
  %869 = vmatprep.mubr.f32.mxu0 %v271
  %870 = vmatmul.mubr.f32.gmra.mrb[0].mxu0 %v270
  %v871 = vpop.f32.mrb[0].mxu0
  %v872 = vadd.f32 %v483, %v871
  %v873 = vpop.f32.mrb[0].mxu0
  %874 = vmatprep.mubr.f32.mxu0 %v275
  %875 = vmatmul.mubr.f32.gmra.mrb[0].mxu0 %v274
  %v876 = vpop.f32.mrb[0].mxu0
  %v877 = vadd.f32 %v483, %v876
  %v878 = vpop.f32.mrb[0].mxu0
  %879 = vmatprep.mubr.f32.mxu0 %v279
  %880 = vmatmul.mubr.f32.gmra.mrb[0].mxu0 %v278
  %v881 = vpop.f32.mrb[0].mxu0
  %v882 = vadd.f32 %v483, %v881
  %v883 = vpop.f32.mrb[0].mxu0
  %884 = vmatprep.mubr.f32.mxu0 %v283
  %885 = vmatmul.mubr.f32.gmra.mrb[0].mxu0 %v282
  %v886 = vpop.f32.mrb[0].mxu0
  %v887 = vadd.f32 %v483, %v886
  %v888 = vpop.f32.mrb[0].mxu0
  %889 = vmatprep.mubr.f32.mxu0 %v287
  %890 = vmatmul.mubr.f32.gmra.mrb[0].mxu0 %v286
  %v891 = vpop.f32.mrb[0].mxu0
  %v892 = vadd.f32 %v483, %v891
  %v893 = vpop.f32.mrb[0].mxu0
  %894 = vmatprep.mubr.f32.mxu0 %v291
  %895 = vmatmul.mubr.f32.gmra.mrb[0].mxu0 %v290
  %v896 = vpop.f32.mrb[0].mxu0
  %v897 = vadd.f32 %v483, %v896
  %v898 = vpop.f32.mrb[0].mxu0
  %899 = vmatprep.mubr.f32.mxu0 %v295
  %900 = vmatmul.mubr.f32.gmra.mrb[0].mxu0 %v294
  %v901 = vpop.f32.mrb[0].mxu0
  %v902 = vadd.f32 %v483, %v901
  %v903 = vpop.f32.mrb[0].mxu0
  %904 = vmatprep.mubr.f32.mxu0 %v299
  %905 = vmatmul.mubr.f32.gmra.mrb[0].mxu0 %v298
  %v906 = vpop.f32.mrb[0].mxu0
  %v907 = vadd.f32 %v483, %v906
  %v908 = vpop.f32.mrb[0].mxu0
  %909 = vmatprep.mubr.f32.mxu0 %v303
  %910 = vmatmul.mubr.f32.gmra.mrb[0].mxu0 %v302
  %v911 = vpop.f32.mrb[0].mxu0
  %v912 = vadd.f32 %v483, %v911
  %v913 = vpop.f32.mrb[0].mxu0
  %914 = vmatprep.mubr.f32.mxu0 %v307
  %915 = vmatmul.mubr.f32.gmra.mrb[0].mxu0 %v306
  %v916 = vpop.f32.mrb[0].mxu0
  %v917 = vadd.f32 %v483, %v916
  %v918 = vpop.f32.mrb[0].mxu0
  %919 = vmatprep.mubr.f32.mxu0 %v311
  %920 = vmatmul.mubr.f32.gmra.mrb[0].mxu0 %v310
  %v921 = vpop.f32.mrb[0].mxu0
  %v922 = vadd.f32 %v483, %v921
  %v923 = vpop.f32.mrb[0].mxu0
  %924 = vmatprep.mubr.f32.mxu0 %v315
  %925 = vmatmul.mubr.f32.gmra.mrb[0].mxu0 %v314
  %v926 = vpop.f32.mrb[0].mxu0
  %v927 = vadd.f32 %v483, %v926
  %v928 = vpop.f32.mrb[0].mxu0
  %929 = vmatprep.mubr.f32.mxu0 %v319
  %930 = vmatmul.mubr.f32.gmra.mrb[0].mxu0 %v318
  %v931 = vpop.f32.mrb[0].mxu0
  %v932 = vadd.f32 %v483, %v931
  %v933 = vpop.f32.mrb[0].mxu0
  %934 = vmatprep.mubr.f32.mxu0 %v323
  %935 = vmatmul.mubr.f32.gmra.mrb[0].mxu0 %v322
  %v936 = vpop.f32.mrb[0].mxu0
  %v937 = vadd.f32 %v483, %v936
  %v938 = vpop.f32.mrb[0].mxu0
  %939 = vmatprep.mubr.f32.mxu0 %v327
  %940 = vmatmul.mubr.f32.gmra.mrb[0].mxu0 %v326
  %v941 = vpop.f32.mrb[0].mxu0
  %v942 = vadd.f32 %v483, %v941
  %v943 = vpop.f32.mrb[0].mxu0
  %944 = vmatprep.mubr.f32.mxu0 %v331
  %945 = vmatmul.mubr.f32.gmra.mrb[0].mxu0 %v330
  %v946 = vpop.f32.mrb[0].mxu0
  %v947 = vadd.f32 %v483, %v946
  %v948 = vpop.f32.mrb[0].mxu0
  %949 = vmatprep.mubr.f32.mxu0 %v335
  %950 = vmatmul.mubr.f32.gmra.mrb[0].mxu0 %v334
  %v951 = vpop.f32.mrb[0].mxu0
  %v952 = vadd.f32 %v483, %v951
  %v953 = vpop.f32.mrb[0].mxu0
  %954 = vmatprep.mubr.f32.mxu0 %v339
  %955 = vmatmul.mubr.f32.gmra.mrb[0].mxu0 %v338
  %v956 = vpop.f32.mrb[0].mxu0
  %v957 = vadd.f32 %v483, %v956
  %v958 = vpop.f32.mrb[0].mxu0
  %959 = vmatprep.mubr.f32.mxu0 %v343
  %960 = vmatmul.mubr.f32.gmra.mrb[0].mxu0 %v342
  %v961 = vpop.f32.mrb[0].mxu0
  %v962 = vadd.f32 %v483, %v961
  %v963 = vpop.f32.mrb[0].mxu0
  %964 = vmatprep.mubr.f32.mxu0 %v347
  %965 = vmatmul.mubr.f32.gmra.mrb[0].mxu0 %v346
  %v966 = vpop.f32.mrb[0].mxu0
  %v967 = vadd.f32 %v483, %v966
  %v968 = vpop.f32.mrb[0].mxu0
  %969 = vmatprep.mubr.f32.mxu0 %v351
  %970 = vmatmul.mubr.f32.gmra.mrb[0].mxu0 %v350
  %v971 = vpop.f32.mrb[0].mxu0
  %v972 = vadd.f32 %v483, %v971
  %v973 = vpop.f32.mrb[0].mxu0
  %974 = vmatprep.mubr.f32.mxu0 %v355
  %975 = vmatmul.mubr.f32.gmra.mrb[0].mxu0 %v354
  %v976 = vpop.f32.mrb[0].mxu0
  %v977 = vadd.f32 %v483, %v976
  %v978 = vpop.f32.mrb[0].mxu0
  %979 = vmatprep.mubr.f32.mxu0 %v359
  %980 = vmatmul.mubr.f32.gmra.mrb[0].mxu0 %v358
  %v981 = vpop.f32.mrb[0].mxu0
  %v982 = vadd.f32 %v483, %v981
  %v983 = vpop.f32.mrb[0].mxu0
  %984 = vmatprep.mubr.f32.mxu0 %v363
  %985 = vmatmul.mubr.f32.gmra.mrb[0].mxu0 %v362
  %v986 = vpop.f32.mrb[0].mxu0
  %v987 = vadd.f32 %v483, %v986
  %v988 = vpop.f32.mrb[0].mxu0
  %989 = vmatprep.mubr.f32.mxu0 %v367
  %990 = vmatmul.mubr.f32.gmra.mrb[0].mxu0 %v366
  %v991 = vpop.f32.mrb[0].mxu0
  %v992 = vadd.f32 %v483, %v991
  %v993 = vpop.f32.mrb[0].mxu0
  %994 = vmatprep.mubr.f32.mxu0 %v371
  %995 = vmatmul.mubr.f32.gmra.mrb[0].mxu0 %v370
  %v996 = vpop.f32.mrb[0].mxu0
  %v997 = vadd.f32 %v483, %v996
  %v998 = vpop.f32.mrb[0].mxu0
  %999 = vmatprep.mubr.f32.mxu0 %v375
  %1000 = vmatmul.mubr.f32.gmra.mrb[0].mxu0 %v374
  %v1001 = vpop.f32.mrb[0].mxu0
  %v1002 = vadd.f32 %v483, %v1001
  %v1003 = vpop.f32.mrb[0].mxu0
  %1004 = vmatprep.mubr.f32.mxu0 %v379
  %1005 = vmatmul.mubr.f32.gmra.mrb[0].mxu0 %v378
  %v1006 = vpop.f32.mrb[0].mxu0
  %v1007 = vadd.f32 %v483, %v1006
  %v1008 = vpop.f32.mrb[0].mxu0
  %1009 = vmatprep.mubr.f32.mxu0 %v383
  %1010 = vmatmul.mubr.f32.gmra.mrb[0].mxu0 %v382
  %v1011 = vpop.f32.mrb[0].mxu0
  %v1012 = vadd.f32 %v483, %v1011
  %v1013 = vpop.f32.mrb[0].mxu0
  %1014 = vmatprep.mubr.f32.mxu0 %v387
  %1015 = vmatmul.mubr.f32.gmra.mrb[0].mxu0 %v386
  %v1016 = vpop.f32.mrb[0].mxu0
  %v1017 = vadd.f32 %v483, %v1016
  %v1018 = vpop.f32.mrb[0].mxu0
  %1019 = vmatprep.mubr.f32.mxu0 %v391
  %1020 = vmatmul.mubr.f32.gmra.mrb[0].mxu0 %v390
  %v1021 = vpop.f32.mrb[0].mxu0
  %v1022 = vadd.f32 %v483, %v1021
  %v1023 = vpop.f32.mrb[0].mxu0
  %1024 = vmatprep.mubr.f32.mxu0 %v395
  %1025 = vmatmul.mubr.f32.gmra.mrb[0].mxu0 %v394
  %v1026 = vpop.f32.mrb[0].mxu0
  %v1027 = vadd.f32 %v483, %v1026
  %v1028 = vpop.f32.mrb[0].mxu0
  %1029 = vmatprep.mubr.f32.mxu0 %v399
  %1030 = vmatmul.mubr.f32.gmra.mrb[0].mxu0 %v398
  %v1031 = vpop.f32.mrb[0].mxu0
  %v1032 = vadd.f32 %v483, %v1031
  %v1033 = vpop.f32.mrb[0].mxu0
  %1034 = vmatprep.mubr.f32.mxu0 %v403
  %1035 = vmatmul.mubr.f32.gmra.mrb[0].mxu0 %v402
  %v1036 = vpop.f32.mrb[0].mxu0
  %v1037 = vadd.f32 %v483, %v1036
  %v1038 = vpop.f32.mrb[0].mxu0
  %1039 = vmatprep.mubr.f32.mxu0 %v407
  %1040 = vmatmul.mubr.f32.gmra.mrb[0].mxu0 %v406
  %v1041 = vpop.f32.mrb[0].mxu0
  %v1042 = vadd.f32 %v483, %v1041
  %v1043 = vpop.f32.mrb[0].mxu0
  %1044 = vmatprep.mubr.f32.mxu0 %v411
  %1045 = vmatmul.mubr.f32.gmra.mrb[0].mxu0 %v410
  %v1046 = vpop.f32.mrb[0].mxu0
  %v1047 = vadd.f32 %v483, %v1046
  %v1048 = vpop.f32.mrb[0].mxu0
  %1049 = vdwg.mxu0
  %1050 = vmatprep.subr.mxu0 0.0
  %1051 = vmatpush1.msra.mxu0 %v446
  %1052 = vmatprep.subr.mxu0 0.0
  %1053 = vmatpush1.msra.mxu0 %v447
  %1054 = vmatprep.subr.mxu0 0.0
  %1055 = vmatpush1.msra.mxu0 %v448
  %1056 = vmatprep.subr.mxu0 0.0
  %1057 = vmatpush1.msra.mxu0 %v449
  %1058 = vmatprep.subr.mxu0 0.0
  %1059 = vmatpush1.msra.mxu0 %v450
  %1060 = vmatprep.subr.mxu0 0.0
  %1061 = vmatpush1.msra.mxu0 %v451
  %1062 = vmatprep.subr.mxu0 0.0
  %1063 = vmatpush1.msra.mxu0 %v452
  %1064 = vmatprep.subr.mxu0 0.0
  %1065 = vmatpush1.msra.mxu0 %v453
  %1066 = vmatprep.subr.mxu0 0.0
  %1067 = vmatpush1.msra.mxu0 %v454
  %1068 = vmatprep.subr.mxu0 0.0
  %1069 = vmatpush1.msra.mxu0 %v455
  %1070 = vmatprep.subr.mxu0 0.0
  %1071 = vmatpush1.msra.mxu0 %v456
  %1072 = vmatprep.subr.mxu0 0.0
  %1073 = vmatpush1.msra.mxu0 %v457
  %1074 = vmatprep.subr.mxu0 0.0
  %1075 = vmatpush1.msra.mxu0 %v458
  %1076 = vmatprep.subr.mxu0 0.0
  %1077 = vmatpush1.msra.mxu0 %v459
  %1078 = vmatprep.subr.mxu0 0.0
  %1079 = vmatpush1.msra.mxu0 %v460
  %1080 = vmatprep.subr.mxu0 0.0
  %1081 = vmatpush1.msra.mxu0 %v461
  %1082 = vmatprep.subr.mxu0 0.0
  %1083 = vmatpush1.msra.mxu0 %v462
  %1084 = vmatprep.subr.mxu0 0.0
  %1085 = vmatpush1.msra.mxu0 %v463
  %1086 = vmatprep.subr.mxu0 0.0
  %1087 = vmatpush1.msra.mxu0 %v464
  %1088 = vmatprep.subr.mxu0 0.0
  %1089 = vmatpush1.msra.mxu0 %v465
  %1090 = vmatprep.subr.mxu0 0.0
  %1091 = vmatpush1.msra.mxu0 %v466
  %1092 = vmatprep.subr.mxu0 0.0
  %1093 = vmatpush1.msra.mxu0 %v467
  %1094 = vmatprep.subr.mxu0 0.0
  %1095 = vmatpush1.msra.mxu0 %v468
  %1096 = vmatprep.subr.mxu0 0.0
  %1097 = vmatpush1.msra.mxu0 %v469
  %1098 = vmatprep.subr.mxu0 0.0
  %1099 = vmatpush1.msra.mxu0 %v470
  %1100 = vmatprep.subr.mxu0 0.0
  %1101 = vmatpush1.msra.mxu0 %v471
  %1102 = vmatprep.subr.mxu0 0.0
  %1103 = vmatpush1.msra.mxu0 %v472
  %1104 = vmatprep.subr.mxu0 0.0
  %1105 = vmatpush1.msra.mxu0 %v473
  %1106 = vmatprep.subr.mxu0 0.0
  %1107 = vmatpush1.msra.mxu0 %v474
  %1108 = vmatprep.subr.mxu0 0.0
  %1109 = vmatpush1.msra.mxu0 %v475
  %1110 = vmatprep.subr.mxu0 0.0
  %1111 = vmatpush1.msra.mxu0 %v476
  %1112 = vmatprep.subr.mxu0 0.0
  %1113 = vmatpush1.msra.mxu0 %v477
  %1114 = vmatprep.mubr.f32.mxu0 %v17
  %1115 = vmatmul.mubr.f32.gmra.mrb[0].mxu0 %v16
  %v1116 = vpop.f32.mrb[0].mxu0
  %v1117 = vadd.f32 %v552, %v1116
  %v1118 = vpop.f32.mrb[0].mxu0
  %1119 = vmatprep.mubr.f32.mxu0 %v21
  %1120 = vmatmul.mubr.f32.gmra.mrb[0].mxu0 %v20
  %v1121 = vpop.f32.mrb[0].mxu0
  %v1122 = vadd.f32 %v557, %v1121
  %v1123 = vpop.f32.mrb[0].mxu0
  %1124 = vmatprep.mubr.f32.mxu0 %v25
  %1125 = vmatmul.mubr.f32.gmra.mrb[0].mxu0 %v24
  %v1126 = vpop.f32.mrb[0].mxu0
  %v1127 = vadd.f32 %v562, %v1126
  %v1128 = vpop.f32.mrb[0].mxu0
  %1129 = vmatprep.mubr.f32.mxu0 %v29
  %1130 = vmatmul.mubr.f32.gmra.mrb[0].mxu0 %v28
  %v1131 = vpop.f32.mrb[0].mxu0
  %v1132 = vadd.f32 %v567, %v1131
  %v1133 = vpop.f32.mrb[0].mxu0
  %1134 = vmatprep.mubr.f32.mxu0 %v33
  %1135 = vmatmul.mubr.f32.gmra.mrb[0].mxu0 %v32
  %v1136 = vpop.f32.mrb[0].mxu0
  %v1137 = vadd.f32 %v572, %v1136
  %v1138 = vpop.f32.mrb[0].mxu0
  %1139 = vmatprep.mubr.f32.mxu0 %v37
  %1140 = vmatmul.mubr.f32.gmra.mrb[0].mxu0 %v36
  %v1141 = vpop.f32.mrb[0].mxu0
  %v1142 = vadd.f32 %v577, %v1141
  %v1143 = vpop.f32.mrb[0].mxu0
  %1144 = vmatprep.mubr.f32.mxu0 %v41
  %1145 = vmatmul.mubr.f32.gmra.mrb[0].mxu0 %v40
  %v1146 = vpop.f32.mrb[0].mxu0
  %v1147 = vadd.f32 %v582, %v1146
  %v1148 = vpop.f32.mrb[0].mxu0
  %1149 = vmatprep.mubr.f32.mxu0 %v45
  %1150 = vmatmul.mubr.f32.gmra.mrb[0].mxu0 %v44
  %v1151 = vpop.f32.mrb[0].mxu0
  %v1152 = vadd.f32 %v587, %v1151
  %v1153 = vpop.f32.mrb[0].mxu0
  %1154 = vmatprep.mubr.f32.mxu0 %v49
  %1155 = vmatmul.mubr.f32.gmra.mrb[0].mxu0 %v48
  %v1156 = vpop.f32.mrb[0].mxu0
  %v1157 = vadd.f32 %v592, %v1156
  %v1158 = vpop.f32.mrb[0].mxu0
  %1159 = vmatprep.mubr.f32.mxu0 %v53
  %1160 = vmatmul.mubr.f32.gmra.mrb[0].mxu0 %v52
  %v1161 = vpop.f32.mrb[0].mxu0
  %v1162 = vadd.f32 %v597, %v1161
  %v1163 = vpop.f32.mrb[0].mxu0
  %1164 = vmatprep.mubr.f32.mxu0 %v57
  %1165 = vmatmul.mubr.f32.gmra.mrb[0].mxu0 %v56
  %v1166 = vpop.f32.mrb[0].mxu0
  %v1167 = vadd.f32 %v602, %v1166
  %v1168 = vpop.f32.mrb[0].mxu0
  %1169 = vmatprep.mubr.f32.mxu0 %v61
  %1170 = vmatmul.mubr.f32.gmra.mrb[0].mxu0 %v60
  %v1171 = vpop.f32.mrb[0].mxu0
  %v1172 = vadd.f32 %v607, %v1171
  %v1173 = vpop.f32.mrb[0].mxu0
  %1174 = vmatprep.mubr.f32.mxu0 %v65
  %1175 = vmatmul.mubr.f32.gmra.mrb[0].mxu0 %v64
  %v1176 = vpop.f32.mrb[0].mxu0
  %v1177 = vadd.f32 %v612, %v1176
  %v1178 = vpop.f32.mrb[0].mxu0
  %1179 = vmatprep.mubr.f32.mxu0 %v69
  %1180 = vmatmul.mubr.f32.gmra.mrb[0].mxu0 %v68
  %v1181 = vpop.f32.mrb[0].mxu0
  %v1182 = vadd.f32 %v617, %v1181
  %v1183 = vpop.f32.mrb[0].mxu0
  %1184 = vmatprep.mubr.f32.mxu0 %v73
  %1185 = vmatmul.mubr.f32.gmra.mrb[0].mxu0 %v72
  %v1186 = vpop.f32.mrb[0].mxu0
  %v1187 = vadd.f32 %v622, %v1186
  %v1188 = vpop.f32.mrb[0].mxu0
  %1189 = vmatprep.mubr.f32.mxu0 %v77
  %1190 = vmatmul.mubr.f32.gmra.mrb[0].mxu0 %v76
  %v1191 = vpop.f32.mrb[0].mxu0
  %v1192 = vadd.f32 %v627, %v1191
  %v1193 = vpop.f32.mrb[0].mxu0
  %1194 = vmatprep.mubr.f32.mxu0 %v81
  %1195 = vmatmul.mubr.f32.gmra.mrb[0].mxu0 %v80
  %v1196 = vpop.f32.mrb[0].mxu0
  %v1197 = vadd.f32 %v632, %v1196
  %v1198 = vpop.f32.mrb[0].mxu0
  %1199 = vmatprep.mubr.f32.mxu0 %v85
  %1200 = vmatmul.mubr.f32.gmra.mrb[0].mxu0 %v84
  %v1201 = vpop.f32.mrb[0].mxu0
  %v1202 = vadd.f32 %v637, %v1201
  %v1203 = vpop.f32.mrb[0].mxu0
  %1204 = vmatprep.mubr.f32.mxu0 %v89
  %1205 = vmatmul.mubr.f32.gmra.mrb[0].mxu0 %v88
  %v1206 = vpop.f32.mrb[0].mxu0
  %v1207 = vadd.f32 %v642, %v1206
  %v1208 = vpop.f32.mrb[0].mxu0
  %1209 = vmatprep.mubr.f32.mxu0 %v93
  %1210 = vmatmul.mubr.f32.gmra.mrb[0].mxu0 %v92
  %v1211 = vpop.f32.mrb[0].mxu0
  %v1212 = vadd.f32 %v647, %v1211
  %v1213 = vpop.f32.mrb[0].mxu0
  %1214 = vmatprep.mubr.f32.mxu0 %v97
  %1215 = vmatmul.mubr.f32.gmra.mrb[0].mxu0 %v96
  %v1216 = vpop.f32.mrb[0].mxu0
  %v1217 = vadd.f32 %v652, %v1216
  %v1218 = vpop.f32.mrb[0].mxu0
  %1219 = vmatprep.mubr.f32.mxu0 %v101
  %1220 = vmatmul.mubr.f32.gmra.mrb[0].mxu0 %v100
  %v1221 = vpop.f32.mrb[0].mxu0
  %v1222 = vadd.f32 %v657, %v1221
  %v1223 = vpop.f32.mrb[0].mxu0
  %1224 = vmatprep.mubr.f32.mxu0 %v105
  %1225 = vmatmul.mubr.f32.gmra.mrb[0].mxu0 %v104
  %v1226 = vpop.f32.mrb[0].mxu0
  %v1227 = vadd.f32 %v662, %v1226
  %v1228 = vpop.f32.mrb[0].mxu0
  %1229 = vmatprep.mubr.f32.mxu0 %v109
  %1230 = vmatmul.mubr.f32.gmra.mrb[0].mxu0 %v108
  %v1231 = vpop.f32.mrb[0].mxu0
  %v1232 = vadd.f32 %v667, %v1231
  %v1233 = vpop.f32.mrb[0].mxu0
  %1234 = vmatprep.mubr.f32.mxu0 %v113
  %1235 = vmatmul.mubr.f32.gmra.mrb[0].mxu0 %v112
  %v1236 = vpop.f32.mrb[0].mxu0
  %v1237 = vadd.f32 %v672, %v1236
  %v1238 = vpop.f32.mrb[0].mxu0
  %1239 = vmatprep.mubr.f32.mxu0 %v117
  %1240 = vmatmul.mubr.f32.gmra.mrb[0].mxu0 %v116
  %v1241 = vpop.f32.mrb[0].mxu0
  %v1242 = vadd.f32 %v677, %v1241
  %v1243 = vpop.f32.mrb[0].mxu0
  %1244 = vmatprep.mubr.f32.mxu0 %v121
  %1245 = vmatmul.mubr.f32.gmra.mrb[0].mxu0 %v120
  %v1246 = vpop.f32.mrb[0].mxu0
  %v1247 = vadd.f32 %v682, %v1246
  %v1248 = vpop.f32.mrb[0].mxu0
  %1249 = vmatprep.mubr.f32.mxu0 %v125
  %1250 = vmatmul.mubr.f32.gmra.mrb[0].mxu0 %v124
  %v1251 = vpop.f32.mrb[0].mxu0
  %v1252 = vadd.f32 %v687, %v1251
  %v1253 = vpop.f32.mrb[0].mxu0
  %1254 = vmatprep.mubr.f32.mxu0 %v129
  %1255 = vmatmul.mubr.f32.gmra.mrb[0].mxu0 %v128
  %v1256 = vpop.f32.mrb[0].mxu0
  %v1257 = vadd.f32 %v692, %v1256
  %v1258 = vpop.f32.mrb[0].mxu0
  %1259 = vmatprep.mubr.f32.mxu0 %v133
  %1260 = vmatmul.mubr.f32.gmra.mrb[0].mxu0 %v132
  %v1261 = vpop.f32.mrb[0].mxu0
  %v1262 = vadd.f32 %v697, %v1261
  %v1263 = vpop.f32.mrb[0].mxu0
  %1264 = vmatprep.mubr.f32.mxu0 %v137
  %1265 = vmatmul.mubr.f32.gmra.mrb[0].mxu0 %v136
  %v1266 = vpop.f32.mrb[0].mxu0
  %v1267 = vadd.f32 %v702, %v1266
  %v1268 = vpop.f32.mrb[0].mxu0
  %1269 = vmatprep.mubr.f32.mxu0 %v141
  %1270 = vmatmul.mubr.f32.gmra.mrb[0].mxu0 %v140
  %v1271 = vpop.f32.mrb[0].mxu0
  %v1272 = vadd.f32 %v707, %v1271
  %v1273 = vpop.f32.mrb[0].mxu0
  %1274 = vmatprep.mubr.f32.mxu0 %v145
  %1275 = vmatmul.mubr.f32.gmra.mrb[0].mxu0 %v144
  %v1276 = vpop.f32.mrb[0].mxu0
  %v1277 = vadd.f32 %v712, %v1276
  %v1278 = vpop.f32.mrb[0].mxu0
  %1279 = vmatprep.mubr.f32.mxu0 %v149
  %1280 = vmatmul.mubr.f32.gmra.mrb[0].mxu0 %v148
  %v1281 = vpop.f32.mrb[0].mxu0
  %v1282 = vadd.f32 %v717, %v1281
  %v1283 = vpop.f32.mrb[0].mxu0
  %1284 = vmatprep.mubr.f32.mxu0 %v153
  %1285 = vmatmul.mubr.f32.gmra.mrb[0].mxu0 %v152
  %v1286 = vpop.f32.mrb[0].mxu0
  %v1287 = vadd.f32 %v722, %v1286
  %v1288 = vpop.f32.mrb[0].mxu0
  %1289 = vmatprep.mubr.f32.mxu0 %v157
  %1290 = vmatmul.mubr.f32.gmra.mrb[0].mxu0 %v156
  %v1291 = vpop.f32.mrb[0].mxu0
  %v1292 = vadd.f32 %v727, %v1291
  %v1293 = vpop.f32.mrb[0].mxu0
  %1294 = vmatprep.mubr.f32.mxu0 %v161
  %1295 = vmatmul.mubr.f32.gmra.mrb[0].mxu0 %v160
  %v1296 = vpop.f32.mrb[0].mxu0
  %v1297 = vadd.f32 %v732, %v1296
  %v1298 = vpop.f32.mrb[0].mxu0
  %1299 = vmatprep.mubr.f32.mxu0 %v165
  %1300 = vmatmul.mubr.f32.gmra.mrb[0].mxu0 %v164
  %v1301 = vpop.f32.mrb[0].mxu0
  %v1302 = vadd.f32 %v737, %v1301
  %v1303 = vpop.f32.mrb[0].mxu0
  %1304 = vmatprep.mubr.f32.mxu0 %v169
  %1305 = vmatmul.mubr.f32.gmra.mrb[0].mxu0 %v168
  %v1306 = vpop.f32.mrb[0].mxu0
  %v1307 = vadd.f32 %v742, %v1306
  %v1308 = vpop.f32.mrb[0].mxu0
  %1309 = vmatprep.mubr.f32.mxu0 %v173
  %1310 = vmatmul.mubr.f32.gmra.mrb[0].mxu0 %v172
  %v1311 = vpop.f32.mrb[0].mxu0
  %v1312 = vadd.f32 %v747, %v1311
  %v1313 = vpop.f32.mrb[0].mxu0
  %1314 = vmatprep.mubr.f32.mxu0 %v177
  %1315 = vmatmul.mubr.f32.gmra.mrb[0].mxu0 %v176
  %v1316 = vpop.f32.mrb[0].mxu0
  %v1317 = vadd.f32 %v752, %v1316
  %v1318 = vpop.f32.mrb[0].mxu0
  %1319 = vmatprep.mubr.f32.mxu0 %v181
  %1320 = vmatmul.mubr.f32.gmra.mrb[0].mxu0 %v180
  %v1321 = vpop.f32.mrb[0].mxu0
  %v1322 = vadd.f32 %v757, %v1321
  %v1323 = vpop.f32.mrb[0].mxu0
  %1324 = vmatprep.mubr.f32.mxu0 %v185
  %1325 = vmatmul.mubr.f32.gmra.mrb[0].mxu0 %v184
  %v1326 = vpop.f32.mrb[0].mxu0
  %v1327 = vadd.f32 %v762, %v1326
  %v1328 = vpop.f32.mrb[0].mxu0
  %1329 = vmatprep.mubr.f32.mxu0 %v189
  %1330 = vmatmul.mubr.f32.gmra.mrb[0].mxu0 %v188
  %v1331 = vpop.f32.mrb[0].mxu0
  %v1332 = vadd.f32 %v767, %v1331
  %v1333 = vpop.f32.mrb[0].mxu0
  %1334 = vmatprep.mubr.f32.mxu0 %v193
  %1335 = vmatmul.mubr.f32.gmra.mrb[0].mxu0 %v192
  %v1336 = vpop.f32.mrb[0].mxu0
  %v1337 = vadd.f32 %v772, %v1336
  %v1338 = vpop.f32.mrb[0].mxu0
  %1339 = vmatprep.mubr.f32.mxu0 %v197
  %1340 = vmatmul.mubr.f32.gmra.mrb[0].mxu0 %v196
  %v1341 = vpop.f32.mrb[0].mxu0
  %v1342 = vadd.f32 %v777, %v1341
  %v1343 = vpop.f32.mrb[0].mxu0
  %1344 = vmatprep.mubr.f32.mxu0 %v201
  %1345 = vmatmul.mubr.f32.gmra.mrb[0].mxu0 %v200
  %v1346 = vpop.f32.mrb[0].mxu0
  %v1347 = vadd.f32 %v782, %v1346
  %v1348 = vpop.f32.mrb[0].mxu0
  %1349 = vmatprep.mubr.f32.mxu0 %v205
  %1350 = vmatmul.mubr.f32.gmra.mrb[0].mxu0 %v204
  %v1351 = vpop.f32.mrb[0].mxu0
  %v1352 = vadd.f32 %v787, %v1351
  %v1353 = vpop.f32.mrb[0].mxu0
  %1354 = vmatprep.mubr.f32.mxu0 %v209
  %1355 = vmatmul.mubr.f32.gmra.mrb[0].mxu0 %v208
  %v1356 = vpop.f32.mrb[0].mxu0
  %v1357 = vadd.f32 %v792, %v1356
  %v1358 = vpop.f32.mrb[0].mxu0
  %1359 = vmatprep.mubr.f32.mxu0 %v213
  %1360 = vmatmul.mubr.f32.gmra.mrb[0].mxu0 %v212
  %v1361 = vpop.f32.mrb[0].mxu0
  %v1362 = vadd.f32 %v797, %v1361
  %v1363 = vpop.f32.mrb[0].mxu0
  %1364 = vmatprep.mubr.f32.mxu0 %v217
  %1365 = vmatmul.mubr.f32.gmra.mrb[0].mxu0 %v216
  %v1366 = vpop.f32.mrb[0].mxu0
  %v1367 = vadd.f32 %v802, %v1366
  %v1368 = vpop.f32.mrb[0].mxu0
  %1369 = vmatprep.mubr.f32.mxu0 %v221
  %1370 = vmatmul.mubr.f32.gmra.mrb[0].mxu0 %v220
  %v1371 = vpop.f32.mrb[0].mxu0
  %v1372 = vadd.f32 %v807, %v1371
  %v1373 = vpop.f32.mrb[0].mxu0
  %1374 = vmatprep.mubr.f32.mxu0 %v225
  %1375 = vmatmul.mubr.f32.gmra.mrb[0].mxu0 %v224
  %v1376 = vpop.f32.mrb[0].mxu0
  %v1377 = vadd.f32 %v812, %v1376
  %v1378 = vpop.f32.mrb[0].mxu0
  %1379 = vmatprep.mubr.f32.mxu0 %v229
  %1380 = vmatmul.mubr.f32.gmra.mrb[0].mxu0 %v228
  %v1381 = vpop.f32.mrb[0].mxu0
  %v1382 = vadd.f32 %v817, %v1381
  %v1383 = vpop.f32.mrb[0].mxu0
  %1384 = vmatprep.mubr.f32.mxu0 %v233
  %1385 = vmatmul.mubr.f32.gmra.mrb[0].mxu0 %v232
  %v1386 = vpop.f32.mrb[0].mxu0
  %v1387 = vadd.f32 %v822, %v1386
  %v1388 = vpop.f32.mrb[0].mxu0
  %1389 = vmatprep.mubr.f32.mxu0 %v237
  %1390 = vmatmul.mubr.f32.gmra.mrb[0].mxu0 %v236
  %v1391 = vpop.f32.mrb[0].mxu0
  %v1392 = vadd.f32 %v827, %v1391
  %v1393 = vpop.f32.mrb[0].mxu0
  %1394 = vmatprep.mubr.f32.mxu0 %v241
  %1395 = vmatmul.mubr.f32.gmra.mrb[0].mxu0 %v240
  %v1396 = vpop.f32.mrb[0].mxu0
  %v1397 = vadd.f32 %v832, %v1396
  %v1398 = vpop.f32.mrb[0].mxu0
  %1399 = vmatprep.mubr.f32.mxu0 %v245
  %1400 = vmatmul.mubr.f32.gmra.mrb[0].mxu0 %v244
  %v1401 = vpop.f32.mrb[0].mxu0
  %v1402 = vadd.f32 %v837, %v1401
  %v1403 = vpop.f32.mrb[0].mxu0
  %1404 = vmatprep.mubr.f32.mxu0 %v249
  %1405 = vmatmul.mubr.f32.gmra.mrb[0].mxu0 %v248
  %v1406 = vpop.f32.mrb[0].mxu0
  %v1407 = vadd.f32 %v842, %v1406
  %v1408 = vpop.f32.mrb[0].mxu0
  %1409 = vmatprep.mubr.f32.mxu0 %v253
  %1410 = vmatmul.mubr.f32.gmra.mrb[0].mxu0 %v252
  %v1411 = vpop.f32.mrb[0].mxu0
  %v1412 = vadd.f32 %v847, %v1411
  %v1413 = vpop.f32.mrb[0].mxu0
  %1414 = vmatprep.mubr.f32.mxu0 %v257
  %1415 = vmatmul.mubr.f32.gmra.mrb[0].mxu0 %v256
  %v1416 = vpop.f32.mrb[0].mxu0
  %v1417 = vadd.f32 %v852, %v1416
  %v1418 = vpop.f32.mrb[0].mxu0
  %1419 = vmatprep.mubr.f32.mxu0 %v261
  %1420 = vmatmul.mubr.f32.gmra.mrb[0].mxu0 %v260
  %v1421 = vpop.f32.mrb[0].mxu0
  %v1422 = vadd.f32 %v857, %v1421
  %v1423 = vpop.f32.mrb[0].mxu0
  %1424 = vmatprep.mubr.f32.mxu0 %v265
  %1425 = vmatmul.mubr.f32.gmra.mrb[0].mxu0 %v264
  %v1426 = vpop.f32.mrb[0].mxu0
  %v1427 = vadd.f32 %v862, %v1426
  %v1428 = vpop.f32.mrb[0].mxu0
  %1429 = vmatprep.mubr.f32.mxu0 %v269
  %1430 = vmatmul.mubr.f32.gmra.mrb[0].mxu0 %v268
  %v1431 = vpop.f32.mrb[0].mxu0
  %v1432 = vadd.f32 %v867, %v1431
  %v1433 = vpop.f32.mrb[0].mxu0
  %1434 = vmatprep.mubr.f32.mxu0 %v273
  %1435 = vmatmul.mubr.f32.gmra.mrb[0].mxu0 %v272
  %v1436 = vpop.f32.mrb[0].mxu0
  %v1437 = vadd.f32 %v872, %v1436
  %v1438 = vpop.f32.mrb[0].mxu0
  %1439 = vmatprep.mubr.f32.mxu0 %v277
  %1440 = vmatmul.mubr.f32.gmra.mrb[0].mxu0 %v276
  %v1441 = vpop.f32.mrb[0].mxu0
  %v1442 = vadd.f32 %v877, %v1441
  %v1443 = vpop.f32.mrb[0].mxu0
  %1444 = vmatprep.mubr.f32.mxu0 %v281
  %1445 = vmatmul.mubr.f32.gmra.mrb[0].mxu0 %v280
  %v1446 = vpop.f32.mrb[0].mxu0
  %v1447 = vadd.f32 %v882, %v1446
  %v1448 = vpop.f32.mrb[0].mxu0
  %1449 = vmatprep.mubr.f32.mxu0 %v285
  %1450 = vmatmul.mubr.f32.gmra.mrb[0].mxu0 %v284
  %v1451 = vpop.f32.mrb[0].mxu0
  %v1452 = vadd.f32 %v887, %v1451
  %v1453 = vpop.f32.mrb[0].mxu0
  %1454 = vmatprep.mubr.f32.mxu0 %v289
  %1455 = vmatmul.mubr.f32.gmra.mrb[0].mxu0 %v288
  %v1456 = vpop.f32.mrb[0].mxu0
  %v1457 = vadd.f32 %v892, %v1456
  %v1458 = vpop.f32.mrb[0].mxu0
  %1459 = vmatprep.mubr.f32.mxu0 %v293
  %1460 = vmatmul.mubr.f32.gmra.mrb[0].mxu0 %v292
  %v1461 = vpop.f32.mrb[0].mxu0
  %v1462 = vadd.f32 %v897, %v1461
  %v1463 = vpop.f32.mrb[0].mxu0
  %1464 = vmatprep.mubr.f32.mxu0 %v297
  %1465 = vmatmul.mubr.f32.gmra.mrb[0].mxu0 %v296
  %v1466 = vpop.f32.mrb[0].mxu0
  %v1467 = vadd.f32 %v902, %v1466
  %v1468 = vpop.f32.mrb[0].mxu0
  %1469 = vmatprep.mubr.f32.mxu0 %v301
  %1470 = vmatmul.mubr.f32.gmra.mrb[0].mxu0 %v300
  %v1471 = vpop.f32.mrb[0].mxu0
  %v1472 = vadd.f32 %v907, %v1471
  %v1473 = vpop.f32.mrb[0].mxu0
  %1474 = vmatprep.mubr.f32.mxu0 %v305
  %1475 = vmatmul.mubr.f32.gmra.mrb[0].mxu0 %v304
  %v1476 = vpop.f32.mrb[0].mxu0
  %v1477 = vadd.f32 %v912, %v1476
  %v1478 = vpop.f32.mrb[0].mxu0
  %1479 = vmatprep.mubr.f32.mxu0 %v309
  %1480 = vmatmul.mubr.f32.gmra.mrb[0].mxu0 %v308
  %v1481 = vpop.f32.mrb[0].mxu0
  %v1482 = vadd.f32 %v917, %v1481
  %v1483 = vpop.f32.mrb[0].mxu0
  %1484 = vmatprep.mubr.f32.mxu0 %v313
  %1485 = vmatmul.mubr.f32.gmra.mrb[0].mxu0 %v312
  %v1486 = vpop.f32.mrb[0].mxu0
  %v1487 = vadd.f32 %v922, %v1486
  %v1488 = vpop.f32.mrb[0].mxu0
  %1489 = vmatprep.mubr.f32.mxu0 %v317
  %1490 = vmatmul.mubr.f32.gmra.mrb[0].mxu0 %v316
  %v1491 = vpop.f32.mrb[0].mxu0
  %v1492 = vadd.f32 %v927, %v1491
  %v1493 = vpop.f32.mrb[0].mxu0
  %1494 = vmatprep.mubr.f32.mxu0 %v321
  %1495 = vmatmul.mubr.f32.gmra.mrb[0].mxu0 %v320
  %v1496 = vpop.f32.mrb[0].mxu0
  %v1497 = vadd.f32 %v932, %v1496
  %v1498 = vpop.f32.mrb[0].mxu0
  %1499 = vmatprep.mubr.f32.mxu0 %v325
  %1500 = vmatmul.mubr.f32.gmra.mrb[0].mxu0 %v324
  %v1501 = vpop.f32.mrb[0].mxu0
  %v1502 = vadd.f32 %v937, %v1501
  %v1503 = vpop.f32.mrb[0].mxu0
  %1504 = vmatprep.mubr.f32.mxu0 %v329
  %1505 = vmatmul.mubr.f32.gmra.mrb[0].mxu0 %v328
  %v1506 = vpop.f32.mrb[0].mxu0
  %v1507 = vadd.f32 %v942, %v1506
  %v1508 = vpop.f32.mrb[0].mxu0
  %1509 = vmatprep.mubr.f32.mxu0 %v333
  %1510 = vmatmul.mubr.f32.gmra.mrb[0].mxu0 %v332
  %v1511 = vpop.f32.mrb[0].mxu0
  %v1512 = vadd.f32 %v947, %v1511
  %v1513 = vpop.f32.mrb[0].mxu0
  %1514 = vmatprep.mubr.f32.mxu0 %v337
  %1515 = vmatmul.mubr.f32.gmra.mrb[0].mxu0 %v336
  %v1516 = vpop.f32.mrb[0].mxu0
  %v1517 = vadd.f32 %v952, %v1516
  %v1518 = vpop.f32.mrb[0].mxu0
  %1519 = vmatprep.mubr.f32.mxu0 %v341
  %1520 = vmatmul.mubr.f32.gmra.mrb[0].mxu0 %v340
  %v1521 = vpop.f32.mrb[0].mxu0
  %v1522 = vadd.f32 %v957, %v1521
  %v1523 = vpop.f32.mrb[0].mxu0
  %1524 = vmatprep.mubr.f32.mxu0 %v345
  %1525 = vmatmul.mubr.f32.gmra.mrb[0].mxu0 %v344
  %v1526 = vpop.f32.mrb[0].mxu0
  %v1527 = vadd.f32 %v962, %v1526
  %v1528 = vpop.f32.mrb[0].mxu0
  %1529 = vmatprep.mubr.f32.mxu0 %v349
  %1530 = vmatmul.mubr.f32.gmra.mrb[0].mxu0 %v348
  %v1531 = vpop.f32.mrb[0].mxu0
  %v1532 = vadd.f32 %v967, %v1531
  %v1533 = vpop.f32.mrb[0].mxu0
  %1534 = vmatprep.mubr.f32.mxu0 %v353
  %1535 = vmatmul.mubr.f32.gmra.mrb[0].mxu0 %v352
  %v1536 = vpop.f32.mrb[0].mxu0
  %v1537 = vadd.f32 %v972, %v1536
  %v1538 = vpop.f32.mrb[0].mxu0
  %1539 = vmatprep.mubr.f32.mxu0 %v357
  %1540 = vmatmul.mubr.f32.gmra.mrb[0].mxu0 %v356
  %v1541 = vpop.f32.mrb[0].mxu0
  %v1542 = vadd.f32 %v977, %v1541
  %v1543 = vpop.f32.mrb[0].mxu0
  %1544 = vmatprep.mubr.f32.mxu0 %v361
  %1545 = vmatmul.mubr.f32.gmra.mrb[0].mxu0 %v360
  %v1546 = vpop.f32.mrb[0].mxu0
  %v1547 = vadd.f32 %v982, %v1546
  %v1548 = vpop.f32.mrb[0].mxu0
  %1549 = vmatprep.mubr.f32.mxu0 %v365
  %1550 = vmatmul.mubr.f32.gmra.mrb[0].mxu0 %v364
  %v1551 = vpop.f32.mrb[0].mxu0
  %v1552 = vadd.f32 %v987, %v1551
  %v1553 = vpop.f32.mrb[0].mxu0
  %1554 = vmatprep.mubr.f32.mxu0 %v369
  %1555 = vmatmul.mubr.f32.gmra.mrb[0].mxu0 %v368
  %v1556 = vpop.f32.mrb[0].mxu0
  %v1557 = vadd.f32 %v992, %v1556
  %v1558 = vpop.f32.mrb[0].mxu0
  %1559 = vmatprep.mubr.f32.mxu0 %v373
  %1560 = vmatmul.mubr.f32.gmra.mrb[0].mxu0 %v372
  %v1561 = vpop.f32.mrb[0].mxu0
  %v1562 = vadd.f32 %v997, %v1561
  %v1563 = vpop.f32.mrb[0].mxu0
  %1564 = vmatprep.mubr.f32.mxu0 %v377
  %1565 = vmatmul.mubr.f32.gmra.mrb[0].mxu0 %v376
  %v1566 = vpop.f32.mrb[0].mxu0
  %v1567 = vadd.f32 %v1002, %v1566
  %v1568 = vpop.f32.mrb[0].mxu0
  %1569 = vmatprep.mubr.f32.mxu0 %v381
  %1570 = vmatmul.mubr.f32.gmra.mrb[0].mxu0 %v380
  %v1571 = vpop.f32.mrb[0].mxu0
  %v1572 = vadd.f32 %v1007, %v1571
  %v1573 = vpop.f32.mrb[0].mxu0
  %1574 = vmatprep.mubr.f32.mxu0 %v385
  %1575 = vmatmul.mubr.f32.gmra.mrb[0].mxu0 %v384
  %v1576 = vpop.f32.mrb[0].mxu0
  %v1577 = vadd.f32 %v1012, %v1576
  %v1578 = vpop.f32.mrb[0].mxu0
  %1579 = vmatprep.mubr.f32.mxu0 %v389
  %1580 = vmatmul.mubr.f32.gmra.mrb[0].mxu0 %v388
  %v1581 = vpop.f32.mrb[0].mxu0
  %v1582 = vadd.f32 %v1017, %v1581
  %v1583 = vpop.f32.mrb[0].mxu0
  %1584 = vmatprep.mubr.f32.mxu0 %v393
  %1585 = vmatmul.mubr.f32.gmra.mrb[0].mxu0 %v392
  %v1586 = vpop.f32.mrb[0].mxu0
  %v1587 = vadd.f32 %v1022, %v1586
  %v1588 = vpop.f32.mrb[0].mxu0
  %1589 = vmatprep.mubr.f32.mxu0 %v397
  %1590 = vmatmul.mubr.f32.gmra.mrb[0].mxu0 %v396
  %v1591 = vpop.f32.mrb[0].mxu0
  %v1592 = vadd.f32 %v1027, %v1591
  %v1593 = vpop.f32.mrb[0].mxu0
  %1594 = vmatprep.mubr.f32.mxu0 %v401
  %1595 = vmatmul.mubr.f32.gmra.mrb[0].mxu0 %v400
  %v1596 = vpop.f32.mrb[0].mxu0
  %v1597 = vadd.f32 %v1032, %v1596
  %v1598 = vpop.f32.mrb[0].mxu0
  %1599 = vmatprep.mubr.f32.mxu0 %v405
  %1600 = vmatmul.mubr.f32.gmra.mrb[0].mxu0 %v404
  %v1601 = vpop.f32.mrb[0].mxu0
  %v1602 = vadd.f32 %v1037, %v1601
  %v1603 = vpop.f32.mrb[0].mxu0
  %1604 = vmatprep.mubr.f32.mxu0 %v409
  %1605 = vmatmul.mubr.f32.gmra.mrb[0].mxu0 %v408
  %v1606 = vpop.f32.mrb[0].mxu0
  %v1607 = vadd.f32 %v1042, %v1606
  %v1608 = vpop.f32.mrb[0].mxu0
  %1609 = vmatprep.mubr.f32.mxu0 %v413
  %1610 = vmatmul.mubr.f32.gmra.mrb[0].mxu0 %v412
  %v1611 = vpop.f32.mrb[0].mxu0
  %v1612 = vadd.f32 %v1047, %v1611
  %v1613 = vpop.f32.mrb[0].mxu0
  %1614 = vdwg.mxu0
  %vm1615 = vcmp.gt.f32.partialorder %v1117, 0.0
  %vm1616 = vcmp.gt.f32.partialorder %v1122, 0.0
  %vm1617 = vcmp.gt.f32.partialorder %v1127, 0.0
  %vm1618 = vcmp.gt.f32.partialorder %v1132, 0.0
  %vm1619 = vcmp.gt.f32.partialorder %v1137, 0.0
  %vm1620 = vcmp.gt.f32.partialorder %v1142, 0.0
  %vm1621 = vcmp.gt.f32.partialorder %v1147, 0.0
  %vm1622 = vcmp.gt.f32.partialorder %v1152, 0.0
  %vm1623 = vcmp.gt.f32.partialorder %v1157, 0.0
  %vm1624 = vcmp.gt.f32.partialorder %v1162, 0.0
  %vm1625 = vcmp.gt.f32.partialorder %v1167, 0.0
  %vm1626 = vcmp.gt.f32.partialorder %v1172, 0.0
  %vm1627 = vcmp.gt.f32.partialorder %v1177, 0.0
  %vm1628 = vcmp.gt.f32.partialorder %v1182, 0.0
  %vm1629 = vcmp.gt.f32.partialorder %v1187, 0.0
  %vm1630 = vcmp.gt.f32.partialorder %v1192, 0.0
  %vm1631 = vcmp.gt.f32.partialorder %v1197, 0.0
  %vm1632 = vcmp.gt.f32.partialorder %v1202, 0.0
  %vm1633 = vcmp.gt.f32.partialorder %v1207, 0.0
  %vm1634 = vcmp.gt.f32.partialorder %v1212, 0.0
  %vm1635 = vcmp.gt.f32.partialorder %v1217, 0.0
  %vm1636 = vcmp.gt.f32.partialorder %v1222, 0.0
  %vm1637 = vcmp.gt.f32.partialorder %v1227, 0.0
  %vm1638 = vcmp.gt.f32.partialorder %v1232, 0.0
  %vm1639 = vcmp.gt.f32.partialorder %v1237, 0.0
  %vm1640 = vcmp.gt.f32.partialorder %v1242, 0.0
  %vm1641 = vcmp.gt.f32.partialorder %v1247, 0.0
  %vm1642 = vcmp.gt.f32.partialorder %v1252, 0.0
  %vm1643 = vcmp.gt.f32.partialorder %v1257, 0.0
  %vm1644 = vcmp.gt.f32.partialorder %v1262, 0.0
  %vm1645 = vcmp.gt.f32.partialorder %v1267, 0.0
  %vm1646 = vcmp.gt.f32.partialorder %v1272, 0.0
  %vm1647 = vcmp.gt.f32.partialorder %v1277, 0.0
  %vm1648 = vcmp.gt.f32.partialorder %v1282, 0.0
  %vm1649 = vcmp.gt.f32.partialorder %v1287, 0.0
  %vm1650 = vcmp.gt.f32.partialorder %v1292, 0.0
  %vm1651 = vcmp.gt.f32.partialorder %v1297, 0.0
  %vm1652 = vcmp.gt.f32.partialorder %v1302, 0.0
  %vm1653 = vcmp.gt.f32.partialorder %v1307, 0.0
  %vm1654 = vcmp.gt.f32.partialorder %v1312, 0.0
  %vm1655 = vcmp.gt.f32.partialorder %v1317, 0.0
  %vm1656 = vcmp.gt.f32.partialorder %v1322, 0.0
  %vm1657 = vcmp.gt.f32.partialorder %v1327, 0.0
  %vm1658 = vcmp.gt.f32.partialorder %v1332, 0.0
  %vm1659 = vcmp.gt.f32.partialorder %v1337, 0.0
  %vm1660 = vcmp.gt.f32.partialorder %v1342, 0.0
  %vm1661 = vcmp.gt.f32.partialorder %v1347, 0.0
  %vm1662 = vcmp.gt.f32.partialorder %v1352, 0.0
  %vm1663 = vcmp.gt.f32.partialorder %v1357, 0.0
  %vm1664 = vcmp.gt.f32.partialorder %v1362, 0.0
  %vm1665 = vcmp.gt.f32.partialorder %v1367, 0.0
  %vm1666 = vcmp.gt.f32.partialorder %v1372, 0.0
  %vm1667 = vcmp.gt.f32.partialorder %v1377, 0.0
  %vm1668 = vcmp.gt.f32.partialorder %v1382, 0.0
  %vm1669 = vcmp.gt.f32.partialorder %v1387, 0.0
  %vm1670 = vcmp.gt.f32.partialorder %v1392, 0.0
  %vm1671 = vcmp.gt.f32.partialorder %v1397, 0.0
  %vm1672 = vcmp.gt.f32.partialorder %v1402, 0.0
  %vm1673 = vcmp.gt.f32.partialorder %v1407, 0.0
  %vm1674 = vcmp.gt.f32.partialorder %v1412, 0.0
  %vm1675 = vcmp.gt.f32.partialorder %v1417, 0.0
  %vm1676 = vcmp.gt.f32.partialorder %v1422, 0.0
  %vm1677 = vcmp.gt.f32.partialorder %v1427, 0.0
  %vm1678 = vcmp.gt.f32.partialorder %v1432, 0.0
  %vm1679 = vcmp.gt.f32.partialorder %v1437, 0.0
  %vm1680 = vcmp.gt.f32.partialorder %v1442, 0.0
  %vm1681 = vcmp.gt.f32.partialorder %v1447, 0.0
  %vm1682 = vcmp.gt.f32.partialorder %v1452, 0.0
  %vm1683 = vcmp.gt.f32.partialorder %v1457, 0.0
  %vm1684 = vcmp.gt.f32.partialorder %v1462, 0.0
  %vm1685 = vcmp.gt.f32.partialorder %v1467, 0.0
  %vm1686 = vcmp.gt.f32.partialorder %v1472, 0.0
  %vm1687 = vcmp.gt.f32.partialorder %v1477, 0.0
  %vm1688 = vcmp.gt.f32.partialorder %v1482, 0.0
  %vm1689 = vcmp.gt.f32.partialorder %v1487, 0.0
  %vm1690 = vcmp.gt.f32.partialorder %v1492, 0.0
  %vm1691 = vcmp.gt.f32.partialorder %v1497, 0.0
  %vm1692 = vcmp.gt.f32.partialorder %v1502, 0.0
  %vm1693 = vcmp.gt.f32.partialorder %v1507, 0.0
  %vm1694 = vcmp.gt.f32.partialorder %v1512, 0.0
  %vm1695 = vcmp.gt.f32.partialorder %v1517, 0.0
  %vm1696 = vcmp.gt.f32.partialorder %v1522, 0.0
  %vm1697 = vcmp.gt.f32.partialorder %v1527, 0.0
  %vm1698 = vcmp.gt.f32.partialorder %v1532, 0.0
  %vm1699 = vcmp.gt.f32.partialorder %v1537, 0.0
  %vm1700 = vcmp.gt.f32.partialorder %v1542, 0.0
  %vm1701 = vcmp.gt.f32.partialorder %v1547, 0.0
  %vm1702 = vcmp.gt.f32.partialorder %v1552, 0.0
  %vm1703 = vcmp.gt.f32.partialorder %v1557, 0.0
  %vm1704 = vcmp.gt.f32.partialorder %v1562, 0.0
  %vm1705 = vcmp.gt.f32.partialorder %v1567, 0.0
  %vm1706 = vcmp.gt.f32.partialorder %v1572, 0.0
  %vm1707 = vcmp.gt.f32.partialorder %v1577, 0.0
  %vm1708 = vcmp.gt.f32.partialorder %v1582, 0.0
  %vm1709 = vcmp.gt.f32.partialorder %v1587, 0.0
  %vm1710 = vcmp.gt.f32.partialorder %v1592, 0.0
  %vm1711 = vcmp.gt.f32.partialorder %v1597, 0.0
  %vm1712 = vcmp.gt.f32.partialorder %v1602, 0.0
  %vm1713 = vcmp.gt.f32.partialorder %v1607, 0.0
  %vm1714 = vcmp.gt.f32.partialorder %v1612, 0.0
  %v1715 = vmul.f32 %v1117, 1.442695
  %v1716 = vpow.pop %v1715
  %v1717 = vmul.f32 %v1122, 1.442695
  %v1718 = vpow.pop %v1717
  %v1719 = vmul.f32 %v1127, 1.442695
  %v1720 = vpow.pop %v1719
  %v1721 = vmul.f32 %v1132, 1.442695
  %v1722 = vpow.pop %v1721
  %v1723 = vmul.f32 %v1137, 1.442695
  %v1724 = vpow.pop %v1723
  %v1725 = vmul.f32 %v1142, 1.442695
  %v1726 = vpow.pop %v1725
  %v1727 = vmul.f32 %v1147, 1.442695
  %v1728 = vpow.pop %v1727
  %v1729 = vmul.f32 %v1152, 1.442695
  %v1730 = vpow.pop %v1729
  %v1731 = vmul.f32 %v1157, 1.442695
  %v1732 = vpow.pop %v1731
  %v1733 = vmul.f32 %v1162, 1.442695
  %v1734 = vpow.pop %v1733
  %v1735 = vmul.f32 %v1167, 1.442695
  %v1736 = vpow.pop %v1735
  %v1737 = vmul.f32 %v1172, 1.442695
  %v1738 = vpow.pop %v1737
  %v1739 = vmul.f32 %v1177, 1.442695
  %v1740 = vpow.pop %v1739
  %v1741 = vmul.f32 %v1182, 1.442695
  %v1742 = vpow.pop %v1741
  %v1743 = vmul.f32 %v1187, 1.442695
  %v1744 = vpow.pop %v1743
  %v1745 = vmul.f32 %v1192, 1.442695
  %v1746 = vpow.pop %v1745
  %v1747 = vmul.f32 %v1197, 1.442695
  %v1748 = vpow.pop %v1747
  %v1749 = vmul.f32 %v1202, 1.442695
  %v1750 = vpow.pop %v1749
  %v1751 = vmul.f32 %v1207, 1.442695
  %v1752 = vpow.pop %v1751
  %v1753 = vmul.f32 %v1212, 1.442695
  %v1754 = vpow.pop %v1753
  %v1755 = vmul.f32 %v1217, 1.442695
  %v1756 = vpow.pop %v1755
  %v1757 = vmul.f32 %v1222, 1.442695
  %v1758 = vpow.pop %v1757
  %v1759 = vmul.f32 %v1227, 1.442695
  %v1760 = vpow.pop %v1759
  %v1761 = vmul.f32 %v1232, 1.442695
  %v1762 = vpow.pop %v1761
  %v1763 = vmul.f32 %v1237, 1.442695
  %v1764 = vpow.pop %v1763
  %v1765 = vmul.f32 %v1242, 1.442695
  %v1766 = vpow.pop %v1765
  %v1767 = vmul.f32 %v1247, 1.442695
  %v1768 = vpow.pop %v1767
  %v1769 = vmul.f32 %v1252, 1.442695
  %v1770 = vpow.pop %v1769
  %v1771 = vmul.f32 %v1257, 1.442695
  %v1772 = vpow.pop %v1771
  %v1773 = vmul.f32 %v1262, 1.442695
  %v1774 = vpow.pop %v1773
  %v1775 = vmul.f32 %v1267, 1.442695
  %v1776 = vpow.pop %v1775
  %v1777 = vmul.f32 %v1272, 1.442695
  %v1778 = vpow.pop %v1777
  %v1779 = vmul.f32 %v1277, 1.442695
  %v1780 = vpow.pop %v1779
  %v1781 = vmul.f32 %v1282, 1.442695
  %v1782 = vpow.pop %v1781
  %v1783 = vmul.f32 %v1287, 1.442695
  %v1784 = vpow.pop %v1783
  %v1785 = vmul.f32 %v1292, 1.442695
  %v1786 = vpow.pop %v1785
  %v1787 = vmul.f32 %v1297, 1.442695
  %v1788 = vpow.pop %v1787
  %v1789 = vmul.f32 %v1302, 1.442695
  %v1790 = vpow.pop %v1789
  %v1791 = vmul.f32 %v1307, 1.442695
  %v1792 = vpow.pop %v1791
  %v1793 = vmul.f32 %v1312, 1.442695
  %v1794 = vpow.pop %v1793
  %v1795 = vmul.f32 %v1317, 1.442695
  %v1796 = vpow.pop %v1795
  %v1797 = vmul.f32 %v1322, 1.442695
  %v1798 = vpow.pop %v1797
  %v1799 = vmul.f32 %v1327, 1.442695
  %v1800 = vpow.pop %v1799
  %v1801 = vmul.f32 %v1332, 1.442695
  %v1802 = vpow.pop %v1801
  %v1803 = vmul.f32 %v1337, 1.442695
  %v1804 = vpow.pop %v1803
  %v1805 = vmul.f32 %v1342, 1.442695
  %v1806 = vpow.pop %v1805
  %v1807 = vmul.f32 %v1347, 1.442695
  %v1808 = vpow.pop %v1807
  %v1809 = vmul.f32 %v1352, 1.442695
  %v1810 = vpow.pop %v1809
  %v1811 = vmul.f32 %v1357, 1.442695
  %v1812 = vpow.pop %v1811
  %v1813 = vmul.f32 %v1362, 1.442695
  %v1814 = vpow.pop %v1813
  %v1815 = vmul.f32 %v1367, 1.442695
  %v1816 = vpow.pop %v1815
  %v1817 = vmul.f32 %v1372, 1.442695
  %v1818 = vpow.pop %v1817
  %v1819 = vmul.f32 %v1377, 1.442695
  %v1820 = vpow.pop %v1819
  %v1821 = vmul.f32 %v1382, 1.442695
  %v1822 = vpow.pop %v1821
  %v1823 = vmul.f32 %v1387, 1.442695
  %v1824 = vpow.pop %v1823
  %v1825 = vmul.f32 %v1392, 1.442695
  %v1826 = vpow.pop %v1825
  %v1827 = vmul.f32 %v1397, 1.442695
  %v1828 = vpow.pop %v1827
  %v1829 = vmul.f32 %v1402, 1.442695
  %v1830 = vpow.pop %v1829
  %v1831 = vmul.f32 %v1407, 1.442695
  %v1832 = vpow.pop %v1831
  %v1833 = vmul.f32 %v1412, 1.442695
  %v1834 = vpow.pop %v1833
  %v1835 = vmul.f32 %v1417, 1.442695
  %v1836 = vpow.pop %v1835
  %v1837 = vmul.f32 %v1422, 1.442695
  %v1838 = vpow.pop %v1837
  %v1839 = vmul.f32 %v1427, 1.442695
  %v1840 = vpow.pop %v1839
  %v1841 = vmul.f32 %v1432, 1.442695
  %v1842 = vpow.pop %v1841
  %v1843 = vmul.f32 %v1437, 1.442695
  %v1844 = vpow.pop %v1843
  %v1845 = vmul.f32 %v1442, 1.442695
  %v1846 = vpow.pop %v1845
  %v1847 = vmul.f32 %v1447, 1.442695
  %v1848 = vpow.pop %v1847
  %v1849 = vmul.f32 %v1452, 1.442695
  %v1850 = vpow.pop %v1849
  %v1851 = vmul.f32 %v1457, 1.442695
  %v1852 = vpow.pop %v1851
  %v1853 = vmul.f32 %v1462, 1.442695
  %v1854 = vpow.pop %v1853
  %v1855 = vmul.f32 %v1467, 1.442695
  %v1856 = vpow.pop %v1855
  %v1857 = vmul.f32 %v1472, 1.442695
  %v1858 = vpow.pop %v1857
  %v1859 = vmul.f32 %v1477, 1.442695
  %v1860 = vpow.pop %v1859
  %v1861 = vmul.f32 %v1482, 1.442695
  %v1862 = vpow.pop %v1861
  %v1863 = vmul.f32 %v1487, 1.442695
  %v1864 = vpow.pop %v1863
  %v1865 = vmul.f32 %v1492, 1.442695
  %v1866 = vpow.pop %v1865
  %v1867 = vmul.f32 %v1497, 1.442695
  %v1868 = vpow.pop %v1867
  %v1869 = vmul.f32 %v1502, 1.442695
  %v1870 = vpow.pop %v1869
  %v1871 = vmul.f32 %v1507, 1.442695
  %v1872 = vpow.pop %v1871
  %v1873 = vmul.f32 %v1512, 1.442695
  %v1874 = vpow.pop %v1873
  %v1875 = vmul.f32 %v1517, 1.442695
  %v1876 = vpow.pop %v1875
  %v1877 = vmul.f32 %v1522, 1.442695
  %v1878 = vpow.pop %v1877
  %v1879 = vmul.f32 %v1527, 1.442695
  %v1880 = vpow.pop %v1879
  %v1881 = vmul.f32 %v1532, 1.442695
  %v1882 = vpow.pop %v1881
  %v1883 = vmul.f32 %v1537, 1.442695
  %v1884 = vpow.pop %v1883
  %v1885 = vmul.f32 %v1542, 1.442695
  %v1886 = vpow.pop %v1885
  %v1887 = vmul.f32 %v1547, 1.442695
  %v1888 = vpow.pop %v1887
  %v1889 = vmul.f32 %v1552, 1.442695
  %v1890 = vpow.pop %v1889
  %v1891 = vmul.f32 %v1557, 1.442695
  %v1892 = vpow.pop %v1891
  %v1893 = vmul.f32 %v1562, 1.442695
  %v1894 = vpow.pop %v1893
  %v1895 = vmul.f32 %v1567, 1.442695
  %v1896 = vpow.pop %v1895
  %v1897 = vmul.f32 %v1572, 1.442695
  %v1898 = vpow.pop %v1897
  %v1899 = vmul.f32 %v1577, 1.442695
  %v1900 = vpow.pop %v1899
  %v1901 = vmul.f32 %v1582, 1.442695
  %v1902 = vpow.pop %v1901
  %v1903 = vmul.f32 %v1587, 1.442695
  %v1904 = vpow.pop %v1903
  %v1905 = vmul.f32 %v1592, 1.442695
  %v1906 = vpow.pop %v1905
  %v1907 = vmul.f32 %v1597, 1.442695
  %v1908 = vpow.pop %v1907
  %v1909 = vmul.f32 %v1602, 1.442695
  %v1910 = vpow.pop %v1909
  %v1911 = vmul.f32 %v1607, 1.442695
  %v1912 = vpow.pop %v1911
  %v1913 = vmul.f32 %v1612, 1.442695
  %v1914 = vpow.pop %v1913
  %v1915 = vsub.f32 %v1716, 1.0
  %v1916 = vsub.f32 %v1718, 1.0
  %v1917 = vsub.f32 %v1720, 1.0
  %v1918 = vsub.f32 %v1722, 1.0
  %v1919 = vsub.f32 %v1724, 1.0
  %v1920 = vsub.f32 %v1726, 1.0
  %v1921 = vsub.f32 %v1728, 1.0
  %v1922 = vsub.f32 %v1730, 1.0
  %v1923 = vsub.f32 %v1732, 1.0
  %v1924 = vsub.f32 %v1734, 1.0
  %v1925 = vsub.f32 %v1736, 1.0
  %v1926 = vsub.f32 %v1738, 1.0
  %v1927 = vsub.f32 %v1740, 1.0
  %v1928 = vsub.f32 %v1742, 1.0
  %v1929 = vsub.f32 %v1744, 1.0
  %v1930 = vsub.f32 %v1746, 1.0
  %v1931 = vsub.f32 %v1748, 1.0
  %v1932 = vsub.f32 %v1750, 1.0
  %v1933 = vsub.f32 %v1752, 1.0
  %v1934 = vsub.f32 %v1754, 1.0
  %v1935 = vsub.f32 %v1756, 1.0
  %v1936 = vsub.f32 %v1758, 1.0
  %v1937 = vsub.f32 %v1760, 1.0
  %v1938 = vsub.f32 %v1762, 1.0
  %v1939 = vsub.f32 %v1764, 1.0
  %v1940 = vsub.f32 %v1766, 1.0
  %v1941 = vsub.f32 %v1768, 1.0
  %v1942 = vsub.f32 %v1770, 1.0
  %v1943 = vsub.f32 %v1772, 1.0
  %v1944 = vsub.f32 %v1774, 1.0
  %v1945 = vsub.f32 %v1776, 1.0
  %v1946 = vsub.f32 %v1778, 1.0
  %v1947 = vsub.f32 %v1780, 1.0
  %v1948 = vsub.f32 %v1782, 1.0
  %v1949 = vsub.f32 %v1784, 1.0
  %v1950 = vsub.f32 %v1786, 1.0
  %v1951 = vsub.f32 %v1788, 1.0
  %v1952 = vsub.f32 %v1790, 1.0
  %v1953 = vsub.f32 %v1792, 1.0
  %v1954 = vsub.f32 %v1794, 1.0
  %v1955 = vsub.f32 %v1796, 1.0
  %v1956 = vsub.f32 %v1798, 1.0
  %v1957 = vsub.f32 %v1800, 1.0
  %v1958 = vsub.f32 %v1802, 1.0
  %v1959 = vsub.f32 %v1804, 1.0
  %v1960 = vsub.f32 %v1806, 1.0
  %v1961 = vsub.f32 %v1808, 1.0
  %v1962 = vsub.f32 %v1810, 1.0
  %v1963 = vsub.f32 %v1812, 1.0
  %v1964 = vsub.f32 %v1814, 1.0
  %v1965 = vsub.f32 %v1816, 1.0
  %v1966 = vsub.f32 %v1818, 1.0
  %v1967 = vsub.f32 %v1820, 1.0
  %v1968 = vsub.f32 %v1822, 1.0
  %v1969 = vsub.f32 %v1824, 1.0
  %v1970 = vsub.f32 %v1826, 1.0
  %v1971 = vsub.f32 %v1828, 1.0
  %v1972 = vsub.f32 %v1830, 1.0
  %v1973 = vsub.f32 %v1832, 1.0
  %v1974 = vsub.f32 %v1834, 1.0
  %v1975 = vsub.f32 %v1836, 1.0
  %v1976 = vsub.f32 %v1838, 1.0
  %v1977 = vsub.f32 %v1840, 1.0
  %v1978 = vsub.f32 %v1842, 1.0
  %v1979 = vsub.f32 %v1844, 1.0
  %v1980 = vsub.f32 %v1846, 1.0
  %v1981 = vsub.f32 %v1848, 1.0
  %v1982 = vsub.f32 %v1850, 1.0
  %v1983 = vsub.f32 %v1852, 1.0
  %v1984 = vsub.f32 %v1854, 1.0
  %v1985 = vsub.f32 %v1856, 1.0
  %v1986 = vsub.f32 %v1858, 1.0
  %v1987 = vsub.f32 %v1860, 1.0
  %v1988 = vsub.f32 %v1862, 1.0
  %v1989 = vsub.f32 %v1864, 1.0
  %v1990 = vsub.f32 %v1866, 1.0
  %v1991 = vsub.f32 %v1868, 1.0
  %v1992 = vsub.f32 %v1870, 1.0
  %v1993 = vsub.f32 %v1872, 1.0
  %v1994 = vsub.f32 %v1874, 1.0
  %v1995 = vsub.f32 %v1876, 1.0
  %v1996 = vsub.f32 %v1878, 1.0
  %v1997 = vsub.f32 %v1880, 1.0
  %v1998 = vsub.f32 %v1882, 1.0
  %v1999 = vsub.f32 %v1884, 1.0
  %v2000 = vsub.f32 %v1886, 1.0
  %v2001 = vsub.f32 %v1888, 1.0
  %v2002 = vsub.f32 %v1890, 1.0
  %v2003 = vsub.f32 %v1892, 1.0
  %v2004 = vsub.f32 %v1894, 1.0
  %v2005 = vsub.f32 %v1896, 1.0
  %v2006 = vsub.f32 %v1898, 1.0
  %v2007 = vsub.f32 %v1900, 1.0
  %v2008 = vsub.f32 %v1902, 1.0
  %v2009 = vsub.f32 %v1904, 1.0
  %v2010 = vsub.f32 %v1906, 1.0
  %v2011 = vsub.f32 %v1908, 1.0
  %v2012 = vsub.f32 %v1910, 1.0
  %v2013 = vsub.f32 %v1912, 1.0
  %v2014 = vsub.f32 %v1914, 1.0
  %v2015 = vsel %vm1615, %v1117, %v1915
  %v2016 = vsel %vm1616, %v1122, %v1916
  %v2017 = vsel %vm1617, %v1127, %v1917
  %v2018 = vsel %vm1618, %v1132, %v1918
  %v2019 = vsel %vm1619, %v1137, %v1919
  %v2020 = vsel %vm1620, %v1142, %v1920
  %v2021 = vsel %vm1621, %v1147, %v1921
  %v2022 = vsel %vm1622, %v1152, %v1922
  %v2023 = vsel %vm1623, %v1157, %v1923
  %v2024 = vsel %vm1624, %v1162, %v1924
  %v2025 = vsel %vm1625, %v1167, %v1925
  %v2026 = vsel %vm1626, %v1172, %v1926
  %v2027 = vsel %vm1627, %v1177, %v1927
  %v2028 = vsel %vm1628, %v1182, %v1928
  %v2029 = vsel %vm1629, %v1187, %v1929
  %v2030 = vsel %vm1630, %v1192, %v1930
  %v2031 = vsel %vm1631, %v1197, %v1931
  %v2032 = vsel %vm1632, %v1202, %v1932
  %v2033 = vsel %vm1633, %v1207, %v1933
  %v2034 = vsel %vm1634, %v1212, %v1934
  %v2035 = vsel %vm1635, %v1217, %v1935
  %v2036 = vsel %vm1636, %v1222, %v1936
  %v2037 = vsel %vm1637, %v1227, %v1937
  %v2038 = vsel %vm1638, %v1232, %v1938
  %v2039 = vsel %vm1639, %v1237, %v1939
  %v2040 = vsel %vm1640, %v1242, %v1940
  %v2041 = vsel %vm1641, %v1247, %v1941
  %v2042 = vsel %vm1642, %v1252, %v1942
  %v2043 = vsel %vm1643, %v1257, %v1943
  %v2044 = vsel %vm1644, %v1262, %v1944
  %v2045 = vsel %vm1645, %v1267, %v1945
  %v2046 = vsel %vm1646, %v1272, %v1946
  %v2047 = vsel %vm1647, %v1277, %v1947
  %v2048 = vsel %vm1648, %v1282, %v1948
  %v2049 = vsel %vm1649, %v1287, %v1949
  %v2050 = vsel %vm1650, %v1292, %v1950
  %v2051 = vsel %vm1651, %v1297, %v1951
  %v2052 = vsel %vm1652, %v1302, %v1952
  %v2053 = vsel %vm1653, %v1307, %v1953
  %v2054 = vsel %vm1654, %v1312, %v1954
  %v2055 = vsel %vm1655, %v1317, %v1955
  %v2056 = vsel %vm1656, %v1322, %v1956
  %v2057 = vsel %vm1657, %v1327, %v1957
  %v2058 = vsel %vm1658, %v1332, %v1958
  %v2059 = vsel %vm1659, %v1337, %v1959
  %v2060 = vsel %vm1660, %v1342, %v1960
  %v2061 = vsel %vm1661, %v1347, %v1961
  %v2062 = vsel %vm1662, %v1352, %v1962
  %v2063 = vsel %vm1663, %v1357, %v1963
  %v2064 = vsel %vm1664, %v1362, %v1964
  %v2065 = vsel %vm1665, %v1367, %v1965
  %v2066 = vsel %vm1666, %v1372, %v1966
  %v2067 = vsel %vm1667, %v1377, %v1967
  %v2068 = vsel %vm1668, %v1382, %v1968
  %v2069 = vsel %vm1669, %v1387, %v1969
  %v2070 = vsel %vm1670, %v1392, %v1970
  %v2071 = vsel %vm1671, %v1397, %v1971
  %v2072 = vsel %vm1672, %v1402, %v1972
  %v2073 = vsel %vm1673, %v1407, %v1973
  %v2074 = vsel %vm1674, %v1412, %v1974
  %v2075 = vsel %vm1675, %v1417, %v1975
  %v2076 = vsel %vm1676, %v1422, %v1976
  %v2077 = vsel %vm1677, %v1427, %v1977
  %v2078 = vsel %vm1678, %v1432, %v1978
  %v2079 = vsel %vm1679, %v1437, %v1979
  %v2080 = vsel %vm1680, %v1442, %v1980
  %v2081 = vsel %vm1681, %v1447, %v1981
  %v2082 = vsel %vm1682, %v1452, %v1982
  %v2083 = vsel %vm1683, %v1457, %v1983
  %v2084 = vsel %vm1684, %v1462, %v1984
  %v2085 = vsel %vm1685, %v1467, %v1985
  %v2086 = vsel %vm1686, %v1472, %v1986
  %v2087 = vsel %vm1687, %v1477, %v1987
  %v2088 = vsel %vm1688, %v1482, %v1988
  %v2089 = vsel %vm1689, %v1487, %v1989
  %v2090 = vsel %vm1690, %v1492, %v1990
  %v2091 = vsel %vm1691, %v1497, %v1991
  %v2092 = vsel %vm1692, %v1502, %v1992
  %v2093 = vsel %vm1693, %v1507, %v1993
  %v2094 = vsel %vm1694, %v1512, %v1994
  %v2095 = vsel %vm1695, %v1517, %v1995
  %v2096 = vsel %vm1696, %v1522, %v1996
  %v2097 = vsel %vm1697, %v1527, %v1997
  %v2098 = vsel %vm1698, %v1532, %v1998
  %v2099 = vsel %vm1699, %v1537, %v1999
  %v2100 = vsel %vm1700, %v1542, %v2000
  %v2101 = vsel %vm1701, %v1547, %v2001
  %v2102 = vsel %vm1702, %v1552, %v2002
  %v2103 = vsel %vm1703, %v1557, %v2003
  %v2104 = vsel %vm1704, %v1562, %v2004
  %v2105 = vsel %vm1705, %v1567, %v2005
  %v2106 = vsel %vm1706, %v1572, %v2006
  %v2107 = vsel %vm1707, %v1577, %v2007
  %v2108 = vsel %vm1708, %v1582, %v2008
  %v2109 = vsel %vm1709, %v1587, %v2009
  %v2110 = vsel %vm1710, %v1592, %v2010
  %v2111 = vsel %vm1711, %v1597, %v2011
  %v2112 = vsel %vm1712, %v1602, %v2012
  %v2113 = vsel %vm1713, %v1607, %v2013
  %v2114 = vsel %vm1714, %v1612, %v2014
  %vm2115 = vcmask 130048
  %2116 = vst.msk [vmem:[%s3] sm:$0xff] %vm2115, %v2015
  %2117 = vst.msk [vmem:[%s3 + $0x8] sm:$0xff] %vm2115, %v2016
  %2118 = vst.msk [vmem:[%s3 + $0x10] sm:$0xff] %vm2115, %v2017
  %2119 = vst.msk [vmem:[%s3 + $0x18] sm:$0xff] %vm2115, %v2018
  %2120 = vst.msk [vmem:[%s3 + $0x20] sm:$0xff] %vm2115, %v2019
  %2121 = vst.msk [vmem:[%s3 + $0x28] sm:$0xff] %vm2115, %v2020
  %2122 = vst.msk [vmem:[%s3 + $0x30] sm:$0xff] %vm2115, %v2021
  %2123 = vst.msk [vmem:[%s3 + $0x38] sm:$0xff] %vm2115, %v2022
  %2124 = vst.msk [vmem:[%s3 + $0x40] sm:$0xff] %vm2115, %v2023
  %2125 = vst.msk [vmem:[%s3 + $0x48] sm:$0xff] %vm2115, %v2024
  %2126 = vst.msk [vmem:[%s3 + $0x50] sm:$0xff] %vm2115, %v2025
  %2127 = vst.msk [vmem:[%s3 + $0x58] sm:$0xff] %vm2115, %v2026
  %2128 = vst.msk [vmem:[%s3 + $0x60] sm:$0xff] %vm2115, %v2027
  %2129 = vst.msk [vmem:[%s3 + $0x68] sm:$0xff] %vm2115, %v2028
  %2130 = vst.msk [vmem:[%s3 + $0x70] sm:$0xff] %vm2115, %v2029
  %2131 = vst.msk [vmem:[%s3 + $0x78] sm:$0xff] %vm2115, %v2030
  %2132 = vst.msk [vmem:[%s3 + $0x80] sm:$0xff] %vm2115, %v2031
  %2133 = vst.msk [vmem:[%s3 + $0x88] sm:$0xff] %vm2115, %v2032
  %2134 = vst.msk [vmem:[%s3 + $0x90] sm:$0xff] %vm2115, %v2033
  %2135 = vst.msk [vmem:[%s3 + $0x98] sm:$0xff] %vm2115, %v2034
  %2136 = vst.msk [vmem:[%s3 + $0xa0] sm:$0xff] %vm2115, %v2035
  %2137 = vst.msk [vmem:[%s3 + $0xa8] sm:$0xff] %vm2115, %v2036
  %2138 = vst.msk [vmem:[%s3 + $0xb0] sm:$0xff] %vm2115, %v2037
  %2139 = vst.msk [vmem:[%s3 + $0xb8] sm:$0xff] %vm2115, %v2038
  %2140 = vst.msk [vmem:[%s3 + $0xc0] sm:$0xff] %vm2115, %v2039
  %2141 = vst.msk [vmem:[%s3 + $0xc8] sm:$0xff] %vm2115, %v2040
  %2142 = vst.msk [vmem:[%s3 + $0xd0] sm:$0xff] %vm2115, %v2041
  %2143 = vst.msk [vmem:[%s3 + $0xd8] sm:$0xff] %vm2115, %v2042
  %2144 = vst.msk [vmem:[%s3 + $0xe0] sm:$0xff] %vm2115, %v2043
  %2145 = vst.msk [vmem:[%s3 + $0xe8] sm:$0xff] %vm2115, %v2044
  %2146 = vst.msk [vmem:[%s3 + $0xf0] sm:$0xff] %vm2115, %v2045
  %2147 = vst.msk [vmem:[%s3 + $0xf8] sm:$0xff] %vm2115, %v2046
  %2148 = vst.msk [vmem:[%s3 + $0x100] sm:$0xff] %vm2115, %v2047
  %2149 = vst.msk [vmem:[%s3 + $0x108] sm:$0xff] %vm2115, %v2048
  %2150 = vst.msk [vmem:[%s3 + $0x110] sm:$0xff] %vm2115, %v2049
  %2151 = vst.msk [vmem:[%s3 + $0x118] sm:$0xff] %vm2115, %v2050
  %2152 = vst.msk [vmem:[%s3 + $0x120] sm:$0xff] %vm2115, %v2051
  %2153 = vst.msk [vmem:[%s3 + $0x128] sm:$0xff] %vm2115, %v2052
  %2154 = vst.msk [vmem:[%s3 + $0x130] sm:$0xff] %vm2115, %v2053
  %2155 = vst.msk [vmem:[%s3 + $0x138] sm:$0xff] %vm2115, %v2054
  %2156 = vst.msk [vmem:[%s3 + $0x140] sm:$0xff] %vm2115, %v2055
  %2157 = vst.msk [vmem:[%s3 + $0x148] sm:$0xff] %vm2115, %v2056
  %2158 = vst.msk [vmem:[%s3 + $0x150] sm:$0xff] %vm2115, %v2057
  %2159 = vst.msk [vmem:[%s3 + $0x158] sm:$0xff] %vm2115, %v2058
  %2160 = vst.msk [vmem:[%s3 + $0x160] sm:$0xff] %vm2115, %v2059
  %2161 = vst.msk [vmem:[%s3 + $0x168] sm:$0xff] %vm2115, %v2060
  %2162 = vst.msk [vmem:[%s3 + $0x170] sm:$0xff] %vm2115, %v2061
  %2163 = vst.msk [vmem:[%s3 + $0x178] sm:$0xff] %vm2115, %v2062
  %2164 = vst.msk [vmem:[%s3 + $0x180] sm:$0xff] %vm2115, %v2063
  %2165 = vst.msk [vmem:[%s3 + $0x188] sm:$0xff] %vm2115, %v2064
  %2166 = vst.msk [vmem:[%s3 + $0x190] sm:$0xff] %vm2115, %v2065
  %2167 = vst.msk [vmem:[%s3 + $0x198] sm:$0xff] %vm2115, %v2066
  %2168 = vst.msk [vmem:[%s3 + $0x1a0] sm:$0xff] %vm2115, %v2067
  %2169 = vst.msk [vmem:[%s3 + $0x1a8] sm:$0xff] %vm2115, %v2068
  %2170 = vst.msk [vmem:[%s3 + $0x1b0] sm:$0xff] %vm2115, %v2069
  %2171 = vst.msk [vmem:[%s3 + $0x1b8] sm:$0xff] %vm2115, %v2070
  %2172 = vst.msk [vmem:[%s3 + $0x1c0] sm:$0xff] %vm2115, %v2071
  %2173 = vst.msk [vmem:[%s3 + $0x1c8] sm:$0xff] %vm2115, %v2072
  %2174 = vst.msk [vmem:[%s3 + $0x1d0] sm:$0xff] %vm2115, %v2073
  %2175 = vst.msk [vmem:[%s3 + $0x1d8] sm:$0xff] %vm2115, %v2074
  %2176 = vst.msk [vmem:[%s3 + $0x1e0] sm:$0xff] %vm2115, %v2075
  %2177 = vst.msk [vmem:[%s3 + $0x1e8] sm:$0xff] %vm2115, %v2076
  %2178 = vst.msk [vmem:[%s3 + $0x1f0] sm:$0xff] %vm2115, %v2077
  %2179 = vst.msk [vmem:[%s3 + $0x1f8] sm:$0xff] %vm2115, %v2078
  %2180 = vst.msk [vmem:[%s3 + $0x200] sm:$0xff] %vm2115, %v2079
  %2181 = vst.msk [vmem:[%s3 + $0x208] sm:$0xff] %vm2115, %v2080
  %2182 = vst.msk [vmem:[%s3 + $0x210] sm:$0xff] %vm2115, %v2081
  %2183 = vst.msk [vmem:[%s3 + $0x218] sm:$0xff] %vm2115, %v2082
  %2184 = vst.msk [vmem:[%s3 + $0x220] sm:$0xff] %vm2115, %v2083
  %2185 = vst.msk [vmem:[%s3 + $0x228] sm:$0xff] %vm2115, %v2084
  %2186 = vst.msk [vmem:[%s3 + $0x230] sm:$0xff] %vm2115, %v2085
  %2187 = vst.msk [vmem:[%s3 + $0x238] sm:$0xff] %vm2115, %v2086
  %2188 = vst.msk [vmem:[%s3 + $0x240] sm:$0xff] %vm2115, %v2087
  %2189 = vst.msk [vmem:[%s3 + $0x248] sm:$0xff] %vm2115, %v2088
  %2190 = vst.msk [vmem:[%s3 + $0x250] sm:$0xff] %vm2115, %v2089
  %2191 = vst.msk [vmem:[%s3 + $0x258] sm:$0xff] %vm2115, %v2090
  %2192 = vst.msk [vmem:[%s3 + $0x260] sm:$0xff] %vm2115, %v2091
  %2193 = vst.msk [vmem:[%s3 + $0x268] sm:$0xff] %vm2115, %v2092
  %2194 = vst.msk [vmem:[%s3 + $0x270] sm:$0xff] %vm2115, %v2093
  %2195 = vst.msk [vmem:[%s3 + $0x278] sm:$0xff] %vm2115, %v2094
  %2196 = vst.msk [vmem:[%s3 + $0x280] sm:$0xff] %vm2115, %v2095
  %2197 = vst.msk [vmem:[%s3 + $0x288] sm:$0xff] %vm2115, %v2096
  %2198 = vst.msk [vmem:[%s3 + $0x290] sm:$0xff] %vm2115, %v2097
  %2199 = vst.msk [vmem:[%s3 + $0x298] sm:$0xff] %vm2115, %v2098
  %2200 = vst.msk [vmem:[%s3 + $0x2a0] sm:$0xff] %vm2115, %v2099
  %2201 = vst.msk [vmem:[%s3 + $0x2a8] sm:$0xff] %vm2115, %v2100
  %2202 = vst.msk [vmem:[%s3 + $0x2b0] sm:$0xff] %vm2115, %v2101
  %2203 = vst.msk [vmem:[%s3 + $0x2b8] sm:$0xff] %vm2115, %v2102
  %2204 = vst.msk [vmem:[%s3 + $0x2c0] sm:$0xff] %vm2115, %v2103
  %2205 = vst.msk [vmem:[%s3 + $0x2c8] sm:$0xff] %vm2115, %v2104
  %2206 = vst.msk [vmem:[%s3 + $0x2d0] sm:$0xff] %vm2115, %v2105
  %2207 = vst.msk [vmem:[%s3 + $0x2d8] sm:$0xff] %vm2115, %v2106
  %2208 = vst.msk [vmem:[%s3 + $0x2e0] sm:$0xff] %vm2115, %v2107
  %2209 = vst.msk [vmem:[%s3 + $0x2e8] sm:$0xff] %vm2115, %v2108
  %2210 = vst.msk [vmem:[%s3 + $0x2f0] sm:$0xff] %vm2115, %v2109
  %2211 = vst.msk [vmem:[%s3 + $0x2f8] sm:$0xff] %vm2115, %v2110
  %2212 = vst.msk [vmem:[%s3 + $0x300] sm:$0xff] %vm2115, %v2111
  %2213 = vst.msk [vmem:[%s3 + $0x308] sm:$0xff] %vm2115, %v2112
  %2214 = vst.msk [vmem:[%s3 + $0x310] sm:$0xff] %vm2115, %v2113
  %2215 = vst.msk [vmem:[%s3 + $0x318] sm:$0xff] %vm2115, %v2114
  // Predicated region
  $region14: #{dae_forward.14} parent=0 // pred_check
    _
  $region15: #{dae_forward.14} parent=0 // pred_check_branch
    %2217 = sbr.rel (0) target = $region17
  $region16: #{dae_forward.14} parent=0 // pred_region
    _
  $region17: #{dae_forward.14} parent=0 // pred_fallthru
    _
  // Predicated region
  $region18: #{dae_forward.14} parent=0 // pred_check
    _
  $region19: #{dae_forward.14} parent=0 // pred_check_branch
    %2219 = sbr.rel (0) target = $region21
  $region20: #{dae_forward.14} parent=0 // pred_region
    _
  $region21: #{dae_forward.14} parent=0 // pred_fallthru
    _

// kernel: dae_forward.15
$region0: #{dae_forward.15}
  #allocation0 [shape = 'u32[]', space=smem, size = 0x4, offset = 0x4, fixed_abs, tag = 'smem constant byte address 0x4 - core index']
  #allocation1 [shape = 'u32[144,128]{1,0:T(1,128)}', space=vmem, size = 0x12000, scoped, tag = 'internal scratch']
  %s0 = inlined_call_operand.vmem [shape: f32[3200,256], index: 0, kind: input, shape index: {}]
  %s1 = inlined_call_operand.vmem [shape: f32[256,3], index: 1, kind: input, shape index: {}]
  %s2 = inlined_call_operand.vmem [shape: f32[1,3], index: 2, kind: input, shape index: {}]
  %s3 = inlined_call_operand.vmem [shape: f32[3200,3], index: 3, kind: output, shape index: {}]
  %s4 = sld [smem:[#allocation0]]
  $region22: #{dae_forward.15} parent=0
    _
  %s6 = ssub.s32 1, %s4
  %s7 = scalar_select 0, %s6, %s4
  // Predicated region
  $region2: #{dae_forward.15} parent=0 // pred_check
    _
  $region3: #{dae_forward.15} parent=0 // pred_check_branch
    %9 = sbr.rel (0) target = $region5
  $region4: #{dae_forward.15} parent=0 // pred_region
    _
  $region5: #{dae_forward.15} parent=0 // pred_fallthru
    _
  // Predicated region
  $region6: #{dae_forward.15} parent=0 // pred_check
    _
  $region7: #{dae_forward.15} parent=0 // pred_check_branch
    %11 = sbr.rel (0) target = $region9
  $region8: #{dae_forward.15} parent=0 // pred_region
    _
  $region9: #{dae_forward.15} parent=0 // pred_fallthru
    _
  // Predicated region
  $region10: #{dae_forward.15} parent=0 // pred_check
    _
  $region11: #{dae_forward.15} parent=0 // pred_check_branch
    %13 = sbr.rel (0) target = $region13
  $region12: #{dae_forward.15} parent=0 // pred_region
    _
  $region13: #{dae_forward.15} parent=0 // pred_fallthru
    _
  %v14 = vld [vmem:[%s0] sm:$0xff]
  %v15 = vld [vmem:[%s0 + $0x8] sm:$0xff]
  %v16 = vld [vmem:[%s0 + $0x10] sm:$0xff]
  %v17 = vld [vmem:[%s0 + $0x18] sm:$0xff]
  %v18 = vld [vmem:[%s0 + $0x20] sm:$0xff]
  %v19 = vld [vmem:[%s0 + $0x28] sm:$0xff]
  %v20 = vld [vmem:[%s0 + $0x30] sm:$0xff]
  %v21 = vld [vmem:[%s0 + $0x38] sm:$0xff]
  %v22 = vld [vmem:[%s0 + $0x40] sm:$0xff]
  %v23 = vld [vmem:[%s0 + $0x48] sm:$0xff]
  %v24 = vld [vmem:[%s0 + $0x50] sm:$0xff]
  %v25 = vld [vmem:[%s0 + $0x58] sm:$0xff]
  %v26 = vld [vmem:[%s0 + $0x60] sm:$0xff]
  %v27 = vld [vmem:[%s0 + $0x68] sm:$0xff]
  %v28 = vld [vmem:[%s0 + $0x70] sm:$0xff]
  %v29 = vld [vmem:[%s0 + $0x78] sm:$0xff]
  %v30 = vld [vmem:[%s0 + $0x80] sm:$0xff]
  %v31 = vld [vmem:[%s0 + $0x88] sm:$0xff]
  %v32 = vld [vmem:[%s0 + $0x90] sm:$0xff]
  %v33 = vld [vmem:[%s0 + $0x98] sm:$0xff]
  %v34 = vld [vmem:[%s0 + $0xa0] sm:$0xff]
  %v35 = vld [vmem:[%s0 + $0xa8] sm:$0xff]
  %v36 = vld [vmem:[%s0 + $0xb0] sm:$0xff]
  %v37 = vld [vmem:[%s0 + $0xb8] sm:$0xff]
  %v38 = vld [vmem:[%s0 + $0xc0] sm:$0xff]
  %v39 = vld [vmem:[%s0 + $0xc8] sm:$0xff]
  %v40 = vld [vmem:[%s0 + $0xd0] sm:$0xff]
  %v41 = vld [vmem:[%s0 + $0xd8] sm:$0xff]
  %v42 = vld [vmem:[%s0 + $0xe0] sm:$0xff]
  %v43 = vld [vmem:[%s0 + $0xe8] sm:$0xff]
  %v44 = vld [vmem:[%s0 + $0xf0] sm:$0xff]
  %v45 = vld [vmem:[%s0 + $0xf8] sm:$0xff]
  %v46 = vld [vmem:[%s0 + $0x100] sm:$0xff]
  %v47 = vld [vmem:[%s0 + $0x108] sm:$0xff]
  %v48 = vld [vmem:[%s0 + $0x110] sm:$0xff]
  %v49 = vld [vmem:[%s0 + $0x118] sm:$0xff]
  %v50 = vld [vmem:[%s0 + $0x120] sm:$0xff]
  %v51 = vld [vmem:[%s0 + $0x128] sm:$0xff]
  %v52 = vld [vmem:[%s0 + $0x130] sm:$0xff]
  %v53 = vld [vmem:[%s0 + $0x138] sm:$0xff]
  %v54 = vld [vmem:[%s0 + $0x140] sm:$0xff]
  %v55 = vld [vmem:[%s0 + $0x148] sm:$0xff]
  %v56 = vld [vmem:[%s0 + $0x150] sm:$0xff]
  %v57 = vld [vmem:[%s0 + $0x158] sm:$0xff]
  %v58 = vld [vmem:[%s0 + $0x160] sm:$0xff]
  %v59 = vld [vmem:[%s0 + $0x168] sm:$0xff]
  %v60 = vld [vmem:[%s0 + $0x170] sm:$0xff]
  %v61 = vld [vmem:[%s0 + $0x178] sm:$0xff]
  %v62 = vld [vmem:[%s0 + $0x180] sm:$0xff]
  %v63 = vld [vmem:[%s0 + $0x188] sm:$0xff]
  %v64 = vld [vmem:[%s0 + $0x190] sm:$0xff]
  %v65 = vld [vmem:[%s0 + $0x198] sm:$0xff]
  %v66 = vld [vmem:[%s0 + $0x1a0] sm:$0xff]
  %v67 = vld [vmem:[%s0 + $0x1a8] sm:$0xff]
  %v68 = vld [vmem:[%s0 + $0x1b0] sm:$0xff]
  %v69 = vld [vmem:[%s0 + $0x1b8] sm:$0xff]
  %v70 = vld [vmem:[%s0 + $0x1c0] sm:$0xff]
  %v71 = vld [vmem:[%s0 + $0x1c8] sm:$0xff]
  %v72 = vld [vmem:[%s0 + $0x1d0] sm:$0xff]
  %v73 = vld [vmem:[%s0 + $0x1d8] sm:$0xff]
  %v74 = vld [vmem:[%s0 + $0x1e0] sm:$0xff]
  %v75 = vld [vmem:[%s0 + $0x1e8] sm:$0xff]
  %v76 = vld [vmem:[%s0 + $0x1f0] sm:$0xff]
  %v77 = vld [vmem:[%s0 + $0x1f8] sm:$0xff]
  %v78 = vld [vmem:[%s0 + $0x200] sm:$0xff]
  %v79 = vld [vmem:[%s0 + $0x208] sm:$0xff]
  %v80 = vld [vmem:[%s0 + $0x210] sm:$0xff]
  %v81 = vld [vmem:[%s0 + $0x218] sm:$0xff]
  %v82 = vld [vmem:[%s0 + $0x220] sm:$0xff]
  %v83 = vld [vmem:[%s0 + $0x228] sm:$0xff]
  %v84 = vld [vmem:[%s0 + $0x230] sm:$0xff]
  %v85 = vld [vmem:[%s0 + $0x238] sm:$0xff]
  %v86 = vld [vmem:[%s0 + $0x240] sm:$0xff]
  %v87 = vld [vmem:[%s0 + $0x248] sm:$0xff]
  %v88 = vld [vmem:[%s0 + $0x250] sm:$0xff]
  %v89 = vld [vmem:[%s0 + $0x258] sm:$0xff]
  %v90 = vld [vmem:[%s0 + $0x260] sm:$0xff]
  %v91 = vld [vmem:[%s0 + $0x268] sm:$0xff]
  %v92 = vld [vmem:[%s0 + $0x270] sm:$0xff]
  %v93 = vld [vmem:[%s0 + $0x278] sm:$0xff]
  %v94 = vld [vmem:[%s0 + $0x280] sm:$0xff]
  %v95 = vld [vmem:[%s0 + $0x288] sm:$0xff]
  %v96 = vld [vmem:[%s0 + $0x290] sm:$0xff]
  %v97 = vld [vmem:[%s0 + $0x298] sm:$0xff]
  %v98 = vld [vmem:[%s0 + $0x2a0] sm:$0xff]
  %v99 = vld [vmem:[%s0 + $0x2a8] sm:$0xff]
  %v100 = vld [vmem:[%s0 + $0x2b0] sm:$0xff]
  %v101 = vld [vmem:[%s0 + $0x2b8] sm:$0xff]
  %v102 = vld [vmem:[%s0 + $0x2c0] sm:$0xff]
  %v103 = vld [vmem:[%s0 + $0x2c8] sm:$0xff]
  %v104 = vld [vmem:[%s0 + $0x2d0] sm:$0xff]
  %v105 = vld [vmem:[%s0 + $0x2d8] sm:$0xff]
  %v106 = vld [vmem:[%s0 + $0x2e0] sm:$0xff]
  %v107 = vld [vmem:[%s0 + $0x2e8] sm:$0xff]
  %v108 = vld [vmem:[%s0 + $0x2f0] sm:$0xff]
  %v109 = vld [vmem:[%s0 + $0x2f8] sm:$0xff]
  %v110 = vld [vmem:[%s0 + $0x300] sm:$0xff]
  %v111 = vld [vmem:[%s0 + $0x308] sm:$0xff]
  %v112 = vld [vmem:[%s0 + $0x310] sm:$0xff]
  %v113 = vld [vmem:[%s0 + $0x318] sm:$0xff]
  %v114 = vld [vmem:[%s0 + $0x320] sm:$0xff]
  %v115 = vld [vmem:[%s0 + $0x328] sm:$0xff]
  %v116 = vld [vmem:[%s0 + $0x330] sm:$0xff]
  %v117 = vld [vmem:[%s0 + $0x338] sm:$0xff]
  %v118 = vld [vmem:[%s0 + $0x340] sm:$0xff]
  %v119 = vld [vmem:[%s0 + $0x348] sm:$0xff]
  %v120 = vld [vmem:[%s0 + $0x350] sm:$0xff]
  %v121 = vld [vmem:[%s0 + $0x358] sm:$0xff]
  %v122 = vld [vmem:[%s0 + $0x360] sm:$0xff]
  %v123 = vld [vmem:[%s0 + $0x368] sm:$0xff]
  %v124 = vld [vmem:[%s0 + $0x370] sm:$0xff]
  %v125 = vld [vmem:[%s0 + $0x378] sm:$0xff]
  %v126 = vld [vmem:[%s0 + $0x380] sm:$0xff]
  %v127 = vld [vmem:[%s0 + $0x388] sm:$0xff]
  %v128 = vld [vmem:[%s0 + $0x390] sm:$0xff]
  %v129 = vld [vmem:[%s0 + $0x398] sm:$0xff]
  %v130 = vld [vmem:[%s0 + $0x3a0] sm:$0xff]
  %v131 = vld [vmem:[%s0 + $0x3a8] sm:$0xff]
  %v132 = vld [vmem:[%s0 + $0x3b0] sm:$0xff]
  %v133 = vld [vmem:[%s0 + $0x3b8] sm:$0xff]
  %v134 = vld [vmem:[%s0 + $0x3c0] sm:$0xff]
  %v135 = vld [vmem:[%s0 + $0x3c8] sm:$0xff]
  %v136 = vld [vmem:[%s0 + $0x3d0] sm:$0xff]
  %v137 = vld [vmem:[%s0 + $0x3d8] sm:$0xff]
  %v138 = vld [vmem:[%s0 + $0x3e0] sm:$0xff]
  %v139 = vld [vmem:[%s0 + $0x3e8] sm:$0xff]
  %v140 = vld [vmem:[%s0 + $0x3f0] sm:$0xff]
  %v141 = vld [vmem:[%s0 + $0x3f8] sm:$0xff]
  %v142 = vld [vmem:[%s0 + $0x400] sm:$0xff]
  %v143 = vld [vmem:[%s0 + $0x408] sm:$0xff]
  %v144 = vld [vmem:[%s0 + $0x410] sm:$0xff]
  %v145 = vld [vmem:[%s0 + $0x418] sm:$0xff]
  %v146 = vld [vmem:[%s0 + $0x420] sm:$0xff]
  %v147 = vld [vmem:[%s0 + $0x428] sm:$0xff]
  %v148 = vld [vmem:[%s0 + $0x430] sm:$0xff]
  %v149 = vld [vmem:[%s0 + $0x438] sm:$0xff]
  %v150 = vld [vmem:[%s0 + $0x440] sm:$0xff]
  %v151 = vld [vmem:[%s0 + $0x448] sm:$0xff]
  %v152 = vld [vmem:[%s0 + $0x450] sm:$0xff]
  %v153 = vld [vmem:[%s0 + $0x458] sm:$0xff]
  %v154 = vld [vmem:[%s0 + $0x460] sm:$0xff]
  %v155 = vld [vmem:[%s0 + $0x468] sm:$0xff]
  %v156 = vld [vmem:[%s0 + $0x470] sm:$0xff]
  %v157 = vld [vmem:[%s0 + $0x478] sm:$0xff]
  %v158 = vld [vmem:[%s0 + $0x480] sm:$0xff]
  %v159 = vld [vmem:[%s0 + $0x488] sm:$0xff]
  %v160 = vld [vmem:[%s0 + $0x490] sm:$0xff]
  %v161 = vld [vmem:[%s0 + $0x498] sm:$0xff]
  %v162 = vld [vmem:[%s0 + $0x4a0] sm:$0xff]
  %v163 = vld [vmem:[%s0 + $0x4a8] sm:$0xff]
  %v164 = vld [vmem:[%s0 + $0x4b0] sm:$0xff]
  %v165 = vld [vmem:[%s0 + $0x4b8] sm:$0xff]
  %v166 = vld [vmem:[%s0 + $0x4c0] sm:$0xff]
  %v167 = vld [vmem:[%s0 + $0x4c8] sm:$0xff]
  %v168 = vld [vmem:[%s0 + $0x4d0] sm:$0xff]
  %v169 = vld [vmem:[%s0 + $0x4d8] sm:$0xff]
  %v170 = vld [vmem:[%s0 + $0x4e0] sm:$0xff]
  %v171 = vld [vmem:[%s0 + $0x4e8] sm:$0xff]
  %v172 = vld [vmem:[%s0 + $0x4f0] sm:$0xff]
  %v173 = vld [vmem:[%s0 + $0x4f8] sm:$0xff]
  %v174 = vld [vmem:[%s0 + $0x500] sm:$0xff]
  %v175 = vld [vmem:[%s0 + $0x508] sm:$0xff]
  %v176 = vld [vmem:[%s0 + $0x510] sm:$0xff]
  %v177 = vld [vmem:[%s0 + $0x518] sm:$0xff]
  %v178 = vld [vmem:[%s0 + $0x520] sm:$0xff]
  %v179 = vld [vmem:[%s0 + $0x528] sm:$0xff]
  %v180 = vld [vmem:[%s0 + $0x530] sm:$0xff]
  %v181 = vld [vmem:[%s0 + $0x538] sm:$0xff]
  %v182 = vld [vmem:[%s0 + $0x540] sm:$0xff]
  %v183 = vld [vmem:[%s0 + $0x548] sm:$0xff]
  %v184 = vld [vmem:[%s0 + $0x550] sm:$0xff]
  %v185 = vld [vmem:[%s0 + $0x558] sm:$0xff]
  %v186 = vld [vmem:[%s0 + $0x560] sm:$0xff]
  %v187 = vld [vmem:[%s0 + $0x568] sm:$0xff]
  %v188 = vld [vmem:[%s0 + $0x570] sm:$0xff]
  %v189 = vld [vmem:[%s0 + $0x578] sm:$0xff]
  %v190 = vld [vmem:[%s0 + $0x580] sm:$0xff]
  %v191 = vld [vmem:[%s0 + $0x588] sm:$0xff]
  %v192 = vld [vmem:[%s0 + $0x590] sm:$0xff]
  %v193 = vld [vmem:[%s0 + $0x598] sm:$0xff]
  %v194 = vld [vmem:[%s0 + $0x5a0] sm:$0xff]
  %v195 = vld [vmem:[%s0 + $0x5a8] sm:$0xff]
  %v196 = vld [vmem:[%s0 + $0x5b0] sm:$0xff]
  %v197 = vld [vmem:[%s0 + $0x5b8] sm:$0xff]
  %v198 = vld [vmem:[%s0 + $0x5c0] sm:$0xff]
  %v199 = vld [vmem:[%s0 + $0x5c8] sm:$0xff]
  %v200 = vld [vmem:[%s0 + $0x5d0] sm:$0xff]
  %v201 = vld [vmem:[%s0 + $0x5d8] sm:$0xff]
  %v202 = vld [vmem:[%s0 + $0x5e0] sm:$0xff]
  %v203 = vld [vmem:[%s0 + $0x5e8] sm:$0xff]
  %v204 = vld [vmem:[%s0 + $0x5f0] sm:$0xff]
  %v205 = vld [vmem:[%s0 + $0x5f8] sm:$0xff]
  %v206 = vld [vmem:[%s0 + $0x600] sm:$0xff]
  %v207 = vld [vmem:[%s0 + $0x608] sm:$0xff]
  %v208 = vld [vmem:[%s0 + $0x610] sm:$0xff]
  %v209 = vld [vmem:[%s0 + $0x618] sm:$0xff]
  %v210 = vld [vmem:[%s0 + $0x620] sm:$0xff]
  %v211 = vld [vmem:[%s0 + $0x628] sm:$0xff]
  %v212 = vld [vmem:[%s0 + $0x630] sm:$0xff]
  %v213 = vld [vmem:[%s0 + $0x638] sm:$0xff]
  %v214 = vld [vmem:[%s0 + $0x640] sm:$0xff]
  %v215 = vld [vmem:[%s0 + $0x648] sm:$0xff]
  %v216 = vld [vmem:[%s0 + $0x650] sm:$0xff]
  %v217 = vld [vmem:[%s0 + $0x658] sm:$0xff]
  %v218 = vld [vmem:[%s0 + $0x660] sm:$0xff]
  %v219 = vld [vmem:[%s0 + $0x668] sm:$0xff]
  %v220 = vld [vmem:[%s0 + $0x670] sm:$0xff]
  %v221 = vld [vmem:[%s0 + $0x678] sm:$0xff]
  %v222 = vld [vmem:[%s0 + $0x680] sm:$0xff]
  %v223 = vld [vmem:[%s0 + $0x688] sm:$0xff]
  %v224 = vld [vmem:[%s0 + $0x690] sm:$0xff]
  %v225 = vld [vmem:[%s0 + $0x698] sm:$0xff]
  %v226 = vld [vmem:[%s0 + $0x6a0] sm:$0xff]
  %v227 = vld [vmem:[%s0 + $0x6a8] sm:$0xff]
  %v228 = vld [vmem:[%s0 + $0x6b0] sm:$0xff]
  %v229 = vld [vmem:[%s0 + $0x6b8] sm:$0xff]
  %v230 = vld [vmem:[%s0 + $0x6c0] sm:$0xff]
  %v231 = vld [vmem:[%s0 + $0x6c8] sm:$0xff]
  %v232 = vld [vmem:[%s0 + $0x6d0] sm:$0xff]
  %v233 = vld [vmem:[%s0 + $0x6d8] sm:$0xff]
  %v234 = vld [vmem:[%s0 + $0x6e0] sm:$0xff]
  %v235 = vld [vmem:[%s0 + $0x6e8] sm:$0xff]
  %v236 = vld [vmem:[%s0 + $0x6f0] sm:$0xff]
  %v237 = vld [vmem:[%s0 + $0x6f8] sm:$0xff]
  %v238 = vld [vmem:[%s0 + $0x700] sm:$0xff]
  %v239 = vld [vmem:[%s0 + $0x708] sm:$0xff]
  %v240 = vld [vmem:[%s0 + $0x710] sm:$0xff]
  %v241 = vld [vmem:[%s0 + $0x718] sm:$0xff]
  %v242 = vld [vmem:[%s0 + $0x720] sm:$0xff]
  %v243 = vld [vmem:[%s0 + $0x728] sm:$0xff]
  %v244 = vld [vmem:[%s0 + $0x730] sm:$0xff]
  %v245 = vld [vmem:[%s0 + $0x738] sm:$0xff]
  %v246 = vld [vmem:[%s0 + $0x740] sm:$0xff]
  %v247 = vld [vmem:[%s0 + $0x748] sm:$0xff]
  %v248 = vld [vmem:[%s0 + $0x750] sm:$0xff]
  %v249 = vld [vmem:[%s0 + $0x758] sm:$0xff]
  %v250 = vld [vmem:[%s0 + $0x760] sm:$0xff]
  %v251 = vld [vmem:[%s0 + $0x768] sm:$0xff]
  %v252 = vld [vmem:[%s0 + $0x770] sm:$0xff]
  %v253 = vld [vmem:[%s0 + $0x778] sm:$0xff]
  %v254 = vld [vmem:[%s0 + $0x780] sm:$0xff]
  %v255 = vld [vmem:[%s0 + $0x788] sm:$0xff]
  %v256 = vld [vmem:[%s0 + $0x790] sm:$0xff]
  %v257 = vld [vmem:[%s0 + $0x798] sm:$0xff]
  %v258 = vld [vmem:[%s0 + $0x7a0] sm:$0xff]
  %v259 = vld [vmem:[%s0 + $0x7a8] sm:$0xff]
  %v260 = vld [vmem:[%s0 + $0x7b0] sm:$0xff]
  %v261 = vld [vmem:[%s0 + $0x7b8] sm:$0xff]
  %v262 = vld [vmem:[%s0 + $0x7c0] sm:$0xff]
  %v263 = vld [vmem:[%s0 + $0x7c8] sm:$0xff]
  %v264 = vld [vmem:[%s0 + $0x7d0] sm:$0xff]
  %v265 = vld [vmem:[%s0 + $0x7d8] sm:$0xff]
  %v266 = vld [vmem:[%s0 + $0x7e0] sm:$0xff]
  %v267 = vld [vmem:[%s0 + $0x7e8] sm:$0xff]
  %v268 = vld [vmem:[%s0 + $0x7f0] sm:$0xff]
  %v269 = vld [vmem:[%s0 + $0x7f8] sm:$0xff]
  %v270 = vld [vmem:[%s0 + $0x800] sm:$0xff]
  %v271 = vld [vmem:[%s0 + $0x808] sm:$0xff]
  %v272 = vld [vmem:[%s0 + $0x810] sm:$0xff]
  %v273 = vld [vmem:[%s0 + $0x818] sm:$0xff]
  %v274 = vld [vmem:[%s0 + $0x820] sm:$0xff]
  %v275 = vld [vmem:[%s0 + $0x828] sm:$0xff]
  %v276 = vld [vmem:[%s0 + $0x830] sm:$0xff]
  %v277 = vld [vmem:[%s0 + $0x838] sm:$0xff]
  %v278 = vld [vmem:[%s0 + $0x840] sm:$0xff]
  %v279 = vld [vmem:[%s0 + $0x848] sm:$0xff]
  %v280 = vld [vmem:[%s0 + $0x850] sm:$0xff]
  %v281 = vld [vmem:[%s0 + $0x858] sm:$0xff]
  %v282 = vld [vmem:[%s0 + $0x860] sm:$0xff]
  %v283 = vld [vmem:[%s0 + $0x868] sm:$0xff]
  %v284 = vld [vmem:[%s0 + $0x870] sm:$0xff]
  %v285 = vld [vmem:[%s0 + $0x878] sm:$0xff]
  %v286 = vld [vmem:[%s0 + $0x880] sm:$0xff]
  %v287 = vld [vmem:[%s0 + $0x888] sm:$0xff]
  %v288 = vld [vmem:[%s0 + $0x890] sm:$0xff]
  %v289 = vld [vmem:[%s0 + $0x898] sm:$0xff]
  %v290 = vld [vmem:[%s0 + $0x8a0] sm:$0xff]
  %v291 = vld [vmem:[%s0 + $0x8a8] sm:$0xff]
  %v292 = vld [vmem:[%s0 + $0x8b0] sm:$0xff]
  %v293 = vld [vmem:[%s0 + $0x8b8] sm:$0xff]
  %v294 = vld [vmem:[%s0 + $0x8c0] sm:$0xff]
  %v295 = vld [vmem:[%s0 + $0x8c8] sm:$0xff]
  %v296 = vld [vmem:[%s0 + $0x8d0] sm:$0xff]
  %v297 = vld [vmem:[%s0 + $0x8d8] sm:$0xff]
  %v298 = vld [vmem:[%s0 + $0x8e0] sm:$0xff]
  %v299 = vld [vmem:[%s0 + $0x8e8] sm:$0xff]
  %v300 = vld [vmem:[%s0 + $0x8f0] sm:$0xff]
  %v301 = vld [vmem:[%s0 + $0x8f8] sm:$0xff]
  %v302 = vld [vmem:[%s0 + $0x900] sm:$0xff]
  %v303 = vld [vmem:[%s0 + $0x908] sm:$0xff]
  %v304 = vld [vmem:[%s0 + $0x910] sm:$0xff]
  %v305 = vld [vmem:[%s0 + $0x918] sm:$0xff]
  %v306 = vld [vmem:[%s0 + $0x920] sm:$0xff]
  %v307 = vld [vmem:[%s0 + $0x928] sm:$0xff]
  %v308 = vld [vmem:[%s0 + $0x930] sm:$0xff]
  %v309 = vld [vmem:[%s0 + $0x938] sm:$0xff]
  %v310 = vld [vmem:[%s0 + $0x940] sm:$0xff]
  %v311 = vld [vmem:[%s0 + $0x948] sm:$0xff]
  %v312 = vld [vmem:[%s0 + $0x950] sm:$0xff]
  %v313 = vld [vmem:[%s0 + $0x958] sm:$0xff]
  %v314 = vld [vmem:[%s0 + $0x960] sm:$0xff]
  %v315 = vld [vmem:[%s0 + $0x968] sm:$0xff]
  %v316 = vld [vmem:[%s0 + $0x970] sm:$0xff]
  %v317 = vld [vmem:[%s0 + $0x978] sm:$0xff]
  %v318 = vld [vmem:[%s0 + $0x980] sm:$0xff]
  %v319 = vld [vmem:[%s0 + $0x988] sm:$0xff]
  %v320 = vld [vmem:[%s0 + $0x990] sm:$0xff]
  %v321 = vld [vmem:[%s0 + $0x998] sm:$0xff]
  %v322 = vld [vmem:[%s0 + $0x9a0] sm:$0xff]
  %v323 = vld [vmem:[%s0 + $0x9a8] sm:$0xff]
  %v324 = vld [vmem:[%s0 + $0x9b0] sm:$0xff]
  %v325 = vld [vmem:[%s0 + $0x9b8] sm:$0xff]
  %v326 = vld [vmem:[%s0 + $0x9c0] sm:$0xff]
  %v327 = vld [vmem:[%s0 + $0x9c8] sm:$0xff]
  %v328 = vld [vmem:[%s0 + $0x9d0] sm:$0xff]
  %v329 = vld [vmem:[%s0 + $0x9d8] sm:$0xff]
  %v330 = vld [vmem:[%s0 + $0x9e0] sm:$0xff]
  %v331 = vld [vmem:[%s0 + $0x9e8] sm:$0xff]
  %v332 = vld [vmem:[%s0 + $0x9f0] sm:$0xff]
  %v333 = vld [vmem:[%s0 + $0x9f8] sm:$0xff]
  %v334 = vld [vmem:[%s0 + $0xa00] sm:$0xff]
  %v335 = vld [vmem:[%s0 + $0xa08] sm:$0xff]
  %v336 = vld [vmem:[%s0 + $0xa10] sm:$0xff]
  %v337 = vld [vmem:[%s0 + $0xa18] sm:$0xff]
  %v338 = vld [vmem:[%s0 + $0xa20] sm:$0xff]
  %v339 = vld [vmem:[%s0 + $0xa28] sm:$0xff]
  %v340 = vld [vmem:[%s0 + $0xa30] sm:$0xff]
  %v341 = vld [vmem:[%s0 + $0xa38] sm:$0xff]
  %v342 = vld [vmem:[%s0 + $0xa40] sm:$0xff]
  %v343 = vld [vmem:[%s0 + $0xa48] sm:$0xff]
  %v344 = vld [vmem:[%s0 + $0xa50] sm:$0xff]
  %v345 = vld [vmem:[%s0 + $0xa58] sm:$0xff]
  %v346 = vld [vmem:[%s0 + $0xa60] sm:$0xff]
  %v347 = vld [vmem:[%s0 + $0xa68] sm:$0xff]
  %v348 = vld [vmem:[%s0 + $0xa70] sm:$0xff]
  %v349 = vld [vmem:[%s0 + $0xa78] sm:$0xff]
  %v350 = vld [vmem:[%s0 + $0xa80] sm:$0xff]
  %v351 = vld [vmem:[%s0 + $0xa88] sm:$0xff]
  %v352 = vld [vmem:[%s0 + $0xa90] sm:$0xff]
  %v353 = vld [vmem:[%s0 + $0xa98] sm:$0xff]
  %v354 = vld [vmem:[%s0 + $0xaa0] sm:$0xff]
  %v355 = vld [vmem:[%s0 + $0xaa8] sm:$0xff]
  %v356 = vld [vmem:[%s0 + $0xab0] sm:$0xff]
  %v357 = vld [vmem:[%s0 + $0xab8] sm:$0xff]
  %v358 = vld [vmem:[%s0 + $0xac0] sm:$0xff]
  %v359 = vld [vmem:[%s0 + $0xac8] sm:$0xff]
  %v360 = vld [vmem:[%s0 + $0xad0] sm:$0xff]
  %v361 = vld [vmem:[%s0 + $0xad8] sm:$0xff]
  %v362 = vld [vmem:[%s0 + $0xae0] sm:$0xff]
  %v363 = vld [vmem:[%s0 + $0xae8] sm:$0xff]
  %v364 = vld [vmem:[%s0 + $0xaf0] sm:$0xff]
  %v365 = vld [vmem:[%s0 + $0xaf8] sm:$0xff]
  %v366 = vld [vmem:[%s0 + $0xb00] sm:$0xff]
  %v367 = vld [vmem:[%s0 + $0xb08] sm:$0xff]
  %v368 = vld [vmem:[%s0 + $0xb10] sm:$0xff]
  %v369 = vld [vmem:[%s0 + $0xb18] sm:$0xff]
  %v370 = vld [vmem:[%s0 + $0xb20] sm:$0xff]
  %v371 = vld [vmem:[%s0 + $0xb28] sm:$0xff]
  %v372 = vld [vmem:[%s0 + $0xb30] sm:$0xff]
  %v373 = vld [vmem:[%s0 + $0xb38] sm:$0xff]
  %v374 = vld [vmem:[%s0 + $0xb40] sm:$0xff]
  %v375 = vld [vmem:[%s0 + $0xb48] sm:$0xff]
  %v376 = vld [vmem:[%s0 + $0xb50] sm:$0xff]
  %v377 = vld [vmem:[%s0 + $0xb58] sm:$0xff]
  %v378 = vld [vmem:[%s0 + $0xb60] sm:$0xff]
  %v379 = vld [vmem:[%s0 + $0xb68] sm:$0xff]
  %v380 = vld [vmem:[%s0 + $0xb70] sm:$0xff]
  %v381 = vld [vmem:[%s0 + $0xb78] sm:$0xff]
  %v382 = vld [vmem:[%s0 + $0xb80] sm:$0xff]
  %v383 = vld [vmem:[%s0 + $0xb88] sm:$0xff]
  %v384 = vld [vmem:[%s0 + $0xb90] sm:$0xff]
  %v385 = vld [vmem:[%s0 + $0xb98] sm:$0xff]
  %v386 = vld [vmem:[%s0 + $0xba0] sm:$0xff]
  %v387 = vld [vmem:[%s0 + $0xba8] sm:$0xff]
  %v388 = vld [vmem:[%s0 + $0xbb0] sm:$0xff]
  %v389 = vld [vmem:[%s0 + $0xbb8] sm:$0xff]
  %v390 = vld [vmem:[%s0 + $0xbc0] sm:$0xff]
  %v391 = vld [vmem:[%s0 + $0xbc8] sm:$0xff]
  %v392 = vld [vmem:[%s0 + $0xbd0] sm:$0xff]
  %v393 = vld [vmem:[%s0 + $0xbd8] sm:$0xff]
  %v394 = vld [vmem:[%s0 + $0xbe0] sm:$0xff]
  %v395 = vld [vmem:[%s0 + $0xbe8] sm:$0xff]
  %v396 = vld [vmem:[%s0 + $0xbf0] sm:$0xff]
  %v397 = vld [vmem:[%s0 + $0xbf8] sm:$0xff]
  %v398 = vld [vmem:[%s0 + $0xc00] sm:$0xff]
  %v399 = vld [vmem:[%s0 + $0xc08] sm:$0xff]
  %v400 = vld [vmem:[%s0 + $0xc10] sm:$0xff]
  %v401 = vld [vmem:[%s0 + $0xc18] sm:$0xff]
  %v402 = vld [vmem:[%s0 + $0xc20] sm:$0xff]
  %v403 = vld [vmem:[%s0 + $0xc28] sm:$0xff]
  %v404 = vld [vmem:[%s0 + $0xc30] sm:$0xff]
  %v405 = vld [vmem:[%s0 + $0xc38] sm:$0xff]
  %v406 = vld [vmem:[%s0 + $0xc40] sm:$0xff]
  %v407 = vld [vmem:[%s0 + $0xc48] sm:$0xff]
  %v408 = vld [vmem:[%s0 + $0xc50] sm:$0xff]
  %v409 = vld [vmem:[%s0 + $0xc58] sm:$0xff]
  %v410 = vld [vmem:[%s0 + $0xc60] sm:$0xff]
  %v411 = vld [vmem:[%s0 + $0xc68] sm:$0xff]
  %v412 = vld [vmem:[%s0 + $0xc70] sm:$0xff]
  %v413 = vld [vmem:[%s0 + $0xc78] sm:$0xff]
  %v414 = vld [vmem:[%s0 + $0xc80] sm:$0xff]
  %v415 = vld [vmem:[%s0 + $0xc88] sm:$0xff]
  %v416 = vld [vmem:[%s0 + $0xc90] sm:$0xff]
  %v417 = vld [vmem:[%s0 + $0xc98] sm:$0xff]
  %v418 = vld [vmem:[%s0 + $0xca0] sm:$0xff]
  %v419 = vld [vmem:[%s0 + $0xca8] sm:$0xff]
  %v420 = vld [vmem:[%s0 + $0xcb0] sm:$0xff]
  %v421 = vld [vmem:[%s0 + $0xcb8] sm:$0xff]
  %v422 = vld [vmem:[%s0 + $0xcc0] sm:$0xff]
  %v423 = vld [vmem:[%s0 + $0xcc8] sm:$0xff]
  %v424 = vld [vmem:[%s0 + $0xcd0] sm:$0xff]
  %v425 = vld [vmem:[%s0 + $0xcd8] sm:$0xff]
  %v426 = vld [vmem:[%s0 + $0xce0] sm:$0xff]
  %v427 = vld [vmem:[%s0 + $0xce8] sm:$0xff]
  %v428 = vld [vmem:[%s0 + $0xcf0] sm:$0xff]
  %v429 = vld [vmem:[%s0 + $0xcf8] sm:$0xff]
  %v430 = vld [vmem:[%s0 + $0xd00] sm:$0xff]
  %v431 = vld [vmem:[%s0 + $0xd08] sm:$0xff]
  %v432 = vld [vmem:[%s0 + $0xd10] sm:$0xff]
  %v433 = vld [vmem:[%s0 + $0xd18] sm:$0xff]
  %v434 = vld [vmem:[%s0 + $0xd20] sm:$0xff]
  %v435 = vld [vmem:[%s0 + $0xd28] sm:$0xff]
  %v436 = vld [vmem:[%s0 + $0xd30] sm:$0xff]
  %v437 = vld [vmem:[%s0 + $0xd38] sm:$0xff]
  %v438 = vld [vmem:[%s0 + $0xd40] sm:$0xff]
  %v439 = vld [vmem:[%s0 + $0xd48] sm:$0xff]
  %v440 = vld [vmem:[%s0 + $0xd50] sm:$0xff]
  %v441 = vld [vmem:[%s0 + $0xd58] sm:$0xff]
  %v442 = vld [vmem:[%s0 + $0xd60] sm:$0xff]
  %v443 = vld [vmem:[%s0 + $0xd68] sm:$0xff]
  %v444 = vld [vmem:[%s0 + $0xd70] sm:$0xff]
  %v445 = vld [vmem:[%s0 + $0xd78] sm:$0xff]
  %v446 = vld [vmem:[%s0 + $0xd80] sm:$0xff]
  %v447 = vld [vmem:[%s0 + $0xd88] sm:$0xff]
  %v448 = vld [vmem:[%s0 + $0xd90] sm:$0xff]
  %v449 = vld [vmem:[%s0 + $0xd98] sm:$0xff]
  %v450 = vld [vmem:[%s0 + $0xda0] sm:$0xff]
  %v451 = vld [vmem:[%s0 + $0xda8] sm:$0xff]
  %v452 = vld [vmem:[%s0 + $0xdb0] sm:$0xff]
  %v453 = vld [vmem:[%s0 + $0xdb8] sm:$0xff]
  %v454 = vld [vmem:[%s0 + $0xdc0] sm:$0xff]
  %v455 = vld [vmem:[%s0 + $0xdc8] sm:$0xff]
  %v456 = vld [vmem:[%s0 + $0xdd0] sm:$0xff]
  %v457 = vld [vmem:[%s0 + $0xdd8] sm:$0xff]
  %v458 = vld [vmem:[%s0 + $0xde0] sm:$0xff]
  %v459 = vld [vmem:[%s0 + $0xde8] sm:$0xff]
  %v460 = vld [vmem:[%s0 + $0xdf0] sm:$0xff]
  %v461 = vld [vmem:[%s0 + $0xdf8] sm:$0xff]
  %v462 = vld [vmem:[%s0 + $0xe00] sm:$0xff]
  %v463 = vld [vmem:[%s0 + $0xe08] sm:$0xff]
  %v464 = vld [vmem:[%s0 + $0xe10] sm:$0xff]
  %v465 = vld [vmem:[%s0 + $0xe18] sm:$0xff]
  %v466 = vld [vmem:[%s0 + $0xe20] sm:$0xff]
  %v467 = vld [vmem:[%s0 + $0xe28] sm:$0xff]
  %v468 = vld [vmem:[%s0 + $0xe30] sm:$0xff]
  %v469 = vld [vmem:[%s0 + $0xe38] sm:$0xff]
  %v470 = vld [vmem:[%s0 + $0xe40] sm:$0xff]
  %v471 = vld [vmem:[%s0 + $0xe48] sm:$0xff]
  %v472 = vld [vmem:[%s0 + $0xe50] sm:$0xff]
  %v473 = vld [vmem:[%s0 + $0xe58] sm:$0xff]
  %v474 = vld [vmem:[%s0 + $0xe60] sm:$0xff]
  %v475 = vld [vmem:[%s0 + $0xe68] sm:$0xff]
  %v476 = vld [vmem:[%s0 + $0xe70] sm:$0xff]
  %v477 = vld [vmem:[%s0 + $0xe78] sm:$0xff]
  %v478 = vld [vmem:[%s0 + $0xe80] sm:$0xff]
  %v479 = vld [vmem:[%s0 + $0xe88] sm:$0xff]
  %v480 = vld [vmem:[%s0 + $0xe90] sm:$0xff]
  %v481 = vld [vmem:[%s0 + $0xe98] sm:$0xff]
  %v482 = vld [vmem:[%s0 + $0xea0] sm:$0xff]
  %v483 = vld [vmem:[%s0 + $0xea8] sm:$0xff]
  %v484 = vld [vmem:[%s0 + $0xeb0] sm:$0xff]
  %v485 = vld [vmem:[%s0 + $0xeb8] sm:$0xff]
  %v486 = vld [vmem:[%s0 + $0xec0] sm:$0xff]
  %v487 = vld [vmem:[%s0 + $0xec8] sm:$0xff]
  %v488 = vld [vmem:[%s0 + $0xed0] sm:$0xff]
  %v489 = vld [vmem:[%s0 + $0xed8] sm:$0xff]
  %v490 = vld [vmem:[%s0 + $0xee0] sm:$0xff]
  %v491 = vld [vmem:[%s0 + $0xee8] sm:$0xff]
  %v492 = vld [vmem:[%s0 + $0xef0] sm:$0xff]
  %v493 = vld [vmem:[%s0 + $0xef8] sm:$0xff]
  %v494 = vld [vmem:[%s0 + $0xf00] sm:$0xff]
  %v495 = vld [vmem:[%s0 + $0xf08] sm:$0xff]
  %v496 = vld [vmem:[%s0 + $0xf10] sm:$0xff]
  %v497 = vld [vmem:[%s0 + $0xf18] sm:$0xff]
  %v498 = vld [vmem:[%s0 + $0xf20] sm:$0xff]
  %v499 = vld [vmem:[%s0 + $0xf28] sm:$0xff]
  %v500 = vld [vmem:[%s0 + $0xf30] sm:$0xff]
  %v501 = vld [vmem:[%s0 + $0xf38] sm:$0xff]
  %v502 = vld [vmem:[%s0 + $0xf40] sm:$0xff]
  %v503 = vld [vmem:[%s0 + $0xf48] sm:$0xff]
  %v504 = vld [vmem:[%s0 + $0xf50] sm:$0xff]
  %v505 = vld [vmem:[%s0 + $0xf58] sm:$0xff]
  %v506 = vld [vmem:[%s0 + $0xf60] sm:$0xff]
  %v507 = vld [vmem:[%s0 + $0xf68] sm:$0xff]
  %v508 = vld [vmem:[%s0 + $0xf70] sm:$0xff]
  %v509 = vld [vmem:[%s0 + $0xf78] sm:$0xff]
  %v510 = vld [vmem:[%s0 + $0xf80] sm:$0xff]
  %v511 = vld [vmem:[%s0 + $0xf88] sm:$0xff]
  %v512 = vld [vmem:[%s0 + $0xf90] sm:$0xff]
  %v513 = vld [vmem:[%s0 + $0xf98] sm:$0xff]
  %v514 = vld [vmem:[%s0 + $0xfa0] sm:$0xff]
  %v515 = vld [vmem:[%s0 + $0xfa8] sm:$0xff]
  %v516 = vld [vmem:[%s0 + $0xfb0] sm:$0xff]
  %v517 = vld [vmem:[%s0 + $0xfb8] sm:$0xff]
  %v518 = vld [vmem:[%s0 + $0xfc0] sm:$0xff]
  %v519 = vld [vmem:[%s0 + $0xfc8] sm:$0xff]
  %v520 = vld [vmem:[%s0 + $0xfd0] sm:$0xff]
  %v521 = vld [vmem:[%s0 + $0xfd8] sm:$0xff]
  %v522 = vld [vmem:[%s0 + $0xfe0] sm:$0xff]
  %v523 = vld [vmem:[%s0 + $0xfe8] sm:$0xff]
  %v524 = vld [vmem:[%s0 + $0xff0] sm:$0xff]
  %v525 = vld [vmem:[%s0 + $0xff8] sm:$0xff]
  %v526 = vld [vmem:[%s0 + $0x1000] sm:$0xff]
  %v527 = vld [vmem:[%s0 + $0x1008] sm:$0xff]
  %v528 = vld [vmem:[%s0 + $0x1010] sm:$0xff]
  %v529 = vld [vmem:[%s0 + $0x1018] sm:$0xff]
  %v530 = vld [vmem:[%s0 + $0x1020] sm:$0xff]
  %v531 = vld [vmem:[%s0 + $0x1028] sm:$0xff]
  %v532 = vld [vmem:[%s0 + $0x1030] sm:$0xff]
  %v533 = vld [vmem:[%s0 + $0x1038] sm:$0xff]
  %v534 = vld [vmem:[%s0 + $0x1040] sm:$0xff]
  %v535 = vld [vmem:[%s0 + $0x1048] sm:$0xff]
  %v536 = vld [vmem:[%s0 + $0x1050] sm:$0xff]
  %v537 = vld [vmem:[%s0 + $0x1058] sm:$0xff]
  %v538 = vld [vmem:[%s0 + $0x1060] sm:$0xff]
  %v539 = vld [vmem:[%s0 + $0x1068] sm:$0xff]
  %v540 = vld [vmem:[%s0 + $0x1070] sm:$0xff]
  %v541 = vld [vmem:[%s0 + $0x1078] sm:$0xff]
  %v542 = vld [vmem:[%s0 + $0x1080] sm:$0xff]
  %v543 = vld [vmem:[%s0 + $0x1088] sm:$0xff]
  %v544 = vld [vmem:[%s0 + $0x1090] sm:$0xff]
  %v545 = vld [vmem:[%s0 + $0x1098] sm:$0xff]
  %v546 = vld [vmem:[%s0 + $0x10a0] sm:$0xff]
  %v547 = vld [vmem:[%s0 + $0x10a8] sm:$0xff]
  %v548 = vld [vmem:[%s0 + $0x10b0] sm:$0xff]
  %v549 = vld [vmem:[%s0 + $0x10b8] sm:$0xff]
  %v550 = vld [vmem:[%s0 + $0x10c0] sm:$0xff]
  %v551 = vld [vmem:[%s0 + $0x10c8] sm:$0xff]
  %v552 = vld [vmem:[%s0 + $0x10d0] sm:$0xff]
  %v553 = vld [vmem:[%s0 + $0x10d8] sm:$0xff]
  %v554 = vld [vmem:[%s0 + $0x10e0] sm:$0xff]
  %v555 = vld [vmem:[%s0 + $0x10e8] sm:$0xff]
  %v556 = vld [vmem:[%s0 + $0x10f0] sm:$0xff]
  %v557 = vld [vmem:[%s0 + $0x10f8] sm:$0xff]
  %v558 = vld [vmem:[%s0 + $0x1100] sm:$0xff]
  %v559 = vld [vmem:[%s0 + $0x1108] sm:$0xff]
  %v560 = vld [vmem:[%s0 + $0x1110] sm:$0xff]
  %v561 = vld [vmem:[%s0 + $0x1118] sm:$0xff]
  %v562 = vld [vmem:[%s0 + $0x1120] sm:$0xff]
  %v563 = vld [vmem:[%s0 + $0x1128] sm:$0xff]
  %v564 = vld [vmem:[%s0 + $0x1130] sm:$0xff]
  %v565 = vld [vmem:[%s0 + $0x1138] sm:$0xff]
  %v566 = vld [vmem:[%s0 + $0x1140] sm:$0xff]
  %v567 = vld [vmem:[%s0 + $0x1148] sm:$0xff]
  %v568 = vld [vmem:[%s0 + $0x1150] sm:$0xff]
  %v569 = vld [vmem:[%s0 + $0x1158] sm:$0xff]
  %v570 = vld [vmem:[%s0 + $0x1160] sm:$0xff]
  %v571 = vld [vmem:[%s0 + $0x1168] sm:$0xff]
  %v572 = vld [vmem:[%s0 + $0x1170] sm:$0xff]
  %v573 = vld [vmem:[%s0 + $0x1178] sm:$0xff]
  %v574 = vld [vmem:[%s0 + $0x1180] sm:$0xff]
  %v575 = vld [vmem:[%s0 + $0x1188] sm:$0xff]
  %v576 = vld [vmem:[%s0 + $0x1190] sm:$0xff]
  %v577 = vld [vmem:[%s0 + $0x1198] sm:$0xff]
  %v578 = vld [vmem:[%s0 + $0x11a0] sm:$0xff]
  %v579 = vld [vmem:[%s0 + $0x11a8] sm:$0xff]
  %v580 = vld [vmem:[%s0 + $0x11b0] sm:$0xff]
  %v581 = vld [vmem:[%s0 + $0x11b8] sm:$0xff]
  %v582 = vld [vmem:[%s0 + $0x11c0] sm:$0xff]
  %v583 = vld [vmem:[%s0 + $0x11c8] sm:$0xff]
  %v584 = vld [vmem:[%s0 + $0x11d0] sm:$0xff]
  %v585 = vld [vmem:[%s0 + $0x11d8] sm:$0xff]
  %v586 = vld [vmem:[%s0 + $0x11e0] sm:$0xff]
  %v587 = vld [vmem:[%s0 + $0x11e8] sm:$0xff]
  %v588 = vld [vmem:[%s0 + $0x11f0] sm:$0xff]
  %v589 = vld [vmem:[%s0 + $0x11f8] sm:$0xff]
  %v590 = vld [vmem:[%s0 + $0x1200] sm:$0xff]
  %v591 = vld [vmem:[%s0 + $0x1208] sm:$0xff]
  %v592 = vld [vmem:[%s0 + $0x1210] sm:$0xff]
  %v593 = vld [vmem:[%s0 + $0x1218] sm:$0xff]
  %v594 = vld [vmem:[%s0 + $0x1220] sm:$0xff]
  %v595 = vld [vmem:[%s0 + $0x1228] sm:$0xff]
  %v596 = vld [vmem:[%s0 + $0x1230] sm:$0xff]
  %v597 = vld [vmem:[%s0 + $0x1238] sm:$0xff]
  %v598 = vld [vmem:[%s0 + $0x1240] sm:$0xff]
  %v599 = vld [vmem:[%s0 + $0x1248] sm:$0xff]
  %v600 = vld [vmem:[%s0 + $0x1250] sm:$0xff]
  %v601 = vld [vmem:[%s0 + $0x1258] sm:$0xff]
  %v602 = vld [vmem:[%s0 + $0x1260] sm:$0xff]
  %v603 = vld [vmem:[%s0 + $0x1268] sm:$0xff]
  %v604 = vld [vmem:[%s0 + $0x1270] sm:$0xff]
  %v605 = vld [vmem:[%s0 + $0x1278] sm:$0xff]
  %v606 = vld [vmem:[%s0 + $0x1280] sm:$0xff]
  %v607 = vld [vmem:[%s0 + $0x1288] sm:$0xff]
  %v608 = vld [vmem:[%s0 + $0x1290] sm:$0xff]
  %v609 = vld [vmem:[%s0 + $0x1298] sm:$0xff]
  %v610 = vld [vmem:[%s0 + $0x12a0] sm:$0xff]
  %v611 = vld [vmem:[%s0 + $0x12a8] sm:$0xff]
  %v612 = vld [vmem:[%s0 + $0x12b0] sm:$0xff]
  %v613 = vld [vmem:[%s0 + $0x12b8] sm:$0xff]
  %v614 = vld [vmem:[%s0 + $0x12c0] sm:$0xff]
  %v615 = vld [vmem:[%s0 + $0x12c8] sm:$0xff]
  %v616 = vld [vmem:[%s0 + $0x12d0] sm:$0xff]
  %v617 = vld [vmem:[%s0 + $0x12d8] sm:$0xff]
  %v618 = vld [vmem:[%s0 + $0x12e0] sm:$0xff]
  %v619 = vld [vmem:[%s0 + $0x12e8] sm:$0xff]
  %v620 = vld [vmem:[%s0 + $0x12f0] sm:$0xff]
  %v621 = vld [vmem:[%s0 + $0x12f8] sm:$0xff]
  %v622 = vld [vmem:[%s0 + $0x1300] sm:$0xff]
  %v623 = vld [vmem:[%s0 + $0x1308] sm:$0xff]
  %v624 = vld [vmem:[%s0 + $0x1310] sm:$0xff]
  %v625 = vld [vmem:[%s0 + $0x1318] sm:$0xff]
  %v626 = vld [vmem:[%s0 + $0x1320] sm:$0xff]
  %v627 = vld [vmem:[%s0 + $0x1328] sm:$0xff]
  %v628 = vld [vmem:[%s0 + $0x1330] sm:$0xff]
  %v629 = vld [vmem:[%s0 + $0x1338] sm:$0xff]
  %v630 = vld [vmem:[%s0 + $0x1340] sm:$0xff]
  %v631 = vld [vmem:[%s0 + $0x1348] sm:$0xff]
  %v632 = vld [vmem:[%s0 + $0x1350] sm:$0xff]
  %v633 = vld [vmem:[%s0 + $0x1358] sm:$0xff]
  %v634 = vld [vmem:[%s0 + $0x1360] sm:$0xff]
  %v635 = vld [vmem:[%s0 + $0x1368] sm:$0xff]
  %v636 = vld [vmem:[%s0 + $0x1370] sm:$0xff]
  %v637 = vld [vmem:[%s0 + $0x1378] sm:$0xff]
  %v638 = vld [vmem:[%s0 + $0x1380] sm:$0xff]
  %v639 = vld [vmem:[%s0 + $0x1388] sm:$0xff]
  %v640 = vld [vmem:[%s0 + $0x1390] sm:$0xff]
  %v641 = vld [vmem:[%s0 + $0x1398] sm:$0xff]
  %v642 = vld [vmem:[%s0 + $0x13a0] sm:$0xff]
  %v643 = vld [vmem:[%s0 + $0x13a8] sm:$0xff]
  %v644 = vld [vmem:[%s0 + $0x13b0] sm:$0xff]
  %v645 = vld [vmem:[%s0 + $0x13b8] sm:$0xff]
  %v646 = vld [vmem:[%s0 + $0x13c0] sm:$0xff]
  %v647 = vld [vmem:[%s0 + $0x13c8] sm:$0xff]
  %v648 = vld [vmem:[%s0 + $0x13d0] sm:$0xff]
  %v649 = vld [vmem:[%s0 + $0x13d8] sm:$0xff]
  %v650 = vld [vmem:[%s0 + $0x13e0] sm:$0xff]
  %v651 = vld [vmem:[%s0 + $0x13e8] sm:$0xff]
  %v652 = vld [vmem:[%s0 + $0x13f0] sm:$0xff]
  %v653 = vld [vmem:[%s0 + $0x13f8] sm:$0xff]
  %v654 = vld [vmem:[%s0 + $0x1400] sm:$0xff]
  %v655 = vld [vmem:[%s0 + $0x1408] sm:$0xff]
  %v656 = vld [vmem:[%s0 + $0x1410] sm:$0xff]
  %v657 = vld [vmem:[%s0 + $0x1418] sm:$0xff]
  %v658 = vld [vmem:[%s0 + $0x1420] sm:$0xff]
  %v659 = vld [vmem:[%s0 + $0x1428] sm:$0xff]
  %v660 = vld [vmem:[%s0 + $0x1430] sm:$0xff]
  %v661 = vld [vmem:[%s0 + $0x1438] sm:$0xff]
  %v662 = vld [vmem:[%s0 + $0x1440] sm:$0xff]
  %v663 = vld [vmem:[%s0 + $0x1448] sm:$0xff]
  %v664 = vld [vmem:[%s0 + $0x1450] sm:$0xff]
  %v665 = vld [vmem:[%s0 + $0x1458] sm:$0xff]
  %v666 = vld [vmem:[%s0 + $0x1460] sm:$0xff]
  %v667 = vld [vmem:[%s0 + $0x1468] sm:$0xff]
  %v668 = vld [vmem:[%s0 + $0x1470] sm:$0xff]
  %v669 = vld [vmem:[%s0 + $0x1478] sm:$0xff]
  %v670 = vld [vmem:[%s0 + $0x1480] sm:$0xff]
  %v671 = vld [vmem:[%s0 + $0x1488] sm:$0xff]
  %v672 = vld [vmem:[%s0 + $0x1490] sm:$0xff]
  %v673 = vld [vmem:[%s0 + $0x1498] sm:$0xff]
  %v674 = vld [vmem:[%s0 + $0x14a0] sm:$0xff]
  %v675 = vld [vmem:[%s0 + $0x14a8] sm:$0xff]
  %v676 = vld [vmem:[%s0 + $0x14b0] sm:$0xff]
  %v677 = vld [vmem:[%s0 + $0x14b8] sm:$0xff]
  %v678 = vld [vmem:[%s0 + $0x14c0] sm:$0xff]
  %v679 = vld [vmem:[%s0 + $0x14c8] sm:$0xff]
  %v680 = vld [vmem:[%s0 + $0x14d0] sm:$0xff]
  %v681 = vld [vmem:[%s0 + $0x14d8] sm:$0xff]
  %v682 = vld [vmem:[%s0 + $0x14e0] sm:$0xff]
  %v683 = vld [vmem:[%s0 + $0x14e8] sm:$0xff]
  %v684 = vld [vmem:[%s0 + $0x14f0] sm:$0xff]
  %v685 = vld [vmem:[%s0 + $0x14f8] sm:$0xff]
  %v686 = vld [vmem:[%s0 + $0x1500] sm:$0xff]
  %v687 = vld [vmem:[%s0 + $0x1508] sm:$0xff]
  %v688 = vld [vmem:[%s0 + $0x1510] sm:$0xff]
  %v689 = vld [vmem:[%s0 + $0x1518] sm:$0xff]
  %v690 = vld [vmem:[%s0 + $0x1520] sm:$0xff]
  %v691 = vld [vmem:[%s0 + $0x1528] sm:$0xff]
  %v692 = vld [vmem:[%s0 + $0x1530] sm:$0xff]
  %v693 = vld [vmem:[%s0 + $0x1538] sm:$0xff]
  %v694 = vld [vmem:[%s0 + $0x1540] sm:$0xff]
  %v695 = vld [vmem:[%s0 + $0x1548] sm:$0xff]
  %v696 = vld [vmem:[%s0 + $0x1550] sm:$0xff]
  %v697 = vld [vmem:[%s0 + $0x1558] sm:$0xff]
  %v698 = vld [vmem:[%s0 + $0x1560] sm:$0xff]
  %v699 = vld [vmem:[%s0 + $0x1568] sm:$0xff]
  %v700 = vld [vmem:[%s0 + $0x1570] sm:$0xff]
  %v701 = vld [vmem:[%s0 + $0x1578] sm:$0xff]
  %v702 = vld [vmem:[%s0 + $0x1580] sm:$0xff]
  %v703 = vld [vmem:[%s0 + $0x1588] sm:$0xff]
  %v704 = vld [vmem:[%s0 + $0x1590] sm:$0xff]
  %v705 = vld [vmem:[%s0 + $0x1598] sm:$0xff]
  %v706 = vld [vmem:[%s0 + $0x15a0] sm:$0xff]
  %v707 = vld [vmem:[%s0 + $0x15a8] sm:$0xff]
  %v708 = vld [vmem:[%s0 + $0x15b0] sm:$0xff]
  %v709 = vld [vmem:[%s0 + $0x15b8] sm:$0xff]
  %v710 = vld [vmem:[%s0 + $0x15c0] sm:$0xff]
  %v711 = vld [vmem:[%s0 + $0x15c8] sm:$0xff]
  %v712 = vld [vmem:[%s0 + $0x15d0] sm:$0xff]
  %v713 = vld [vmem:[%s0 + $0x15d8] sm:$0xff]
  %v714 = vld [vmem:[%s0 + $0x15e0] sm:$0xff]
  %v715 = vld [vmem:[%s0 + $0x15e8] sm:$0xff]
  %v716 = vld [vmem:[%s0 + $0x15f0] sm:$0xff]
  %v717 = vld [vmem:[%s0 + $0x15f8] sm:$0xff]
  %v718 = vld [vmem:[%s0 + $0x1600] sm:$0xff]
  %v719 = vld [vmem:[%s0 + $0x1608] sm:$0xff]
  %v720 = vld [vmem:[%s0 + $0x1610] sm:$0xff]
  %v721 = vld [vmem:[%s0 + $0x1618] sm:$0xff]
  %v722 = vld [vmem:[%s0 + $0x1620] sm:$0xff]
  %v723 = vld [vmem:[%s0 + $0x1628] sm:$0xff]
  %v724 = vld [vmem:[%s0 + $0x1630] sm:$0xff]
  %v725 = vld [vmem:[%s0 + $0x1638] sm:$0xff]
  %v726 = vld [vmem:[%s0 + $0x1640] sm:$0xff]
  %v727 = vld [vmem:[%s0 + $0x1648] sm:$0xff]
  %v728 = vld [vmem:[%s0 + $0x1650] sm:$0xff]
  %v729 = vld [vmem:[%s0 + $0x1658] sm:$0xff]
  %v730 = vld [vmem:[%s0 + $0x1660] sm:$0xff]
  %v731 = vld [vmem:[%s0 + $0x1668] sm:$0xff]
  %v732 = vld [vmem:[%s0 + $0x1670] sm:$0xff]
  %v733 = vld [vmem:[%s0 + $0x1678] sm:$0xff]
  %v734 = vld [vmem:[%s0 + $0x1680] sm:$0xff]
  %v735 = vld [vmem:[%s0 + $0x1688] sm:$0xff]
  %v736 = vld [vmem:[%s0 + $0x1690] sm:$0xff]
  %v737 = vld [vmem:[%s0 + $0x1698] sm:$0xff]
  %v738 = vld [vmem:[%s0 + $0x16a0] sm:$0xff]
  %v739 = vld [vmem:[%s0 + $0x16a8] sm:$0xff]
  %v740 = vld [vmem:[%s0 + $0x16b0] sm:$0xff]
  %v741 = vld [vmem:[%s0 + $0x16b8] sm:$0xff]
  %v742 = vld [vmem:[%s0 + $0x16c0] sm:$0xff]
  %v743 = vld [vmem:[%s0 + $0x16c8] sm:$0xff]
  %v744 = vld [vmem:[%s0 + $0x16d0] sm:$0xff]
  %v745 = vld [vmem:[%s0 + $0x16d8] sm:$0xff]
  %v746 = vld [vmem:[%s0 + $0x16e0] sm:$0xff]
  %v747 = vld [vmem:[%s0 + $0x16e8] sm:$0xff]
  %v748 = vld [vmem:[%s0 + $0x16f0] sm:$0xff]
  %v749 = vld [vmem:[%s0 + $0x16f8] sm:$0xff]
  %v750 = vld [vmem:[%s0 + $0x1700] sm:$0xff]
  %v751 = vld [vmem:[%s0 + $0x1708] sm:$0xff]
  %v752 = vld [vmem:[%s0 + $0x1710] sm:$0xff]
  %v753 = vld [vmem:[%s0 + $0x1718] sm:$0xff]
  %v754 = vld [vmem:[%s0 + $0x1720] sm:$0xff]
  %v755 = vld [vmem:[%s0 + $0x1728] sm:$0xff]
  %v756 = vld [vmem:[%s0 + $0x1730] sm:$0xff]
  %v757 = vld [vmem:[%s0 + $0x1738] sm:$0xff]
  %v758 = vld [vmem:[%s0 + $0x1740] sm:$0xff]
  %v759 = vld [vmem:[%s0 + $0x1748] sm:$0xff]
  %v760 = vld [vmem:[%s0 + $0x1750] sm:$0xff]
  %v761 = vld [vmem:[%s0 + $0x1758] sm:$0xff]
  %v762 = vld [vmem:[%s0 + $0x1760] sm:$0xff]
  %v763 = vld [vmem:[%s0 + $0x1768] sm:$0xff]
  %v764 = vld [vmem:[%s0 + $0x1770] sm:$0xff]
  %v765 = vld [vmem:[%s0 + $0x1778] sm:$0xff]
  %v766 = vld [vmem:[%s0 + $0x1780] sm:$0xff]
  %v767 = vld [vmem:[%s0 + $0x1788] sm:$0xff]
  %v768 = vld [vmem:[%s0 + $0x1790] sm:$0xff]
  %v769 = vld [vmem:[%s0 + $0x1798] sm:$0xff]
  %v770 = vld [vmem:[%s0 + $0x17a0] sm:$0xff]
  %v771 = vld [vmem:[%s0 + $0x17a8] sm:$0xff]
  %v772 = vld [vmem:[%s0 + $0x17b0] sm:$0xff]
  %v773 = vld [vmem:[%s0 + $0x17b8] sm:$0xff]
  %v774 = vld [vmem:[%s0 + $0x17c0] sm:$0xff]
  %v775 = vld [vmem:[%s0 + $0x17c8] sm:$0xff]
  %v776 = vld [vmem:[%s0 + $0x17d0] sm:$0xff]
  %v777 = vld [vmem:[%s0 + $0x17d8] sm:$0xff]
  %v778 = vld [vmem:[%s0 + $0x17e0] sm:$0xff]
  %v779 = vld [vmem:[%s0 + $0x17e8] sm:$0xff]
  %v780 = vld [vmem:[%s0 + $0x17f0] sm:$0xff]
  %v781 = vld [vmem:[%s0 + $0x17f8] sm:$0xff]
  %v782 = vld [vmem:[%s0 + $0x1800] sm:$0xff]
  %v783 = vld [vmem:[%s0 + $0x1808] sm:$0xff]
  %v784 = vld [vmem:[%s0 + $0x1810] sm:$0xff]
  %v785 = vld [vmem:[%s0 + $0x1818] sm:$0xff]
  %v786 = vld [vmem:[%s0 + $0x1820] sm:$0xff]
  %v787 = vld [vmem:[%s0 + $0x1828] sm:$0xff]
  %v788 = vld [vmem:[%s0 + $0x1830] sm:$0xff]
  %v789 = vld [vmem:[%s0 + $0x1838] sm:$0xff]
  %v790 = vld [vmem:[%s0 + $0x1840] sm:$0xff]
  %v791 = vld [vmem:[%s0 + $0x1848] sm:$0xff]
  %v792 = vld [vmem:[%s0 + $0x1850] sm:$0xff]
  %v793 = vld [vmem:[%s0 + $0x1858] sm:$0xff]
  %v794 = vld [vmem:[%s0 + $0x1860] sm:$0xff]
  %v795 = vld [vmem:[%s0 + $0x1868] sm:$0xff]
  %v796 = vld [vmem:[%s0 + $0x1870] sm:$0xff]
  %v797 = vld [vmem:[%s0 + $0x1878] sm:$0xff]
  %v798 = vld [vmem:[%s0 + $0x1880] sm:$0xff]
  %v799 = vld [vmem:[%s0 + $0x1888] sm:$0xff]
  %v800 = vld [vmem:[%s0 + $0x1890] sm:$0xff]
  %v801 = vld [vmem:[%s0 + $0x1898] sm:$0xff]
  %v802 = vld [vmem:[%s0 + $0x18a0] sm:$0xff]
  %v803 = vld [vmem:[%s0 + $0x18a8] sm:$0xff]
  %v804 = vld [vmem:[%s0 + $0x18b0] sm:$0xff]
  %v805 = vld [vmem:[%s0 + $0x18b8] sm:$0xff]
  %v806 = vld [vmem:[%s0 + $0x18c0] sm:$0xff]
  %v807 = vld [vmem:[%s0 + $0x18c8] sm:$0xff]
  %v808 = vld [vmem:[%s0 + $0x18d0] sm:$0xff]
  %v809 = vld [vmem:[%s0 + $0x18d8] sm:$0xff]
  %v810 = vld [vmem:[%s0 + $0x18e0] sm:$0xff]
  %v811 = vld [vmem:[%s0 + $0x18e8] sm:$0xff]
  %v812 = vld [vmem:[%s0 + $0x18f0] sm:$0xff]
  %v813 = vld [vmem:[%s0 + $0x18f8] sm:$0xff]
  %v814 = vld [vmem:[%s1] sm:$0xff]
  %v815 = vld [vmem:[%s1 + $0x8] sm:$0xff]
  %v816 = vld [vmem:[%s1 + $0x10] sm:$0xff]
  %v817 = vld [vmem:[%s1 + $0x18] sm:$0xff]
  %v818 = vld [vmem:[%s1 + $0x20] sm:$0xff]
  %v819 = vld [vmem:[%s1 + $0x28] sm:$0xff]
  %v820 = vld [vmem:[%s1 + $0x30] sm:$0xff]
  %v821 = vld [vmem:[%s1 + $0x38] sm:$0xff]
  %v822 = vld [vmem:[%s1 + $0x40] sm:$0xff]
  %v823 = vld [vmem:[%s1 + $0x48] sm:$0xff]
  %v824 = vld [vmem:[%s1 + $0x50] sm:$0xff]
  %v825 = vld [vmem:[%s1 + $0x58] sm:$0xff]
  %v826 = vld [vmem:[%s1 + $0x60] sm:$0xff]
  %v827 = vld [vmem:[%s1 + $0x68] sm:$0xff]
  %v828 = vld [vmem:[%s1 + $0x70] sm:$0xff]
  %v829 = vld [vmem:[%s1 + $0x78] sm:$0xff]
  %v830 = vld [vmem:[%s1 + $0x80] sm:$0xff]
  %v831 = vld [vmem:[%s1 + $0x88] sm:$0xff]
  %v832 = vld [vmem:[%s1 + $0x90] sm:$0xff]
  %v833 = vld [vmem:[%s1 + $0x98] sm:$0xff]
  %v834 = vld [vmem:[%s1 + $0xa0] sm:$0xff]
  %v835 = vld [vmem:[%s1 + $0xa8] sm:$0xff]
  %v836 = vld [vmem:[%s1 + $0xb0] sm:$0xff]
  %v837 = vld [vmem:[%s1 + $0xb8] sm:$0xff]
  %v838 = vld [vmem:[%s1 + $0xc0] sm:$0xff]
  %v839 = vld [vmem:[%s1 + $0xc8] sm:$0xff]
  %v840 = vld [vmem:[%s1 + $0xd0] sm:$0xff]
  %v841 = vld [vmem:[%s1 + $0xd8] sm:$0xff]
  %v842 = vld [vmem:[%s1 + $0xe0] sm:$0xff]
  %v843 = vld [vmem:[%s1 + $0xe8] sm:$0xff]
  %v844 = vld [vmem:[%s1 + $0xf0] sm:$0xff]
  %v845 = vld [vmem:[%s1 + $0xf8] sm:$0xff]
  %v846 = vld [vmem:[%s2] sm:$0x1]
  %v848 = vlaneseq
  %v849 = vshrl.u32 %v848, 7
  %v850 = vsub.s32 0, %v849
  %v851 = vrot.slane %v846, %v850
  %853 = vmatprep.subr.mxu0 0.0
  %854 = vmatpush1.msra.mxu0 %v814
  %855 = vmatprep.subr.mxu0 0.0
  %856 = vmatpush1.msra.mxu0 %v815
  %857 = vmatprep.subr.mxu0 0.0
  %858 = vmatpush1.msra.mxu0 %v816
  %859 = vmatprep.subr.mxu0 0.0
  %860 = vmatpush1.msra.mxu0 %v817
  %861 = vmatprep.subr.mxu0 0.0
  %862 = vmatpush1.msra.mxu0 %v818
  %863 = vmatprep.subr.mxu0 0.0
  %864 = vmatpush1.msra.mxu0 %v819
  %865 = vmatprep.subr.mxu0 0.0
  %866 = vmatpush1.msra.mxu0 %v820
  %867 = vmatprep.subr.mxu0 0.0
  %868 = vmatpush1.msra.mxu0 %v821
  %869 = vmatprep.subr.mxu0 0.0
  %870 = vmatpush1.msra.mxu0 %v822
  %871 = vmatprep.subr.mxu0 0.0
  %872 = vmatpush1.msra.mxu0 %v823
  %873 = vmatprep.subr.mxu0 0.0
  %874 = vmatpush1.msra.mxu0 %v824
  %875 = vmatprep.subr.mxu0 0.0
  %876 = vmatpush1.msra.mxu0 %v825
  %877 = vmatprep.subr.mxu0 0.0
  %878 = vmatpush1.msra.mxu0 %v826
  %879 = vmatprep.subr.mxu0 0.0
  %880 = vmatpush1.msra.mxu0 %v827
  %881 = vmatprep.subr.mxu0 0.0
  %882 = vmatpush1.msra.mxu0 %v828
  %883 = vmatprep.subr.mxu0 0.0
  %884 = vmatpush1.msra.mxu0 %v829
  %885 = vmatprep.subr.mxu0 0.0
  %886 = vmatpush1.msra.mxu0 %v830
  %887 = vmatprep.subr.mxu0 0.0
  %888 = vmatpush1.msra.mxu0 %v831
  %889 = vmatprep.subr.mxu0 0.0
  %890 = vmatpush1.msra.mxu0 %v832
  %891 = vmatprep.subr.mxu0 0.0
  %892 = vmatpush1.msra.mxu0 %v833
  %893 = vmatprep.subr.mxu0 0.0
  %894 = vmatpush1.msra.mxu0 %v834
  %895 = vmatprep.subr.mxu0 0.0
  %896 = vmatpush1.msra.mxu0 %v835
  %897 = vmatprep.subr.mxu0 0.0
  %898 = vmatpush1.msra.mxu0 %v836
  %899 = vmatprep.subr.mxu0 0.0
  %900 = vmatpush1.msra.mxu0 %v837
  %901 = vmatprep.subr.mxu0 0.0
  %902 = vmatpush1.msra.mxu0 %v838
  %903 = vmatprep.subr.mxu0 0.0
  %904 = vmatpush1.msra.mxu0 %v839
  %905 = vmatprep.subr.mxu0 0.0
  %906 = vmatpush1.msra.mxu0 %v840
  %907 = vmatprep.subr.mxu0 0.0
  %908 = vmatpush1.msra.mxu0 %v841
  %909 = vmatprep.subr.mxu0 0.0
  %910 = vmatpush1.msra.mxu0 %v842
  %911 = vmatprep.subr.mxu0 0.0
  %912 = vmatpush1.msra.mxu0 %v843
  %913 = vmatprep.subr.mxu0 0.0
  %914 = vmatpush1.msra.mxu0 %v844
  %915 = vmatprep.subr.mxu0 0.0
  %916 = vmatpush1.msra.mxu0 %v845
  %917 = vmatprep.mubr.f32.mxu0 %v15
  %918 = vmatmul.mubr.f32.gmra.mrb[0].mxu0 %v14
  %v919 = vpop.f32.mrb[0].mxu0
  %v920 = vadd.f32 %v851, %v919
  %v921 = vpop.f32.mrb[0].mxu0
  %922 = vmatprep.mubr.f32.mxu0 %v17
  %923 = vmatmul.mubr.f32.gmra.mrb[0].mxu0 %v16
  %v924 = vpop.f32.mrb[0].mxu0
  %v925 = vadd.f32 %v851, %v924
  %v926 = vpop.f32.mrb[0].mxu0
  %927 = vmatprep.mubr.f32.mxu0 %v19
  %928 = vmatmul.mubr.f32.gmra.mrb[0].mxu0 %v18
  %v929 = vpop.f32.mrb[0].mxu0
  %v930 = vadd.f32 %v851, %v929
  %v931 = vpop.f32.mrb[0].mxu0
  %932 = vmatprep.mubr.f32.mxu0 %v21
  %933 = vmatmul.mubr.f32.gmra.mrb[0].mxu0 %v20
  %v934 = vpop.f32.mrb[0].mxu0
  %v935 = vadd.f32 %v851, %v934
  %v936 = vpop.f32.mrb[0].mxu0
  %937 = vmatprep.mubr.f32.mxu0 %v23
  %938 = vmatmul.mubr.f32.gmra.mrb[0].mxu0 %v22
  %v939 = vpop.f32.mrb[0].mxu0
  %v940 = vadd.f32 %v851, %v939
  %v941 = vpop.f32.mrb[0].mxu0
  %942 = vmatprep.mubr.f32.mxu0 %v25
  %943 = vmatmul.mubr.f32.gmra.mrb[0].mxu0 %v24
  %v944 = vpop.f32.mrb[0].mxu0
  %v945 = vadd.f32 %v851, %v944
  %v946 = vpop.f32.mrb[0].mxu0
  %947 = vmatprep.mubr.f32.mxu0 %v27
  %948 = vmatmul.mubr.f32.gmra.mrb[0].mxu0 %v26
  %v949 = vpop.f32.mrb[0].mxu0
  %v950 = vadd.f32 %v851, %v949
  %v951 = vpop.f32.mrb[0].mxu0
  %952 = vmatprep.mubr.f32.mxu0 %v29
  %953 = vmatmul.mubr.f32.gmra.mrb[0].mxu0 %v28
  %v954 = vpop.f32.mrb[0].mxu0
  %v955 = vadd.f32 %v851, %v954
  %v956 = vpop.f32.mrb[0].mxu0
  %957 = vmatprep.mubr.f32.mxu0 %v31
  %958 = vmatmul.mubr.f32.gmra.mrb[0].mxu0 %v30
  %v959 = vpop.f32.mrb[0].mxu0
  %v960 = vadd.f32 %v851, %v959
  %v961 = vpop.f32.mrb[0].mxu0
  %962 = vmatprep.mubr.f32.mxu0 %v33
  %963 = vmatmul.mubr.f32.gmra.mrb[0].mxu0 %v32
  %v964 = vpop.f32.mrb[0].mxu0
  %v965 = vadd.f32 %v851, %v964
  %v966 = vpop.f32.mrb[0].mxu0
  %967 = vmatprep.mubr.f32.mxu0 %v35
  %968 = vmatmul.mubr.f32.gmra.mrb[0].mxu0 %v34
  %v969 = vpop.f32.mrb[0].mxu0
  %v970 = vadd.f32 %v851, %v969
  %v971 = vpop.f32.mrb[0].mxu0
  %972 = vmatprep.mubr.f32.mxu0 %v37
  %973 = vmatmul.mubr.f32.gmra.mrb[0].mxu0 %v36
  %v974 = vpop.f32.mrb[0].mxu0
  %v975 = vadd.f32 %v851, %v974
  %v976 = vpop.f32.mrb[0].mxu0
  %977 = vmatprep.mubr.f32.mxu0 %v39
  %978 = vmatmul.mubr.f32.gmra.mrb[0].mxu0 %v38
  %v979 = vpop.f32.mrb[0].mxu0
  %v980 = vadd.f32 %v851, %v979
  %v981 = vpop.f32.mrb[0].mxu0
  %982 = vmatprep.mubr.f32.mxu0 %v41
  %983 = vmatmul.mubr.f32.gmra.mrb[0].mxu0 %v40
  %v984 = vpop.f32.mrb[0].mxu0
  %v985 = vadd.f32 %v851, %v984
  %v986 = vpop.f32.mrb[0].mxu0
  %987 = vmatprep.mubr.f32.mxu0 %v43
  %988 = vmatmul.mubr.f32.gmra.mrb[0].mxu0 %v42
  %v989 = vpop.f32.mrb[0].mxu0
  %v990 = vadd.f32 %v851, %v989
  %v991 = vpop.f32.mrb[0].mxu0
  %992 = vmatprep.mubr.f32.mxu0 %v45
  %993 = vmatmul.mubr.f32.gmra.mrb[0].mxu0 %v44
  %v994 = vpop.f32.mrb[0].mxu0
  %v995 = vadd.f32 %v851, %v994
  %v996 = vpop.f32.mrb[0].mxu0
  %997 = vmatprep.mubr.f32.mxu0 %v47
  %998 = vmatmul.mubr.f32.gmra.mrb[0].mxu0 %v46
  %v999 = vpop.f32.mrb[0].mxu0
  %v1000 = vadd.f32 %v851, %v999
  %v1001 = vpop.f32.mrb[0].mxu0
  %1002 = vmatprep.mubr.f32.mxu0 %v49
  %1003 = vmatmul.mubr.f32.gmra.mrb[0].mxu0 %v48
  %v1004 = vpop.f32.mrb[0].mxu0
  %v1005 = vadd.f32 %v851, %v1004
  %v1006 = vpop.f32.mrb[0].mxu0
  %1007 = vmatprep.mubr.f32.mxu0 %v51
  %1008 = vmatmul.mubr.f32.gmra.mrb[0].mxu0 %v50
  %v1009 = vpop.f32.mrb[0].mxu0
  %v1010 = vadd.f32 %v851, %v1009
  %v1011 = vpop.f32.mrb[0].mxu0
  %1012 = vmatprep.mubr.f32.mxu0 %v53
  %1013 = vmatmul.mubr.f32.gmra.mrb[0].mxu0 %v52
  %v1014 = vpop.f32.mrb[0].mxu0
  %v1015 = vadd.f32 %v851, %v1014
  %v1016 = vpop.f32.mrb[0].mxu0
  %1017 = vmatprep.mubr.f32.mxu0 %v55
  %1018 = vmatmul.mubr.f32.gmra.mrb[0].mxu0 %v54
  %v1019 = vpop.f32.mrb[0].mxu0
  %v1020 = vadd.f32 %v851, %v1019
  %v1021 = vpop.f32.mrb[0].mxu0
  %1022 = vmatprep.mubr.f32.mxu0 %v57
  %1023 = vmatmul.mubr.f32.gmra.mrb[0].mxu0 %v56
  %v1024 = vpop.f32.mrb[0].mxu0
  %v1025 = vadd.f32 %v851, %v1024
  %v1026 = vpop.f32.mrb[0].mxu0
  %1027 = vmatprep.mubr.f32.mxu0 %v59
  %1028 = vmatmul.mubr.f32.gmra.mrb[0].mxu0 %v58
  %v1029 = vpop.f32.mrb[0].mxu0
  %v1030 = vadd.f32 %v851, %v1029
  %v1031 = vpop.f32.mrb[0].mxu0
  %1032 = vmatprep.mubr.f32.mxu0 %v61
  %1033 = vmatmul.mubr.f32.gmra.mrb[0].mxu0 %v60
  %v1034 = vpop.f32.mrb[0].mxu0
  %v1035 = vadd.f32 %v851, %v1034
  %v1036 = vpop.f32.mrb[0].mxu0
  %1037 = vmatprep.mubr.f32.mxu0 %v63
  %1038 = vmatmul.mubr.f32.gmra.mrb[0].mxu0 %v62
  %v1039 = vpop.f32.mrb[0].mxu0
  %v1040 = vadd.f32 %v851, %v1039
  %v1041 = vpop.f32.mrb[0].mxu0
  %1042 = vmatprep.mubr.f32.mxu0 %v65
  %1043 = vmatmul.mubr.f32.gmra.mrb[0].mxu0 %v64
  %v1044 = vpop.f32.mrb[0].mxu0
  %v1045 = vadd.f32 %v851, %v1044
  %v1046 = vpop.f32.mrb[0].mxu0
  %1047 = vmatprep.mubr.f32.mxu0 %v67
  %1048 = vmatmul.mubr.f32.gmra.mrb[0].mxu0 %v66
  %v1049 = vpop.f32.mrb[0].mxu0
  %v1050 = vadd.f32 %v851, %v1049
  %v1051 = vpop.f32.mrb[0].mxu0
  %1052 = vmatprep.mubr.f32.mxu0 %v69
  %1053 = vmatmul.mubr.f32.gmra.mrb[0].mxu0 %v68
  %v1054 = vpop.f32.mrb[0].mxu0
  %v1055 = vadd.f32 %v851, %v1054
  %v1056 = vpop.f32.mrb[0].mxu0
  %1057 = vmatprep.mubr.f32.mxu0 %v71
  %1058 = vmatmul.mubr.f32.gmra.mrb[0].mxu0 %v70
  %v1059 = vpop.f32.mrb[0].mxu0
  %v1060 = vadd.f32 %v851, %v1059
  %v1061 = vpop.f32.mrb[0].mxu0
  %1062 = vmatprep.mubr.f32.mxu0 %v73
  %1063 = vmatmul.mubr.f32.gmra.mrb[0].mxu0 %v72
  %v1064 = vpop.f32.mrb[0].mxu0
  %v1065 = vadd.f32 %v851, %v1064
  %v1066 = vpop.f32.mrb[0].mxu0
  %1067 = vmatprep.mubr.f32.mxu0 %v75
  %1068 = vmatmul.mubr.f32.gmra.mrb[0].mxu0 %v74
  %v1069 = vpop.f32.mrb[0].mxu0
  %v1070 = vadd.f32 %v851, %v1069
  %v1071 = vpop.f32.mrb[0].mxu0
  %1072 = vmatprep.mubr.f32.mxu0 %v77
  %1073 = vmatmul.mubr.f32.gmra.mrb[0].mxu0 %v76
  %v1074 = vpop.f32.mrb[0].mxu0
  %v1075 = vadd.f32 %v851, %v1074
  %v1076 = vpop.f32.mrb[0].mxu0
  %1077 = vmatprep.mubr.f32.mxu0 %v79
  %1078 = vmatmul.mubr.f32.gmra.mrb[0].mxu0 %v78
  %v1079 = vpop.f32.mrb[0].mxu0
  %v1080 = vadd.f32 %v851, %v1079
  %v1081 = vpop.f32.mrb[0].mxu0
  %1082 = vmatprep.mubr.f32.mxu0 %v81
  %1083 = vmatmul.mubr.f32.gmra.mrb[0].mxu0 %v80
  %v1084 = vpop.f32.mrb[0].mxu0
  %v1085 = vadd.f32 %v851, %v1084
  %v1086 = vpop.f32.mrb[0].mxu0
  %1087 = vmatprep.mubr.f32.mxu0 %v83
  %1088 = vmatmul.mubr.f32.gmra.mrb[0].mxu0 %v82
  %v1089 = vpop.f32.mrb[0].mxu0
  %v1090 = vadd.f32 %v851, %v1089
  %v1091 = vpop.f32.mrb[0].mxu0
  %1092 = vmatprep.mubr.f32.mxu0 %v85
  %1093 = vmatmul.mubr.f32.gmra.mrb[0].mxu0 %v84
  %v1094 = vpop.f32.mrb[0].mxu0
  %v1095 = vadd.f32 %v851, %v1094
  %v1096 = vpop.f32.mrb[0].mxu0
  %1097 = vmatprep.mubr.f32.mxu0 %v87
  %1098 = vmatmul.mubr.f32.gmra.mrb[0].mxu0 %v86
  %v1099 = vpop.f32.mrb[0].mxu0
  %v1100 = vadd.f32 %v851, %v1099
  %v1101 = vpop.f32.mrb[0].mxu0
  %1102 = vmatprep.mubr.f32.mxu0 %v89
  %1103 = vmatmul.mubr.f32.gmra.mrb[0].mxu0 %v88
  %v1104 = vpop.f32.mrb[0].mxu0
  %v1105 = vadd.f32 %v851, %v1104
  %v1106 = vpop.f32.mrb[0].mxu0
  %1107 = vmatprep.mubr.f32.mxu0 %v91
  %1108 = vmatmul.mubr.f32.gmra.mrb[0].mxu0 %v90
  %v1109 = vpop.f32.mrb[0].mxu0
  %v1110 = vadd.f32 %v851, %v1109
  %v1111 = vpop.f32.mrb[0].mxu0
  %1112 = vmatprep.mubr.f32.mxu0 %v93
  %1113 = vmatmul.mubr.f32.gmra.mrb[0].mxu0 %v92
  %v1114 = vpop.f32.mrb[0].mxu0
  %v1115 = vadd.f32 %v851, %v1114
  %v1116 = vpop.f32.mrb[0].mxu0
  %1117 = vmatprep.mubr.f32.mxu0 %v95
  %1118 = vmatmul.mubr.f32.gmra.mrb[0].mxu0 %v94
  %v1119 = vpop.f32.mrb[0].mxu0
  %v1120 = vadd.f32 %v851, %v1119
  %v1121 = vpop.f32.mrb[0].mxu0
  %1122 = vmatprep.mubr.f32.mxu0 %v97
  %1123 = vmatmul.mubr.f32.gmra.mrb[0].mxu0 %v96
  %v1124 = vpop.f32.mrb[0].mxu0
  %v1125 = vadd.f32 %v851, %v1124
  %v1126 = vpop.f32.mrb[0].mxu0
  %1127 = vmatprep.mubr.f32.mxu0 %v99
  %1128 = vmatmul.mubr.f32.gmra.mrb[0].mxu0 %v98
  %v1129 = vpop.f32.mrb[0].mxu0
  %v1130 = vadd.f32 %v851, %v1129
  %v1131 = vpop.f32.mrb[0].mxu0
  %1132 = vmatprep.mubr.f32.mxu0 %v101
  %1133 = vmatmul.mubr.f32.gmra.mrb[0].mxu0 %v100
  %v1134 = vpop.f32.mrb[0].mxu0
  %v1135 = vadd.f32 %v851, %v1134
  %v1136 = vpop.f32.mrb[0].mxu0
  %1137 = vmatprep.mubr.f32.mxu0 %v103
  %1138 = vmatmul.mubr.f32.gmra.mrb[0].mxu0 %v102
  %v1139 = vpop.f32.mrb[0].mxu0
  %v1140 = vadd.f32 %v851, %v1139
  %v1141 = vpop.f32.mrb[0].mxu0
  %1142 = vmatprep.mubr.f32.mxu0 %v105
  %1143 = vmatmul.mubr.f32.gmra.mrb[0].mxu0 %v104
  %v1144 = vpop.f32.mrb[0].mxu0
  %v1145 = vadd.f32 %v851, %v1144
  %v1146 = vpop.f32.mrb[0].mxu0
  %1147 = vmatprep.mubr.f32.mxu0 %v107
  %1148 = vmatmul.mubr.f32.gmra.mrb[0].mxu0 %v106
  %v1149 = vpop.f32.mrb[0].mxu0
  %v1150 = vadd.f32 %v851, %v1149
  %v1151 = vpop.f32.mrb[0].mxu0
  %1152 = vmatprep.mubr.f32.mxu0 %v109
  %1153 = vmatmul.mubr.f32.gmra.mrb[0].mxu0 %v108
  %v1154 = vpop.f32.mrb[0].mxu0
  %v1155 = vadd.f32 %v851, %v1154
  %v1156 = vpop.f32.mrb[0].mxu0
  %1157 = vmatprep.mubr.f32.mxu0 %v111
  %1158 = vmatmul.mubr.f32.gmra.mrb[0].mxu0 %v110
  %v1159 = vpop.f32.mrb[0].mxu0
  %v1160 = vadd.f32 %v851, %v1159
  %v1161 = vpop.f32.mrb[0].mxu0
  %1162 = vmatprep.mubr.f32.mxu0 %v113
  %1163 = vmatmul.mubr.f32.gmra.mrb[0].mxu0 %v112
  %v1164 = vpop.f32.mrb[0].mxu0
  %v1165 = vadd.f32 %v851, %v1164
  %v1166 = vpop.f32.mrb[0].mxu0
  %1167 = vmatprep.mubr.f32.mxu0 %v115
  %1168 = vmatmul.mubr.f32.gmra.mrb[0].mxu0 %v114
  %v1169 = vpop.f32.mrb[0].mxu0
  %v1170 = vadd.f32 %v851, %v1169
  %v1171 = vpop.f32.mrb[0].mxu0
  %1172 = vmatprep.mubr.f32.mxu0 %v117
  %1173 = vmatmul.mubr.f32.gmra.mrb[0].mxu0 %v116
  %v1174 = vpop.f32.mrb[0].mxu0
  %v1175 = vadd.f32 %v851, %v1174
  %v1176 = vpop.f32.mrb[0].mxu0
  %1177 = vmatprep.mubr.f32.mxu0 %v119
  %1178 = vmatmul.mubr.f32.gmra.mrb[0].mxu0 %v118
  %v1179 = vpop.f32.mrb[0].mxu0
  %v1180 = vadd.f32 %v851, %v1179
  %v1181 = vpop.f32.mrb[0].mxu0
  %1182 = vmatprep.mubr.f32.mxu0 %v121
  %1183 = vmatmul.mubr.f32.gmra.mrb[0].mxu0 %v120
  %v1184 = vpop.f32.mrb[0].mxu0
  %v1185 = vadd.f32 %v851, %v1184
  %v1186 = vpop.f32.mrb[0].mxu0
  %1187 = vmatprep.mubr.f32.mxu0 %v123
  %1188 = vmatmul.mubr.f32.gmra.mrb[0].mxu0 %v122
  %v1189 = vpop.f32.mrb[0].mxu0
  %v1190 = vadd.f32 %v851, %v1189
  %v1191 = vpop.f32.mrb[0].mxu0
  %1192 = vmatprep.mubr.f32.mxu0 %v125
  %1193 = vmatmul.mubr.f32.gmra.mrb[0].mxu0 %v124
  %v1194 = vpop.f32.mrb[0].mxu0
  %v1195 = vadd.f32 %v851, %v1194
  %v1196 = vpop.f32.mrb[0].mxu0
  %1197 = vmatprep.mubr.f32.mxu0 %v127
  %1198 = vmatmul.mubr.f32.gmra.mrb[0].mxu0 %v126
  %v1199 = vpop.f32.mrb[0].mxu0
  %v1200 = vadd.f32 %v851, %v1199
  %v1201 = vpop.f32.mrb[0].mxu0
  %1202 = vmatprep.mubr.f32.mxu0 %v129
  %1203 = vmatmul.mubr.f32.gmra.mrb[0].mxu0 %v128
  %v1204 = vpop.f32.mrb[0].mxu0
  %v1205 = vadd.f32 %v851, %v1204
  %v1206 = vpop.f32.mrb[0].mxu0
  %1207 = vmatprep.mubr.f32.mxu0 %v131
  %1208 = vmatmul.mubr.f32.gmra.mrb[0].mxu0 %v130
  %v1209 = vpop.f32.mrb[0].mxu0
  %v1210 = vadd.f32 %v851, %v1209
  %v1211 = vpop.f32.mrb[0].mxu0
  %1212 = vmatprep.mubr.f32.mxu0 %v133
  %1213 = vmatmul.mubr.f32.gmra.mrb[0].mxu0 %v132
  %v1214 = vpop.f32.mrb[0].mxu0
  %v1215 = vadd.f32 %v851, %v1214
  %v1216 = vpop.f32.mrb[0].mxu0
  %1217 = vmatprep.mubr.f32.mxu0 %v135
  %1218 = vmatmul.mubr.f32.gmra.mrb[0].mxu0 %v134
  %v1219 = vpop.f32.mrb[0].mxu0
  %v1220 = vadd.f32 %v851, %v1219
  %v1221 = vpop.f32.mrb[0].mxu0
  %1222 = vmatprep.mubr.f32.mxu0 %v137
  %1223 = vmatmul.mubr.f32.gmra.mrb[0].mxu0 %v136
  %v1224 = vpop.f32.mrb[0].mxu0
  %v1225 = vadd.f32 %v851, %v1224
  %v1226 = vpop.f32.mrb[0].mxu0
  %1227 = vmatprep.mubr.f32.mxu0 %v139
  %1228 = vmatmul.mubr.f32.gmra.mrb[0].mxu0 %v138
  %v1229 = vpop.f32.mrb[0].mxu0
  %v1230 = vadd.f32 %v851, %v1229
  %v1231 = vpop.f32.mrb[0].mxu0
  %1232 = vmatprep.mubr.f32.mxu0 %v141
  %1233 = vmatmul.mubr.f32.gmra.mrb[0].mxu0 %v140
  %v1234 = vpop.f32.mrb[0].mxu0
  %v1235 = vadd.f32 %v851, %v1234
  %v1236 = vpop.f32.mrb[0].mxu0
  %1237 = vmatprep.mubr.f32.mxu0 %v143
  %1238 = vmatmul.mubr.f32.gmra.mrb[0].mxu0 %v142
  %v1239 = vpop.f32.mrb[0].mxu0
  %v1240 = vadd.f32 %v851, %v1239
  %v1241 = vpop.f32.mrb[0].mxu0
  %1242 = vmatprep.mubr.f32.mxu0 %v145
  %1243 = vmatmul.mubr.f32.gmra.mrb[0].mxu0 %v144
  %v1244 = vpop.f32.mrb[0].mxu0
  %v1245 = vadd.f32 %v851, %v1244
  %v1246 = vpop.f32.mrb[0].mxu0
  %1247 = vmatprep.mubr.f32.mxu0 %v147
  %1248 = vmatmul.mubr.f32.gmra.mrb[0].mxu0 %v146
  %v1249 = vpop.f32.mrb[0].mxu0
  %v1250 = vadd.f32 %v851, %v1249
  %v1251 = vpop.f32.mrb[0].mxu0
  %1252 = vmatprep.mubr.f32.mxu0 %v149
  %1253 = vmatmul.mubr.f32.gmra.mrb[0].mxu0 %v148
  %v1254 = vpop.f32.mrb[0].mxu0
  %v1255 = vadd.f32 %v851, %v1254
  %v1256 = vpop.f32.mrb[0].mxu0
  %1257 = vmatprep.mubr.f32.mxu0 %v151
  %1258 = vmatmul.mubr.f32.gmra.mrb[0].mxu0 %v150
  %v1259 = vpop.f32.mrb[0].mxu0
  %v1260 = vadd.f32 %v851, %v1259
  %v1261 = vpop.f32.mrb[0].mxu0
  %1262 = vmatprep.mubr.f32.mxu0 %v153
  %1263 = vmatmul.mubr.f32.gmra.mrb[0].mxu0 %v152
  %v1264 = vpop.f32.mrb[0].mxu0
  %v1265 = vadd.f32 %v851, %v1264
  %v1266 = vpop.f32.mrb[0].mxu0
  %1267 = vmatprep.mubr.f32.mxu0 %v155
  %1268 = vmatmul.mubr.f32.gmra.mrb[0].mxu0 %v154
  %v1269 = vpop.f32.mrb[0].mxu0
  %v1270 = vadd.f32 %v851, %v1269
  %v1271 = vpop.f32.mrb[0].mxu0
  %1272 = vmatprep.mubr.f32.mxu0 %v157
  %1273 = vmatmul.mubr.f32.gmra.mrb[0].mxu0 %v156
  %v1274 = vpop.f32.mrb[0].mxu0
  %v1275 = vadd.f32 %v851, %v1274
  %v1276 = vpop.f32.mrb[0].mxu0
  %1277 = vmatprep.mubr.f32.mxu0 %v159
  %1278 = vmatmul.mubr.f32.gmra.mrb[0].mxu0 %v158
  %v1279 = vpop.f32.mrb[0].mxu0
  %v1280 = vadd.f32 %v851, %v1279
  %v1281 = vpop.f32.mrb[0].mxu0
  %1282 = vmatprep.mubr.f32.mxu0 %v161
  %1283 = vmatmul.mubr.f32.gmra.mrb[0].mxu0 %v160
  %v1284 = vpop.f32.mrb[0].mxu0
  %v1285 = vadd.f32 %v851, %v1284
  %v1286 = vpop.f32.mrb[0].mxu0
  %1287 = vmatprep.mubr.f32.mxu0 %v163
  %1288 = vmatmul.mubr.f32.gmra.mrb[0].mxu0 %v162
  %v1289 = vpop.f32.mrb[0].mxu0
  %v1290 = vadd.f32 %v851, %v1289
  %v1291 = vpop.f32.mrb[0].mxu0
  %1292 = vmatprep.mubr.f32.mxu0 %v165
  %1293 = vmatmul.mubr.f32.gmra.mrb[0].mxu0 %v164
  %v1294 = vpop.f32.mrb[0].mxu0
  %v1295 = vadd.f32 %v851, %v1294
  %v1296 = vpop.f32.mrb[0].mxu0
  %1297 = vmatprep.mubr.f32.mxu0 %v167
  %1298 = vmatmul.mubr.f32.gmra.mrb[0].mxu0 %v166
  %v1299 = vpop.f32.mrb[0].mxu0
  %v1300 = vadd.f32 %v851, %v1299
  %v1301 = vpop.f32.mrb[0].mxu0
  %1302 = vmatprep.mubr.f32.mxu0 %v169
  %1303 = vmatmul.mubr.f32.gmra.mrb[0].mxu0 %v168
  %v1304 = vpop.f32.mrb[0].mxu0
  %v1305 = vadd.f32 %v851, %v1304
  %v1306 = vpop.f32.mrb[0].mxu0
  %1307 = vmatprep.mubr.f32.mxu0 %v171
  %1308 = vmatmul.mubr.f32.gmra.mrb[0].mxu0 %v170
  %v1309 = vpop.f32.mrb[0].mxu0
  %v1310 = vadd.f32 %v851, %v1309
  %v1311 = vpop.f32.mrb[0].mxu0
  %1312 = vmatprep.mubr.f32.mxu0 %v173
  %1313 = vmatmul.mubr.f32.gmra.mrb[0].mxu0 %v172
  %v1314 = vpop.f32.mrb[0].mxu0
  %v1315 = vadd.f32 %v851, %v1314
  %v1316 = vpop.f32.mrb[0].mxu0
  %1317 = vmatprep.mubr.f32.mxu0 %v175
  %1318 = vmatmul.mubr.f32.gmra.mrb[0].mxu0 %v174
  %v1319 = vpop.f32.mrb[0].mxu0
  %v1320 = vadd.f32 %v851, %v1319
  %v1321 = vpop.f32.mrb[0].mxu0
  %1322 = vmatprep.mubr.f32.mxu0 %v177
  %1323 = vmatmul.mubr.f32.gmra.mrb[0].mxu0 %v176
  %v1324 = vpop.f32.mrb[0].mxu0
  %v1325 = vadd.f32 %v851, %v1324
  %v1326 = vpop.f32.mrb[0].mxu0
  %1327 = vmatprep.mubr.f32.mxu0 %v179
  %1328 = vmatmul.mubr.f32.gmra.mrb[0].mxu0 %v178
  %v1329 = vpop.f32.mrb[0].mxu0
  %v1330 = vadd.f32 %v851, %v1329
  %v1331 = vpop.f32.mrb[0].mxu0
  %1332 = vmatprep.mubr.f32.mxu0 %v181
  %1333 = vmatmul.mubr.f32.gmra.mrb[0].mxu0 %v180
  %v1334 = vpop.f32.mrb[0].mxu0
  %v1335 = vadd.f32 %v851, %v1334
  %v1336 = vpop.f32.mrb[0].mxu0
  %1337 = vmatprep.mubr.f32.mxu0 %v183
  %1338 = vmatmul.mubr.f32.gmra.mrb[0].mxu0 %v182
  %v1339 = vpop.f32.mrb[0].mxu0
  %v1340 = vadd.f32 %v851, %v1339
  %v1341 = vpop.f32.mrb[0].mxu0
  %1342 = vmatprep.mubr.f32.mxu0 %v185
  %1343 = vmatmul.mubr.f32.gmra.mrb[0].mxu0 %v184
  %v1344 = vpop.f32.mrb[0].mxu0
  %v1345 = vadd.f32 %v851, %v1344
  %v1346 = vpop.f32.mrb[0].mxu0
  %1347 = vmatprep.mubr.f32.mxu0 %v187
  %1348 = vmatmul.mubr.f32.gmra.mrb[0].mxu0 %v186
  %v1349 = vpop.f32.mrb[0].mxu0
  %v1350 = vadd.f32 %v851, %v1349
  %v1351 = vpop.f32.mrb[0].mxu0
  %1352 = vmatprep.mubr.f32.mxu0 %v189
  %1353 = vmatmul.mubr.f32.gmra.mrb[0].mxu0 %v188
  %v1354 = vpop.f32.mrb[0].mxu0
  %v1355 = vadd.f32 %v851, %v1354
  %v1356 = vpop.f32.mrb[0].mxu0
  %1357 = vmatprep.mubr.f32.mxu0 %v191
  %1358 = vmatmul.mubr.f32.gmra.mrb[0].mxu0 %v190
  %v1359 = vpop.f32.mrb[0].mxu0
  %v1360 = vadd.f32 %v851, %v1359
  %v1361 = vpop.f32.mrb[0].mxu0
  %1362 = vmatprep.mubr.f32.mxu0 %v193
  %1363 = vmatmul.mubr.f32.gmra.mrb[0].mxu0 %v192
  %v1364 = vpop.f32.mrb[0].mxu0
  %v1365 = vadd.f32 %v851, %v1364
  %v1366 = vpop.f32.mrb[0].mxu0
  %1367 = vmatprep.mubr.f32.mxu0 %v195
  %1368 = vmatmul.mubr.f32.gmra.mrb[0].mxu0 %v194
  %v1369 = vpop.f32.mrb[0].mxu0
  %v1370 = vadd.f32 %v851, %v1369
  %v1371 = vpop.f32.mrb[0].mxu0
  %1372 = vmatprep.mubr.f32.mxu0 %v197
  %1373 = vmatmul.mubr.f32.gmra.mrb[0].mxu0 %v196
  %v1374 = vpop.f32.mrb[0].mxu0
  %v1375 = vadd.f32 %v851, %v1374
  %v1376 = vpop.f32.mrb[0].mxu0
  %1377 = vmatprep.mubr.f32.mxu0 %v199
  %1378 = vmatmul.mubr.f32.gmra.mrb[0].mxu0 %v198
  %v1379 = vpop.f32.mrb[0].mxu0
  %v1380 = vadd.f32 %v851, %v1379
  %v1381 = vpop.f32.mrb[0].mxu0
  %1382 = vmatprep.mubr.f32.mxu0 %v201
  %1383 = vmatmul.mubr.f32.gmra.mrb[0].mxu0 %v200
  %v1384 = vpop.f32.mrb[0].mxu0
  %v1385 = vadd.f32 %v851, %v1384
  %v1386 = vpop.f32.mrb[0].mxu0
  %1387 = vmatprep.mubr.f32.mxu0 %v203
  %1388 = vmatmul.mubr.f32.gmra.mrb[0].mxu0 %v202
  %v1389 = vpop.f32.mrb[0].mxu0
  %v1390 = vadd.f32 %v851, %v1389
  %v1391 = vpop.f32.mrb[0].mxu0
  %1392 = vmatprep.mubr.f32.mxu0 %v205
  %1393 = vmatmul.mubr.f32.gmra.mrb[0].mxu0 %v204
  %v1394 = vpop.f32.mrb[0].mxu0
  %v1395 = vadd.f32 %v851, %v1394
  %v1396 = vpop.f32.mrb[0].mxu0
  %1397 = vmatprep.mubr.f32.mxu0 %v207
  %1398 = vmatmul.mubr.f32.gmra.mrb[0].mxu0 %v206
  %v1399 = vpop.f32.mrb[0].mxu0
  %v1400 = vadd.f32 %v851, %v1399
  %v1401 = vpop.f32.mrb[0].mxu0
  %1402 = vmatprep.mubr.f32.mxu0 %v209
  %1403 = vmatmul.mubr.f32.gmra.mrb[0].mxu0 %v208
  %v1404 = vpop.f32.mrb[0].mxu0
  %v1405 = vadd.f32 %v851, %v1404
  %v1406 = vpop.f32.mrb[0].mxu0
  %1407 = vmatprep.mubr.f32.mxu0 %v211
  %1408 = vmatmul.mubr.f32.gmra.mrb[0].mxu0 %v210
  %v1409 = vpop.f32.mrb[0].mxu0
  %v1410 = vadd.f32 %v851, %v1409
  %v1411 = vpop.f32.mrb[0].mxu0
  %1412 = vmatprep.mubr.f32.mxu0 %v213
  %1413 = vmatmul.mubr.f32.gmra.mrb[0].mxu0 %v212
  %v1414 = vpop.f32.mrb[0].mxu0
  %v1415 = vadd.f32 %v851, %v1414
  %v1416 = vpop.f32.mrb[0].mxu0
  %1417 = vmatprep.mubr.f32.mxu0 %v215
  %1418 = vmatmul.mubr.f32.gmra.mrb[0].mxu0 %v214
  %v1419 = vpop.f32.mrb[0].mxu0
  %v1420 = vadd.f32 %v851, %v1419
  %v1421 = vpop.f32.mrb[0].mxu0
  %1422 = vmatprep.mubr.f32.mxu0 %v217
  %1423 = vmatmul.mubr.f32.gmra.mrb[0].mxu0 %v216
  %v1424 = vpop.f32.mrb[0].mxu0
  %v1425 = vadd.f32 %v851, %v1424
  %v1426 = vpop.f32.mrb[0].mxu0
  %1427 = vmatprep.mubr.f32.mxu0 %v219
  %1428 = vmatmul.mubr.f32.gmra.mrb[0].mxu0 %v218
  %v1429 = vpop.f32.mrb[0].mxu0
  %v1430 = vadd.f32 %v851, %v1429
  %v1431 = vpop.f32.mrb[0].mxu0
  %1432 = vmatprep.mubr.f32.mxu0 %v221
  %1433 = vmatmul.mubr.f32.gmra.mrb[0].mxu0 %v220
  %v1434 = vpop.f32.mrb[0].mxu0
  %v1435 = vadd.f32 %v851, %v1434
  %v1436 = vpop.f32.mrb[0].mxu0
  %1437 = vmatprep.mubr.f32.mxu0 %v223
  %1438 = vmatmul.mubr.f32.gmra.mrb[0].mxu0 %v222
  %v1439 = vpop.f32.mrb[0].mxu0
  %v1440 = vadd.f32 %v851, %v1439
  %v1441 = vpop.f32.mrb[0].mxu0
  %1442 = vmatprep.mubr.f32.mxu0 %v225
  %1443 = vmatmul.mubr.f32.gmra.mrb[0].mxu0 %v224
  %v1444 = vpop.f32.mrb[0].mxu0
  %v1445 = vadd.f32 %v851, %v1444
  %v1446 = vpop.f32.mrb[0].mxu0
  %1447 = vmatprep.mubr.f32.mxu0 %v227
  %1448 = vmatmul.mubr.f32.gmra.mrb[0].mxu0 %v226
  %v1449 = vpop.f32.mrb[0].mxu0
  %v1450 = vadd.f32 %v851, %v1449
  %v1451 = vpop.f32.mrb[0].mxu0
  %1452 = vmatprep.mubr.f32.mxu0 %v229
  %1453 = vmatmul.mubr.f32.gmra.mrb[0].mxu0 %v228
  %v1454 = vpop.f32.mrb[0].mxu0
  %v1455 = vadd.f32 %v851, %v1454
  %v1456 = vpop.f32.mrb[0].mxu0
  %1457 = vmatprep.mubr.f32.mxu0 %v231
  %1458 = vmatmul.mubr.f32.gmra.mrb[0].mxu0 %v230
  %v1459 = vpop.f32.mrb[0].mxu0
  %v1460 = vadd.f32 %v851, %v1459
  %v1461 = vpop.f32.mrb[0].mxu0
  %1462 = vmatprep.mubr.f32.mxu0 %v233
  %1463 = vmatmul.mubr.f32.gmra.mrb[0].mxu0 %v232
  %v1464 = vpop.f32.mrb[0].mxu0
  %v1465 = vadd.f32 %v851, %v1464
  %v1466 = vpop.f32.mrb[0].mxu0
  %1467 = vmatprep.mubr.f32.mxu0 %v235
  %1468 = vmatmul.mubr.f32.gmra.mrb[0].mxu0 %v234
  %v1469 = vpop.f32.mrb[0].mxu0
  %v1470 = vadd.f32 %v851, %v1469
  %v1471 = vpop.f32.mrb[0].mxu0
  %1472 = vmatprep.mubr.f32.mxu0 %v237
  %1473 = vmatmul.mubr.f32.gmra.mrb[0].mxu0 %v236
  %v1474 = vpop.f32.mrb[0].mxu0
  %v1475 = vadd.f32 %v851, %v1474
  %v1476 = vpop.f32.mrb[0].mxu0
  %1477 = vmatprep.mubr.f32.mxu0 %v239
  %1478 = vmatmul.mubr.f32.gmra.mrb[0].mxu0 %v238
  %v1479 = vpop.f32.mrb[0].mxu0
  %v1480 = vadd.f32 %v851, %v1479
  %v1481 = vpop.f32.mrb[0].mxu0
  %1482 = vmatprep.mubr.f32.mxu0 %v241
  %1483 = vmatmul.mubr.f32.gmra.mrb[0].mxu0 %v240
  %v1484 = vpop.f32.mrb[0].mxu0
  %v1485 = vadd.f32 %v851, %v1484
  %v1486 = vpop.f32.mrb[0].mxu0
  %1487 = vmatprep.mubr.f32.mxu0 %v243
  %1488 = vmatmul.mubr.f32.gmra.mrb[0].mxu0 %v242
  %v1489 = vpop.f32.mrb[0].mxu0
  %v1490 = vadd.f32 %v851, %v1489
  %v1491 = vpop.f32.mrb[0].mxu0
  %1492 = vmatprep.mubr.f32.mxu0 %v245
  %1493 = vmatmul.mubr.f32.gmra.mrb[0].mxu0 %v244
  %v1494 = vpop.f32.mrb[0].mxu0
  %v1495 = vadd.f32 %v851, %v1494
  %v1496 = vpop.f32.mrb[0].mxu0
  %1497 = vmatprep.mubr.f32.mxu0 %v247
  %1498 = vmatmul.mubr.f32.gmra.mrb[0].mxu0 %v246
  %v1499 = vpop.f32.mrb[0].mxu0
  %v1500 = vadd.f32 %v851, %v1499
  %v1501 = vpop.f32.mrb[0].mxu0
  %1502 = vmatprep.mubr.f32.mxu0 %v249
  %1503 = vmatmul.mubr.f32.gmra.mrb[0].mxu0 %v248
  %v1504 = vpop.f32.mrb[0].mxu0
  %v1505 = vadd.f32 %v851, %v1504
  %v1506 = vpop.f32.mrb[0].mxu0
  %1507 = vmatprep.mubr.f32.mxu0 %v251
  %1508 = vmatmul.mubr.f32.gmra.mrb[0].mxu0 %v250
  %v1509 = vpop.f32.mrb[0].mxu0
  %v1510 = vadd.f32 %v851, %v1509
  %v1511 = vpop.f32.mrb[0].mxu0
  %1512 = vmatprep.mubr.f32.mxu0 %v253
  %1513 = vmatmul.mubr.f32.gmra.mrb[0].mxu0 %v252
  %v1514 = vpop.f32.mrb[0].mxu0
  %v1515 = vadd.f32 %v851, %v1514
  %v1516 = vpop.f32.mrb[0].mxu0
  %1517 = vmatprep.mubr.f32.mxu0 %v255
  %1518 = vmatmul.mubr.f32.gmra.mrb[0].mxu0 %v254
  %v1519 = vpop.f32.mrb[0].mxu0
  %v1520 = vadd.f32 %v851, %v1519
  %v1521 = vpop.f32.mrb[0].mxu0
  %1522 = vmatprep.mubr.f32.mxu0 %v257
  %1523 = vmatmul.mubr.f32.gmra.mrb[0].mxu0 %v256
  %v1524 = vpop.f32.mrb[0].mxu0
  %v1525 = vadd.f32 %v851, %v1524
  %v1526 = vpop.f32.mrb[0].mxu0
  %1527 = vmatprep.mubr.f32.mxu0 %v259
  %1528 = vmatmul.mubr.f32.gmra.mrb[0].mxu0 %v258
  %v1529 = vpop.f32.mrb[0].mxu0
  %v1530 = vadd.f32 %v851, %v1529
  %v1531 = vpop.f32.mrb[0].mxu0
  %1532 = vmatprep.mubr.f32.mxu0 %v261
  %1533 = vmatmul.mubr.f32.gmra.mrb[0].mxu0 %v260
  %v1534 = vpop.f32.mrb[0].mxu0
  %v1535 = vadd.f32 %v851, %v1534
  %v1536 = vpop.f32.mrb[0].mxu0
  %1537 = vmatprep.mubr.f32.mxu0 %v263
  %1538 = vmatmul.mubr.f32.gmra.mrb[0].mxu0 %v262
  %v1539 = vpop.f32.mrb[0].mxu0
  %v1540 = vadd.f32 %v851, %v1539
  %v1541 = vpop.f32.mrb[0].mxu0
  %1542 = vmatprep.mubr.f32.mxu0 %v265
  %1543 = vmatmul.mubr.f32.gmra.mrb[0].mxu0 %v264
  %v1544 = vpop.f32.mrb[0].mxu0
  %v1545 = vadd.f32 %v851, %v1544
  %v1546 = vpop.f32.mrb[0].mxu0
  %1547 = vmatprep.mubr.f32.mxu0 %v267
  %1548 = vmatmul.mubr.f32.gmra.mrb[0].mxu0 %v266
  %v1549 = vpop.f32.mrb[0].mxu0
  %v1550 = vadd.f32 %v851, %v1549
  %v1551 = vpop.f32.mrb[0].mxu0
  %1552 = vmatprep.mubr.f32.mxu0 %v269
  %1553 = vmatmul.mubr.f32.gmra.mrb[0].mxu0 %v268
  %v1554 = vpop.f32.mrb[0].mxu0
  %v1555 = vadd.f32 %v851, %v1554
  %v1556 = vpop.f32.mrb[0].mxu0
  %1557 = vmatprep.mubr.f32.mxu0 %v271
  %1558 = vmatmul.mubr.f32.gmra.mrb[0].mxu0 %v270
  %v1559 = vpop.f32.mrb[0].mxu0
  %v1560 = vadd.f32 %v851, %v1559
  %v1561 = vpop.f32.mrb[0].mxu0
  %1562 = vmatprep.mubr.f32.mxu0 %v273
  %1563 = vmatmul.mubr.f32.gmra.mrb[0].mxu0 %v272
  %v1564 = vpop.f32.mrb[0].mxu0
  %v1565 = vadd.f32 %v851, %v1564
  %v1566 = vpop.f32.mrb[0].mxu0
  %1567 = vmatprep.mubr.f32.mxu0 %v275
  %1568 = vmatmul.mubr.f32.gmra.mrb[0].mxu0 %v274
  %v1569 = vpop.f32.mrb[0].mxu0
  %v1570 = vadd.f32 %v851, %v1569
  %v1571 = vpop.f32.mrb[0].mxu0
  %1572 = vmatprep.mubr.f32.mxu0 %v277
  %1573 = vmatmul.mubr.f32.gmra.mrb[0].mxu0 %v276
  %v1574 = vpop.f32.mrb[0].mxu0
  %v1575 = vadd.f32 %v851, %v1574
  %v1576 = vpop.f32.mrb[0].mxu0
  %1577 = vmatprep.mubr.f32.mxu0 %v279
  %1578 = vmatmul.mubr.f32.gmra.mrb[0].mxu0 %v278
  %v1579 = vpop.f32.mrb[0].mxu0
  %v1580 = vadd.f32 %v851, %v1579
  %v1581 = vpop.f32.mrb[0].mxu0
  %1582 = vmatprep.mubr.f32.mxu0 %v281
  %1583 = vmatmul.mubr.f32.gmra.mrb[0].mxu0 %v280
  %v1584 = vpop.f32.mrb[0].mxu0
  %v1585 = vadd.f32 %v851, %v1584
  %v1586 = vpop.f32.mrb[0].mxu0
  %1587 = vmatprep.mubr.f32.mxu0 %v283
  %1588 = vmatmul.mubr.f32.gmra.mrb[0].mxu0 %v282
  %v1589 = vpop.f32.mrb[0].mxu0
  %v1590 = vadd.f32 %v851, %v1589
  %v1591 = vpop.f32.mrb[0].mxu0
  %1592 = vmatprep.mubr.f32.mxu0 %v285
  %1593 = vmatmul.mubr.f32.gmra.mrb[0].mxu0 %v284
  %v1594 = vpop.f32.mrb[0].mxu0
  %v1595 = vadd.f32 %v851, %v1594
  %v1596 = vpop.f32.mrb[0].mxu0
  %1597 = vmatprep.mubr.f32.mxu0 %v287
  %1598 = vmatmul.mubr.f32.gmra.mrb[0].mxu0 %v286
  %v1599 = vpop.f32.mrb[0].mxu0
  %v1600 = vadd.f32 %v851, %v1599
  %v1601 = vpop.f32.mrb[0].mxu0
  %1602 = vmatprep.mubr.f32.mxu0 %v289
  %1603 = vmatmul.mubr.f32.gmra.mrb[0].mxu0 %v288
  %v1604 = vpop.f32.mrb[0].mxu0
  %v1605 = vadd.f32 %v851, %v1604
  %v1606 = vpop.f32.mrb[0].mxu0
  %1607 = vmatprep.mubr.f32.mxu0 %v291
  %1608 = vmatmul.mubr.f32.gmra.mrb[0].mxu0 %v290
  %v1609 = vpop.f32.mrb[0].mxu0
  %v1610 = vadd.f32 %v851, %v1609
  %v1611 = vpop.f32.mrb[0].mxu0
  %1612 = vmatprep.mubr.f32.mxu0 %v293
  %1613 = vmatmul.mubr.f32.gmra.mrb[0].mxu0 %v292
  %v1614 = vpop.f32.mrb[0].mxu0
  %v1615 = vadd.f32 %v851, %v1614
  %v1616 = vpop.f32.mrb[0].mxu0
  %1617 = vmatprep.mubr.f32.mxu0 %v295
  %1618 = vmatmul.mubr.f32.gmra.mrb[0].mxu0 %v294
  %v1619 = vpop.f32.mrb[0].mxu0
  %v1620 = vadd.f32 %v851, %v1619
  %v1621 = vpop.f32.mrb[0].mxu0
  %1622 = vmatprep.mubr.f32.mxu0 %v297
  %1623 = vmatmul.mubr.f32.gmra.mrb[0].mxu0 %v296
  %v1624 = vpop.f32.mrb[0].mxu0
  %v1625 = vadd.f32 %v851, %v1624
  %v1626 = vpop.f32.mrb[0].mxu0
  %1627 = vmatprep.mubr.f32.mxu0 %v299
  %1628 = vmatmul.mubr.f32.gmra.mrb[0].mxu0 %v298
  %v1629 = vpop.f32.mrb[0].mxu0
  %v1630 = vadd.f32 %v851, %v1629
  %v1631 = vpop.f32.mrb[0].mxu0
  %1632 = vmatprep.mubr.f32.mxu0 %v301
  %1633 = vmatmul.mubr.f32.gmra.mrb[0].mxu0 %v300
  %v1634 = vpop.f32.mrb[0].mxu0
  %v1635 = vadd.f32 %v851, %v1634
  %v1636 = vpop.f32.mrb[0].mxu0
  %1637 = vmatprep.mubr.f32.mxu0 %v303
  %1638 = vmatmul.mubr.f32.gmra.mrb[0].mxu0 %v302
  %v1639 = vpop.f32.mrb[0].mxu0
  %v1640 = vadd.f32 %v851, %v1639
  %v1641 = vpop.f32.mrb[0].mxu0
  %1642 = vmatprep.mubr.f32.mxu0 %v305
  %1643 = vmatmul.mubr.f32.gmra.mrb[0].mxu0 %v304
  %v1644 = vpop.f32.mrb[0].mxu0
  %v1645 = vadd.f32 %v851, %v1644
  %v1646 = vpop.f32.mrb[0].mxu0
  %1647 = vmatprep.mubr.f32.mxu0 %v307
  %1648 = vmatmul.mubr.f32.gmra.mrb[0].mxu0 %v306
  %v1649 = vpop.f32.mrb[0].mxu0
  %v1650 = vadd.f32 %v851, %v1649
  %v1651 = vpop.f32.mrb[0].mxu0
  %1652 = vmatprep.mubr.f32.mxu0 %v309
  %1653 = vmatmul.mubr.f32.gmra.mrb[0].mxu0 %v308
  %v1654 = vpop.f32.mrb[0].mxu0
  %v1655 = vadd.f32 %v851, %v1654
  %v1656 = vpop.f32.mrb[0].mxu0
  %1657 = vmatprep.mubr.f32.mxu0 %v311
  %1658 = vmatmul.mubr.f32.gmra.mrb[0].mxu0 %v310
  %v1659 = vpop.f32.mrb[0].mxu0
  %v1660 = vadd.f32 %v851, %v1659
  %v1661 = vpop.f32.mrb[0].mxu0
  %1662 = vmatprep.mubr.f32.mxu0 %v313
  %1663 = vmatmul.mubr.f32.gmra.mrb[0].mxu0 %v312
  %v1664 = vpop.f32.mrb[0].mxu0
  %v1665 = vadd.f32 %v851, %v1664
  %v1666 = vpop.f32.mrb[0].mxu0
  %1667 = vmatprep.mubr.f32.mxu0 %v315
  %1668 = vmatmul.mubr.f32.gmra.mrb[0].mxu0 %v314
  %v1669 = vpop.f32.mrb[0].mxu0
  %v1670 = vadd.f32 %v851, %v1669
  %v1671 = vpop.f32.mrb[0].mxu0
  %1672 = vmatprep.mubr.f32.mxu0 %v317
  %1673 = vmatmul.mubr.f32.gmra.mrb[0].mxu0 %v316
  %v1674 = vpop.f32.mrb[0].mxu0
  %v1675 = vadd.f32 %v851, %v1674
  %v1676 = vpop.f32.mrb[0].mxu0
  %1677 = vmatprep.mubr.f32.mxu0 %v319
  %1678 = vmatmul.mubr.f32.gmra.mrb[0].mxu0 %v318
  %v1679 = vpop.f32.mrb[0].mxu0
  %v1680 = vadd.f32 %v851, %v1679
  %v1681 = vpop.f32.mrb[0].mxu0
  %1682 = vmatprep.mubr.f32.mxu0 %v321
  %1683 = vmatmul.mubr.f32.gmra.mrb[0].mxu0 %v320
  %v1684 = vpop.f32.mrb[0].mxu0
  %v1685 = vadd.f32 %v851, %v1684
  %v1686 = vpop.f32.mrb[0].mxu0
  %1687 = vmatprep.mubr.f32.mxu0 %v323
  %1688 = vmatmul.mubr.f32.gmra.mrb[0].mxu0 %v322
  %v1689 = vpop.f32.mrb[0].mxu0
  %v1690 = vadd.f32 %v851, %v1689
  %v1691 = vpop.f32.mrb[0].mxu0
  %1692 = vmatprep.mubr.f32.mxu0 %v325
  %1693 = vmatmul.mubr.f32.gmra.mrb[0].mxu0 %v324
  %v1694 = vpop.f32.mrb[0].mxu0
  %v1695 = vadd.f32 %v851, %v1694
  %v1696 = vpop.f32.mrb[0].mxu0
  %1697 = vmatprep.mubr.f32.mxu0 %v327
  %1698 = vmatmul.mubr.f32.gmra.mrb[0].mxu0 %v326
  %v1699 = vpop.f32.mrb[0].mxu0
  %v1700 = vadd.f32 %v851, %v1699
  %v1701 = vpop.f32.mrb[0].mxu0
  %1702 = vmatprep.mubr.f32.mxu0 %v329
  %1703 = vmatmul.mubr.f32.gmra.mrb[0].mxu0 %v328
  %v1704 = vpop.f32.mrb[0].mxu0
  %v1705 = vadd.f32 %v851, %v1704
  %v1706 = vpop.f32.mrb[0].mxu0
  %1707 = vmatprep.mubr.f32.mxu0 %v331
  %1708 = vmatmul.mubr.f32.gmra.mrb[0].mxu0 %v330
  %v1709 = vpop.f32.mrb[0].mxu0
  %v1710 = vadd.f32 %v851, %v1709
  %v1711 = vpop.f32.mrb[0].mxu0
  %1712 = vmatprep.mubr.f32.mxu0 %v333
  %1713 = vmatmul.mubr.f32.gmra.mrb[0].mxu0 %v332
  %v1714 = vpop.f32.mrb[0].mxu0
  %v1715 = vadd.f32 %v851, %v1714
  %v1716 = vpop.f32.mrb[0].mxu0
  %1717 = vmatprep.mubr.f32.mxu0 %v335
  %1718 = vmatmul.mubr.f32.gmra.mrb[0].mxu0 %v334
  %v1719 = vpop.f32.mrb[0].mxu0
  %v1720 = vadd.f32 %v851, %v1719
  %v1721 = vpop.f32.mrb[0].mxu0
  %1722 = vmatprep.mubr.f32.mxu0 %v337
  %1723 = vmatmul.mubr.f32.gmra.mrb[0].mxu0 %v336
  %v1724 = vpop.f32.mrb[0].mxu0
  %v1725 = vadd.f32 %v851, %v1724
  %v1726 = vpop.f32.mrb[0].mxu0
  %1727 = vmatprep.mubr.f32.mxu0 %v339
  %1728 = vmatmul.mubr.f32.gmra.mrb[0].mxu0 %v338
  %v1729 = vpop.f32.mrb[0].mxu0
  %v1730 = vadd.f32 %v851, %v1729
  %v1731 = vpop.f32.mrb[0].mxu0
  %1732 = vmatprep.mubr.f32.mxu0 %v341
  %1733 = vmatmul.mubr.f32.gmra.mrb[0].mxu0 %v340
  %v1734 = vpop.f32.mrb[0].mxu0
  %v1735 = vadd.f32 %v851, %v1734
  %v1736 = vpop.f32.mrb[0].mxu0
  %1737 = vmatprep.mubr.f32.mxu0 %v343
  %1738 = vmatmul.mubr.f32.gmra.mrb[0].mxu0 %v342
  %v1739 = vpop.f32.mrb[0].mxu0
  %v1740 = vadd.f32 %v851, %v1739
  %v1741 = vpop.f32.mrb[0].mxu0
  %1742 = vmatprep.mubr.f32.mxu0 %v345
  %1743 = vmatmul.mubr.f32.gmra.mrb[0].mxu0 %v344
  %v1744 = vpop.f32.mrb[0].mxu0
  %v1745 = vadd.f32 %v851, %v1744
  %v1746 = vpop.f32.mrb[0].mxu0
  %1747 = vmatprep.mubr.f32.mxu0 %v347
  %1748 = vmatmul.mubr.f32.gmra.mrb[0].mxu0 %v346
  %v1749 = vpop.f32.mrb[0].mxu0
  %v1750 = vadd.f32 %v851, %v1749
  %v1751 = vpop.f32.mrb[0].mxu0
  %1752 = vmatprep.mubr.f32.mxu0 %v349
  %1753 = vmatmul.mubr.f32.gmra.mrb[0].mxu0 %v348
  %v1754 = vpop.f32.mrb[0].mxu0
  %v1755 = vadd.f32 %v851, %v1754
  %v1756 = vpop.f32.mrb[0].mxu0
  %1757 = vmatprep.mubr.f32.mxu0 %v351
  %1758 = vmatmul.mubr.f32.gmra.mrb[0].mxu0 %v350
  %v1759 = vpop.f32.mrb[0].mxu0
  %v1760 = vadd.f32 %v851, %v1759
  %v1761 = vpop.f32.mrb[0].mxu0
  %1762 = vmatprep.mubr.f32.mxu0 %v353
  %1763 = vmatmul.mubr.f32.gmra.mrb[0].mxu0 %v352
  %v1764 = vpop.f32.mrb[0].mxu0
  %v1765 = vadd.f32 %v851, %v1764
  %v1766 = vpop.f32.mrb[0].mxu0
  %1767 = vmatprep.mubr.f32.mxu0 %v355
  %1768 = vmatmul.mubr.f32.gmra.mrb[0].mxu0 %v354
  %v1769 = vpop.f32.mrb[0].mxu0
  %v1770 = vadd.f32 %v851, %v1769
  %v1771 = vpop.f32.mrb[0].mxu0
  %1772 = vmatprep.mubr.f32.mxu0 %v357
  %1773 = vmatmul.mubr.f32.gmra.mrb[0].mxu0 %v356
  %v1774 = vpop.f32.mrb[0].mxu0
  %v1775 = vadd.f32 %v851, %v1774
  %v1776 = vpop.f32.mrb[0].mxu0
  %1777 = vmatprep.mubr.f32.mxu0 %v359
  %1778 = vmatmul.mubr.f32.gmra.mrb[0].mxu0 %v358
  %v1779 = vpop.f32.mrb[0].mxu0
  %v1780 = vadd.f32 %v851, %v1779
  %v1781 = vpop.f32.mrb[0].mxu0
  %1782 = vmatprep.mubr.f32.mxu0 %v361
  %1783 = vmatmul.mubr.f32.gmra.mrb[0].mxu0 %v360
  %v1784 = vpop.f32.mrb[0].mxu0
  %v1785 = vadd.f32 %v851, %v1784
  %v1786 = vpop.f32.mrb[0].mxu0
  %1787 = vmatprep.mubr.f32.mxu0 %v363
  %1788 = vmatmul.mubr.f32.gmra.mrb[0].mxu0 %v362
  %v1789 = vpop.f32.mrb[0].mxu0
  %v1790 = vadd.f32 %v851, %v1789
  %v1791 = vpop.f32.mrb[0].mxu0
  %1792 = vmatprep.mubr.f32.mxu0 %v365
  %1793 = vmatmul.mubr.f32.gmra.mrb[0].mxu0 %v364
  %v1794 = vpop.f32.mrb[0].mxu0
  %v1795 = vadd.f32 %v851, %v1794
  %v1796 = vpop.f32.mrb[0].mxu0
  %1797 = vmatprep.mubr.f32.mxu0 %v367
  %1798 = vmatmul.mubr.f32.gmra.mrb[0].mxu0 %v366
  %v1799 = vpop.f32.mrb[0].mxu0
  %v1800 = vadd.f32 %v851, %v1799
  %v1801 = vpop.f32.mrb[0].mxu0
  %1802 = vmatprep.mubr.f32.mxu0 %v369
  %1803 = vmatmul.mubr.f32.gmra.mrb[0].mxu0 %v368
  %v1804 = vpop.f32.mrb[0].mxu0
  %v1805 = vadd.f32 %v851, %v1804
  %v1806 = vpop.f32.mrb[0].mxu0
  %1807 = vmatprep.mubr.f32.mxu0 %v371
  %1808 = vmatmul.mubr.f32.gmra.mrb[0].mxu0 %v370
  %v1809 = vpop.f32.mrb[0].mxu0
  %v1810 = vadd.f32 %v851, %v1809
  %v1811 = vpop.f32.mrb[0].mxu0
  %1812 = vmatprep.mubr.f32.mxu0 %v373
  %1813 = vmatmul.mubr.f32.gmra.mrb[0].mxu0 %v372
  %v1814 = vpop.f32.mrb[0].mxu0
  %v1815 = vadd.f32 %v851, %v1814
  %v1816 = vpop.f32.mrb[0].mxu0
  %1817 = vmatprep.mubr.f32.mxu0 %v375
  %1818 = vmatmul.mubr.f32.gmra.mrb[0].mxu0 %v374
  %v1819 = vpop.f32.mrb[0].mxu0
  %v1820 = vadd.f32 %v851, %v1819
  %v1821 = vpop.f32.mrb[0].mxu0
  %1822 = vmatprep.mubr.f32.mxu0 %v377
  %1823 = vmatmul.mubr.f32.gmra.mrb[0].mxu0 %v376
  %v1824 = vpop.f32.mrb[0].mxu0
  %v1825 = vadd.f32 %v851, %v1824
  %v1826 = vpop.f32.mrb[0].mxu0
  %1827 = vmatprep.mubr.f32.mxu0 %v379
  %1828 = vmatmul.mubr.f32.gmra.mrb[0].mxu0 %v378
  %v1829 = vpop.f32.mrb[0].mxu0
  %v1830 = vadd.f32 %v851, %v1829
  %v1831 = vpop.f32.mrb[0].mxu0
  %1832 = vmatprep.mubr.f32.mxu0 %v381
  %1833 = vmatmul.mubr.f32.gmra.mrb[0].mxu0 %v380
  %v1834 = vpop.f32.mrb[0].mxu0
  %v1835 = vadd.f32 %v851, %v1834
  %v1836 = vpop.f32.mrb[0].mxu0
  %1837 = vmatprep.mubr.f32.mxu0 %v383
  %1838 = vmatmul.mubr.f32.gmra.mrb[0].mxu0 %v382
  %v1839 = vpop.f32.mrb[0].mxu0
  %v1840 = vadd.f32 %v851, %v1839
  %v1841 = vpop.f32.mrb[0].mxu0
  %1842 = vmatprep.mubr.f32.mxu0 %v385
  %1843 = vmatmul.mubr.f32.gmra.mrb[0].mxu0 %v384
  %v1844 = vpop.f32.mrb[0].mxu0
  %v1845 = vadd.f32 %v851, %v1844
  %v1846 = vpop.f32.mrb[0].mxu0
  %1847 = vmatprep.mubr.f32.mxu0 %v387
  %1848 = vmatmul.mubr.f32.gmra.mrb[0].mxu0 %v386
  %v1849 = vpop.f32.mrb[0].mxu0
  %v1850 = vadd.f32 %v851, %v1849
  %v1851 = vpop.f32.mrb[0].mxu0
  %1852 = vmatprep.mubr.f32.mxu0 %v389
  %1853 = vmatmul.mubr.f32.gmra.mrb[0].mxu0 %v388
  %v1854 = vpop.f32.mrb[0].mxu0
  %v1855 = vadd.f32 %v851, %v1854
  %v1856 = vpop.f32.mrb[0].mxu0
  %1857 = vmatprep.mubr.f32.mxu0 %v391
  %1858 = vmatmul.mubr.f32.gmra.mrb[0].mxu0 %v390
  %v1859 = vpop.f32.mrb[0].mxu0
  %v1860 = vadd.f32 %v851, %v1859
  %v1861 = vpop.f32.mrb[0].mxu0
  %1862 = vmatprep.mubr.f32.mxu0 %v393
  %1863 = vmatmul.mubr.f32.gmra.mrb[0].mxu0 %v392
  %v1864 = vpop.f32.mrb[0].mxu0
  %v1865 = vadd.f32 %v851, %v1864
  %v1866 = vpop.f32.mrb[0].mxu0
  %1867 = vmatprep.mubr.f32.mxu0 %v395
  %1868 = vmatmul.mubr.f32.gmra.mrb[0].mxu0 %v394
  %v1869 = vpop.f32.mrb[0].mxu0
  %v1870 = vadd.f32 %v851, %v1869
  %v1871 = vpop.f32.mrb[0].mxu0
  %1872 = vmatprep.mubr.f32.mxu0 %v397
  %1873 = vmatmul.mubr.f32.gmra.mrb[0].mxu0 %v396
  %v1874 = vpop.f32.mrb[0].mxu0
  %v1875 = vadd.f32 %v851, %v1874
  %v1876 = vpop.f32.mrb[0].mxu0
  %1877 = vmatprep.mubr.f32.mxu0 %v399
  %1878 = vmatmul.mubr.f32.gmra.mrb[0].mxu0 %v398
  %v1879 = vpop.f32.mrb[0].mxu0
  %v1880 = vadd.f32 %v851, %v1879
  %v1881 = vpop.f32.mrb[0].mxu0
  %1882 = vmatprep.mubr.f32.mxu0 %v401
  %1883 = vmatmul.mubr.f32.gmra.mrb[0].mxu0 %v400
  %v1884 = vpop.f32.mrb[0].mxu0
  %v1885 = vadd.f32 %v851, %v1884
  %v1886 = vpop.f32.mrb[0].mxu0
  %1887 = vmatprep.mubr.f32.mxu0 %v403
  %1888 = vmatmul.mubr.f32.gmra.mrb[0].mxu0 %v402
  %v1889 = vpop.f32.mrb[0].mxu0
  %v1890 = vadd.f32 %v851, %v1889
  %v1891 = vpop.f32.mrb[0].mxu0
  %1892 = vmatprep.mubr.f32.mxu0 %v405
  %1893 = vmatmul.mubr.f32.gmra.mrb[0].mxu0 %v404
  %v1894 = vpop.f32.mrb[0].mxu0
  %v1895 = vadd.f32 %v851, %v1894
  %v1896 = vpop.f32.mrb[0].mxu0
  %1897 = vmatprep.mubr.f32.mxu0 %v407
  %1898 = vmatmul.mubr.f32.gmra.mrb[0].mxu0 %v406
  %v1899 = vpop.f32.mrb[0].mxu0
  %v1900 = vadd.f32 %v851, %v1899
  %v1901 = vpop.f32.mrb[0].mxu0
  %1902 = vmatprep.mubr.f32.mxu0 %v409
  %1903 = vmatmul.mubr.f32.gmra.mrb[0].mxu0 %v408
  %v1904 = vpop.f32.mrb[0].mxu0
  %v1905 = vadd.f32 %v851, %v1904
  %v1906 = vpop.f32.mrb[0].mxu0
  %1907 = vmatprep.mubr.f32.mxu0 %v411
  %1908 = vmatmul.mubr.f32.gmra.mrb[0].mxu0 %v410
  %v1909 = vpop.f32.mrb[0].mxu0
  %v1910 = vadd.f32 %v851, %v1909
  %v1911 = vpop.f32.mrb[0].mxu0
  %1912 = vmatprep.mubr.f32.mxu0 %v413
  %1913 = vmatmul.mubr.f32.gmra.mrb[0].mxu0 %v412
  %v1914 = vpop.f32.mrb[0].mxu0
  %v1915 = vadd.f32 %v851, %v1914
  %v1916 = vpop.f32.mrb[0].mxu0
  %1917 = vmatprep.mubr.f32.mxu0 %v415
  %1918 = vmatmul.mubr.f32.gmra.mrb[0].mxu0 %v414
  %v1919 = vpop.f32.mrb[0].mxu0
  %v1920 = vadd.f32 %v851, %v1919
  %v1921 = vpop.f32.mrb[0].mxu0
  %1922 = vmatprep.mubr.f32.mxu0 %v417
  %1923 = vmatmul.mubr.f32.gmra.mrb[0].mxu0 %v416
  %v1924 = vpop.f32.mrb[0].mxu0
  %v1925 = vadd.f32 %v851, %v1924
  %v1926 = vpop.f32.mrb[0].mxu0
  %1927 = vmatprep.mubr.f32.mxu0 %v419
  %1928 = vmatmul.mubr.f32.gmra.mrb[0].mxu0 %v418
  %v1929 = vpop.f32.mrb[0].mxu0
  %v1930 = vadd.f32 %v851, %v1929
  %v1931 = vpop.f32.mrb[0].mxu0
  %1932 = vmatprep.mubr.f32.mxu0 %v421
  %1933 = vmatmul.mubr.f32.gmra.mrb[0].mxu0 %v420
  %v1934 = vpop.f32.mrb[0].mxu0
  %v1935 = vadd.f32 %v851, %v1934
  %v1936 = vpop.f32.mrb[0].mxu0
  %1937 = vmatprep.mubr.f32.mxu0 %v423
  %1938 = vmatmul.mubr.f32.gmra.mrb[0].mxu0 %v422
  %v1939 = vpop.f32.mrb[0].mxu0
  %v1940 = vadd.f32 %v851, %v1939
  %v1941 = vpop.f32.mrb[0].mxu0
  %1942 = vmatprep.mubr.f32.mxu0 %v425
  %1943 = vmatmul.mubr.f32.gmra.mrb[0].mxu0 %v424
  %v1944 = vpop.f32.mrb[0].mxu0
  %v1945 = vadd.f32 %v851, %v1944
  %v1946 = vpop.f32.mrb[0].mxu0
  %1947 = vmatprep.mubr.f32.mxu0 %v427
  %1948 = vmatmul.mubr.f32.gmra.mrb[0].mxu0 %v426
  %v1949 = vpop.f32.mrb[0].mxu0
  %v1950 = vadd.f32 %v851, %v1949
  %v1951 = vpop.f32.mrb[0].mxu0
  %1952 = vmatprep.mubr.f32.mxu0 %v429
  %1953 = vmatmul.mubr.f32.gmra.mrb[0].mxu0 %v428
  %v1954 = vpop.f32.mrb[0].mxu0
  %v1955 = vadd.f32 %v851, %v1954
  %v1956 = vpop.f32.mrb[0].mxu0
  %1957 = vmatprep.mubr.f32.mxu0 %v431
  %1958 = vmatmul.mubr.f32.gmra.mrb[0].mxu0 %v430
  %v1959 = vpop.f32.mrb[0].mxu0
  %v1960 = vadd.f32 %v851, %v1959
  %v1961 = vpop.f32.mrb[0].mxu0
  %1962 = vmatprep.mubr.f32.mxu0 %v433
  %1963 = vmatmul.mubr.f32.gmra.mrb[0].mxu0 %v432
  %v1964 = vpop.f32.mrb[0].mxu0
  %v1965 = vadd.f32 %v851, %v1964
  %v1966 = vpop.f32.mrb[0].mxu0
  %1967 = vmatprep.mubr.f32.mxu0 %v435
  %1968 = vmatmul.mubr.f32.gmra.mrb[0].mxu0 %v434
  %v1969 = vpop.f32.mrb[0].mxu0
  %v1970 = vadd.f32 %v851, %v1969
  %v1971 = vpop.f32.mrb[0].mxu0
  %1972 = vmatprep.mubr.f32.mxu0 %v437
  %1973 = vmatmul.mubr.f32.gmra.mrb[0].mxu0 %v436
  %v1974 = vpop.f32.mrb[0].mxu0
  %v1975 = vadd.f32 %v851, %v1974
  %v1976 = vpop.f32.mrb[0].mxu0
  %1977 = vmatprep.mubr.f32.mxu0 %v439
  %1978 = vmatmul.mubr.f32.gmra.mrb[0].mxu0 %v438
  %v1979 = vpop.f32.mrb[0].mxu0
  %v1980 = vadd.f32 %v851, %v1979
  %v1981 = vpop.f32.mrb[0].mxu0
  %1982 = vmatprep.mubr.f32.mxu0 %v441
  %1983 = vmatmul.mubr.f32.gmra.mrb[0].mxu0 %v440
  %v1984 = vpop.f32.mrb[0].mxu0
  %v1985 = vadd.f32 %v851, %v1984
  %v1986 = vpop.f32.mrb[0].mxu0
  %1987 = vmatprep.mubr.f32.mxu0 %v443
  %1988 = vmatmul.mubr.f32.gmra.mrb[0].mxu0 %v442
  %v1989 = vpop.f32.mrb[0].mxu0
  %v1990 = vadd.f32 %v851, %v1989
  %v1991 = vpop.f32.mrb[0].mxu0
  %1992 = vmatprep.mubr.f32.mxu0 %v445
  %1993 = vmatmul.mubr.f32.gmra.mrb[0].mxu0 %v444
  %v1994 = vpop.f32.mrb[0].mxu0
  %v1995 = vadd.f32 %v851, %v1994
  %v1996 = vpop.f32.mrb[0].mxu0
  %1997 = vmatprep.mubr.f32.mxu0 %v447
  %1998 = vmatmul.mubr.f32.gmra.mrb[0].mxu0 %v446
  %v1999 = vpop.f32.mrb[0].mxu0
  %v2000 = vadd.f32 %v851, %v1999
  %v2001 = vpop.f32.mrb[0].mxu0
  %2002 = vmatprep.mubr.f32.mxu0 %v449
  %2003 = vmatmul.mubr.f32.gmra.mrb[0].mxu0 %v448
  %v2004 = vpop.f32.mrb[0].mxu0
  %v2005 = vadd.f32 %v851, %v2004
  %v2006 = vpop.f32.mrb[0].mxu0
  %2007 = vmatprep.mubr.f32.mxu0 %v451
  %2008 = vmatmul.mubr.f32.gmra.mrb[0].mxu0 %v450
  %v2009 = vpop.f32.mrb[0].mxu0
  %v2010 = vadd.f32 %v851, %v2009
  %v2011 = vpop.f32.mrb[0].mxu0
  %2012 = vmatprep.mubr.f32.mxu0 %v453
  %2013 = vmatmul.mubr.f32.gmra.mrb[0].mxu0 %v452
  %v2014 = vpop.f32.mrb[0].mxu0
  %v2015 = vadd.f32 %v851, %v2014
  %v2016 = vpop.f32.mrb[0].mxu0
  %2017 = vmatprep.mubr.f32.mxu0 %v455
  %2018 = vmatmul.mubr.f32.gmra.mrb[0].mxu0 %v454
  %v2019 = vpop.f32.mrb[0].mxu0
  %v2020 = vadd.f32 %v851, %v2019
  %v2021 = vpop.f32.mrb[0].mxu0
  %2022 = vmatprep.mubr.f32.mxu0 %v457
  %2023 = vmatmul.mubr.f32.gmra.mrb[0].mxu0 %v456
  %v2024 = vpop.f32.mrb[0].mxu0
  %v2025 = vadd.f32 %v851, %v2024
  %v2026 = vpop.f32.mrb[0].mxu0
  %2027 = vmatprep.mubr.f32.mxu0 %v459
  %2028 = vmatmul.mubr.f32.gmra.mrb[0].mxu0 %v458
  %v2029 = vpop.f32.mrb[0].mxu0
  %v2030 = vadd.f32 %v851, %v2029
  %v2031 = vpop.f32.mrb[0].mxu0
  %2032 = vmatprep.mubr.f32.mxu0 %v461
  %2033 = vmatmul.mubr.f32.gmra.mrb[0].mxu0 %v460
  %v2034 = vpop.f32.mrb[0].mxu0
  %v2035 = vadd.f32 %v851, %v2034
  %v2036 = vpop.f32.mrb[0].mxu0
  %2037 = vmatprep.mubr.f32.mxu0 %v463
  %2038 = vmatmul.mubr.f32.gmra.mrb[0].mxu0 %v462
  %v2039 = vpop.f32.mrb[0].mxu0
  %v2040 = vadd.f32 %v851, %v2039
  %v2041 = vpop.f32.mrb[0].mxu0
  %2042 = vmatprep.mubr.f32.mxu0 %v465
  %2043 = vmatmul.mubr.f32.gmra.mrb[0].mxu0 %v464
  %v2044 = vpop.f32.mrb[0].mxu0
  %v2045 = vadd.f32 %v851, %v2044
  %v2046 = vpop.f32.mrb[0].mxu0
  %2047 = vmatprep.mubr.f32.mxu0 %v467
  %2048 = vmatmul.mubr.f32.gmra.mrb[0].mxu0 %v466
  %v2049 = vpop.f32.mrb[0].mxu0
  %v2050 = vadd.f32 %v851, %v2049
  %v2051 = vpop.f32.mrb[0].mxu0
  %2052 = vmatprep.mubr.f32.mxu0 %v469
  %2053 = vmatmul.mubr.f32.gmra.mrb[0].mxu0 %v468
  %v2054 = vpop.f32.mrb[0].mxu0
  %v2055 = vadd.f32 %v851, %v2054
  %v2056 = vpop.f32.mrb[0].mxu0
  %2057 = vmatprep.mubr.f32.mxu0 %v471
  %2058 = vmatmul.mubr.f32.gmra.mrb[0].mxu0 %v470
  %v2059 = vpop.f32.mrb[0].mxu0
  %v2060 = vadd.f32 %v851, %v2059
  %v2061 = vpop.f32.mrb[0].mxu0
  %2062 = vmatprep.mubr.f32.mxu0 %v473
  %2063 = vmatmul.mubr.f32.gmra.mrb[0].mxu0 %v472
  %v2064 = vpop.f32.mrb[0].mxu0
  %v2065 = vadd.f32 %v851, %v2064
  %v2066 = vpop.f32.mrb[0].mxu0
  %2067 = vmatprep.mubr.f32.mxu0 %v475
  %2068 = vmatmul.mubr.f32.gmra.mrb[0].mxu0 %v474
  %v2069 = vpop.f32.mrb[0].mxu0
  %v2070 = vadd.f32 %v851, %v2069
  %v2071 = vpop.f32.mrb[0].mxu0
  %2072 = vmatprep.mubr.f32.mxu0 %v477
  %2073 = vmatmul.mubr.f32.gmra.mrb[0].mxu0 %v476
  %v2074 = vpop.f32.mrb[0].mxu0
  %v2075 = vadd.f32 %v851, %v2074
  %v2076 = vpop.f32.mrb[0].mxu0
  %2077 = vmatprep.mubr.f32.mxu0 %v479
  %2078 = vmatmul.mubr.f32.gmra.mrb[0].mxu0 %v478
  %v2079 = vpop.f32.mrb[0].mxu0
  %v2080 = vadd.f32 %v851, %v2079
  %v2081 = vpop.f32.mrb[0].mxu0
  %2082 = vmatprep.mubr.f32.mxu0 %v481
  %2083 = vmatmul.mubr.f32.gmra.mrb[0].mxu0 %v480
  %v2084 = vpop.f32.mrb[0].mxu0
  %v2085 = vadd.f32 %v851, %v2084
  %v2086 = vpop.f32.mrb[0].mxu0
  %2087 = vmatprep.mubr.f32.mxu0 %v483
  %2088 = vmatmul.mubr.f32.gmra.mrb[0].mxu0 %v482
  %v2089 = vpop.f32.mrb[0].mxu0
  %v2090 = vadd.f32 %v851, %v2089
  %v2091 = vpop.f32.mrb[0].mxu0
  %2092 = vmatprep.mubr.f32.mxu0 %v485
  %2093 = vmatmul.mubr.f32.gmra.mrb[0].mxu0 %v484
  %v2094 = vpop.f32.mrb[0].mxu0
  %v2095 = vadd.f32 %v851, %v2094
  %v2096 = vpop.f32.mrb[0].mxu0
  %2097 = vmatprep.mubr.f32.mxu0 %v487
  %2098 = vmatmul.mubr.f32.gmra.mrb[0].mxu0 %v486
  %v2099 = vpop.f32.mrb[0].mxu0
  %v2100 = vadd.f32 %v851, %v2099
  %v2101 = vpop.f32.mrb[0].mxu0
  %2102 = vmatprep.mubr.f32.mxu0 %v489
  %2103 = vmatmul.mubr.f32.gmra.mrb[0].mxu0 %v488
  %v2104 = vpop.f32.mrb[0].mxu0
  %v2105 = vadd.f32 %v851, %v2104
  %v2106 = vpop.f32.mrb[0].mxu0
  %2107 = vmatprep.mubr.f32.mxu0 %v491
  %2108 = vmatmul.mubr.f32.gmra.mrb[0].mxu0 %v490
  %v2109 = vpop.f32.mrb[0].mxu0
  %v2110 = vadd.f32 %v851, %v2109
  %v2111 = vpop.f32.mrb[0].mxu0
  %2112 = vmatprep.mubr.f32.mxu0 %v493
  %2113 = vmatmul.mubr.f32.gmra.mrb[0].mxu0 %v492
  %v2114 = vpop.f32.mrb[0].mxu0
  %v2115 = vadd.f32 %v851, %v2114
  %v2116 = vpop.f32.mrb[0].mxu0
  %2117 = vmatprep.mubr.f32.mxu0 %v495
  %2118 = vmatmul.mubr.f32.gmra.mrb[0].mxu0 %v494
  %v2119 = vpop.f32.mrb[0].mxu0
  %v2120 = vadd.f32 %v851, %v2119
  %v2121 = vpop.f32.mrb[0].mxu0
  %2122 = vmatprep.mubr.f32.mxu0 %v497
  %2123 = vmatmul.mubr.f32.gmra.mrb[0].mxu0 %v496
  %v2124 = vpop.f32.mrb[0].mxu0
  %v2125 = vadd.f32 %v851, %v2124
  %v2126 = vpop.f32.mrb[0].mxu0
  %2127 = vmatprep.mubr.f32.mxu0 %v499
  %2128 = vmatmul.mubr.f32.gmra.mrb[0].mxu0 %v498
  %v2129 = vpop.f32.mrb[0].mxu0
  %v2130 = vadd.f32 %v851, %v2129
  %v2131 = vpop.f32.mrb[0].mxu0
  %2132 = vmatprep.mubr.f32.mxu0 %v501
  %2133 = vmatmul.mubr.f32.gmra.mrb[0].mxu0 %v500
  %v2134 = vpop.f32.mrb[0].mxu0
  %v2135 = vadd.f32 %v851, %v2134
  %v2136 = vpop.f32.mrb[0].mxu0
  %2137 = vmatprep.mubr.f32.mxu0 %v503
  %2138 = vmatmul.mubr.f32.gmra.mrb[0].mxu0 %v502
  %v2139 = vpop.f32.mrb[0].mxu0
  %v2140 = vadd.f32 %v851, %v2139
  %v2141 = vpop.f32.mrb[0].mxu0
  %2142 = vmatprep.mubr.f32.mxu0 %v505
  %2143 = vmatmul.mubr.f32.gmra.mrb[0].mxu0 %v504
  %v2144 = vpop.f32.mrb[0].mxu0
  %v2145 = vadd.f32 %v851, %v2144
  %v2146 = vpop.f32.mrb[0].mxu0
  %2147 = vmatprep.mubr.f32.mxu0 %v507
  %2148 = vmatmul.mubr.f32.gmra.mrb[0].mxu0 %v506
  %v2149 = vpop.f32.mrb[0].mxu0
  %v2150 = vadd.f32 %v851, %v2149
  %v2151 = vpop.f32.mrb[0].mxu0
  %2152 = vmatprep.mubr.f32.mxu0 %v509
  %2153 = vmatmul.mubr.f32.gmra.mrb[0].mxu0 %v508
  %v2154 = vpop.f32.mrb[0].mxu0
  %v2155 = vadd.f32 %v851, %v2154
  %v2156 = vpop.f32.mrb[0].mxu0
  %2157 = vmatprep.mubr.f32.mxu0 %v511
  %2158 = vmatmul.mubr.f32.gmra.mrb[0].mxu0 %v510
  %v2159 = vpop.f32.mrb[0].mxu0
  %v2160 = vadd.f32 %v851, %v2159
  %v2161 = vpop.f32.mrb[0].mxu0
  %2162 = vmatprep.mubr.f32.mxu0 %v513
  %2163 = vmatmul.mubr.f32.gmra.mrb[0].mxu0 %v512
  %v2164 = vpop.f32.mrb[0].mxu0
  %v2165 = vadd.f32 %v851, %v2164
  %v2166 = vpop.f32.mrb[0].mxu0
  %2167 = vmatprep.mubr.f32.mxu0 %v515
  %2168 = vmatmul.mubr.f32.gmra.mrb[0].mxu0 %v514
  %v2169 = vpop.f32.mrb[0].mxu0
  %v2170 = vadd.f32 %v851, %v2169
  %v2171 = vpop.f32.mrb[0].mxu0
  %2172 = vmatprep.mubr.f32.mxu0 %v517
  %2173 = vmatmul.mubr.f32.gmra.mrb[0].mxu0 %v516
  %v2174 = vpop.f32.mrb[0].mxu0
  %v2175 = vadd.f32 %v851, %v2174
  %v2176 = vpop.f32.mrb[0].mxu0
  %2177 = vmatprep.mubr.f32.mxu0 %v519
  %2178 = vmatmul.mubr.f32.gmra.mrb[0].mxu0 %v518
  %v2179 = vpop.f32.mrb[0].mxu0
  %v2180 = vadd.f32 %v851, %v2179
  %v2181 = vpop.f32.mrb[0].mxu0
  %2182 = vmatprep.mubr.f32.mxu0 %v521
  %2183 = vmatmul.mubr.f32.gmra.mrb[0].mxu0 %v520
  %v2184 = vpop.f32.mrb[0].mxu0
  %v2185 = vadd.f32 %v851, %v2184
  %v2186 = vpop.f32.mrb[0].mxu0
  %2187 = vmatprep.mubr.f32.mxu0 %v523
  %2188 = vmatmul.mubr.f32.gmra.mrb[0].mxu0 %v522
  %v2189 = vpop.f32.mrb[0].mxu0
  %v2190 = vadd.f32 %v851, %v2189
  %v2191 = vpop.f32.mrb[0].mxu0
  %2192 = vmatprep.mubr.f32.mxu0 %v525
  %2193 = vmatmul.mubr.f32.gmra.mrb[0].mxu0 %v524
  %v2194 = vpop.f32.mrb[0].mxu0
  %v2195 = vadd.f32 %v851, %v2194
  %v2196 = vpop.f32.mrb[0].mxu0
  %2197 = vmatprep.mubr.f32.mxu0 %v527
  %2198 = vmatmul.mubr.f32.gmra.mrb[0].mxu0 %v526
  %v2199 = vpop.f32.mrb[0].mxu0
  %v2200 = vadd.f32 %v851, %v2199
  %v2201 = vpop.f32.mrb[0].mxu0
  %2202 = vmatprep.mubr.f32.mxu0 %v529
  %2203 = vmatmul.mubr.f32.gmra.mrb[0].mxu0 %v528
  %v2204 = vpop.f32.mrb[0].mxu0
  %v2205 = vadd.f32 %v851, %v2204
  %v2206 = vpop.f32.mrb[0].mxu0
  %2207 = vmatprep.mubr.f32.mxu0 %v531
  %2208 = vmatmul.mubr.f32.gmra.mrb[0].mxu0 %v530
  %v2209 = vpop.f32.mrb[0].mxu0
  %v2210 = vadd.f32 %v851, %v2209
  %v2211 = vpop.f32.mrb[0].mxu0
  %2212 = vmatprep.mubr.f32.mxu0 %v533
  %2213 = vmatmul.mubr.f32.gmra.mrb[0].mxu0 %v532
  %v2214 = vpop.f32.mrb[0].mxu0
  %v2215 = vadd.f32 %v851, %v2214
  %v2216 = vpop.f32.mrb[0].mxu0
  %2217 = vmatprep.mubr.f32.mxu0 %v535
  %2218 = vmatmul.mubr.f32.gmra.mrb[0].mxu0 %v534
  %v2219 = vpop.f32.mrb[0].mxu0
  %v2220 = vadd.f32 %v851, %v2219
  %v2221 = vpop.f32.mrb[0].mxu0
  %2222 = vmatprep.mubr.f32.mxu0 %v537
  %2223 = vmatmul.mubr.f32.gmra.mrb[0].mxu0 %v536
  %v2224 = vpop.f32.mrb[0].mxu0
  %v2225 = vadd.f32 %v851, %v2224
  %v2226 = vpop.f32.mrb[0].mxu0
  %2227 = vmatprep.mubr.f32.mxu0 %v539
  %2228 = vmatmul.mubr.f32.gmra.mrb[0].mxu0 %v538
  %v2229 = vpop.f32.mrb[0].mxu0
  %v2230 = vadd.f32 %v851, %v2229
  %v2231 = vpop.f32.mrb[0].mxu0
  %2232 = vmatprep.mubr.f32.mxu0 %v541
  %2233 = vmatmul.mubr.f32.gmra.mrb[0].mxu0 %v540
  %v2234 = vpop.f32.mrb[0].mxu0
  %v2235 = vadd.f32 %v851, %v2234
  %v2236 = vpop.f32.mrb[0].mxu0
  %2237 = vmatprep.mubr.f32.mxu0 %v543
  %2238 = vmatmul.mubr.f32.gmra.mrb[0].mxu0 %v542
  %v2239 = vpop.f32.mrb[0].mxu0
  %v2240 = vadd.f32 %v851, %v2239
  %v2241 = vpop.f32.mrb[0].mxu0
  %2242 = vmatprep.mubr.f32.mxu0 %v545
  %2243 = vmatmul.mubr.f32.gmra.mrb[0].mxu0 %v544
  %v2244 = vpop.f32.mrb[0].mxu0
  %v2245 = vadd.f32 %v851, %v2244
  %v2246 = vpop.f32.mrb[0].mxu0
  %2247 = vmatprep.mubr.f32.mxu0 %v547
  %2248 = vmatmul.mubr.f32.gmra.mrb[0].mxu0 %v546
  %v2249 = vpop.f32.mrb[0].mxu0
  %v2250 = vadd.f32 %v851, %v2249
  %v2251 = vpop.f32.mrb[0].mxu0
  %2252 = vmatprep.mubr.f32.mxu0 %v549
  %2253 = vmatmul.mubr.f32.gmra.mrb[0].mxu0 %v548
  %v2254 = vpop.f32.mrb[0].mxu0
  %v2255 = vadd.f32 %v851, %v2254
  %v2256 = vpop.f32.mrb[0].mxu0
  %2257 = vmatprep.mubr.f32.mxu0 %v551
  %2258 = vmatmul.mubr.f32.gmra.mrb[0].mxu0 %v550
  %v2259 = vpop.f32.mrb[0].mxu0
  %v2260 = vadd.f32 %v851, %v2259
  %v2261 = vpop.f32.mrb[0].mxu0
  %2262 = vmatprep.mubr.f32.mxu0 %v553
  %2263 = vmatmul.mubr.f32.gmra.mrb[0].mxu0 %v552
  %v2264 = vpop.f32.mrb[0].mxu0
  %v2265 = vadd.f32 %v851, %v2264
  %v2266 = vpop.f32.mrb[0].mxu0
  %2267 = vmatprep.mubr.f32.mxu0 %v555
  %2268 = vmatmul.mubr.f32.gmra.mrb[0].mxu0 %v554
  %v2269 = vpop.f32.mrb[0].mxu0
  %v2270 = vadd.f32 %v851, %v2269
  %v2271 = vpop.f32.mrb[0].mxu0
  %2272 = vmatprep.mubr.f32.mxu0 %v557
  %2273 = vmatmul.mubr.f32.gmra.mrb[0].mxu0 %v556
  %v2274 = vpop.f32.mrb[0].mxu0
  %v2275 = vadd.f32 %v851, %v2274
  %v2276 = vpop.f32.mrb[0].mxu0
  %2277 = vmatprep.mubr.f32.mxu0 %v559
  %2278 = vmatmul.mubr.f32.gmra.mrb[0].mxu0 %v558
  %v2279 = vpop.f32.mrb[0].mxu0
  %v2280 = vadd.f32 %v851, %v2279
  %v2281 = vpop.f32.mrb[0].mxu0
  %2282 = vmatprep.mubr.f32.mxu0 %v561
  %2283 = vmatmul.mubr.f32.gmra.mrb[0].mxu0 %v560
  %v2284 = vpop.f32.mrb[0].mxu0
  %v2285 = vadd.f32 %v851, %v2284
  %v2286 = vpop.f32.mrb[0].mxu0
  %2287 = vmatprep.mubr.f32.mxu0 %v563
  %2288 = vmatmul.mubr.f32.gmra.mrb[0].mxu0 %v562
  %v2289 = vpop.f32.mrb[0].mxu0
  %v2290 = vadd.f32 %v851, %v2289
  %v2291 = vpop.f32.mrb[0].mxu0
  %2292 = vmatprep.mubr.f32.mxu0 %v565
  %2293 = vmatmul.mubr.f32.gmra.mrb[0].mxu0 %v564
  %v2294 = vpop.f32.mrb[0].mxu0
  %v2295 = vadd.f32 %v851, %v2294
  %v2296 = vpop.f32.mrb[0].mxu0
  %2297 = vmatprep.mubr.f32.mxu0 %v567
  %2298 = vmatmul.mubr.f32.gmra.mrb[0].mxu0 %v566
  %v2299 = vpop.f32.mrb[0].mxu0
  %v2300 = vadd.f32 %v851, %v2299
  %v2301 = vpop.f32.mrb[0].mxu0
  %2302 = vmatprep.mubr.f32.mxu0 %v569
  %2303 = vmatmul.mubr.f32.gmra.mrb[0].mxu0 %v568
  %v2304 = vpop.f32.mrb[0].mxu0
  %v2305 = vadd.f32 %v851, %v2304
  %v2306 = vpop.f32.mrb[0].mxu0
  %2307 = vmatprep.mubr.f32.mxu0 %v571
  %2308 = vmatmul.mubr.f32.gmra.mrb[0].mxu0 %v570
  %v2309 = vpop.f32.mrb[0].mxu0
  %v2310 = vadd.f32 %v851, %v2309
  %v2311 = vpop.f32.mrb[0].mxu0
  %2312 = vmatprep.mubr.f32.mxu0 %v573
  %2313 = vmatmul.mubr.f32.gmra.mrb[0].mxu0 %v572
  %v2314 = vpop.f32.mrb[0].mxu0
  %v2315 = vadd.f32 %v851, %v2314
  %v2316 = vpop.f32.mrb[0].mxu0
  %2317 = vmatprep.mubr.f32.mxu0 %v575
  %2318 = vmatmul.mubr.f32.gmra.mrb[0].mxu0 %v574
  %v2319 = vpop.f32.mrb[0].mxu0
  %v2320 = vadd.f32 %v851, %v2319
  %v2321 = vpop.f32.mrb[0].mxu0
  %2322 = vmatprep.mubr.f32.mxu0 %v577
  %2323 = vmatmul.mubr.f32.gmra.mrb[0].mxu0 %v576
  %v2324 = vpop.f32.mrb[0].mxu0
  %v2325 = vadd.f32 %v851, %v2324
  %v2326 = vpop.f32.mrb[0].mxu0
  %2327 = vmatprep.mubr.f32.mxu0 %v579
  %2328 = vmatmul.mubr.f32.gmra.mrb[0].mxu0 %v578
  %v2329 = vpop.f32.mrb[0].mxu0
  %v2330 = vadd.f32 %v851, %v2329
  %v2331 = vpop.f32.mrb[0].mxu0
  %2332 = vmatprep.mubr.f32.mxu0 %v581
  %2333 = vmatmul.mubr.f32.gmra.mrb[0].mxu0 %v580
  %v2334 = vpop.f32.mrb[0].mxu0
  %v2335 = vadd.f32 %v851, %v2334
  %v2336 = vpop.f32.mrb[0].mxu0
  %2337 = vmatprep.mubr.f32.mxu0 %v583
  %2338 = vmatmul.mubr.f32.gmra.mrb[0].mxu0 %v582
  %v2339 = vpop.f32.mrb[0].mxu0
  %v2340 = vadd.f32 %v851, %v2339
  %v2341 = vpop.f32.mrb[0].mxu0
  %2342 = vmatprep.mubr.f32.mxu0 %v585
  %2343 = vmatmul.mubr.f32.gmra.mrb[0].mxu0 %v584
  %v2344 = vpop.f32.mrb[0].mxu0
  %v2345 = vadd.f32 %v851, %v2344
  %v2346 = vpop.f32.mrb[0].mxu0
  %2347 = vmatprep.mubr.f32.mxu0 %v587
  %2348 = vmatmul.mubr.f32.gmra.mrb[0].mxu0 %v586
  %v2349 = vpop.f32.mrb[0].mxu0
  %v2350 = vadd.f32 %v851, %v2349
  %v2351 = vpop.f32.mrb[0].mxu0
  %2352 = vmatprep.mubr.f32.mxu0 %v589
  %2353 = vmatmul.mubr.f32.gmra.mrb[0].mxu0 %v588
  %v2354 = vpop.f32.mrb[0].mxu0
  %v2355 = vadd.f32 %v851, %v2354
  %v2356 = vpop.f32.mrb[0].mxu0
  %2357 = vmatprep.mubr.f32.mxu0 %v591
  %2358 = vmatmul.mubr.f32.gmra.mrb[0].mxu0 %v590
  %v2359 = vpop.f32.mrb[0].mxu0
  %v2360 = vadd.f32 %v851, %v2359
  %v2361 = vpop.f32.mrb[0].mxu0
  %2362 = vmatprep.mubr.f32.mxu0 %v593
  %2363 = vmatmul.mubr.f32.gmra.mrb[0].mxu0 %v592
  %v2364 = vpop.f32.mrb[0].mxu0
  %v2365 = vadd.f32 %v851, %v2364
  %v2366 = vpop.f32.mrb[0].mxu0
  %2367 = vmatprep.mubr.f32.mxu0 %v595
  %2368 = vmatmul.mubr.f32.gmra.mrb[0].mxu0 %v594
  %v2369 = vpop.f32.mrb[0].mxu0
  %v2370 = vadd.f32 %v851, %v2369
  %v2371 = vpop.f32.mrb[0].mxu0
  %2372 = vmatprep.mubr.f32.mxu0 %v597
  %2373 = vmatmul.mubr.f32.gmra.mrb[0].mxu0 %v596
  %v2374 = vpop.f32.mrb[0].mxu0
  %v2375 = vadd.f32 %v851, %v2374
  %v2376 = vpop.f32.mrb[0].mxu0
  %2377 = vmatprep.mubr.f32.mxu0 %v599
  %2378 = vmatmul.mubr.f32.gmra.mrb[0].mxu0 %v598
  %v2379 = vpop.f32.mrb[0].mxu0
  %v2380 = vadd.f32 %v851, %v2379
  %v2381 = vpop.f32.mrb[0].mxu0
  %2382 = vmatprep.mubr.f32.mxu0 %v601
  %2383 = vmatmul.mubr.f32.gmra.mrb[0].mxu0 %v600
  %v2384 = vpop.f32.mrb[0].mxu0
  %v2385 = vadd.f32 %v851, %v2384
  %v2386 = vpop.f32.mrb[0].mxu0
  %2387 = vmatprep.mubr.f32.mxu0 %v603
  %2388 = vmatmul.mubr.f32.gmra.mrb[0].mxu0 %v602
  %v2389 = vpop.f32.mrb[0].mxu0
  %v2390 = vadd.f32 %v851, %v2389
  %v2391 = vpop.f32.mrb[0].mxu0
  %2392 = vmatprep.mubr.f32.mxu0 %v605
  %2393 = vmatmul.mubr.f32.gmra.mrb[0].mxu0 %v604
  %v2394 = vpop.f32.mrb[0].mxu0
  %v2395 = vadd.f32 %v851, %v2394
  %v2396 = vpop.f32.mrb[0].mxu0
  %2397 = vmatprep.mubr.f32.mxu0 %v607
  %2398 = vmatmul.mubr.f32.gmra.mrb[0].mxu0 %v606
  %v2399 = vpop.f32.mrb[0].mxu0
  %v2400 = vadd.f32 %v851, %v2399
  %v2401 = vpop.f32.mrb[0].mxu0
  %2402 = vmatprep.mubr.f32.mxu0 %v609
  %2403 = vmatmul.mubr.f32.gmra.mrb[0].mxu0 %v608
  %v2404 = vpop.f32.mrb[0].mxu0
  %v2405 = vadd.f32 %v851, %v2404
  %v2406 = vpop.f32.mrb[0].mxu0
  %2407 = vmatprep.mubr.f32.mxu0 %v611
  %2408 = vmatmul.mubr.f32.gmra.mrb[0].mxu0 %v610
  %v2409 = vpop.f32.mrb[0].mxu0
  %v2410 = vadd.f32 %v851, %v2409
  %v2411 = vpop.f32.mrb[0].mxu0
  %2412 = vmatprep.mubr.f32.mxu0 %v613
  %2413 = vmatmul.mubr.f32.gmra.mrb[0].mxu0 %v612
  %v2414 = vpop.f32.mrb[0].mxu0
  %v2415 = vadd.f32 %v851, %v2414
  %v2416 = vpop.f32.mrb[0].mxu0
  %2417 = vmatprep.mubr.f32.mxu0 %v615
  %2418 = vmatmul.mubr.f32.gmra.mrb[0].mxu0 %v614
  %v2419 = vpop.f32.mrb[0].mxu0
  %v2420 = vadd.f32 %v851, %v2419
  %v2421 = vpop.f32.mrb[0].mxu0
  %2422 = vmatprep.mubr.f32.mxu0 %v617
  %2423 = vmatmul.mubr.f32.gmra.mrb[0].mxu0 %v616
  %v2424 = vpop.f32.mrb[0].mxu0
  %v2425 = vadd.f32 %v851, %v2424
  %v2426 = vpop.f32.mrb[0].mxu0
  %2427 = vmatprep.mubr.f32.mxu0 %v619
  %2428 = vmatmul.mubr.f32.gmra.mrb[0].mxu0 %v618
  %v2429 = vpop.f32.mrb[0].mxu0
  %v2430 = vadd.f32 %v851, %v2429
  %v2431 = vpop.f32.mrb[0].mxu0
  %2432 = vmatprep.mubr.f32.mxu0 %v621
  %2433 = vmatmul.mubr.f32.gmra.mrb[0].mxu0 %v620
  %v2434 = vpop.f32.mrb[0].mxu0
  %v2435 = vadd.f32 %v851, %v2434
  %v2436 = vpop.f32.mrb[0].mxu0
  %2437 = vmatprep.mubr.f32.mxu0 %v623
  %2438 = vmatmul.mubr.f32.gmra.mrb[0].mxu0 %v622
  %v2439 = vpop.f32.mrb[0].mxu0
  %v2440 = vadd.f32 %v851, %v2439
  %v2441 = vpop.f32.mrb[0].mxu0
  %2442 = vmatprep.mubr.f32.mxu0 %v625
  %2443 = vmatmul.mubr.f32.gmra.mrb[0].mxu0 %v624
  %v2444 = vpop.f32.mrb[0].mxu0
  %v2445 = vadd.f32 %v851, %v2444
  %v2446 = vpop.f32.mrb[0].mxu0
  %2447 = vmatprep.mubr.f32.mxu0 %v627
  %2448 = vmatmul.mubr.f32.gmra.mrb[0].mxu0 %v626
  %v2449 = vpop.f32.mrb[0].mxu0
  %v2450 = vadd.f32 %v851, %v2449
  %v2451 = vpop.f32.mrb[0].mxu0
  %2452 = vmatprep.mubr.f32.mxu0 %v629
  %2453 = vmatmul.mubr.f32.gmra.mrb[0].mxu0 %v628
  %v2454 = vpop.f32.mrb[0].mxu0
  %v2455 = vadd.f32 %v851, %v2454
  %v2456 = vpop.f32.mrb[0].mxu0
  %2457 = vmatprep.mubr.f32.mxu0 %v631
  %2458 = vmatmul.mubr.f32.gmra.mrb[0].mxu0 %v630
  %v2459 = vpop.f32.mrb[0].mxu0
  %v2460 = vadd.f32 %v851, %v2459
  %v2461 = vpop.f32.mrb[0].mxu0
  %2462 = vmatprep.mubr.f32.mxu0 %v633
  %2463 = vmatmul.mubr.f32.gmra.mrb[0].mxu0 %v632
  %v2464 = vpop.f32.mrb[0].mxu0
  %v2465 = vadd.f32 %v851, %v2464
  %v2466 = vpop.f32.mrb[0].mxu0
  %2467 = vmatprep.mubr.f32.mxu0 %v635
  %2468 = vmatmul.mubr.f32.gmra.mrb[0].mxu0 %v634
  %v2469 = vpop.f32.mrb[0].mxu0
  %v2470 = vadd.f32 %v851, %v2469
  %v2471 = vpop.f32.mrb[0].mxu0
  %2472 = vmatprep.mubr.f32.mxu0 %v637
  %2473 = vmatmul.mubr.f32.gmra.mrb[0].mxu0 %v636
  %v2474 = vpop.f32.mrb[0].mxu0
  %v2475 = vadd.f32 %v851, %v2474
  %v2476 = vpop.f32.mrb[0].mxu0
  %2477 = vmatprep.mubr.f32.mxu0 %v639
  %2478 = vmatmul.mubr.f32.gmra.mrb[0].mxu0 %v638
  %v2479 = vpop.f32.mrb[0].mxu0
  %v2480 = vadd.f32 %v851, %v2479
  %v2481 = vpop.f32.mrb[0].mxu0
  %2482 = vmatprep.mubr.f32.mxu0 %v641
  %2483 = vmatmul.mubr.f32.gmra.mrb[0].mxu0 %v640
  %v2484 = vpop.f32.mrb[0].mxu0
  %v2485 = vadd.f32 %v851, %v2484
  %v2486 = vpop.f32.mrb[0].mxu0
  %2487 = vmatprep.mubr.f32.mxu0 %v643
  %2488 = vmatmul.mubr.f32.gmra.mrb[0].mxu0 %v642
  %v2489 = vpop.f32.mrb[0].mxu0
  %v2490 = vadd.f32 %v851, %v2489
  %v2491 = vpop.f32.mrb[0].mxu0
  %2492 = vmatprep.mubr.f32.mxu0 %v645
  %2493 = vmatmul.mubr.f32.gmra.mrb[0].mxu0 %v644
  %v2494 = vpop.f32.mrb[0].mxu0
  %v2495 = vadd.f32 %v851, %v2494
  %v2496 = vpop.f32.mrb[0].mxu0
  %2497 = vmatprep.mubr.f32.mxu0 %v647
  %2498 = vmatmul.mubr.f32.gmra.mrb[0].mxu0 %v646
  %v2499 = vpop.f32.mrb[0].mxu0
  %v2500 = vadd.f32 %v851, %v2499
  %v2501 = vpop.f32.mrb[0].mxu0
  %2502 = vmatprep.mubr.f32.mxu0 %v649
  %2503 = vmatmul.mubr.f32.gmra.mrb[0].mxu0 %v648
  %v2504 = vpop.f32.mrb[0].mxu0
  %v2505 = vadd.f32 %v851, %v2504
  %v2506 = vpop.f32.mrb[0].mxu0
  %2507 = vmatprep.mubr.f32.mxu0 %v651
  %2508 = vmatmul.mubr.f32.gmra.mrb[0].mxu0 %v650
  %v2509 = vpop.f32.mrb[0].mxu0
  %v2510 = vadd.f32 %v851, %v2509
  %v2511 = vpop.f32.mrb[0].mxu0
  %2512 = vmatprep.mubr.f32.mxu0 %v653
  %2513 = vmatmul.mubr.f32.gmra.mrb[0].mxu0 %v652
  %v2514 = vpop.f32.mrb[0].mxu0
  %v2515 = vadd.f32 %v851, %v2514
  %v2516 = vpop.f32.mrb[0].mxu0
  %2517 = vmatprep.mubr.f32.mxu0 %v655
  %2518 = vmatmul.mubr.f32.gmra.mrb[0].mxu0 %v654
  %v2519 = vpop.f32.mrb[0].mxu0
  %v2520 = vadd.f32 %v851, %v2519
  %v2521 = vpop.f32.mrb[0].mxu0
  %2522 = vmatprep.mubr.f32.mxu0 %v657
  %2523 = vmatmul.mubr.f32.gmra.mrb[0].mxu0 %v656
  %v2524 = vpop.f32.mrb[0].mxu0
  %v2525 = vadd.f32 %v851, %v2524
  %v2526 = vpop.f32.mrb[0].mxu0
  %2527 = vmatprep.mubr.f32.mxu0 %v659
  %2528 = vmatmul.mubr.f32.gmra.mrb[0].mxu0 %v658
  %v2529 = vpop.f32.mrb[0].mxu0
  %v2530 = vadd.f32 %v851, %v2529
  %v2531 = vpop.f32.mrb[0].mxu0
  %2532 = vmatprep.mubr.f32.mxu0 %v661
  %2533 = vmatmul.mubr.f32.gmra.mrb[0].mxu0 %v660
  %v2534 = vpop.f32.mrb[0].mxu0
  %v2535 = vadd.f32 %v851, %v2534
  %v2536 = vpop.f32.mrb[0].mxu0
  %2537 = vmatprep.mubr.f32.mxu0 %v663
  %2538 = vmatmul.mubr.f32.gmra.mrb[0].mxu0 %v662
  %v2539 = vpop.f32.mrb[0].mxu0
  %v2540 = vadd.f32 %v851, %v2539
  %v2541 = vpop.f32.mrb[0].mxu0
  %2542 = vmatprep.mubr.f32.mxu0 %v665
  %2543 = vmatmul.mubr.f32.gmra.mrb[0].mxu0 %v664
  %v2544 = vpop.f32.mrb[0].mxu0
  %v2545 = vadd.f32 %v851, %v2544
  %v2546 = vpop.f32.mrb[0].mxu0
  %2547 = vmatprep.mubr.f32.mxu0 %v667
  %2548 = vmatmul.mubr.f32.gmra.mrb[0].mxu0 %v666
  %v2549 = vpop.f32.mrb[0].mxu0
  %v2550 = vadd.f32 %v851, %v2549
  %v2551 = vpop.f32.mrb[0].mxu0
  %2552 = vmatprep.mubr.f32.mxu0 %v669
  %2553 = vmatmul.mubr.f32.gmra.mrb[0].mxu0 %v668
  %v2554 = vpop.f32.mrb[0].mxu0
  %v2555 = vadd.f32 %v851, %v2554
  %v2556 = vpop.f32.mrb[0].mxu0
  %2557 = vmatprep.mubr.f32.mxu0 %v671
  %2558 = vmatmul.mubr.f32.gmra.mrb[0].mxu0 %v670
  %v2559 = vpop.f32.mrb[0].mxu0
  %v2560 = vadd.f32 %v851, %v2559
  %v2561 = vpop.f32.mrb[0].mxu0
  %2562 = vmatprep.mubr.f32.mxu0 %v673
  %2563 = vmatmul.mubr.f32.gmra.mrb[0].mxu0 %v672
  %v2564 = vpop.f32.mrb[0].mxu0
  %v2565 = vadd.f32 %v851, %v2564
  %v2566 = vpop.f32.mrb[0].mxu0
  %2567 = vmatprep.mubr.f32.mxu0 %v675
  %2568 = vmatmul.mubr.f32.gmra.mrb[0].mxu0 %v674
  %v2569 = vpop.f32.mrb[0].mxu0
  %v2570 = vadd.f32 %v851, %v2569
  %v2571 = vpop.f32.mrb[0].mxu0
  %2572 = vmatprep.mubr.f32.mxu0 %v677
  %2573 = vmatmul.mubr.f32.gmra.mrb[0].mxu0 %v676
  %v2574 = vpop.f32.mrb[0].mxu0
  %v2575 = vadd.f32 %v851, %v2574
  %v2576 = vpop.f32.mrb[0].mxu0
  %2577 = vmatprep.mubr.f32.mxu0 %v679
  %2578 = vmatmul.mubr.f32.gmra.mrb[0].mxu0 %v678
  %v2579 = vpop.f32.mrb[0].mxu0
  %v2580 = vadd.f32 %v851, %v2579
  %v2581 = vpop.f32.mrb[0].mxu0
  %2582 = vmatprep.mubr.f32.mxu0 %v681
  %2583 = vmatmul.mubr.f32.gmra.mrb[0].mxu0 %v680
  %v2584 = vpop.f32.mrb[0].mxu0
  %v2585 = vadd.f32 %v851, %v2584
  %v2586 = vpop.f32.mrb[0].mxu0
  %2587 = vmatprep.mubr.f32.mxu0 %v683
  %2588 = vmatmul.mubr.f32.gmra.mrb[0].mxu0 %v682
  %v2589 = vpop.f32.mrb[0].mxu0
  %v2590 = vadd.f32 %v851, %v2589
  %v2591 = vpop.f32.mrb[0].mxu0
  %2592 = vmatprep.mubr.f32.mxu0 %v685
  %2593 = vmatmul.mubr.f32.gmra.mrb[0].mxu0 %v684
  %v2594 = vpop.f32.mrb[0].mxu0
  %v2595 = vadd.f32 %v851, %v2594
  %v2596 = vpop.f32.mrb[0].mxu0
  %2597 = vmatprep.mubr.f32.mxu0 %v687
  %2598 = vmatmul.mubr.f32.gmra.mrb[0].mxu0 %v686
  %v2599 = vpop.f32.mrb[0].mxu0
  %v2600 = vadd.f32 %v851, %v2599
  %v2601 = vpop.f32.mrb[0].mxu0
  %2602 = vmatprep.mubr.f32.mxu0 %v689
  %2603 = vmatmul.mubr.f32.gmra.mrb[0].mxu0 %v688
  %v2604 = vpop.f32.mrb[0].mxu0
  %v2605 = vadd.f32 %v851, %v2604
  %v2606 = vpop.f32.mrb[0].mxu0
  %2607 = vmatprep.mubr.f32.mxu0 %v691
  %2608 = vmatmul.mubr.f32.gmra.mrb[0].mxu0 %v690
  %v2609 = vpop.f32.mrb[0].mxu0
  %v2610 = vadd.f32 %v851, %v2609
  %v2611 = vpop.f32.mrb[0].mxu0
  %2612 = vmatprep.mubr.f32.mxu0 %v693
  %2613 = vmatmul.mubr.f32.gmra.mrb[0].mxu0 %v692
  %v2614 = vpop.f32.mrb[0].mxu0
  %v2615 = vadd.f32 %v851, %v2614
  %v2616 = vpop.f32.mrb[0].mxu0
  %2617 = vmatprep.mubr.f32.mxu0 %v695
  %2618 = vmatmul.mubr.f32.gmra.mrb[0].mxu0 %v694
  %v2619 = vpop.f32.mrb[0].mxu0
  %v2620 = vadd.f32 %v851, %v2619
  %v2621 = vpop.f32.mrb[0].mxu0
  %2622 = vmatprep.mubr.f32.mxu0 %v697
  %2623 = vmatmul.mubr.f32.gmra.mrb[0].mxu0 %v696
  %v2624 = vpop.f32.mrb[0].mxu0
  %v2625 = vadd.f32 %v851, %v2624
  %v2626 = vpop.f32.mrb[0].mxu0
  %2627 = vmatprep.mubr.f32.mxu0 %v699
  %2628 = vmatmul.mubr.f32.gmra.mrb[0].mxu0 %v698
  %v2629 = vpop.f32.mrb[0].mxu0
  %v2630 = vadd.f32 %v851, %v2629
  %v2631 = vpop.f32.mrb[0].mxu0
  %2632 = vmatprep.mubr.f32.mxu0 %v701
  %2633 = vmatmul.mubr.f32.gmra.mrb[0].mxu0 %v700
  %v2634 = vpop.f32.mrb[0].mxu0
  %v2635 = vadd.f32 %v851, %v2634
  %v2636 = vpop.f32.mrb[0].mxu0
  %2637 = vmatprep.mubr.f32.mxu0 %v703
  %2638 = vmatmul.mubr.f32.gmra.mrb[0].mxu0 %v702
  %v2639 = vpop.f32.mrb[0].mxu0
  %v2640 = vadd.f32 %v851, %v2639
  %v2641 = vpop.f32.mrb[0].mxu0
  %2642 = vmatprep.mubr.f32.mxu0 %v705
  %2643 = vmatmul.mubr.f32.gmra.mrb[0].mxu0 %v704
  %v2644 = vpop.f32.mrb[0].mxu0
  %v2645 = vadd.f32 %v851, %v2644
  %v2646 = vpop.f32.mrb[0].mxu0
  %2647 = vmatprep.mubr.f32.mxu0 %v707
  %2648 = vmatmul.mubr.f32.gmra.mrb[0].mxu0 %v706
  %v2649 = vpop.f32.mrb[0].mxu0
  %v2650 = vadd.f32 %v851, %v2649
  %v2651 = vpop.f32.mrb[0].mxu0
  %2652 = vmatprep.mubr.f32.mxu0 %v709
  %2653 = vmatmul.mubr.f32.gmra.mrb[0].mxu0 %v708
  %v2654 = vpop.f32.mrb[0].mxu0
  %v2655 = vadd.f32 %v851, %v2654
  %v2656 = vpop.f32.mrb[0].mxu0
  %2657 = vmatprep.mubr.f32.mxu0 %v711
  %2658 = vmatmul.mubr.f32.gmra.mrb[0].mxu0 %v710
  %v2659 = vpop.f32.mrb[0].mxu0
  %v2660 = vadd.f32 %v851, %v2659
  %v2661 = vpop.f32.mrb[0].mxu0
  %2662 = vmatprep.mubr.f32.mxu0 %v713
  %2663 = vmatmul.mubr.f32.gmra.mrb[0].mxu0 %v712
  %v2664 = vpop.f32.mrb[0].mxu0
  %v2665 = vadd.f32 %v851, %v2664
  %v2666 = vpop.f32.mrb[0].mxu0
  %2667 = vmatprep.mubr.f32.mxu0 %v715
  %2668 = vmatmul.mubr.f32.gmra.mrb[0].mxu0 %v714
  %v2669 = vpop.f32.mrb[0].mxu0
  %v2670 = vadd.f32 %v851, %v2669
  %v2671 = vpop.f32.mrb[0].mxu0
  %2672 = vmatprep.mubr.f32.mxu0 %v717
  %2673 = vmatmul.mubr.f32.gmra.mrb[0].mxu0 %v716
  %v2674 = vpop.f32.mrb[0].mxu0
  %v2675 = vadd.f32 %v851, %v2674
  %v2676 = vpop.f32.mrb[0].mxu0
  %2677 = vmatprep.mubr.f32.mxu0 %v719
  %2678 = vmatmul.mubr.f32.gmra.mrb[0].mxu0 %v718
  %v2679 = vpop.f32.mrb[0].mxu0
  %v2680 = vadd.f32 %v851, %v2679
  %v2681 = vpop.f32.mrb[0].mxu0
  %2682 = vmatprep.mubr.f32.mxu0 %v721
  %2683 = vmatmul.mubr.f32.gmra.mrb[0].mxu0 %v720
  %v2684 = vpop.f32.mrb[0].mxu0
  %v2685 = vadd.f32 %v851, %v2684
  %v2686 = vpop.f32.mrb[0].mxu0
  %2687 = vmatprep.mubr.f32.mxu0 %v723
  %2688 = vmatmul.mubr.f32.gmra.mrb[0].mxu0 %v722
  %v2689 = vpop.f32.mrb[0].mxu0
  %v2690 = vadd.f32 %v851, %v2689
  %v2691 = vpop.f32.mrb[0].mxu0
  %2692 = vmatprep.mubr.f32.mxu0 %v725
  %2693 = vmatmul.mubr.f32.gmra.mrb[0].mxu0 %v724
  %v2694 = vpop.f32.mrb[0].mxu0
  %v2695 = vadd.f32 %v851, %v2694
  %v2696 = vpop.f32.mrb[0].mxu0
  %2697 = vmatprep.mubr.f32.mxu0 %v727
  %2698 = vmatmul.mubr.f32.gmra.mrb[0].mxu0 %v726
  %v2699 = vpop.f32.mrb[0].mxu0
  %v2700 = vadd.f32 %v851, %v2699
  %v2701 = vpop.f32.mrb[0].mxu0
  %2702 = vmatprep.mubr.f32.mxu0 %v729
  %2703 = vmatmul.mubr.f32.gmra.mrb[0].mxu0 %v728
  %v2704 = vpop.f32.mrb[0].mxu0
  %v2705 = vadd.f32 %v851, %v2704
  %v2706 = vpop.f32.mrb[0].mxu0
  %2707 = vmatprep.mubr.f32.mxu0 %v731
  %2708 = vmatmul.mubr.f32.gmra.mrb[0].mxu0 %v730
  %v2709 = vpop.f32.mrb[0].mxu0
  %v2710 = vadd.f32 %v851, %v2709
  %v2711 = vpop.f32.mrb[0].mxu0
  %2712 = vmatprep.mubr.f32.mxu0 %v733
  %2713 = vmatmul.mubr.f32.gmra.mrb[0].mxu0 %v732
  %v2714 = vpop.f32.mrb[0].mxu0
  %v2715 = vadd.f32 %v851, %v2714
  %v2716 = vpop.f32.mrb[0].mxu0
  %2717 = vmatprep.mubr.f32.mxu0 %v735
  %2718 = vmatmul.mubr.f32.gmra.mrb[0].mxu0 %v734
  %v2719 = vpop.f32.mrb[0].mxu0
  %v2720 = vadd.f32 %v851, %v2719
  %v2721 = vpop.f32.mrb[0].mxu0
  %2722 = vmatprep.mubr.f32.mxu0 %v737
  %2723 = vmatmul.mubr.f32.gmra.mrb[0].mxu0 %v736
  %v2724 = vpop.f32.mrb[0].mxu0
  %v2725 = vadd.f32 %v851, %v2724
  %v2726 = vpop.f32.mrb[0].mxu0
  %2727 = vmatprep.mubr.f32.mxu0 %v739
  %2728 = vmatmul.mubr.f32.gmra.mrb[0].mxu0 %v738
  %v2729 = vpop.f32.mrb[0].mxu0
  %v2730 = vadd.f32 %v851, %v2729
  %v2731 = vpop.f32.mrb[0].mxu0
  %2732 = vmatprep.mubr.f32.mxu0 %v741
  %2733 = vmatmul.mubr.f32.gmra.mrb[0].mxu0 %v740
  %v2734 = vpop.f32.mrb[0].mxu0
  %v2735 = vadd.f32 %v851, %v2734
  %v2736 = vpop.f32.mrb[0].mxu0
  %2737 = vmatprep.mubr.f32.mxu0 %v743
  %2738 = vmatmul.mubr.f32.gmra.mrb[0].mxu0 %v742
  %v2739 = vpop.f32.mrb[0].mxu0
  %v2740 = vadd.f32 %v851, %v2739
  %v2741 = vpop.f32.mrb[0].mxu0
  %2742 = vmatprep.mubr.f32.mxu0 %v745
  %2743 = vmatmul.mubr.f32.gmra.mrb[0].mxu0 %v744
  %v2744 = vpop.f32.mrb[0].mxu0
  %v2745 = vadd.f32 %v851, %v2744
  %v2746 = vpop.f32.mrb[0].mxu0
  %2747 = vmatprep.mubr.f32.mxu0 %v747
  %2748 = vmatmul.mubr.f32.gmra.mrb[0].mxu0 %v746
  %v2749 = vpop.f32.mrb[0].mxu0
  %v2750 = vadd.f32 %v851, %v2749
  %v2751 = vpop.f32.mrb[0].mxu0
  %2752 = vmatprep.mubr.f32.mxu0 %v749
  %2753 = vmatmul.mubr.f32.gmra.mrb[0].mxu0 %v748
  %v2754 = vpop.f32.mrb[0].mxu0
  %v2755 = vadd.f32 %v851, %v2754
  %v2756 = vpop.f32.mrb[0].mxu0
  %2757 = vmatprep.mubr.f32.mxu0 %v751
  %2758 = vmatmul.mubr.f32.gmra.mrb[0].mxu0 %v750
  %v2759 = vpop.f32.mrb[0].mxu0
  %v2760 = vadd.f32 %v851, %v2759
  %v2761 = vpop.f32.mrb[0].mxu0
  %2762 = vmatprep.mubr.f32.mxu0 %v753
  %2763 = vmatmul.mubr.f32.gmra.mrb[0].mxu0 %v752
  %v2764 = vpop.f32.mrb[0].mxu0
  %v2765 = vadd.f32 %v851, %v2764
  %v2766 = vpop.f32.mrb[0].mxu0
  %2767 = vmatprep.mubr.f32.mxu0 %v755
  %2768 = vmatmul.mubr.f32.gmra.mrb[0].mxu0 %v754
  %v2769 = vpop.f32.mrb[0].mxu0
  %v2770 = vadd.f32 %v851, %v2769
  %v2771 = vpop.f32.mrb[0].mxu0
  %2772 = vmatprep.mubr.f32.mxu0 %v757
  %2773 = vmatmul.mubr.f32.gmra.mrb[0].mxu0 %v756
  %v2774 = vpop.f32.mrb[0].mxu0
  %v2775 = vadd.f32 %v851, %v2774
  %v2776 = vpop.f32.mrb[0].mxu0
  %2777 = vmatprep.mubr.f32.mxu0 %v759
  %2778 = vmatmul.mubr.f32.gmra.mrb[0].mxu0 %v758
  %v2779 = vpop.f32.mrb[0].mxu0
  %v2780 = vadd.f32 %v851, %v2779
  %v2781 = vpop.f32.mrb[0].mxu0
  %2782 = vmatprep.mubr.f32.mxu0 %v761
  %2783 = vmatmul.mubr.f32.gmra.mrb[0].mxu0 %v760
  %v2784 = vpop.f32.mrb[0].mxu0
  %v2785 = vadd.f32 %v851, %v2784
  %v2786 = vpop.f32.mrb[0].mxu0
  %2787 = vmatprep.mubr.f32.mxu0 %v763
  %2788 = vmatmul.mubr.f32.gmra.mrb[0].mxu0 %v762
  %v2789 = vpop.f32.mrb[0].mxu0
  %v2790 = vadd.f32 %v851, %v2789
  %v2791 = vpop.f32.mrb[0].mxu0
  %2792 = vmatprep.mubr.f32.mxu0 %v765
  %2793 = vmatmul.mubr.f32.gmra.mrb[0].mxu0 %v764
  %v2794 = vpop.f32.mrb[0].mxu0
  %v2795 = vadd.f32 %v851, %v2794
  %v2796 = vpop.f32.mrb[0].mxu0
  %2797 = vmatprep.mubr.f32.mxu0 %v767
  %2798 = vmatmul.mubr.f32.gmra.mrb[0].mxu0 %v766
  %v2799 = vpop.f32.mrb[0].mxu0
  %v2800 = vadd.f32 %v851, %v2799
  %v2801 = vpop.f32.mrb[0].mxu0
  %2802 = vmatprep.mubr.f32.mxu0 %v769
  %2803 = vmatmul.mubr.f32.gmra.mrb[0].mxu0 %v768
  %v2804 = vpop.f32.mrb[0].mxu0
  %v2805 = vadd.f32 %v851, %v2804
  %v2806 = vpop.f32.mrb[0].mxu0
  %2807 = vmatprep.mubr.f32.mxu0 %v771
  %2808 = vmatmul.mubr.f32.gmra.mrb[0].mxu0 %v770
  %v2809 = vpop.f32.mrb[0].mxu0
  %v2810 = vadd.f32 %v851, %v2809
  %v2811 = vpop.f32.mrb[0].mxu0
  %2812 = vmatprep.mubr.f32.mxu0 %v773
  %2813 = vmatmul.mubr.f32.gmra.mrb[0].mxu0 %v772
  %v2814 = vpop.f32.mrb[0].mxu0
  %v2815 = vadd.f32 %v851, %v2814
  %v2816 = vpop.f32.mrb[0].mxu0
  %2817 = vmatprep.mubr.f32.mxu0 %v775
  %2818 = vmatmul.mubr.f32.gmra.mrb[0].mxu0 %v774
  %v2819 = vpop.f32.mrb[0].mxu0
  %v2820 = vadd.f32 %v851, %v2819
  %v2821 = vpop.f32.mrb[0].mxu0
  %2822 = vmatprep.mubr.f32.mxu0 %v777
  %2823 = vmatmul.mubr.f32.gmra.mrb[0].mxu0 %v776
  %v2824 = vpop.f32.mrb[0].mxu0
  %v2825 = vadd.f32 %v851, %v2824
  %v2826 = vpop.f32.mrb[0].mxu0
  %2827 = vmatprep.mubr.f32.mxu0 %v779
  %2828 = vmatmul.mubr.f32.gmra.mrb[0].mxu0 %v778
  %v2829 = vpop.f32.mrb[0].mxu0
  %v2830 = vadd.f32 %v851, %v2829
  %v2831 = vpop.f32.mrb[0].mxu0
  %2832 = vmatprep.mubr.f32.mxu0 %v781
  %2833 = vmatmul.mubr.f32.gmra.mrb[0].mxu0 %v780
  %v2834 = vpop.f32.mrb[0].mxu0
  %v2835 = vadd.f32 %v851, %v2834
  %v2836 = vpop.f32.mrb[0].mxu0
  %2837 = vmatprep.mubr.f32.mxu0 %v783
  %2838 = vmatmul.mubr.f32.gmra.mrb[0].mxu0 %v782
  %v2839 = vpop.f32.mrb[0].mxu0
  %v2840 = vadd.f32 %v851, %v2839
  %v2841 = vpop.f32.mrb[0].mxu0
  %2842 = vmatprep.mubr.f32.mxu0 %v785
  %2843 = vmatmul.mubr.f32.gmra.mrb[0].mxu0 %v784
  %v2844 = vpop.f32.mrb[0].mxu0
  %v2845 = vadd.f32 %v851, %v2844
  %v2846 = vpop.f32.mrb[0].mxu0
  %2847 = vmatprep.mubr.f32.mxu0 %v787
  %2848 = vmatmul.mubr.f32.gmra.mrb[0].mxu0 %v786
  %v2849 = vpop.f32.mrb[0].mxu0
  %v2850 = vadd.f32 %v851, %v2849
  %v2851 = vpop.f32.mrb[0].mxu0
  %2852 = vmatprep.mubr.f32.mxu0 %v789
  %2853 = vmatmul.mubr.f32.gmra.mrb[0].mxu0 %v788
  %v2854 = vpop.f32.mrb[0].mxu0
  %v2855 = vadd.f32 %v851, %v2854
  %v2856 = vpop.f32.mrb[0].mxu0
  %2857 = vmatprep.mubr.f32.mxu0 %v791
  %2858 = vmatmul.mubr.f32.gmra.mrb[0].mxu0 %v790
  %v2859 = vpop.f32.mrb[0].mxu0
  %v2860 = vadd.f32 %v851, %v2859
  %v2861 = vpop.f32.mrb[0].mxu0
  %2862 = vmatprep.mubr.f32.mxu0 %v793
  %2863 = vmatmul.mubr.f32.gmra.mrb[0].mxu0 %v792
  %v2864 = vpop.f32.mrb[0].mxu0
  %v2865 = vadd.f32 %v851, %v2864
  %v2866 = vpop.f32.mrb[0].mxu0
  %2867 = vmatprep.mubr.f32.mxu0 %v795
  %2868 = vmatmul.mubr.f32.gmra.mrb[0].mxu0 %v794
  %v2869 = vpop.f32.mrb[0].mxu0
  %v2870 = vadd.f32 %v851, %v2869
  %v2871 = vpop.f32.mrb[0].mxu0
  %2872 = vmatprep.mubr.f32.mxu0 %v797
  %2873 = vmatmul.mubr.f32.gmra.mrb[0].mxu0 %v796
  %v2874 = vpop.f32.mrb[0].mxu0
  %v2875 = vadd.f32 %v851, %v2874
  %v2876 = vpop.f32.mrb[0].mxu0
  %2877 = vmatprep.mubr.f32.mxu0 %v799
  %2878 = vmatmul.mubr.f32.gmra.mrb[0].mxu0 %v798
  %v2879 = vpop.f32.mrb[0].mxu0
  %v2880 = vadd.f32 %v851, %v2879
  %v2881 = vpop.f32.mrb[0].mxu0
  %2882 = vmatprep.mubr.f32.mxu0 %v801
  %2883 = vmatmul.mubr.f32.gmra.mrb[0].mxu0 %v800
  %v2884 = vpop.f32.mrb[0].mxu0
  %v2885 = vadd.f32 %v851, %v2884
  %v2886 = vpop.f32.mrb[0].mxu0
  %2887 = vmatprep.mubr.f32.mxu0 %v803
  %2888 = vmatmul.mubr.f32.gmra.mrb[0].mxu0 %v802
  %v2889 = vpop.f32.mrb[0].mxu0
  %v2890 = vadd.f32 %v851, %v2889
  %v2891 = vpop.f32.mrb[0].mxu0
  %2892 = vmatprep.mubr.f32.mxu0 %v805
  %2893 = vmatmul.mubr.f32.gmra.mrb[0].mxu0 %v804
  %v2894 = vpop.f32.mrb[0].mxu0
  %v2895 = vadd.f32 %v851, %v2894
  %v2896 = vpop.f32.mrb[0].mxu0
  %2897 = vmatprep.mubr.f32.mxu0 %v807
  %2898 = vmatmul.mubr.f32.gmra.mrb[0].mxu0 %v806
  %v2899 = vpop.f32.mrb[0].mxu0
  %v2900 = vadd.f32 %v851, %v2899
  %v2901 = vpop.f32.mrb[0].mxu0
  %2902 = vmatprep.mubr.f32.mxu0 %v809
  %2903 = vmatmul.mubr.f32.gmra.mrb[0].mxu0 %v808
  %v2904 = vpop.f32.mrb[0].mxu0
  %v2905 = vadd.f32 %v851, %v2904
  %v2906 = vpop.f32.mrb[0].mxu0
  %2907 = vmatprep.mubr.f32.mxu0 %v811
  %2908 = vmatmul.mubr.f32.gmra.mrb[0].mxu0 %v810
  %v2909 = vpop.f32.mrb[0].mxu0
  %v2910 = vadd.f32 %v851, %v2909
  %v2911 = vpop.f32.mrb[0].mxu0
  %2912 = vmatprep.mubr.f32.mxu0 %v813
  %2913 = vmatmul.mubr.f32.gmra.mrb[0].mxu0 %v812
  %v2914 = vpop.f32.mrb[0].mxu0
  %v2915 = vadd.f32 %v851, %v2914
  %v2916 = vpop.f32.mrb[0].mxu0
  %2917 = vdwg.mxu0
  %vm2918 = vcmask 23552
  %2919 = vst.msk [vmem:[%s3] sm:$0xff] %vm2918, %v920
  %2920 = vst.msk [vmem:[%s3 + $0x8] sm:$0xff] %vm2918, %v925
  %2921 = vst.msk [vmem:[%s3 + $0x10] sm:$0xff] %vm2918, %v930
  %2922 = vst.msk [vmem:[%s3 + $0x18] sm:$0xff] %vm2918, %v935
  %2923 = vst.msk [vmem:[%s3 + $0x20] sm:$0xff] %vm2918, %v940
  %2924 = vst.msk [vmem:[%s3 + $0x28] sm:$0xff] %vm2918, %v945
  %2925 = vst.msk [vmem:[%s3 + $0x30] sm:$0xff] %vm2918, %v950
  %2926 = vst.msk [vmem:[%s3 + $0x38] sm:$0xff] %vm2918, %v955
  %2927 = vst.msk [vmem:[%s3 + $0x40] sm:$0xff] %vm2918, %v960
  %2928 = vst.msk [vmem:[%s3 + $0x48] sm:$0xff] %vm2918, %v965
  %2929 = vst.msk [vmem:[%s3 + $0x50] sm:$0xff] %vm2918, %v970
  %2930 = vst.msk [vmem:[%s3 + $0x58] sm:$0xff] %vm2918, %v975
  %2931 = vst.msk [vmem:[%s3 + $0x60] sm:$0xff] %vm2918, %v980
  %2932 = vst.msk [vmem:[%s3 + $0x68] sm:$0xff] %vm2918, %v985
  %2933 = vst.msk [vmem:[%s3 + $0x70] sm:$0xff] %vm2918, %v990
  %2934 = vst.msk [vmem:[%s3 + $0x78] sm:$0xff] %vm2918, %v995
  %2935 = vst.msk [vmem:[%s3 + $0x80] sm:$0xff] %vm2918, %v1000
  %2936 = vst.msk [vmem:[%s3 + $0x88] sm:$0xff] %vm2918, %v1005
  %2937 = vst.msk [vmem:[%s3 + $0x90] sm:$0xff] %vm2918, %v1010
  %2938 = vst.msk [vmem:[%s3 + $0x98] sm:$0xff] %vm2918, %v1015
  %2939 = vst.msk [vmem:[%s3 + $0xa0] sm:$0xff] %vm2918, %v1020
  %2940 = vst.msk [vmem:[%s3 + $0xa8] sm:$0xff] %vm2918, %v1025
  %2941 = vst.msk [vmem:[%s3 + $0xb0] sm:$0xff] %vm2918, %v1030
  %2942 = vst.msk [vmem:[%s3 + $0xb8] sm:$0xff] %vm2918, %v1035
  %2943 = vst.msk [vmem:[%s3 + $0xc0] sm:$0xff] %vm2918, %v1040
  %2944 = vst.msk [vmem:[%s3 + $0xc8] sm:$0xff] %vm2918, %v1045
  %2945 = vst.msk [vmem:[%s3 + $0xd0] sm:$0xff] %vm2918, %v1050
  %2946 = vst.msk [vmem:[%s3 + $0xd8] sm:$0xff] %vm2918, %v1055
  %2947 = vst.msk [vmem:[%s3 + $0xe0] sm:$0xff] %vm2918, %v1060
  %2948 = vst.msk [vmem:[%s3 + $0xe8] sm:$0xff] %vm2918, %v1065
  %2949 = vst.msk [vmem:[%s3 + $0xf0] sm:$0xff] %vm2918, %v1070
  %2950 = vst.msk [vmem:[%s3 + $0xf8] sm:$0xff] %vm2918, %v1075
  %2951 = vst.msk [vmem:[%s3 + $0x100] sm:$0xff] %vm2918, %v1080
  %2952 = vst.msk [vmem:[%s3 + $0x108] sm:$0xff] %vm2918, %v1085
  %2953 = vst.msk [vmem:[%s3 + $0x110] sm:$0xff] %vm2918, %v1090
  %2954 = vst.msk [vmem:[%s3 + $0x118] sm:$0xff] %vm2918, %v1095
  %2955 = vst.msk [vmem:[%s3 + $0x120] sm:$0xff] %vm2918, %v1100
  %2956 = vst.msk [vmem:[%s3 + $0x128] sm:$0xff] %vm2918, %v1105
  %2957 = vst.msk [vmem:[%s3 + $0x130] sm:$0xff] %vm2918, %v1110
  %2958 = vst.msk [vmem:[%s3 + $0x138] sm:$0xff] %vm2918, %v1115
  %2959 = vst.msk [vmem:[%s3 + $0x140] sm:$0xff] %vm2918, %v1120
  %2960 = vst.msk [vmem:[%s3 + $0x148] sm:$0xff] %vm2918, %v1125
  %2961 = vst.msk [vmem:[%s3 + $0x150] sm:$0xff] %vm2918, %v1130
  %2962 = vst.msk [vmem:[%s3 + $0x158] sm:$0xff] %vm2918, %v1135
  %2963 = vst.msk [vmem:[%s3 + $0x160] sm:$0xff] %vm2918, %v1140
  %2964 = vst.msk [vmem:[%s3 + $0x168] sm:$0xff] %vm2918, %v1145
  %2965 = vst.msk [vmem:[%s3 + $0x170] sm:$0xff] %vm2918, %v1150
  %2966 = vst.msk [vmem:[%s3 + $0x178] sm:$0xff] %vm2918, %v1155
  %2967 = vst.msk [vmem:[%s3 + $0x180] sm:$0xff] %vm2918, %v1160
  %2968 = vst.msk [vmem:[%s3 + $0x188] sm:$0xff] %vm2918, %v1165
  %2969 = vst.msk [vmem:[%s3 + $0x190] sm:$0xff] %vm2918, %v1170
  %2970 = vst.msk [vmem:[%s3 + $0x198] sm:$0xff] %vm2918, %v1175
  %2971 = vst.msk [vmem:[%s3 + $0x1a0] sm:$0xff] %vm2918, %v1180
  %2972 = vst.msk [vmem:[%s3 + $0x1a8] sm:$0xff] %vm2918, %v1185
  %2973 = vst.msk [vmem:[%s3 + $0x1b0] sm:$0xff] %vm2918, %v1190
  %2974 = vst.msk [vmem:[%s3 + $0x1b8] sm:$0xff] %vm2918, %v1195
  %2975 = vst.msk [vmem:[%s3 + $0x1c0] sm:$0xff] %vm2918, %v1200
  %2976 = vst.msk [vmem:[%s3 + $0x1c8] sm:$0xff] %vm2918, %v1205
  %2977 = vst.msk [vmem:[%s3 + $0x1d0] sm:$0xff] %vm2918, %v1210
  %2978 = vst.msk [vmem:[%s3 + $0x1d8] sm:$0xff] %vm2918, %v1215
  %2979 = vst.msk [vmem:[%s3 + $0x1e0] sm:$0xff] %vm2918, %v1220
  %2980 = vst.msk [vmem:[%s3 + $0x1e8] sm:$0xff] %vm2918, %v1225
  %2981 = vst.msk [vmem:[%s3 + $0x1f0] sm:$0xff] %vm2918, %v1230
  %2982 = vst.msk [vmem:[%s3 + $0x1f8] sm:$0xff] %vm2918, %v1235
  %2983 = vst.msk [vmem:[%s3 + $0x200] sm:$0xff] %vm2918, %v1240
  %2984 = vst.msk [vmem:[%s3 + $0x208] sm:$0xff] %vm2918, %v1245
  %2985 = vst.msk [vmem:[%s3 + $0x210] sm:$0xff] %vm2918, %v1250
  %2986 = vst.msk [vmem:[%s3 + $0x218] sm:$0xff] %vm2918, %v1255
  %2987 = vst.msk [vmem:[%s3 + $0x220] sm:$0xff] %vm2918, %v1260
  %2988 = vst.msk [vmem:[%s3 + $0x228] sm:$0xff] %vm2918, %v1265
  %2989 = vst.msk [vmem:[%s3 + $0x230] sm:$0xff] %vm2918, %v1270
  %2990 = vst.msk [vmem:[%s3 + $0x238] sm:$0xff] %vm2918, %v1275
  %2991 = vst.msk [vmem:[%s3 + $0x240] sm:$0xff] %vm2918, %v1280
  %2992 = vst.msk [vmem:[%s3 + $0x248] sm:$0xff] %vm2918, %v1285
  %2993 = vst.msk [vmem:[%s3 + $0x250] sm:$0xff] %vm2918, %v1290
  %2994 = vst.msk [vmem:[%s3 + $0x258] sm:$0xff] %vm2918, %v1295
  %2995 = vst.msk [vmem:[%s3 + $0x260] sm:$0xff] %vm2918, %v1300
  %2996 = vst.msk [vmem:[%s3 + $0x268] sm:$0xff] %vm2918, %v1305
  %2997 = vst.msk [vmem:[%s3 + $0x270] sm:$0xff] %vm2918, %v1310
  %2998 = vst.msk [vmem:[%s3 + $0x278] sm:$0xff] %vm2918, %v1315
  %2999 = vst.msk [vmem:[%s3 + $0x280] sm:$0xff] %vm2918, %v1320
  %3000 = vst.msk [vmem:[%s3 + $0x288] sm:$0xff] %vm2918, %v1325
  %3001 = vst.msk [vmem:[%s3 + $0x290] sm:$0xff] %vm2918, %v1330
  %3002 = vst.msk [vmem:[%s3 + $0x298] sm:$0xff] %vm2918, %v1335
  %3003 = vst.msk [vmem:[%s3 + $0x2a0] sm:$0xff] %vm2918, %v1340
  %3004 = vst.msk [vmem:[%s3 + $0x2a8] sm:$0xff] %vm2918, %v1345
  %3005 = vst.msk [vmem:[%s3 + $0x2b0] sm:$0xff] %vm2918, %v1350
  %3006 = vst.msk [vmem:[%s3 + $0x2b8] sm:$0xff] %vm2918, %v1355
  %3007 = vst.msk [vmem:[%s3 + $0x2c0] sm:$0xff] %vm2918, %v1360
  %3008 = vst.msk [vmem:[%s3 + $0x2c8] sm:$0xff] %vm2918, %v1365
  %3009 = vst.msk [vmem:[%s3 + $0x2d0] sm:$0xff] %vm2918, %v1370
  %3010 = vst.msk [vmem:[%s3 + $0x2d8] sm:$0xff] %vm2918, %v1375
  %3011 = vst.msk [vmem:[%s3 + $0x2e0] sm:$0xff] %vm2918, %v1380
  %3012 = vst.msk [vmem:[%s3 + $0x2e8] sm:$0xff] %vm2918, %v1385
  %3013 = vst.msk [vmem:[%s3 + $0x2f0] sm:$0xff] %vm2918, %v1390
  %3014 = vst.msk [vmem:[%s3 + $0x2f8] sm:$0xff] %vm2918, %v1395
  %3015 = vst.msk [vmem:[%s3 + $0x300] sm:$0xff] %vm2918, %v1400
  %3016 = vst.msk [vmem:[%s3 + $0x308] sm:$0xff] %vm2918, %v1405
  %3017 = vst.msk [vmem:[%s3 + $0x310] sm:$0xff] %vm2918, %v1410
  %3018 = vst.msk [vmem:[%s3 + $0x318] sm:$0xff] %vm2918, %v1415
  %3019 = vst.msk [vmem:[%s3 + $0x320] sm:$0xff] %vm2918, %v1420
  %3020 = vst.msk [vmem:[%s3 + $0x328] sm:$0xff] %vm2918, %v1425
  %3021 = vst.msk [vmem:[%s3 + $0x330] sm:$0xff] %vm2918, %v1430
  %3022 = vst.msk [vmem:[%s3 + $0x338] sm:$0xff] %vm2918, %v1435
  %3023 = vst.msk [vmem:[%s3 + $0x340] sm:$0xff] %vm2918, %v1440
  %3024 = vst.msk [vmem:[%s3 + $0x348] sm:$0xff] %vm2918, %v1445
  %3025 = vst.msk [vmem:[%s3 + $0x350] sm:$0xff] %vm2918, %v1450
  %3026 = vst.msk [vmem:[%s3 + $0x358] sm:$0xff] %vm2918, %v1455
  %3027 = vst.msk [vmem:[%s3 + $0x360] sm:$0xff] %vm2918, %v1460
  %3028 = vst.msk [vmem:[%s3 + $0x368] sm:$0xff] %vm2918, %v1465
  %3029 = vst.msk [vmem:[%s3 + $0x370] sm:$0xff] %vm2918, %v1470
  %3030 = vst.msk [vmem:[%s3 + $0x378] sm:$0xff] %vm2918, %v1475
  %3031 = vst.msk [vmem:[%s3 + $0x380] sm:$0xff] %vm2918, %v1480
  %3032 = vst.msk [vmem:[%s3 + $0x388] sm:$0xff] %vm2918, %v1485
  %3033 = vst.msk [vmem:[%s3 + $0x390] sm:$0xff] %vm2918, %v1490
  %3034 = vst.msk [vmem:[%s3 + $0x398] sm:$0xff] %vm2918, %v1495
  %3035 = vst.msk [vmem:[%s3 + $0x3a0] sm:$0xff] %vm2918, %v1500
  %3036 = vst.msk [vmem:[%s3 + $0x3a8] sm:$0xff] %vm2918, %v1505
  %3037 = vst.msk [vmem:[%s3 + $0x3b0] sm:$0xff] %vm2918, %v1510
  %3038 = vst.msk [vmem:[%s3 + $0x3b8] sm:$0xff] %vm2918, %v1515
  %3039 = vst.msk [vmem:[%s3 + $0x3c0] sm:$0xff] %vm2918, %v1520
  %3040 = vst.msk [vmem:[%s3 + $0x3c8] sm:$0xff] %vm2918, %v1525
  %3041 = vst.msk [vmem:[%s3 + $0x3d0] sm:$0xff] %vm2918, %v1530
  %3042 = vst.msk [vmem:[%s3 + $0x3d8] sm:$0xff] %vm2918, %v1535
  %3043 = vst.msk [vmem:[%s3 + $0x3e0] sm:$0xff] %vm2918, %v1540
  %3044 = vst.msk [vmem:[%s3 + $0x3e8] sm:$0xff] %vm2918, %v1545
  %3045 = vst.msk [vmem:[%s3 + $0x3f0] sm:$0xff] %vm2918, %v1550
  %3046 = vst.msk [vmem:[%s3 + $0x3f8] sm:$0xff] %vm2918, %v1555
  %3047 = vst.msk [vmem:[%s3 + $0x400] sm:$0xff] %vm2918, %v1560
  %3048 = vst.msk [vmem:[%s3 + $0x408] sm:$0xff] %vm2918, %v1565
  %3049 = vst.msk [vmem:[%s3 + $0x410] sm:$0xff] %vm2918, %v1570
  %3050 = vst.msk [vmem:[%s3 + $0x418] sm:$0xff] %vm2918, %v1575
  %3051 = vst.msk [vmem:[%s3 + $0x420] sm:$0xff] %vm2918, %v1580
  %3052 = vst.msk [vmem:[%s3 + $0x428] sm:$0xff] %vm2918, %v1585
  %3053 = vst.msk [vmem:[%s3 + $0x430] sm:$0xff] %vm2918, %v1590
  %3054 = vst.msk [vmem:[%s3 + $0x438] sm:$0xff] %vm2918, %v1595
  %3055 = vst.msk [vmem:[%s3 + $0x440] sm:$0xff] %vm2918, %v1600
  %3056 = vst.msk [vmem:[%s3 + $0x448] sm:$0xff] %vm2918, %v1605
  %3057 = vst.msk [vmem:[%s3 + $0x450] sm:$0xff] %vm2918, %v1610
  %3058 = vst.msk [vmem:[%s3 + $0x458] sm:$0xff] %vm2918, %v1615
  %3059 = vst.msk [vmem:[%s3 + $0x460] sm:$0xff] %vm2918, %v1620
  %3060 = vst.msk [vmem:[%s3 + $0x468] sm:$0xff] %vm2918, %v1625
  %3061 = vst.msk [vmem:[%s3 + $0x470] sm:$0xff] %vm2918, %v1630
  %3062 = vst.msk [vmem:[%s3 + $0x478] sm:$0xff] %vm2918, %v1635
  %3063 = vst.msk [vmem:[%s3 + $0x480] sm:$0xff] %vm2918, %v1640
  %3064 = vst.msk [vmem:[%s3 + $0x488] sm:$0xff] %vm2918, %v1645
  %3065 = vst.msk [vmem:[%s3 + $0x490] sm:$0xff] %vm2918, %v1650
  %3066 = vst.msk [vmem:[%s3 + $0x498] sm:$0xff] %vm2918, %v1655
  %3067 = vst.msk [vmem:[%s3 + $0x4a0] sm:$0xff] %vm2918, %v1660
  %3068 = vst.msk [vmem:[%s3 + $0x4a8] sm:$0xff] %vm2918, %v1665
  %3069 = vst.msk [vmem:[%s3 + $0x4b0] sm:$0xff] %vm2918, %v1670
  %3070 = vst.msk [vmem:[%s3 + $0x4b8] sm:$0xff] %vm2918, %v1675
  %3071 = vst.msk [vmem:[%s3 + $0x4c0] sm:$0xff] %vm2918, %v1680
  %3072 = vst.msk [vmem:[%s3 + $0x4c8] sm:$0xff] %vm2918, %v1685
  %3073 = vst.msk [vmem:[%s3 + $0x4d0] sm:$0xff] %vm2918, %v1690
  %3074 = vst.msk [vmem:[%s3 + $0x4d8] sm:$0xff] %vm2918, %v1695
  %3075 = vst.msk [vmem:[%s3 + $0x4e0] sm:$0xff] %vm2918, %v1700
  %3076 = vst.msk [vmem:[%s3 + $0x4e8] sm:$0xff] %vm2918, %v1705
  %3077 = vst.msk [vmem:[%s3 + $0x4f0] sm:$0xff] %vm2918, %v1710
  %3078 = vst.msk [vmem:[%s3 + $0x4f8] sm:$0xff] %vm2918, %v1715
  %3079 = vst.msk [vmem:[%s3 + $0x500] sm:$0xff] %vm2918, %v1720
  %3080 = vst.msk [vmem:[%s3 + $0x508] sm:$0xff] %vm2918, %v1725
  %3081 = vst.msk [vmem:[%s3 + $0x510] sm:$0xff] %vm2918, %v1730
  %3082 = vst.msk [vmem:[%s3 + $0x518] sm:$0xff] %vm2918, %v1735
  %3083 = vst.msk [vmem:[%s3 + $0x520] sm:$0xff] %vm2918, %v1740
  %3084 = vst.msk [vmem:[%s3 + $0x528] sm:$0xff] %vm2918, %v1745
  %3085 = vst.msk [vmem:[%s3 + $0x530] sm:$0xff] %vm2918, %v1750
  %3086 = vst.msk [vmem:[%s3 + $0x538] sm:$0xff] %vm2918, %v1755
  %3087 = vst.msk [vmem:[%s3 + $0x540] sm:$0xff] %vm2918, %v1760
  %3088 = vst.msk [vmem:[%s3 + $0x548] sm:$0xff] %vm2918, %v1765
  %3089 = vst.msk [vmem:[%s3 + $0x550] sm:$0xff] %vm2918, %v1770
  %3090 = vst.msk [vmem:[%s3 + $0x558] sm:$0xff] %vm2918, %v1775
  %3091 = vst.msk [vmem:[%s3 + $0x560] sm:$0xff] %vm2918, %v1780
  %3092 = vst.msk [vmem:[%s3 + $0x568] sm:$0xff] %vm2918, %v1785
  %3093 = vst.msk [vmem:[%s3 + $0x570] sm:$0xff] %vm2918, %v1790
  %3094 = vst.msk [vmem:[%s3 + $0x578] sm:$0xff] %vm2918, %v1795
  %3095 = vst.msk [vmem:[%s3 + $0x580] sm:$0xff] %vm2918, %v1800
  %3096 = vst.msk [vmem:[%s3 + $0x588] sm:$0xff] %vm2918, %v1805
  %3097 = vst.msk [vmem:[%s3 + $0x590] sm:$0xff] %vm2918, %v1810
  %3098 = vst.msk [vmem:[%s3 + $0x598] sm:$0xff] %vm2918, %v1815
  %3099 = vst.msk [vmem:[%s3 + $0x5a0] sm:$0xff] %vm2918, %v1820
  %3100 = vst.msk [vmem:[%s3 + $0x5a8] sm:$0xff] %vm2918, %v1825
  %3101 = vst.msk [vmem:[%s3 + $0x5b0] sm:$0xff] %vm2918, %v1830
  %3102 = vst.msk [vmem:[%s3 + $0x5b8] sm:$0xff] %vm2918, %v1835
  %3103 = vst.msk [vmem:[%s3 + $0x5c0] sm:$0xff] %vm2918, %v1840
  %3104 = vst.msk [vmem:[%s3 + $0x5c8] sm:$0xff] %vm2918, %v1845
  %3105 = vst.msk [vmem:[%s3 + $0x5d0] sm:$0xff] %vm2918, %v1850
  %3106 = vst.msk [vmem:[%s3 + $0x5d8] sm:$0xff] %vm2918, %v1855
  %3107 = vst.msk [vmem:[%s3 + $0x5e0] sm:$0xff] %vm2918, %v1860
  %3108 = vst.msk [vmem:[%s3 + $0x5e8] sm:$0xff] %vm2918, %v1865
  %3109 = vst.msk [vmem:[%s3 + $0x5f0] sm:$0xff] %vm2918, %v1870
  %3110 = vst.msk [vmem:[%s3 + $0x5f8] sm:$0xff] %vm2918, %v1875
  %3111 = vst.msk [vmem:[%s3 + $0x600] sm:$0xff] %vm2918, %v1880
  %3112 = vst.msk [vmem:[%s3 + $0x608] sm:$0xff] %vm2918, %v1885
  %3113 = vst.msk [vmem:[%s3 + $0x610] sm:$0xff] %vm2918, %v1890
  %3114 = vst.msk [vmem:[%s3 + $0x618] sm:$0xff] %vm2918, %v1895
  %3115 = vst.msk [vmem:[%s3 + $0x620] sm:$0xff] %vm2918, %v1900
  %3116 = vst.msk [vmem:[%s3 + $0x628] sm:$0xff] %vm2918, %v1905
  %3117 = vst.msk [vmem:[%s3 + $0x630] sm:$0xff] %vm2918, %v1910
  %3118 = vst.msk [vmem:[%s3 + $0x638] sm:$0xff] %vm2918, %v1915
  %3119 = vst.msk [vmem:[%s3 + $0x640] sm:$0xff] %vm2918, %v1920
  %3120 = vst.msk [vmem:[%s3 + $0x648] sm:$0xff] %vm2918, %v1925
  %3121 = vst.msk [vmem:[%s3 + $0x650] sm:$0xff] %vm2918, %v1930
  %3122 = vst.msk [vmem:[%s3 + $0x658] sm:$0xff] %vm2918, %v1935
  %3123 = vst.msk [vmem:[%s3 + $0x660] sm:$0xff] %vm2918, %v1940
  %3124 = vst.msk [vmem:[%s3 + $0x668] sm:$0xff] %vm2918, %v1945
  %3125 = vst.msk [vmem:[%s3 + $0x670] sm:$0xff] %vm2918, %v1950
  %3126 = vst.msk [vmem:[%s3 + $0x678] sm:$0xff] %vm2918, %v1955
  %3127 = vst.msk [vmem:[%s3 + $0x680] sm:$0xff] %vm2918, %v1960
  %3128 = vst.msk [vmem:[%s3 + $0x688] sm:$0xff] %vm2918, %v1965
  %3129 = vst.msk [vmem:[%s3 + $0x690] sm:$0xff] %vm2918, %v1970
  %3130 = vst.msk [vmem:[%s3 + $0x698] sm:$0xff] %vm2918, %v1975
  %3131 = vst.msk [vmem:[%s3 + $0x6a0] sm:$0xff] %vm2918, %v1980
  %3132 = vst.msk [vmem:[%s3 + $0x6a8] sm:$0xff] %vm2918, %v1985
  %3133 = vst.msk [vmem:[%s3 + $0x6b0] sm:$0xff] %vm2918, %v1990
  %3134 = vst.msk [vmem:[%s3 + $0x6b8] sm:$0xff] %vm2918, %v1995
  %3135 = vst.msk [vmem:[%s3 + $0x6c0] sm:$0xff] %vm2918, %v2000
  %3136 = vst.msk [vmem:[%s3 + $0x6c8] sm:$0xff] %vm2918, %v2005
  %3137 = vst.msk [vmem:[%s3 + $0x6d0] sm:$0xff] %vm2918, %v2010
  %3138 = vst.msk [vmem:[%s3 + $0x6d8] sm:$0xff] %vm2918, %v2015
  %3139 = vst.msk [vmem:[%s3 + $0x6e0] sm:$0xff] %vm2918, %v2020
  %3140 = vst.msk [vmem:[%s3 + $0x6e8] sm:$0xff] %vm2918, %v2025
  %3141 = vst.msk [vmem:[%s3 + $0x6f0] sm:$0xff] %vm2918, %v2030
  %3142 = vst.msk [vmem:[%s3 + $0x6f8] sm:$0xff] %vm2918, %v2035
  %3143 = vst.msk [vmem:[%s3 + $0x700] sm:$0xff] %vm2918, %v2040
  %3144 = vst.msk [vmem:[%s3 + $0x708] sm:$0xff] %vm2918, %v2045
  %3145 = vst.msk [vmem:[%s3 + $0x710] sm:$0xff] %vm2918, %v2050
  %3146 = vst.msk [vmem:[%s3 + $0x718] sm:$0xff] %vm2918, %v2055
  %3147 = vst.msk [vmem:[%s3 + $0x720] sm:$0xff] %vm2918, %v2060
  %3148 = vst.msk [vmem:[%s3 + $0x728] sm:$0xff] %vm2918, %v2065
  %3149 = vst.msk [vmem:[%s3 + $0x730] sm:$0xff] %vm2918, %v2070
  %3150 = vst.msk [vmem:[%s3 + $0x738] sm:$0xff] %vm2918, %v2075
  %3151 = vst.msk [vmem:[%s3 + $0x740] sm:$0xff] %vm2918, %v2080
  %3152 = vst.msk [vmem:[%s3 + $0x748] sm:$0xff] %vm2918, %v2085
  %3153 = vst.msk [vmem:[%s3 + $0x750] sm:$0xff] %vm2918, %v2090
  %3154 = vst.msk [vmem:[%s3 + $0x758] sm:$0xff] %vm2918, %v2095
  %3155 = vst.msk [vmem:[%s3 + $0x760] sm:$0xff] %vm2918, %v2100
  %3156 = vst.msk [vmem:[%s3 + $0x768] sm:$0xff] %vm2918, %v2105
  %3157 = vst.msk [vmem:[%s3 + $0x770] sm:$0xff] %vm2918, %v2110
  %3158 = vst.msk [vmem:[%s3 + $0x778] sm:$0xff] %vm2918, %v2115
  %3159 = vst.msk [vmem:[%s3 + $0x780] sm:$0xff] %vm2918, %v2120
  %3160 = vst.msk [vmem:[%s3 + $0x788] sm:$0xff] %vm2918, %v2125
  %3161 = vst.msk [vmem:[%s3 + $0x790] sm:$0xff] %vm2918, %v2130
  %3162 = vst.msk [vmem:[%s3 + $0x798] sm:$0xff] %vm2918, %v2135
  %3163 = vst.msk [vmem:[%s3 + $0x7a0] sm:$0xff] %vm2918, %v2140
  %3164 = vst.msk [vmem:[%s3 + $0x7a8] sm:$0xff] %vm2918, %v2145
  %3165 = vst.msk [vmem:[%s3 + $0x7b0] sm:$0xff] %vm2918, %v2150
  %3166 = vst.msk [vmem:[%s3 + $0x7b8] sm:$0xff] %vm2918, %v2155
  %3167 = vst.msk [vmem:[%s3 + $0x7c0] sm:$0xff] %vm2918, %v2160
  %3168 = vst.msk [vmem:[%s3 + $0x7c8] sm:$0xff] %vm2918, %v2165
  %3169 = vst.msk [vmem:[%s3 + $0x7d0] sm:$0xff] %vm2918, %v2170
  %3170 = vst.msk [vmem:[%s3 + $0x7d8] sm:$0xff] %vm2918, %v2175
  %3171 = vst.msk [vmem:[%s3 + $0x7e0] sm:$0xff] %vm2918, %v2180
  %3172 = vst.msk [vmem:[%s3 + $0x7e8] sm:$0xff] %vm2918, %v2185
  %3173 = vst.msk [vmem:[%s3 + $0x7f0] sm:$0xff] %vm2918, %v2190
  %3174 = vst.msk [vmem:[%s3 + $0x7f8] sm:$0xff] %vm2918, %v2195
  %3175 = vst.msk [vmem:[%s3 + $0x800] sm:$0xff] %vm2918, %v2200
  %3176 = vst.msk [vmem:[%s3 + $0x808] sm:$0xff] %vm2918, %v2205
  %3177 = vst.msk [vmem:[%s3 + $0x810] sm:$0xff] %vm2918, %v2210
  %3178 = vst.msk [vmem:[%s3 + $0x818] sm:$0xff] %vm2918, %v2215
  %3179 = vst.msk [vmem:[%s3 + $0x820] sm:$0xff] %vm2918, %v2220
  %3180 = vst.msk [vmem:[%s3 + $0x828] sm:$0xff] %vm2918, %v2225
  %3181 = vst.msk [vmem:[%s3 + $0x830] sm:$0xff] %vm2918, %v2230
  %3182 = vst.msk [vmem:[%s3 + $0x838] sm:$0xff] %vm2918, %v2235
  %3183 = vst.msk [vmem:[%s3 + $0x840] sm:$0xff] %vm2918, %v2240
  %3184 = vst.msk [vmem:[%s3 + $0x848] sm:$0xff] %vm2918, %v2245
  %3185 = vst.msk [vmem:[%s3 + $0x850] sm:$0xff] %vm2918, %v2250
  %3186 = vst.msk [vmem:[%s3 + $0x858] sm:$0xff] %vm2918, %v2255
  %3187 = vst.msk [vmem:[%s3 + $0x860] sm:$0xff] %vm2918, %v2260
  %3188 = vst.msk [vmem:[%s3 + $0x868] sm:$0xff] %vm2918, %v2265
  %3189 = vst.msk [vmem:[%s3 + $0x870] sm:$0xff] %vm2918, %v2270
  %3190 = vst.msk [vmem:[%s3 + $0x878] sm:$0xff] %vm2918, %v2275
  %3191 = vst.msk [vmem:[%s3 + $0x880] sm:$0xff] %vm2918, %v2280
  %3192 = vst.msk [vmem:[%s3 + $0x888] sm:$0xff] %vm2918, %v2285
  %3193 = vst.msk [vmem:[%s3 + $0x890] sm:$0xff] %vm2918, %v2290
  %3194 = vst.msk [vmem:[%s3 + $0x898] sm:$0xff] %vm2918, %v2295
  %3195 = vst.msk [vmem:[%s3 + $0x8a0] sm:$0xff] %vm2918, %v2300
  %3196 = vst.msk [vmem:[%s3 + $0x8a8] sm:$0xff] %vm2918, %v2305
  %3197 = vst.msk [vmem:[%s3 + $0x8b0] sm:$0xff] %vm2918, %v2310
  %3198 = vst.msk [vmem:[%s3 + $0x8b8] sm:$0xff] %vm2918, %v2315
  %3199 = vst.msk [vmem:[%s3 + $0x8c0] sm:$0xff] %vm2918, %v2320
  %3200 = vst.msk [vmem:[%s3 + $0x8c8] sm:$0xff] %vm2918, %v2325
  %3201 = vst.msk [vmem:[%s3 + $0x8d0] sm:$0xff] %vm2918, %v2330
  %3202 = vst.msk [vmem:[%s3 + $0x8d8] sm:$0xff] %vm2918, %v2335
  %3203 = vst.msk [vmem:[%s3 + $0x8e0] sm:$0xff] %vm2918, %v2340
  %3204 = vst.msk [vmem:[%s3 + $0x8e8] sm:$0xff] %vm2918, %v2345
  %3205 = vst.msk [vmem:[%s3 + $0x8f0] sm:$0xff] %vm2918, %v2350
  %3206 = vst.msk [vmem:[%s3 + $0x8f8] sm:$0xff] %vm2918, %v2355
  %3207 = vst.msk [vmem:[%s3 + $0x900] sm:$0xff] %vm2918, %v2360
  %3208 = vst.msk [vmem:[%s3 + $0x908] sm:$0xff] %vm2918, %v2365
  %3209 = vst.msk [vmem:[%s3 + $0x910] sm:$0xff] %vm2918, %v2370
  %3210 = vst.msk [vmem:[%s3 + $0x918] sm:$0xff] %vm2918, %v2375
  %3211 = vst.msk [vmem:[%s3 + $0x920] sm:$0xff] %vm2918, %v2380
  %3212 = vst.msk [vmem:[%s3 + $0x928] sm:$0xff] %vm2918, %v2385
  %3213 = vst.msk [vmem:[%s3 + $0x930] sm:$0xff] %vm2918, %v2390
  %3214 = vst.msk [vmem:[%s3 + $0x938] sm:$0xff] %vm2918, %v2395
  %3215 = vst.msk [vmem:[%s3 + $0x940] sm:$0xff] %vm2918, %v2400
  %3216 = vst.msk [vmem:[%s3 + $0x948] sm:$0xff] %vm2918, %v2405
  %3217 = vst.msk [vmem:[%s3 + $0x950] sm:$0xff] %vm2918, %v2410
  %3218 = vst.msk [vmem:[%s3 + $0x958] sm:$0xff] %vm2918, %v2415
  %3219 = vst.msk [vmem:[%s3 + $0x960] sm:$0xff] %vm2918, %v2420
  %3220 = vst.msk [vmem:[%s3 + $0x968] sm:$0xff] %vm2918, %v2425
  %3221 = vst.msk [vmem:[%s3 + $0x970] sm:$0xff] %vm2918, %v2430
  %3222 = vst.msk [vmem:[%s3 + $0x978] sm:$0xff] %vm2918, %v2435
  %3223 = vst.msk [vmem:[%s3 + $0x980] sm:$0xff] %vm2918, %v2440
  %3224 = vst.msk [vmem:[%s3 + $0x988] sm:$0xff] %vm2918, %v2445
  %3225 = vst.msk [vmem:[%s3 + $0x990] sm:$0xff] %vm2918, %v2450
  %3226 = vst.msk [vmem:[%s3 + $0x998] sm:$0xff] %vm2918, %v2455
  %3227 = vst.msk [vmem:[%s3 + $0x9a0] sm:$0xff] %vm2918, %v2460
  %3228 = vst.msk [vmem:[%s3 + $0x9a8] sm:$0xff] %vm2918, %v2465
  %3229 = vst.msk [vmem:[%s3 + $0x9b0] sm:$0xff] %vm2918, %v2470
  %3230 = vst.msk [vmem:[%s3 + $0x9b8] sm:$0xff] %vm2918, %v2475
  %3231 = vst.msk [vmem:[%s3 + $0x9c0] sm:$0xff] %vm2918, %v2480
  %3232 = vst.msk [vmem:[%s3 + $0x9c8] sm:$0xff] %vm2918, %v2485
  %3233 = vst.msk [vmem:[%s3 + $0x9d0] sm:$0xff] %vm2918, %v2490
  %3234 = vst.msk [vmem:[%s3 + $0x9d8] sm:$0xff] %vm2918, %v2495
  %3235 = vst.msk [vmem:[%s3 + $0x9e0] sm:$0xff] %vm2918, %v2500
  %3236 = vst.msk [vmem:[%s3 + $0x9e8] sm:$0xff] %vm2918, %v2505
  %3237 = vst.msk [vmem:[%s3 + $0x9f0] sm:$0xff] %vm2918, %v2510
  %3238 = vst.msk [vmem:[%s3 + $0x9f8] sm:$0xff] %vm2918, %v2515
  %3239 = vst.msk [vmem:[%s3 + $0xa00] sm:$0xff] %vm2918, %v2520
  %3240 = vst.msk [vmem:[%s3 + $0xa08] sm:$0xff] %vm2918, %v2525
  %3241 = vst.msk [vmem:[%s3 + $0xa10] sm:$0xff] %vm2918, %v2530
  %3242 = vst.msk [vmem:[%s3 + $0xa18] sm:$0xff] %vm2918, %v2535
  %3243 = vst.msk [vmem:[%s3 + $0xa20] sm:$0xff] %vm2918, %v2540
  %3244 = vst.msk [vmem:[%s3 + $0xa28] sm:$0xff] %vm2918, %v2545
  %3245 = vst.msk [vmem:[%s3 + $0xa30] sm:$0xff] %vm2918, %v2550
  %3246 = vst.msk [vmem:[%s3 + $0xa38] sm:$0xff] %vm2918, %v2555
  %3247 = vst.msk [vmem:[%s3 + $0xa40] sm:$0xff] %vm2918, %v2560
  %3248 = vst.msk [vmem:[%s3 + $0xa48] sm:$0xff] %vm2918, %v2565
  %3249 = vst.msk [vmem:[%s3 + $0xa50] sm:$0xff] %vm2918, %v2570
  %3250 = vst.msk [vmem:[%s3 + $0xa58] sm:$0xff] %vm2918, %v2575
  %3251 = vst.msk [vmem:[%s3 + $0xa60] sm:$0xff] %vm2918, %v2580
  %3252 = vst.msk [vmem:[%s3 + $0xa68] sm:$0xff] %vm2918, %v2585
  %3253 = vst.msk [vmem:[%s3 + $0xa70] sm:$0xff] %vm2918, %v2590
  %3254 = vst.msk [vmem:[%s3 + $0xa78] sm:$0xff] %vm2918, %v2595
  %3255 = vst.msk [vmem:[%s3 + $0xa80] sm:$0xff] %vm2918, %v2600
  %3256 = vst.msk [vmem:[%s3 + $0xa88] sm:$0xff] %vm2918, %v2605
  %3257 = vst.msk [vmem:[%s3 + $0xa90] sm:$0xff] %vm2918, %v2610
  %3258 = vst.msk [vmem:[%s3 + $0xa98] sm:$0xff] %vm2918, %v2615
  %3259 = vst.msk [vmem:[%s3 + $0xaa0] sm:$0xff] %vm2918, %v2620
  %3260 = vst.msk [vmem:[%s3 + $0xaa8] sm:$0xff] %vm2918, %v2625
  %3261 = vst.msk [vmem:[%s3 + $0xab0] sm:$0xff] %vm2918, %v2630
  %3262 = vst.msk [vmem:[%s3 + $0xab8] sm:$0xff] %vm2918, %v2635
  %3263 = vst.msk [vmem:[%s3 + $0xac0] sm:$0xff] %vm2918, %v2640
  %3264 = vst.msk [vmem:[%s3 + $0xac8] sm:$0xff] %vm2918, %v2645
  %3265 = vst.msk [vmem:[%s3 + $0xad0] sm:$0xff] %vm2918, %v2650
  %3266 = vst.msk [vmem:[%s3 + $0xad8] sm:$0xff] %vm2918, %v2655
  %3267 = vst.msk [vmem:[%s3 + $0xae0] sm:$0xff] %vm2918, %v2660
  %3268 = vst.msk [vmem:[%s3 + $0xae8] sm:$0xff] %vm2918, %v2665
  %3269 = vst.msk [vmem:[%s3 + $0xaf0] sm:$0xff] %vm2918, %v2670
  %3270 = vst.msk [vmem:[%s3 + $0xaf8] sm:$0xff] %vm2918, %v2675
  %3271 = vst.msk [vmem:[%s3 + $0xb00] sm:$0xff] %vm2918, %v2680
  %3272 = vst.msk [vmem:[%s3 + $0xb08] sm:$0xff] %vm2918, %v2685
  %3273 = vst.msk [vmem:[%s3 + $0xb10] sm:$0xff] %vm2918, %v2690
  %3274 = vst.msk [vmem:[%s3 + $0xb18] sm:$0xff] %vm2918, %v2695
  %3275 = vst.msk [vmem:[%s3 + $0xb20] sm:$0xff] %vm2918, %v2700
  %3276 = vst.msk [vmem:[%s3 + $0xb28] sm:$0xff] %vm2918, %v2705
  %3277 = vst.msk [vmem:[%s3 + $0xb30] sm:$0xff] %vm2918, %v2710
  %3278 = vst.msk [vmem:[%s3 + $0xb38] sm:$0xff] %vm2918, %v2715
  %3279 = vst.msk [vmem:[%s3 + $0xb40] sm:$0xff] %vm2918, %v2720
  %3280 = vst.msk [vmem:[%s3 + $0xb48] sm:$0xff] %vm2918, %v2725
  %3281 = vst.msk [vmem:[%s3 + $0xb50] sm:$0xff] %vm2918, %v2730
  %3282 = vst.msk [vmem:[%s3 + $0xb58] sm:$0xff] %vm2918, %v2735
  %3283 = vst.msk [vmem:[%s3 + $0xb60] sm:$0xff] %vm2918, %v2740
  %3284 = vst.msk [vmem:[%s3 + $0xb68] sm:$0xff] %vm2918, %v2745
  %3285 = vst.msk [vmem:[%s3 + $0xb70] sm:$0xff] %vm2918, %v2750
  %3286 = vst.msk [vmem:[%s3 + $0xb78] sm:$0xff] %vm2918, %v2755
  %3287 = vst.msk [vmem:[%s3 + $0xb80] sm:$0xff] %vm2918, %v2760
  %3288 = vst.msk [vmem:[%s3 + $0xb88] sm:$0xff] %vm2918, %v2765
  %3289 = vst.msk [vmem:[%s3 + $0xb90] sm:$0xff] %vm2918, %v2770
  %3290 = vst.msk [vmem:[%s3 + $0xb98] sm:$0xff] %vm2918, %v2775
  %3291 = vst.msk [vmem:[%s3 + $0xba0] sm:$0xff] %vm2918, %v2780
  %3292 = vst.msk [vmem:[%s3 + $0xba8] sm:$0xff] %vm2918, %v2785
  %3293 = vst.msk [vmem:[%s3 + $0xbb0] sm:$0xff] %vm2918, %v2790
  %3294 = vst.msk [vmem:[%s3 + $0xbb8] sm:$0xff] %vm2918, %v2795
  %3295 = vst.msk [vmem:[%s3 + $0xbc0] sm:$0xff] %vm2918, %v2800
  %3296 = vst.msk [vmem:[%s3 + $0xbc8] sm:$0xff] %vm2918, %v2805
  %3297 = vst.msk [vmem:[%s3 + $0xbd0] sm:$0xff] %vm2918, %v2810
  %3298 = vst.msk [vmem:[%s3 + $0xbd8] sm:$0xff] %vm2918, %v2815
  %3299 = vst.msk [vmem:[%s3 + $0xbe0] sm:$0xff] %vm2918, %v2820
  %3300 = vst.msk [vmem:[%s3 + $0xbe8] sm:$0xff] %vm2918, %v2825
  %3301 = vst.msk [vmem:[%s3 + $0xbf0] sm:$0xff] %vm2918, %v2830
  %3302 = vst.msk [vmem:[%s3 + $0xbf8] sm:$0xff] %vm2918, %v2835
  %3303 = vst.msk [vmem:[%s3 + $0xc00] sm:$0xff] %vm2918, %v2840
  %3304 = vst.msk [vmem:[%s3 + $0xc08] sm:$0xff] %vm2918, %v2845
  %3305 = vst.msk [vmem:[%s3 + $0xc10] sm:$0xff] %vm2918, %v2850
  %3306 = vst.msk [vmem:[%s3 + $0xc18] sm:$0xff] %vm2918, %v2855
  %3307 = vst.msk [vmem:[%s3 + $0xc20] sm:$0xff] %vm2918, %v2860
  %3308 = vst.msk [vmem:[%s3 + $0xc28] sm:$0xff] %vm2918, %v2865
  %3309 = vst.msk [vmem:[%s3 + $0xc30] sm:$0xff] %vm2918, %v2870
  %3310 = vst.msk [vmem:[%s3 + $0xc38] sm:$0xff] %vm2918, %v2875
  %3311 = vst.msk [vmem:[%s3 + $0xc40] sm:$0xff] %vm2918, %v2880
  %3312 = vst.msk [vmem:[%s3 + $0xc48] sm:$0xff] %vm2918, %v2885
  %3313 = vst.msk [vmem:[%s3 + $0xc50] sm:$0xff] %vm2918, %v2890
  %3314 = vst.msk [vmem:[%s3 + $0xc58] sm:$0xff] %vm2918, %v2895
  %3315 = vst.msk [vmem:[%s3 + $0xc60] sm:$0xff] %vm2918, %v2900
  %3316 = vst.msk [vmem:[%s3 + $0xc68] sm:$0xff] %vm2918, %v2905
  %3317 = vst.msk [vmem:[%s3 + $0xc70] sm:$0xff] %vm2918, %v2910
  %3318 = vst.msk [vmem:[%s3 + $0xc78] sm:$0xff] %vm2918, %v2915
  // Predicated region
  $region14: #{dae_forward.15} parent=0 // pred_check
    _
  $region15: #{dae_forward.15} parent=0 // pred_check_branch
    %3320 = sbr.rel (0) target = $region17
  $region16: #{dae_forward.15} parent=0 // pred_region
    _
  $region17: #{dae_forward.15} parent=0 // pred_fallthru
    _
  // Predicated region
  $region18: #{dae_forward.15} parent=0 // pred_check
    _
  $region19: #{dae_forward.15} parent=0 // pred_check_branch
    %3322 = sbr.rel (0) target = $region21
  $region20: #{dae_forward.15} parent=0 // pred_region
    _
  $region21: #{dae_forward.15} parent=0 // pred_fallthru
    _

</llo_original>
